<compile_context>
chip_gen: v7x
topology: tpu7x:2x2x1
jax: 0.10.0
libtpu: 0.0.40
codegen_flags: <defaults>
</compile_context>

<pallas_src>
import numpy as np
import jax
import jax.numpy as jnp
from jax import lax
from jax.experimental import pallas as pl
from jax.experimental.pallas import tpu as pltpu

_INV_SQRT2 = np.float32(1.0 / np.sqrt(2.0))


def _gelu(x):
    # exact (erf-based) GELU, matching torch.nn.functional.gelu's default
    return 0.5 * x * (1.0 + lax.erf(x * _INV_SQRT2))


def _bdot(a, b):
    # leading-batch stacked matmul: (G, P, K) @ (G, K, Q) -> (G, P, Q), f32 acc
    return lax.dot_general(a, b, (((2,), (1,)), ((0,), (0,))),
                           preferred_element_type=jnp.float32)


def fno1d_kernel(u_ref, w0u_ref, c0_ref, wr_ref, wi_ref, cw_ref, cb_ref,
                 fdft_ref, idft_ref, fc1w_ref, fc1b_ref, fc2w_ref, fc2b_ref,
                 out_ref):
    """One grid step == one block of Bt batch elements; weights fully in VMEM."""
    L = wr_ref.shape[0]           # number of spectral blocks (4)
    M = wr_ref.shape[1]           # kept Fourier modes
    W = wr_ref.shape[3]           # channel width
    Bt, N, _ = u_ref.shape        # batch block, spatial points
    H = fc1w_ref.shape[1]         # fc1 hidden size (128)

    # ---- fc0 as broadcast-multiply + constant grid image (no K=2 matmul) ----
    u3 = u_ref[...]                                                 # (Bt, N, 1)
    h = u3 * w0u_ref[...][None, :, :] + c0_ref[...][None, :, :]     # (Bt, N, W)

    # Fused DFT matrices, broadcast over the batch block once (hoisted).
    Fb = jnp.broadcast_to(fdft_ref[...][None], (Bt, 2 * M, N))      # (Bt,2M,N)
    Ib = jnp.broadcast_to(idft_ref[...][None], (Bt, N, 2 * M))      # (Bt,N,2M)

    for l in range(L):
        # ---- spectral conv: fused truncated rfft (one batched matmul) ------
        xf = _bdot(Fb, h)                           # (Bt, 2M, W): [Re ; Im]
        xf_km = pltpu.einshape("bkw->kbw", xf)      # (2M, Bt, W), lane dim kept
        xr = xf_km[:M]                              # (M, Bt, W)
        xi = xf_km[M:]                              # (M, Bt, W)

        # per-mode complex channel mixing as mode-batched MXU matmuls
        wr_l = wr_ref[l]                            # (M, W, W)  Re(weights1)
        wi_l = wi_ref[l]                            # (M, W, W)  Im(weights1)
        outr = _bdot(xr, wr_l) - _bdot(xi, wi_l)    # (M, Bt, W)
        outi = _bdot(xr, wi_l) + _bdot(xi, wr_l)    # (M, Bt, W)
        out_km = jnp.concatenate([outr, outi], axis=0)   # (2M, Bt, W)
        out_bm = pltpu.einshape("kbw->bkw", out_km)      # (Bt, 2M, W)

        # fused truncated irfft (one batched matmul)
        y1 = _bdot(Ib, out_bm)                      # (Bt, N, W)

        # ---- 1x1 conv (pointwise channel mix) on Bt*N rows ------------------
        hf = h.reshape(Bt * N, W)
        y2 = jnp.dot(hf, cw_ref[l], preferred_element_type=jnp.float32) + cb_ref[l]
        h = y1 + y2.reshape(Bt, N, W)
        if l < L - 1:                               # no GELU after last block
            h = _gelu(h)

    # ---- fc1 -> gelu -> fc2 (fc2 as lane reduction -> lane-dense output) ----
    hf = h.reshape(Bt * N, W)
    z = _gelu(jnp.dot(hf, fc1w_ref[...], preferred_element_type=jnp.float32)
              + fc1b_ref[...])                      # (Bt*N, H)
    z3 = z.reshape(Bt, N, H)
    out_ref[...] = (jnp.sum(z3 * fc2w_ref[...][None, :, :], axis=-1)
                    + fc2b_ref[...])                # (Bt, N)


def _const_index_map(ndim):
    if ndim == 2:
        return lambda b: (0, 0)
    if ndim == 3:
        return lambda b: (0, 0, 0)
    return lambda b: (0, 0, 0, 0)


def _pick_batch_block(B, N):
    """Pick Bt: divides B, legal as (Bt, N) output block (Bt == B or Bt % 8 == 0),
    and Bt*N reasonably MXU-friendly."""
    cands = [d for d in range(1, B + 1)
             if B % d == 0 and (d == B or d % 8 == 0)]
    for d in sorted(cands):
        if d * N >= 256:
            return d
    return B


def fno1d_pro_forward(x, params, modes):
    """x: (B, N, 1) float32 -> (B, N, 1) float32."""
    B, N, _ = x.shape
    M = modes
    Bt = _pick_batch_block(B, N)

    # ---- glue: fold grid feature + fc0 bias into a constant (N, W) image ----
    gridx = jnp.linspace(0.0, 1.0, N, dtype=jnp.float32)[:, None]     # (N, 1)
    c0 = gridx * params["fc0_w"][1:2, :] + params["fc0_b"]            # (N, W)
    w_u = params["fc0_w"][0:1, :]                                     # (1, W)

    # ---- glue: fused DFT matrices for truncated rfft / irfft ----------------
    k = np.arange(M)[:, None]
    n = np.arange(N)[None, :]
    ang = 2.0 * np.pi * k * n / N                                     # (M, N)
    fcos = np.cos(ang)
    fsin = -np.sin(ang)
    factor = np.where(
        (k[:, 0] == 0) | ((N % 2 == 0) & (k[:, 0] == N // 2)), 1.0, 2.0)
    icos = np.cos(ang).T * (factor / N)
    isin = -np.sin(ang).T * (factor / N)
    fdft = jnp.asarray(np.concatenate([fcos, fsin], axis=0), dtype=jnp.float32)   # (2M, N)
    idft = jnp.asarray(np.concatenate([icos, isin], axis=1), dtype=jnp.float32)   # (N, 2M)

    fc2_wT = params["fc2_w"].T                                        # (1, 128)

    args = (x.astype(jnp.float32),                                    # (B, N, 1)
            w_u, c0,
            params["wr"], params["wi"], params["cw"], params["cb"],
            fdft, idft,
            params["fc1_w"], params["fc1_b"], fc2_wT, params["fc2_b"])

    in_specs = [pl.BlockSpec((Bt, N, 1), lambda b: (b, 0, 0))]
    in_specs += [pl.BlockSpec(a.shape, _const_index_map(a.ndim)) for a in args[1:]]
    out_spec = pl.BlockSpec((Bt, N), lambda b: (b, 0))

    out2d = pl.pallas_call(
        fno1d_kernel,
        out_shape=jax.ShapeDtypeStruct((B, N), jnp.float32),
        grid=(B // Bt,),
        in_specs=in_specs,
        out_specs=out_spec,
        compiler_params=pltpu.CompilerParams(dimension_semantics=("parallel",)),
    )(*args)
    return out2d.reshape(B, N, 1)


def init_params(key, width, modes, num_layers=4):
    """Deterministic synthetic parameters with the same shapes as the module."""
    W, M = width, modes
    keys = jax.random.split(key, 10)

    def xavier(k, shape, fan_in, fan_out):
        std = np.sqrt(2.0 / (fan_in + fan_out))
        return (std * jax.random.normal(k, shape)).astype(jnp.float32)

    spec_scale = np.float32(np.sqrt(2.0 / (W + W)))
    return {
        # fc0: Linear(2, W), stored transposed as (in, out)
        "fc0_w": xavier(keys[0], (2, W), 2, W),
        "fc0_b": (0.01 * jax.random.normal(keys[1], (1, W))).astype(jnp.float32),
        # SpectralConv weights: complex (in, out, M) -> real/imag, layout [layer, mode, in, out]
        "wr": (spec_scale * jax.random.uniform(keys[2], (num_layers, M, W, W))).astype(jnp.float32),
        "wi": (spec_scale * jax.random.uniform(keys[3], (num_layers, M, W, W))).astype(jnp.float32),
        # 1x1 Conv1d weights (out, in, 1) -> stored as [layer, in, out]; bias [layer, 1, out]
        "cw": xavier(keys[4], (num_layers, W, W), W, W),
        "cb": (0.01 * jax.random.normal(keys[5], (num_layers, 1, W))).astype(jnp.float32),
        # fc1: Linear(W, 128), fc2: Linear(128, 1), stored as (in, out)
        "fc1_w": xavier(keys[6], (W, 128), W, 128),
        "fc1_b": (0.01 * jax.random.normal(keys[7], (1, 128))).astype(jnp.float32),
        "fc2_w": xavier(keys[8], (128, 1), 128, 1),
        "fc2_b": (0.01 * jax.random.normal(keys[9], (1, 1))).astype(jnp.float32),
    }


def fno1d_reference(x, params, modes):
    """Pure-JAX reference mirroring the PyTorch forward (uses jnp.fft)."""
    B, N, _ = x.shape
    gridx = jnp.broadcast_to(
        jnp.linspace(0.0, 1.0, N, dtype=jnp.float32).reshape(1, N, 1), (B, N, 1))
    h = jnp.concatenate([x, gridx], axis=-1) @ params["fc0_w"] + params["fc0_b"][0]
    h = jnp.transpose(h, (0, 2, 1))                                    # (B, W, N) channels-first
    L = params["wr"].shape[0]
    for l in range(L):
        w = (params["wr"][l] + 1j * params["wi"][l]).transpose(1, 2, 0)  # (in, out, mode)
        x_ft = jnp.fft.rfft(h, axis=-1)
        out_ft = jnp.zeros((B, h.shape[1], N // 2 + 1), dtype=jnp.complex64)
        out_ft = out_ft.at[:, :, :modes].set(
            jnp.einsum("bix,iox->box", x_ft[:, :, :modes], w))
        x1 = jnp.fft.irfft(out_ft, n=N, axis=-1)
        x2 = jnp.einsum("io,bin->bon", params["cw"][l], h) + params["cb"][l][0][None, :, None]
        h = x1 + x2
        if l < L - 1:
            h = jax.nn.gelu(h, approximate=False)
    h = jnp.transpose(h, (0, 2, 1))
    z = jax.nn.gelu(h @ params["fc1_w"] + params["fc1_b"][0], approximate=False)
    return z @ params["fc2_w"] + params["fc2_b"][0]


if __name__ == "__main__":
    B, N, width, modes = 2, 16, 32, 4          # small shapes consistent with the module
    key = jax.random.PRNGKey(0)
    k_param, k_x = jax.random.split(key)
    params = init_params(k_param, width, modes)
    x = jax.random.normal(k_x, (B, N, 1), dtype=jnp.float32)

    out = fno1d_pro_forward(x, params, modes)
    out = jax.block_until_ready(out)

    ref = fno1d_reference(x, params, modes)
    assert out.shape == (B, N, 1)
    max_err = float(jnp.max(jnp.abs(out - ref)))
    assert max_err < 2e-2, f"mismatch vs reference: max abs err = {max_err}"
    print("KERNEL_OK")
</pallas_src>

<mosaic_0001>
module attributes {stable_mosaic.version = 11 : i64} {
  func.func @fno1d_kernel(%arg0: i32, %arg1: memref<2x16x1xf32, #tpu.memory_space<vmem>>, %arg2: memref<1x32xf32, #tpu.memory_space<vmem>>, %arg3: memref<16x32xf32, #tpu.memory_space<vmem>>, %arg4: memref<4x4x32x32xf32, #tpu.memory_space<vmem>>, %arg5: memref<4x4x32x32xf32, #tpu.memory_space<vmem>>, %arg6: memref<4x32x32xf32, #tpu.memory_space<vmem>>, %arg7: memref<4x1x32xf32, #tpu.memory_space<vmem>>, %arg8: memref<8x16xf32, #tpu.memory_space<vmem>>, %arg9: memref<16x8xf32, #tpu.memory_space<vmem>>, %arg10: memref<32x128xf32, #tpu.memory_space<vmem>>, %arg11: memref<1x128xf32, #tpu.memory_space<vmem>>, %arg12: memref<1x128xf32, #tpu.memory_space<vmem>>, %arg13: memref<1x1xf32, #tpu.memory_space<vmem>>, %arg14: memref<2x16xf32, #tpu.memory_space<vmem>>) attributes {dimension_semantics = [#tpu.dimension_semantics<parallel>], iteration_bounds = array<i64: 1>, scalar_prefetch = 0 : i64, scratch_operands = 0 : i64, tpu.core_type = #tpu.core_type<tc>, window_params = [{transform_indices = @transform_0, window_bounds = array<i64: 2, 16, 1>}, {pipeline_mode = #tpu.pipeline_mode<synchronous>, transform_indices = @transform_1, window_bounds = array<i64: 1, 32>}, {pipeline_mode = #tpu.pipeline_mode<synchronous>, transform_indices = @transform_2, window_bounds = array<i64: 16, 32>}, {pipeline_mode = #tpu.pipeline_mode<synchronous>, transform_indices = @transform_3, window_bounds = array<i64: 4, 4, 32, 32>}, {pipeline_mode = #tpu.pipeline_mode<synchronous>, transform_indices = @transform_4, window_bounds = array<i64: 4, 4, 32, 32>}, {pipeline_mode = #tpu.pipeline_mode<synchronous>, transform_indices = @transform_5, window_bounds = array<i64: 4, 32, 32>}, {pipeline_mode = #tpu.pipeline_mode<synchronous>, transform_indices = @transform_6, window_bounds = array<i64: 4, 1, 32>}, {pipeline_mode = #tpu.pipeline_mode<synchronous>, transform_indices = @transform_7, window_bounds = array<i64: 8, 16>}, {pipeline_mode = #tpu.pipeline_mode<synchronous>, transform_indices = @transform_8, window_bounds = array<i64: 16, 8>}, {pipeline_mode = #tpu.pipeline_mode<synchronous>, transform_indices = @transform_9, window_bounds = array<i64: 32, 128>}, {pipeline_mode = #tpu.pipeline_mode<synchronous>, transform_indices = @transform_10, window_bounds = array<i64: 1, 128>}, {pipeline_mode = #tpu.pipeline_mode<synchronous>, transform_indices = @transform_11, window_bounds = array<i64: 1, 128>}, {pipeline_mode = #tpu.pipeline_mode<synchronous>, transform_indices = @transform_12, window_bounds = array<i64: 1, 1>}, {transform_indices = @transform_13, window_bounds = array<i64: 2, 16>}]} {
    %c0 = arith.constant 0 : index
    %c0_0 = arith.constant 0 : index
    %c0_1 = arith.constant 0 : index
    %0 = vector.load %arg1[%c0, %c0_0, %c0_1] : memref<2x16x1xf32, #tpu.memory_space<vmem>>, vector<2x16x1xf32>
    %c0_2 = arith.constant 0 : index
    %c0_3 = arith.constant 0 : index
    %1 = vector.load %arg2[%c0_2, %c0_3] : memref<1x32xf32, #tpu.memory_space<vmem>>, vector<1x32xf32>
    %2 = vector.shape_cast %1 : vector<1x32xf32> to vector<1x1x32xf32>
    %3 = vector.broadcast %0 : vector<2x16x1xf32> to vector<2x16x32xf32>
    %4 = vector.broadcast %2 : vector<1x1x32xf32> to vector<2x16x32xf32>
    %5 = arith.mulf %3, %4 : vector<2x16x32xf32>
    %c0_4 = arith.constant 0 : index
    %c0_5 = arith.constant 0 : index
    %6 = vector.load %arg3[%c0_4, %c0_5] : memref<16x32xf32, #tpu.memory_space<vmem>>, vector<16x32xf32>
    %7 = vector.shape_cast %6 : vector<16x32xf32> to vector<1x16x32xf32>
    %8 = vector.broadcast %7 : vector<1x16x32xf32> to vector<2x16x32xf32>
    %9 = arith.addf %5, %8 : vector<2x16x32xf32>
    %c0_6 = arith.constant 0 : index
    %c0_7 = arith.constant 0 : index
    %10 = vector.load %arg8[%c0_6, %c0_7] : memref<8x16xf32, #tpu.memory_space<vmem>>, vector<8x16xf32>
    %11 = vector.shape_cast %10 : vector<8x16xf32> to vector<1x8x16xf32>
    %12 = vector.shape_cast %11 : vector<1x8x16xf32> to vector<1x8x16xf32>
    %13 = vector.broadcast %12 : vector<1x8x16xf32> to vector<2x8x16xf32>
    %c0_8 = arith.constant 0 : index
    %c0_9 = arith.constant 0 : index
    %14 = vector.load %arg9[%c0_8, %c0_9] : memref<16x8xf32, #tpu.memory_space<vmem>>, vector<16x8xf32>
    %15 = vector.shape_cast %14 : vector<16x8xf32> to vector<1x16x8xf32>
    %16 = vector.shape_cast %15 : vector<1x16x8xf32> to vector<1x16x8xf32>
    %17 = vector.broadcast %16 : vector<1x16x8xf32> to vector<2x16x8xf32>
    %cst = arith.constant dense<0.000000e+00> : vector<2x8x32xf32>
    %18 = tpu.matmul %13, %9, %cst {dimension_numbers = #tpu.dot_dimension_numbers<[2], [1], [1], [2], [0, 0, 0, 1, 1, 2], [0], [0]>} : vector<2x8x16xf32>, vector<2x16x32xf32>, vector<2x8x32xf32> -> vector<2x8x32xf32>
    %19 = tpu.transpose %18, [1, 0, 2] : vector<2x8x32xf32> -> vector<8x2x32xf32>
    %20 = vector.extract_strided_slice %19 {offsets = [0, 0, 0], sizes = [4, 2, 32], strides = [1, 1, 1]} : vector<8x2x32xf32> to vector<4x2x32xf32>
    %21 = vector.extract_strided_slice %19 {offsets = [4, 0, 0], sizes = [4, 2, 32], strides = [1, 1, 1]} : vector<8x2x32xf32> to vector<4x2x32xf32>
    %c0_10 = arith.constant 0 : index
    %c0_11 = arith.constant 0 : index
    %c0_12 = arith.constant 0 : index
    %c0_13 = arith.constant 0 : index
    %22 = vector.load %arg4[%c0_10, %c0_11, %c0_12, %c0_13] : memref<4x4x32x32xf32, #tpu.memory_space<vmem>>, vector<1x4x32x32xf32>
    %23 = vector.shape_cast %22 : vector<1x4x32x32xf32> to vector<4x32x32xf32>
    %c0_14 = arith.constant 0 : index
    %c0_15 = arith.constant 0 : index
    %c0_16 = arith.constant 0 : index
    %c0_17 = arith.constant 0 : index
    %24 = vector.load %arg5[%c0_14, %c0_15, %c0_16, %c0_17] : memref<4x4x32x32xf32, #tpu.memory_space<vmem>>, vector<1x4x32x32xf32>
    %25 = vector.shape_cast %24 : vector<1x4x32x32xf32> to vector<4x32x32xf32>
    %cst_18 = arith.constant dense<0.000000e+00> : vector<4x2x32xf32>
    %26 = tpu.matmul %20, %23, %cst_18 {dimension_numbers = #tpu.dot_dimension_numbers<[2], [1], [1], [2], [0, 0, 0, 1, 1, 2], [0], [0]>} : vector<4x2x32xf32>, vector<4x32x32xf32>, vector<4x2x32xf32> -> vector<4x2x32xf32>
    %cst_19 = arith.constant dense<0.000000e+00> : vector<4x2x32xf32>
    %27 = tpu.matmul %21, %25, %cst_19 {dimension_numbers = #tpu.dot_dimension_numbers<[2], [1], [1], [2], [0, 0, 0, 1, 1, 2], [0], [0]>} : vector<4x2x32xf32>, vector<4x32x32xf32>, vector<4x2x32xf32> -> vector<4x2x32xf32>
    %28 = arith.subf %26, %27 : vector<4x2x32xf32>
    %cst_20 = arith.constant dense<0.000000e+00> : vector<4x2x32xf32>
    %29 = tpu.matmul %20, %25, %cst_20 {dimension_numbers = #tpu.dot_dimension_numbers<[2], [1], [1], [2], [0, 0, 0, 1, 1, 2], [0], [0]>} : vector<4x2x32xf32>, vector<4x32x32xf32>, vector<4x2x32xf32> -> vector<4x2x32xf32>
    %cst_21 = arith.constant dense<0.000000e+00> : vector<4x2x32xf32>
    %30 = tpu.matmul %21, %23, %cst_21 {dimension_numbers = #tpu.dot_dimension_numbers<[2], [1], [1], [2], [0, 0, 0, 1, 1, 2], [0], [0]>} : vector<4x2x32xf32>, vector<4x32x32xf32>, vector<4x2x32xf32> -> vector<4x2x32xf32>
    %31 = arith.addf %29, %30 : vector<4x2x32xf32>
    %32 = tpu.concatenate %28, %31 in 0 : vector<4x2x32xf32>, vector<4x2x32xf32> -> vector<8x2x32xf32>
    %33 = tpu.transpose %32, [1, 0, 2] : vector<8x2x32xf32> -> vector<2x8x32xf32>
    %cst_22 = arith.constant dense<0.000000e+00> : vector<2x16x32xf32>
    %34 = tpu.matmul %17, %33, %cst_22 {dimension_numbers = #tpu.dot_dimension_numbers<[2], [1], [1], [2], [0, 0, 0, 1, 1, 2], [0], [0]>} : vector<2x16x8xf32>, vector<2x8x32xf32>, vector<2x16x32xf32> -> vector<2x16x32xf32>
    %35 = vector.shape_cast %9 : vector<2x16x32xf32> to vector<32x32xf32>
    %c0_23 = arith.constant 0 : index
    %c0_24 = arith.constant 0 : index
    %c0_25 = arith.constant 0 : index
    %36 = vector.load %arg6[%c0_23, %c0_24, %c0_25] : memref<4x32x32xf32, #tpu.memory_space<vmem>>, vector<1x32x32xf32>
    %37 = vector.shape_cast %36 : vector<1x32x32xf32> to vector<32x32xf32>
    %cst_26 = arith.constant dense<0.000000e+00> : vector<32x32xf32>
    %38 = tpu.matmul %35, %37, %cst_26 {dimension_numbers = #tpu.dot_dimension_numbers<[1], [0], [0], [1], [0, 0, 1, 1], [], []>} : vector<32x32xf32>, vector<32x32xf32>, vector<32x32xf32> -> vector<32x32xf32>
    %c0_27 = arith.constant 0 : index
    %c0_28 = arith.constant 0 : index
    %c0_29 = arith.constant 0 : index
    %39 = vector.load %arg7[%c0_27, %c0_28, %c0_29] : memref<4x1x32xf32, #tpu.memory_space<vmem>>, vector<1x1x32xf32>
    %40 = vector.shape_cast %39 : vector<1x1x32xf32> to vector<1x32xf32>
    %41 = vector.broadcast %40 : vector<1x32xf32> to vector<32x32xf32>
    %42 = arith.addf %38, %41 : vector<32x32xf32>
    %43 = vector.shape_cast %42 : vector<32x32xf32> to vector<2x16x32xf32>
    %44 = arith.addf %34, %43 : vector<2x16x32xf32>
    %cst_30 = arith.constant 5.000000e-01 : f32
    %45 = vector.broadcast %cst_30 : f32 to vector<2x16x32xf32>
    %46 = arith.mulf %45, %44 : vector<2x16x32xf32>
    %cst_31 = arith.constant 0.707106769 : f32
    %47 = vector.broadcast %cst_31 : f32 to vector<2x16x32xf32>
    %48 = arith.mulf %44, %47 : vector<2x16x32xf32>
    %49 = math.erf %48 : vector<2x16x32xf32>
    %cst_32 = arith.constant 1.000000e+00 : f32
    %50 = vector.broadcast %cst_32 : f32 to vector<2x16x32xf32>
    %51 = arith.addf %50, %49 : vector<2x16x32xf32>
    %52 = arith.mulf %46, %51 : vector<2x16x32xf32>
    %cst_33 = arith.constant dense<0.000000e+00> : vector<2x8x32xf32>
    %53 = tpu.matmul %13, %52, %cst_33 {dimension_numbers = #tpu.dot_dimension_numbers<[2], [1], [1], [2], [0, 0, 0, 1, 1, 2], [0], [0]>} : vector<2x8x16xf32>, vector<2x16x32xf32>, vector<2x8x32xf32> -> vector<2x8x32xf32>
    %54 = tpu.transpose %53, [1, 0, 2] : vector<2x8x32xf32> -> vector<8x2x32xf32>
    %55 = vector.extract_strided_slice %54 {offsets = [0, 0, 0], sizes = [4, 2, 32], strides = [1, 1, 1]} : vector<8x2x32xf32> to vector<4x2x32xf32>
    %56 = vector.extract_strided_slice %54 {offsets = [4, 0, 0], sizes = [4, 2, 32], strides = [1, 1, 1]} : vector<8x2x32xf32> to vector<4x2x32xf32>
    %c1 = arith.constant 1 : index
    %c0_34 = arith.constant 0 : index
    %c0_35 = arith.constant 0 : index
    %c0_36 = arith.constant 0 : index
    %57 = vector.load %arg4[%c1, %c0_34, %c0_35, %c0_36] : memref<4x4x32x32xf32, #tpu.memory_space<vmem>>, vector<1x4x32x32xf32>
    %58 = vector.shape_cast %57 : vector<1x4x32x32xf32> to vector<4x32x32xf32>
    %c1_37 = arith.constant 1 : index
    %c0_38 = arith.constant 0 : index
    %c0_39 = arith.constant 0 : index
    %c0_40 = arith.constant 0 : index
    %59 = vector.load %arg5[%c1_37, %c0_38, %c0_39, %c0_40] : memref<4x4x32x32xf32, #tpu.memory_space<vmem>>, vector<1x4x32x32xf32>
    %60 = vector.shape_cast %59 : vector<1x4x32x32xf32> to vector<4x32x32xf32>
    %cst_41 = arith.constant dense<0.000000e+00> : vector<4x2x32xf32>
    %61 = tpu.matmul %55, %58, %cst_41 {dimension_numbers = #tpu.dot_dimension_numbers<[2], [1], [1], [2], [0, 0, 0, 1, 1, 2], [0], [0]>} : vector<4x2x32xf32>, vector<4x32x32xf32>, vector<4x2x32xf32> -> vector<4x2x32xf32>
    %cst_42 = arith.constant dense<0.000000e+00> : vector<4x2x32xf32>
    %62 = tpu.matmul %56, %60, %cst_42 {dimension_numbers = #tpu.dot_dimension_numbers<[2], [1], [1], [2], [0, 0, 0, 1, 1, 2], [0], [0]>} : vector<4x2x32xf32>, vector<4x32x32xf32>, vector<4x2x32xf32> -> vector<4x2x32xf32>
    %63 = arith.subf %61, %62 : vector<4x2x32xf32>
    %cst_43 = arith.constant dense<0.000000e+00> : vector<4x2x32xf32>
    %64 = tpu.matmul %55, %60, %cst_43 {dimension_numbers = #tpu.dot_dimension_numbers<[2], [1], [1], [2], [0, 0, 0, 1, 1, 2], [0], [0]>} : vector<4x2x32xf32>, vector<4x32x32xf32>, vector<4x2x32xf32> -> vector<4x2x32xf32>
    %cst_44 = arith.constant dense<0.000000e+00> : vector<4x2x32xf32>
    %65 = tpu.matmul %56, %58, %cst_44 {dimension_numbers = #tpu.dot_dimension_numbers<[2], [1], [1], [2], [0, 0, 0, 1, 1, 2], [0], [0]>} : vector<4x2x32xf32>, vector<4x32x32xf32>, vector<4x2x32xf32> -> vector<4x2x32xf32>
    %66 = arith.addf %64, %65 : vector<4x2x32xf32>
    %67 = tpu.concatenate %63, %66 in 0 : vector<4x2x32xf32>, vector<4x2x32xf32> -> vector<8x2x32xf32>
    %68 = tpu.transpose %67, [1, 0, 2] : vector<8x2x32xf32> -> vector<2x8x32xf32>
    %cst_45 = arith.constant dense<0.000000e+00> : vector<2x16x32xf32>
    %69 = tpu.matmul %17, %68, %cst_45 {dimension_numbers = #tpu.dot_dimension_numbers<[2], [1], [1], [2], [0, 0, 0, 1, 1, 2], [0], [0]>} : vector<2x16x8xf32>, vector<2x8x32xf32>, vector<2x16x32xf32> -> vector<2x16x32xf32>
    %70 = vector.shape_cast %52 : vector<2x16x32xf32> to vector<32x32xf32>
    %c1_46 = arith.constant 1 : index
    %c0_47 = arith.constant 0 : index
    %c0_48 = arith.constant 0 : index
    %71 = vector.load %arg6[%c1_46, %c0_47, %c0_48] : memref<4x32x32xf32, #tpu.memory_space<vmem>>, vector<1x32x32xf32>
    %72 = vector.shape_cast %71 : vector<1x32x32xf32> to vector<32x32xf32>
    %cst_49 = arith.constant dense<0.000000e+00> : vector<32x32xf32>
    %73 = tpu.matmul %70, %72, %cst_49 {dimension_numbers = #tpu.dot_dimension_numbers<[1], [0], [0], [1], [0, 0, 1, 1], [], []>} : vector<32x32xf32>, vector<32x32xf32>, vector<32x32xf32> -> vector<32x32xf32>
    %c1_50 = arith.constant 1 : index
    %c0_51 = arith.constant 0 : index
    %c0_52 = arith.constant 0 : index
    %74 = vector.load %arg7[%c1_50, %c0_51, %c0_52] : memref<4x1x32xf32, #tpu.memory_space<vmem>>, vector<1x1x32xf32>
    %75 = vector.shape_cast %74 : vector<1x1x32xf32> to vector<1x32xf32>
    %76 = vector.broadcast %75 : vector<1x32xf32> to vector<32x32xf32>
    %77 = arith.addf %73, %76 : vector<32x32xf32>
    %78 = vector.shape_cast %77 : vector<32x32xf32> to vector<2x16x32xf32>
    %79 = arith.addf %69, %78 : vector<2x16x32xf32>
    %cst_53 = arith.constant 5.000000e-01 : f32
    %80 = vector.broadcast %cst_53 : f32 to vector<2x16x32xf32>
    %81 = arith.mulf %80, %79 : vector<2x16x32xf32>
    %cst_54 = arith.constant 0.707106769 : f32
    %82 = vector.broadcast %cst_54 : f32 to vector<2x16x32xf32>
    %83 = arith.mulf %79, %82 : vector<2x16x32xf32>
    %84 = math.erf %83 : vector<2x16x32xf32>
    %cst_55 = arith.constant 1.000000e+00 : f32
    %85 = vector.broadcast %cst_55 : f32 to vector<2x16x32xf32>
    %86 = arith.addf %85, %84 : vector<2x16x32xf32>
    %87 = arith.mulf %81, %86 : vector<2x16x32xf32>
    %cst_56 = arith.constant dense<0.000000e+00> : vector<2x8x32xf32>
    %88 = tpu.matmul %13, %87, %cst_56 {dimension_numbers = #tpu.dot_dimension_numbers<[2], [1], [1], [2], [0, 0, 0, 1, 1, 2], [0], [0]>} : vector<2x8x16xf32>, vector<2x16x32xf32>, vector<2x8x32xf32> -> vector<2x8x32xf32>
    %89 = tpu.transpose %88, [1, 0, 2] : vector<2x8x32xf32> -> vector<8x2x32xf32>
    %90 = vector.extract_strided_slice %89 {offsets = [0, 0, 0], sizes = [4, 2, 32], strides = [1, 1, 1]} : vector<8x2x32xf32> to vector<4x2x32xf32>
    %91 = vector.extract_strided_slice %89 {offsets = [4, 0, 0], sizes = [4, 2, 32], strides = [1, 1, 1]} : vector<8x2x32xf32> to vector<4x2x32xf32>
    %c2 = arith.constant 2 : index
    %c0_57 = arith.constant 0 : index
    %c0_58 = arith.constant 0 : index
    %c0_59 = arith.constant 0 : index
    %92 = vector.load %arg4[%c2, %c0_57, %c0_58, %c0_59] : memref<4x4x32x32xf32, #tpu.memory_space<vmem>>, vector<1x4x32x32xf32>
    %93 = vector.shape_cast %92 : vector<1x4x32x32xf32> to vector<4x32x32xf32>
    %c2_60 = arith.constant 2 : index
    %c0_61 = arith.constant 0 : index
    %c0_62 = arith.constant 0 : index
    %c0_63 = arith.constant 0 : index
    %94 = vector.load %arg5[%c2_60, %c0_61, %c0_62, %c0_63] : memref<4x4x32x32xf32, #tpu.memory_space<vmem>>, vector<1x4x32x32xf32>
    %95 = vector.shape_cast %94 : vector<1x4x32x32xf32> to vector<4x32x32xf32>
    %cst_64 = arith.constant dense<0.000000e+00> : vector<4x2x32xf32>
    %96 = tpu.matmul %90, %93, %cst_64 {dimension_numbers = #tpu.dot_dimension_numbers<[2], [1], [1], [2], [0, 0, 0, 1, 1, 2], [0], [0]>} : vector<4x2x32xf32>, vector<4x32x32xf32>, vector<4x2x32xf32> -> vector<4x2x32xf32>
    %cst_65 = arith.constant dense<0.000000e+00> : vector<4x2x32xf32>
    %97 = tpu.matmul %91, %95, %cst_65 {dimension_numbers = #tpu.dot_dimension_numbers<[2], [1], [1], [2], [0, 0, 0, 1, 1, 2], [0], [0]>} : vector<4x2x32xf32>, vector<4x32x32xf32>, vector<4x2x32xf32> -> vector<4x2x32xf32>
    %98 = arith.subf %96, %97 : vector<4x2x32xf32>
    %cst_66 = arith.constant dense<0.000000e+00> : vector<4x2x32xf32>
    %99 = tpu.matmul %90, %95, %cst_66 {dimension_numbers = #tpu.dot_dimension_numbers<[2], [1], [1], [2], [0, 0, 0, 1, 1, 2], [0], [0]>} : vector<4x2x32xf32>, vector<4x32x32xf32>, vector<4x2x32xf32> -> vector<4x2x32xf32>
    %cst_67 = arith.constant dense<0.000000e+00> : vector<4x2x32xf32>
    %100 = tpu.matmul %91, %93, %cst_67 {dimension_numbers = #tpu.dot_dimension_numbers<[2], [1], [1], [2], [0, 0, 0, 1, 1, 2], [0], [0]>} : vector<4x2x32xf32>, vector<4x32x32xf32>, vector<4x2x32xf32> -> vector<4x2x32xf32>
    %101 = arith.addf %99, %100 : vector<4x2x32xf32>
    %102 = tpu.concatenate %98, %101 in 0 : vector<4x2x32xf32>, vector<4x2x32xf32> -> vector<8x2x32xf32>
    %103 = tpu.transpose %102, [1, 0, 2] : vector<8x2x32xf32> -> vector<2x8x32xf32>
    %cst_68 = arith.constant dense<0.000000e+00> : vector<2x16x32xf32>
    %104 = tpu.matmul %17, %103, %cst_68 {dimension_numbers = #tpu.dot_dimension_numbers<[2], [1], [1], [2], [0, 0, 0, 1, 1, 2], [0], [0]>} : vector<2x16x8xf32>, vector<2x8x32xf32>, vector<2x16x32xf32> -> vector<2x16x32xf32>
    %105 = vector.shape_cast %87 : vector<2x16x32xf32> to vector<32x32xf32>
    %c2_69 = arith.constant 2 : index
    %c0_70 = arith.constant 0 : index
    %c0_71 = arith.constant 0 : index
    %106 = vector.load %arg6[%c2_69, %c0_70, %c0_71] : memref<4x32x32xf32, #tpu.memory_space<vmem>>, vector<1x32x32xf32>
    %107 = vector.shape_cast %106 : vector<1x32x32xf32> to vector<32x32xf32>
    %cst_72 = arith.constant dense<0.000000e+00> : vector<32x32xf32>
    %108 = tpu.matmul %105, %107, %cst_72 {dimension_numbers = #tpu.dot_dimension_numbers<[1], [0], [0], [1], [0, 0, 1, 1], [], []>} : vector<32x32xf32>, vector<32x32xf32>, vector<32x32xf32> -> vector<32x32xf32>
    %c2_73 = arith.constant 2 : index
    %c0_74 = arith.constant 0 : index
    %c0_75 = arith.constant 0 : index
    %109 = vector.load %arg7[%c2_73, %c0_74, %c0_75] : memref<4x1x32xf32, #tpu.memory_space<vmem>>, vector<1x1x32xf32>
    %110 = vector.shape_cast %109 : vector<1x1x32xf32> to vector<1x32xf32>
    %111 = vector.broadcast %110 : vector<1x32xf32> to vector<32x32xf32>
    %112 = arith.addf %108, %111 : vector<32x32xf32>
    %113 = vector.shape_cast %112 : vector<32x32xf32> to vector<2x16x32xf32>
    %114 = arith.addf %104, %113 : vector<2x16x32xf32>
    %cst_76 = arith.constant 5.000000e-01 : f32
    %115 = vector.broadcast %cst_76 : f32 to vector<2x16x32xf32>
    %116 = arith.mulf %115, %114 : vector<2x16x32xf32>
    %cst_77 = arith.constant 0.707106769 : f32
    %117 = vector.broadcast %cst_77 : f32 to vector<2x16x32xf32>
    %118 = arith.mulf %114, %117 : vector<2x16x32xf32>
    %119 = math.erf %118 : vector<2x16x32xf32>
    %cst_78 = arith.constant 1.000000e+00 : f32
    %120 = vector.broadcast %cst_78 : f32 to vector<2x16x32xf32>
    %121 = arith.addf %120, %119 : vector<2x16x32xf32>
    %122 = arith.mulf %116, %121 : vector<2x16x32xf32>
    %cst_79 = arith.constant dense<0.000000e+00> : vector<2x8x32xf32>
    %123 = tpu.matmul %13, %122, %cst_79 {dimension_numbers = #tpu.dot_dimension_numbers<[2], [1], [1], [2], [0, 0, 0, 1, 1, 2], [0], [0]>} : vector<2x8x16xf32>, vector<2x16x32xf32>, vector<2x8x32xf32> -> vector<2x8x32xf32>
    %124 = tpu.transpose %123, [1, 0, 2] : vector<2x8x32xf32> -> vector<8x2x32xf32>
    %125 = vector.extract_strided_slice %124 {offsets = [0, 0, 0], sizes = [4, 2, 32], strides = [1, 1, 1]} : vector<8x2x32xf32> to vector<4x2x32xf32>
    %126 = vector.extract_strided_slice %124 {offsets = [4, 0, 0], sizes = [4, 2, 32], strides = [1, 1, 1]} : vector<8x2x32xf32> to vector<4x2x32xf32>
    %c3 = arith.constant 3 : index
    %c0_80 = arith.constant 0 : index
    %c0_81 = arith.constant 0 : index
    %c0_82 = arith.constant 0 : index
    %127 = vector.load %arg4[%c3, %c0_80, %c0_81, %c0_82] : memref<4x4x32x32xf32, #tpu.memory_space<vmem>>, vector<1x4x32x32xf32>
    %128 = vector.shape_cast %127 : vector<1x4x32x32xf32> to vector<4x32x32xf32>
    %c3_83 = arith.constant 3 : index
    %c0_84 = arith.constant 0 : index
    %c0_85 = arith.constant 0 : index
    %c0_86 = arith.constant 0 : index
    %129 = vector.load %arg5[%c3_83, %c0_84, %c0_85, %c0_86] : memref<4x4x32x32xf32, #tpu.memory_space<vmem>>, vector<1x4x32x32xf32>
    %130 = vector.shape_cast %129 : vector<1x4x32x32xf32> to vector<4x32x32xf32>
    %cst_87 = arith.constant dense<0.000000e+00> : vector<4x2x32xf32>
    %131 = tpu.matmul %125, %128, %cst_87 {dimension_numbers = #tpu.dot_dimension_numbers<[2], [1], [1], [2], [0, 0, 0, 1, 1, 2], [0], [0]>} : vector<4x2x32xf32>, vector<4x32x32xf32>, vector<4x2x32xf32> -> vector<4x2x32xf32>
    %cst_88 = arith.constant dense<0.000000e+00> : vector<4x2x32xf32>
    %132 = tpu.matmul %126, %130, %cst_88 {dimension_numbers = #tpu.dot_dimension_numbers<[2], [1], [1], [2], [0, 0, 0, 1, 1, 2], [0], [0]>} : vector<4x2x32xf32>, vector<4x32x32xf32>, vector<4x2x32xf32> -> vector<4x2x32xf32>
    %133 = arith.subf %131, %132 : vector<4x2x32xf32>
    %cst_89 = arith.constant dense<0.000000e+00> : vector<4x2x32xf32>
    %134 = tpu.matmul %125, %130, %cst_89 {dimension_numbers = #tpu.dot_dimension_numbers<[2], [1], [1], [2], [0, 0, 0, 1, 1, 2], [0], [0]>} : vector<4x2x32xf32>, vector<4x32x32xf32>, vector<4x2x32xf32> -> vector<4x2x32xf32>
    %cst_90 = arith.constant dense<0.000000e+00> : vector<4x2x32xf32>
    %135 = tpu.matmul %126, %128, %cst_90 {dimension_numbers = #tpu.dot_dimension_numbers<[2], [1], [1], [2], [0, 0, 0, 1, 1, 2], [0], [0]>} : vector<4x2x32xf32>, vector<4x32x32xf32>, vector<4x2x32xf32> -> vector<4x2x32xf32>
    %136 = arith.addf %134, %135 : vector<4x2x32xf32>
    %137 = tpu.concatenate %133, %136 in 0 : vector<4x2x32xf32>, vector<4x2x32xf32> -> vector<8x2x32xf32>
    %138 = tpu.transpose %137, [1, 0, 2] : vector<8x2x32xf32> -> vector<2x8x32xf32>
    %cst_91 = arith.constant dense<0.000000e+00> : vector<2x16x32xf32>
    %139 = tpu.matmul %17, %138, %cst_91 {dimension_numbers = #tpu.dot_dimension_numbers<[2], [1], [1], [2], [0, 0, 0, 1, 1, 2], [0], [0]>} : vector<2x16x8xf32>, vector<2x8x32xf32>, vector<2x16x32xf32> -> vector<2x16x32xf32>
    %140 = vector.shape_cast %122 : vector<2x16x32xf32> to vector<32x32xf32>
    %c3_92 = arith.constant 3 : index
    %c0_93 = arith.constant 0 : index
    %c0_94 = arith.constant 0 : index
    %141 = vector.load %arg6[%c3_92, %c0_93, %c0_94] : memref<4x32x32xf32, #tpu.memory_space<vmem>>, vector<1x32x32xf32>
    %142 = vector.shape_cast %141 : vector<1x32x32xf32> to vector<32x32xf32>
    %cst_95 = arith.constant dense<0.000000e+00> : vector<32x32xf32>
    %143 = tpu.matmul %140, %142, %cst_95 {dimension_numbers = #tpu.dot_dimension_numbers<[1], [0], [0], [1], [0, 0, 1, 1], [], []>} : vector<32x32xf32>, vector<32x32xf32>, vector<32x32xf32> -> vector<32x32xf32>
    %c3_96 = arith.constant 3 : index
    %c0_97 = arith.constant 0 : index
    %c0_98 = arith.constant 0 : index
    %144 = vector.load %arg7[%c3_96, %c0_97, %c0_98] : memref<4x1x32xf32, #tpu.memory_space<vmem>>, vector<1x1x32xf32>
    %145 = vector.shape_cast %144 : vector<1x1x32xf32> to vector<1x32xf32>
    %146 = vector.broadcast %145 : vector<1x32xf32> to vector<32x32xf32>
    %147 = arith.addf %143, %146 : vector<32x32xf32>
    %148 = vector.shape_cast %147 : vector<32x32xf32> to vector<2x16x32xf32>
    %149 = arith.addf %139, %148 : vector<2x16x32xf32>
    %150 = vector.shape_cast %149 : vector<2x16x32xf32> to vector<32x32xf32>
    %c0_99 = arith.constant 0 : index
    %c0_100 = arith.constant 0 : index
    %151 = vector.load %arg10[%c0_99, %c0_100] : memref<32x128xf32, #tpu.memory_space<vmem>>, vector<32x128xf32>
    %cst_101 = arith.constant dense<0.000000e+00> : vector<32x128xf32>
    %152 = tpu.matmul %150, %151, %cst_101 {dimension_numbers = #tpu.dot_dimension_numbers<[1], [0], [0], [1], [0, 0, 1, 1], [], []>} : vector<32x32xf32>, vector<32x128xf32>, vector<32x128xf32> -> vector<32x128xf32>
    %c0_102 = arith.constant 0 : index
    %c0_103 = arith.constant 0 : index
    %153 = vector.load %arg11[%c0_102, %c0_103] : memref<1x128xf32, #tpu.memory_space<vmem>>, vector<1x128xf32>
    %154 = vector.broadcast %153 : vector<1x128xf32> to vector<32x128xf32>
    %155 = arith.addf %152, %154 : vector<32x128xf32>
    %cst_104 = arith.constant 5.000000e-01 : f32
    %156 = vector.broadcast %cst_104 : f32 to vector<32x128xf32>
    %157 = arith.mulf %156, %155 : vector<32x128xf32>
    %cst_105 = arith.constant 0.707106769 : f32
    %158 = vector.broadcast %cst_105 : f32 to vector<32x128xf32>
    %159 = arith.mulf %155, %158 : vector<32x128xf32>
    %160 = math.erf %159 : vector<32x128xf32>
    %cst_106 = arith.constant 1.000000e+00 : f32
    %161 = vector.broadcast %cst_106 : f32 to vector<32x128xf32>
    %162 = arith.addf %161, %160 : vector<32x128xf32>
    %163 = arith.mulf %157, %162 : vector<32x128xf32>
    %164 = vector.shape_cast %163 : vector<32x128xf32> to vector<2x16x128xf32>
    %c0_107 = arith.constant 0 : index
    %c0_108 = arith.constant 0 : index
    %165 = vector.load %arg12[%c0_107, %c0_108] : memref<1x128xf32, #tpu.memory_space<vmem>>, vector<1x128xf32>
    %166 = vector.shape_cast %165 : vector<1x128xf32> to vector<1x1x128xf32>
    %167 = vector.broadcast %166 : vector<1x1x128xf32> to vector<2x16x128xf32>
    %168 = arith.mulf %164, %167 : vector<2x16x128xf32>
    %cst_109 = arith.constant dense<0.000000e+00> : vector<2x16xf32>
    %169 = vector.multi_reduction <add>, %168, %cst_109 [2] : vector<2x16x128xf32> to vector<2x16xf32>
    %c0_110 = arith.constant 0 : index
    %c0_111 = arith.constant 0 : index
    %170 = vector.load %arg13[%c0_110, %c0_111] : memref<1x1xf32, #tpu.memory_space<vmem>>, vector<1x1xf32>
    %171 = vector.broadcast %170 : vector<1x1xf32> to vector<2x16xf32>
    %172 = arith.addf %169, %171 : vector<2x16xf32>
    %c0_112 = arith.constant 0 : index
    %c0_113 = arith.constant 0 : index
    %173 = vector.load %arg14[%c0_112, %c0_113] : memref<2x16xf32, #tpu.memory_space<vmem>>, vector<2x16xf32>
    tpu.vector_store %arg14[%c0_112, %c0_113], %172 {strides = array<i32>} : memref<2x16xf32, #tpu.memory_space<vmem>>, vector<2x16xf32>,
    return
  }
  func.func @transform_0(%arg0: i32) -> (i32, i32, i32) {
    %c0_i32 = arith.constant 0 : i32
    %c0_i32_0 = arith.constant 0 : i32
    %c0_i32_1 = arith.constant 0 : i32
    return %arg0, %c0_i32, %c0_i32_0 : i32, i32, i32
  }
  func.func @transform_1(%arg0: i32) -> (i32, i32) {
    %c0_i32 = arith.constant 0 : i32
    %c0_i32_0 = arith.constant 0 : i32
    %c0_i32_1 = arith.constant 0 : i32
    return %c0_i32, %c0_i32_0 : i32, i32
  }
  func.func @transform_2(%arg0: i32) -> (i32, i32) {
    %c0_i32 = arith.constant 0 : i32
    %c0_i32_0 = arith.constant 0 : i32
    %c0_i32_1 = arith.constant 0 : i32
    return %c0_i32, %c0_i32_0 : i32, i32
  }
  func.func @transform_3(%arg0: i32) -> (i32, i32, i32, i32) {
    %c0_i32 = arith.constant 0 : i32
    %c0_i32_0 = arith.constant 0 : i32
    %c0_i32_1 = arith.constant 0 : i32
    %c0_i32_2 = arith.constant 0 : i32
    %c0_i32_3 = arith.constant 0 : i32
    return %c0_i32, %c0_i32_0, %c0_i32_1, %c0_i32_2 : i32, i32, i32, i32
  }
  func.func @transform_4(%arg0: i32) -> (i32, i32, i32, i32) {
    %c0_i32 = arith.constant 0 : i32
    %c0_i32_0 = arith.constant 0 : i32
    %c0_i32_1 = arith.constant 0 : i32
    %c0_i32_2 = arith.constant 0 : i32
    %c0_i32_3 = arith.constant 0 : i32
    return %c0_i32, %c0_i32_0, %c0_i32_1, %c0_i32_2 : i32, i32, i32, i32
  }
  func.func @transform_5(%arg0: i32) -> (i32, i32, i32) {
    %c0_i32 = arith.constant 0 : i32
    %c0_i32_0 = arith.constant 0 : i32
    %c0_i32_1 = arith.constant 0 : i32
    %c0_i32_2 = arith.constant 0 : i32
    return %c0_i32, %c0_i32_0, %c0_i32_1 : i32, i32, i32
  }
  func.func @transform_6(%arg0: i32) -> (i32, i32, i32) {
    %c0_i32 = arith.constant 0 : i32
    %c0_i32_0 = arith.constant 0 : i32
    %c0_i32_1 = arith.constant 0 : i32
    %c0_i32_2 = arith.constant 0 : i32
    return %c0_i32, %c0_i32_0, %c0_i32_1 : i32, i32, i32
  }
  func.func @transform_7(%arg0: i32) -> (i32, i32) {
    %c0_i32 = arith.constant 0 : i32
    %c0_i32_0 = arith.constant 0 : i32
    %c0_i32_1 = arith.constant 0 : i32
    return %c0_i32, %c0_i32_0 : i32, i32
  }
  func.func @transform_8(%arg0: i32) -> (i32, i32) {
    %c0_i32 = arith.constant 0 : i32
    %c0_i32_0 = arith.constant 0 : i32
    %c0_i32_1 = arith.constant 0 : i32
    return %c0_i32, %c0_i32_0 : i32, i32
  }
  func.func @transform_9(%arg0: i32) -> (i32, i32) {
    %c0_i32 = arith.constant 0 : i32
    %c0_i32_0 = arith.constant 0 : i32
    %c0_i32_1 = arith.constant 0 : i32
    return %c0_i32, %c0_i32_0 : i32, i32
  }
  func.func @transform_10(%arg0: i32) -> (i32, i32) {
    %c0_i32 = arith.constant 0 : i32
    %c0_i32_0 = arith.constant 0 : i32
    %c0_i32_1 = arith.constant 0 : i32
    return %c0_i32, %c0_i32_0 : i32, i32
  }
  func.func @transform_11(%arg0: i32) -> (i32, i32) {
    %c0_i32 = arith.constant 0 : i32
    %c0_i32_0 = arith.constant 0 : i32
    %c0_i32_1 = arith.constant 0 : i32
    return %c0_i32, %c0_i32_0 : i32, i32
  }
  func.func @transform_12(%arg0: i32) -> (i32, i32) {
    %c0_i32 = arith.constant 0 : i32
    %c0_i32_0 = arith.constant 0 : i32
    %c0_i32_1 = arith.constant 0 : i32
    return %c0_i32, %c0_i32_0 : i32, i32
  }
  func.func @transform_13(%arg0: i32) -> (i32, i32) {
    %c0_i32 = arith.constant 0 : i32
    %c0_i32_0 = arith.constant 0 : i32
    return %arg0, %c0_i32 : i32, i32
  }
}

</mosaic_0001>

<llo_original>
// kernel: tpu_custom_call.1
$region0: #{tpu_custom_call.1}
  #allocation0 [shape = 'u32[]', space=smem, size = 0x4, offset = 0x4, fixed_abs, tag = 'smem constant byte address 0x4 - core index']
  #allocation1 [shape = 'u32[144,128]{1,0:T(1,128)}', space=vmem, size = 0x12000, scoped, tag = 'internal scratch']
  #allocation2 [shape = 'f32[1,1]{1,0:T(1,128)S(1)}', space=vmem, size = 0x200, scoped, tag = 'scoped memory for tpu_custom_call.1']
  %s0 = inlined_call_operand.vmem [shape: f32[2,16,1], index: 0, kind: input, shape index: {}]
  %s1 = inlined_call_operand.vmem [shape: f32[1,32], index: 1, kind: input, shape index: {}]
  %s2 = inlined_call_operand.vmem [shape: f32[16,32], index: 2, kind: input, shape index: {}]
  %s3 = inlined_call_operand.hbm [shape: f32[4,4,32,32], index: 3, kind: input, shape index: {}]
  %s4 = inlined_call_operand.hbm [shape: f32[4,4,32,32], index: 4, kind: input, shape index: {}]
  %s5 = inlined_call_operand.hbm [shape: f32[4,32,32], index: 5, kind: input, shape index: {}]
  %s6 = inlined_call_operand.vmem [shape: f32[4,1,32], index: 6, kind: input, shape index: {}]
  %s7 = inlined_call_operand.vmem [shape: f32[8,16], index: 7, kind: input, shape index: {}]
  %s8 = inlined_call_operand.vmem [shape: f32[16,8], index: 8, kind: input, shape index: {}]
  %s9 = inlined_call_operand.vmem [shape: f32[32,128], index: 9, kind: input, shape index: {}]
  %s10 = inlined_call_operand.vmem [shape: f32[1,128], index: 10, kind: input, shape index: {}]
  %s11 = inlined_call_operand.vmem [shape: f32[1,128], index: 11, kind: input, shape index: {}]
  %s12 = inlined_call_operand.<no memory space> [shape: f32[1,1], index: 12, kind: input, shape index: {}]
  %s13 = inlined_call_operand.hbm [shape: f32[2,16], index: 13, kind: output, shape index: {}]
  %s14 = sld [smem:[#allocation0]]
  $region74: #{tpu_custom_call.1} parent=0
    _
  %s16 = ssub.s32 1, %s14
  %s17 = scalar_select 0, %s16, %s14
  %v18 = vstv %s12
  %19 = vst [vmem:[#allocation2] sm:$0x1] %v18
  $region1: #{tpu_custom_call.1} parent=0
    #allocation3 [shape = 'u8[262144]{0}', space=vmem, size = 0x40000, scoped, tag = 'input window, operand 3, single buffered']
    #allocation4 [shape = 's32[1]{0}', space=sflag, size = 0x4, scoped, tag = 'scoped memory for tpu_custom_call.1']
    #allocation5 [shape = 's32[1]{0}', space=sflag, size = 0x4, scoped, tag = 'scoped memory for tpu_custom_call.1']
    #allocation6 [shape = 'u8[262144]{0}', space=vmem, size = 0x40000, scoped, tag = 'input window, operand 4, single buffered']
    #allocation7 [shape = 's32[1]{0}', space=sflag, size = 0x4, scoped, tag = 'scoped memory for tpu_custom_call.1']
    #allocation8 [shape = 'u8[65536]{0}', space=vmem, size = 0x10000, scoped, tag = 'input window, operand 5, single buffered']
    #allocation9 [shape = 'u8[1024]{0}', space=vmem, size = 0x400, scoped, tag = 'output window, operand 0, single buffered']
    %20 = vsyncpa [#allocation4], 0
    %21 = vsyncpa [#allocation7], 0
    %22 = vsyncpa [#allocation5], 0
    // Predicated region
    $region2: #{tpu_custom_call.1} parent=1 // pred_check
      _
    $region3: #{tpu_custom_call.1} parent=1 // pred_check_branch
      %24 = sbr.rel (0) target = $region5
    $region4: #{tpu_custom_call.1} parent=1 // pred_region
      _
    $region5: #{tpu_custom_call.1} parent=1 // pred_fallthru
      _
    // Predicated region
    $region6: #{tpu_custom_call.1} parent=1 // pred_check
      _
    $region7: #{tpu_custom_call.1} parent=1 // pred_check_branch
      %26 = sbr.rel (0) target = $region9
    $region8: #{tpu_custom_call.1} parent=1 // pred_region
      _
    $region9: #{tpu_custom_call.1} parent=1 // pred_fallthru
      _
    // Predicated region
    $region10: #{tpu_custom_call.1} parent=1 // pred_check
      _
    $region11: #{tpu_custom_call.1} parent=1 // pred_check_branch
      %28 = sbr.rel (0) target = $region13
    $region12: #{tpu_custom_call.1} parent=1 // pred_region
      _
    $region13: #{tpu_custom_call.1} parent=1 // pred_fallthru
      _
    // Predicated region
    $region14: #{tpu_custom_call.1} parent=1 // pred_check
      _
    $region15: #{tpu_custom_call.1} parent=1 // pred_check_branch
      %30 = sbr.rel (0) target = $region17
    $region16: #{tpu_custom_call.1} parent=1 // pred_region
      %s32 = ssub.s32 8192, 8192
      %33 = vsyncadd [#allocation4], %s32
      %s34 = sshll.u32 [#allocation3], 4
      %s35 = int_to_ptr.vmem [resolvable:$true] %s34
      %40 = dma.hbm_to_vmem [thread:$0]  %s3, 8192, %s35, [#allocation4], 128, 128, 8
    $region17: #{tpu_custom_call.1} parent=1 // pred_fallthru
      _
    // Predicated region
    $region18: #{tpu_custom_call.1} parent=1 // pred_check
      _
    $region19: #{tpu_custom_call.1} parent=1 // pred_check_branch
      %42 = sbr.rel (0) target = $region21
    $region20: #{tpu_custom_call.1} parent=1 // pred_region
      %s44 = ssub.s32 8192, 8192
      %45 = vsyncadd [#allocation7], %s44
      %s46 = sshll.u32 [#allocation6], 4
      %s47 = int_to_ptr.vmem [resolvable:$true] %s46
      %52 = dma.hbm_to_vmem [thread:$0]  %s4, 8192, %s47, [#allocation7], 128, 128, 8
    $region21: #{tpu_custom_call.1} parent=1 // pred_fallthru
      _
    // Predicated region
    $region22: #{tpu_custom_call.1} parent=1 // pred_check
      _
    $region23: #{tpu_custom_call.1} parent=1 // pred_check_branch
      %54 = sbr.rel (0) target = $region25
    $region24: #{tpu_custom_call.1} parent=1 // pred_region
      %s56 = ssub.s32 2048, 2048
      %57 = vsyncadd [#allocation7], %s56
      %s58 = sshll.u32 [#allocation8], 4
      %s59 = int_to_ptr.vmem [resolvable:$true] %s58
      %64 = dma.hbm_to_vmem [thread:$0]  %s5, 2048, %s59, [#allocation7], 128, 128, 8
    $region25: #{tpu_custom_call.1} parent=1 // pred_fallthru
      _
    // Predicated region
    $region26: #{tpu_custom_call.1} parent=1 // pred_check
      _
    $region27: #{tpu_custom_call.1} parent=1 // pred_check_branch
      %66 = sbr.rel (0) target = $region29
    $region28: #{tpu_custom_call.1} parent=1 // pred_region
      _
    $region29: #{tpu_custom_call.1} parent=1 // pred_fallthru
      _
    // Predicated region
    $region30: #{tpu_custom_call.1} parent=1 // pred_check
      _
    $region31: #{tpu_custom_call.1} parent=1 // pred_check_branch
      %68 = sbr.rel (0) target = $region33
    $region32: #{tpu_custom_call.1} parent=1 // pred_region
      _
    $region33: #{tpu_custom_call.1} parent=1 // pred_fallthru
      _
    // Predicated region
    $region34: #{tpu_custom_call.1} parent=1 // pred_check
      _
    $region35: #{tpu_custom_call.1} parent=1 // pred_check_branch
      %70 = sbr.rel (0) target = $region37
    $region36: #{tpu_custom_call.1} parent=1 // pred_region
      _
    $region37: #{tpu_custom_call.1} parent=1 // pred_fallthru
      _
    // Predicated region
    $region38: #{tpu_custom_call.1} parent=1 // pred_check
      _
    $region39: #{tpu_custom_call.1} parent=1 // pred_check_branch
      %72 = sbr.rel (0) target = $region41
    $region40: #{tpu_custom_call.1} parent=1 // pred_region
      _
    $region41: #{tpu_custom_call.1} parent=1 // pred_fallthru
      _
    // Predicated region
    $region42: #{tpu_custom_call.1} parent=1 // pred_check
      _
    $region43: #{tpu_custom_call.1} parent=1 // pred_check_branch
      %74 = sbr.rel (0) target = $region45
    $region44: #{tpu_custom_call.1} parent=1 // pred_region
      _
    $region45: #{tpu_custom_call.1} parent=1 // pred_fallthru
      _
    // Predicated region
    $region46: #{tpu_custom_call.1} parent=1 // pred_check
      _
    $region47: #{tpu_custom_call.1} parent=1 // pred_check_branch
      %76 = sbr.rel (0) target = $region49
    $region48: #{tpu_custom_call.1} parent=1 // pred_region
      _
    $region49: #{tpu_custom_call.1} parent=1 // pred_fallthru
      _
    // Predicated region
    $region50: #{tpu_custom_call.1} parent=1 // pred_check
      _
    $region51: #{tpu_custom_call.1} parent=1 // pred_check_branch
      %78 = sbr.rel (0) target = $region53
    $region52: #{tpu_custom_call.1} parent=1 // pred_region
      _
    $region53: #{tpu_custom_call.1} parent=1 // pred_fallthru
      _
    // Predicated region
    $region54: #{tpu_custom_call.1} parent=1 // pred_check
      _
    $region55: #{tpu_custom_call.1} parent=1 // pred_check_branch
      %80 = sbr.rel (0) target = $region57
    $region56: #{tpu_custom_call.1} parent=1 // pred_region
      %81 = dma.done [#allocation4], 8192
    $region57: #{tpu_custom_call.1} parent=1 // pred_fallthru
      _
    // Predicated region
    $region58: #{tpu_custom_call.1} parent=1 // pred_check
      _
    $region59: #{tpu_custom_call.1} parent=1 // pred_check_branch
      %83 = sbr.rel (0) target = $region61
    $region60: #{tpu_custom_call.1} parent=1 // pred_region
      %84 = dma.done [#allocation7], 8192
    $region61: #{tpu_custom_call.1} parent=1 // pred_fallthru
      _
    // Predicated region
    $region62: #{tpu_custom_call.1} parent=1 // pred_check
      _
    $region63: #{tpu_custom_call.1} parent=1 // pred_check_branch
      %86 = sbr.rel (0) target = $region65
    $region64: #{tpu_custom_call.1} parent=1 // pred_region
      %87 = dma.done [#allocation7], 2048
    $region65: #{tpu_custom_call.1} parent=1 // pred_fallthru
      _
    %v88 = vld [vmem:[%s0] sm:$0xff]
    %v89 = vld [vmem:[%s0 + $0x8] sm:$0xff]
    %v90 = vld [vmem:[%s0 + $0x10] sm:$0xff]
    %v91 = vld [vmem:[%s0 + $0x18] sm:$0xff]
    %v92 = vld [vmem:[%s1] sm:$0x1]
    %94 = vset.pattern.permute.xlu0 0
    %95 = vperm.xlu0 %94, %v88
    %v96 = vpop.permute.xlu0 %95
    %99 = vset.pattern.permute.xlu0 0
    %100 = vperm.xlu0 %99, %v89
    %v101 = vpop.permute.xlu0 %100
    %104 = vset.pattern.permute.xlu0 0
    %105 = vperm.xlu0 %104, %v90
    %v106 = vpop.permute.xlu0 %105
    %109 = vset.pattern.permute.xlu0 0
    %110 = vperm.xlu0 %109, %v91
    %v111 = vpop.permute.xlu0 %110
    %v114 = vlaneseq
    %v115 = vshrl.u32 %v114, 7
    %v116 = vsub.s32 0, %v115
    %v117 = vrot.slane %v92, %v116
    %v119 = vmul.f32 %v96, %v117
    %v120 = vmul.f32 %v101, %v117
    %v121 = vmul.f32 %v106, %v117
    %v122 = vmul.f32 %v111, %v117
    %v123 = vld [vmem:[%s2] sm:$0xff]
    %v124 = vld [vmem:[%s2 + $0x8] sm:$0xff]
    %v125 = vadd.f32 %v119, %v123
    %v126 = vadd.f32 %v120, %v124
    %v127 = vadd.f32 %v121, %v123
    %v128 = vadd.f32 %v122, %v124
    %v129 = vld [vmem:[%s7] sm:$0xff]
    %v130 = vld [vmem:[%s8] sm:$0xff]
    %v131 = vld [vmem:[%s8 + $0x8] sm:$0xff]
    %vm132 = vcmask 130048
    %v134 = vsel %vm132, %v129, 0
    %136 = vmatprep.subr.mxu0 0.0
    %137 = vmatpush1.msra.mxu0 %v125
    %138 = vmatprep.subr.mxu0 0.0
    %139 = vmatpush1.msra.mxu0 %v126
    %140 = vmatprep.subr.mxu0 0.0
    %141 = vmatpush1.msra.mxu0 0.0
    %142 = vmatprep.subr.mxu0 0.0
    %143 = vmatpush1.msra.mxu0 0.0
    %144 = vmatprep.subr.mxu0 0.0
    %145 = vmatpush1.msra.mxu0 0.0
    %146 = vmatprep.subr.mxu0 0.0
    %147 = vmatpush1.msra.mxu0 0.0
    %148 = vmatprep.subr.mxu0 0.0
    %149 = vmatpush1.msra.mxu0 0.0
    %150 = vmatprep.subr.mxu0 0.0
    %151 = vmatpush1.msra.mxu0 0.0
    %152 = vmatprep.subr.mxu0 0.0
    %153 = vmatpush1.msra.mxu0 0.0
    %154 = vmatprep.subr.mxu0 0.0
    %155 = vmatpush1.msra.mxu0 0.0
    %156 = vmatprep.subr.mxu0 0.0
    %157 = vmatpush1.msra.mxu0 0.0
    %158 = vmatprep.subr.mxu0 0.0
    %159 = vmatpush1.msra.mxu0 0.0
    %160 = vmatprep.subr.mxu0 0.0
    %161 = vmatpush1.msra.mxu0 0.0
    %162 = vmatprep.subr.mxu0 0.0
    %163 = vmatpush1.msra.mxu0 0.0
    %164 = vmatprep.subr.mxu0 0.0
    %165 = vmatpush1.msra.mxu0 0.0
    %166 = vmatprep.subr.mxu0 0.0
    %167 = vmatpush1.msra.mxu0 0.0
    %168 = vmatprep.subr.mxu0 0.0
    %169 = vmatpush1.msra.mxu0 0.0
    %170 = vmatprep.subr.mxu0 0.0
    %171 = vmatpush1.msra.mxu0 0.0
    %172 = vmatprep.subr.mxu0 0.0
    %173 = vmatpush1.msra.mxu0 0.0
    %174 = vmatprep.subr.mxu0 0.0
    %175 = vmatpush1.msra.mxu0 0.0
    %176 = vmatprep.subr.mxu0 0.0
    %177 = vmatpush1.msra.mxu0 0.0
    %178 = vmatprep.subr.mxu0 0.0
    %179 = vmatpush1.msra.mxu0 0.0
    %180 = vmatprep.subr.mxu0 0.0
    %181 = vmatpush1.msra.mxu0 0.0
    %182 = vmatprep.subr.mxu0 0.0
    %183 = vmatpush1.msra.mxu0 0.0
    %184 = vmatprep.subr.mxu0 0.0
    %185 = vmatpush1.msra.mxu0 0.0
    %186 = vmatprep.subr.mxu0 0.0
    %187 = vmatpush1.msra.mxu0 0.0
    %188 = vmatprep.subr.mxu0 0.0
    %189 = vmatpush1.msra.mxu0 0.0
    %190 = vmatprep.subr.mxu0 0.0
    %191 = vmatpush1.msra.mxu0 0.0
    %192 = vmatprep.subr.mxu0 0.0
    %193 = vmatpush1.msra.mxu0 0.0
    %194 = vmatprep.subr.mxu0 0.0
    %195 = vmatpush1.msra.mxu0 0.0
    %196 = vmatprep.subr.mxu0 0.0
    %197 = vmatpush1.msra.mxu0 0.0
    %198 = vmatprep.subr.mxu0 0.0
    %199 = vmatpush1.msra.mxu0 0.0
    %200 = vmatprep.mubr.f32.mxu0 0.0
    %201 = vmatmul.mubr.f32.gmra.mrb[0].mxu0 %v134
    %v202 = vpop.f32.mrb[0].mxu0
    %v203 = vadd.f32 0.0, %v202
    %v204 = vpop.f32.mrb[0].mxu0
    %205 = vdwg.mxu0
    %206 = vmatprep.subr.mxu0 0.0
    %207 = vmatpush1.msra.mxu0 %v127
    %208 = vmatprep.subr.mxu0 0.0
    %209 = vmatpush1.msra.mxu0 %v128
    %210 = vmatprep.subr.mxu0 0.0
    %211 = vmatpush1.msra.mxu0 0.0
    %212 = vmatprep.subr.mxu0 0.0
    %213 = vmatpush1.msra.mxu0 0.0
    %214 = vmatprep.subr.mxu0 0.0
    %215 = vmatpush1.msra.mxu0 0.0
    %216 = vmatprep.subr.mxu0 0.0
    %217 = vmatpush1.msra.mxu0 0.0
    %218 = vmatprep.subr.mxu0 0.0
    %219 = vmatpush1.msra.mxu0 0.0
    %220 = vmatprep.subr.mxu0 0.0
    %221 = vmatpush1.msra.mxu0 0.0
    %222 = vmatprep.subr.mxu0 0.0
    %223 = vmatpush1.msra.mxu0 0.0
    %224 = vmatprep.subr.mxu0 0.0
    %225 = vmatpush1.msra.mxu0 0.0
    %226 = vmatprep.subr.mxu0 0.0
    %227 = vmatpush1.msra.mxu0 0.0
    %228 = vmatprep.subr.mxu0 0.0
    %229 = vmatpush1.msra.mxu0 0.0
    %230 = vmatprep.subr.mxu0 0.0
    %231 = vmatpush1.msra.mxu0 0.0
    %232 = vmatprep.subr.mxu0 0.0
    %233 = vmatpush1.msra.mxu0 0.0
    %234 = vmatprep.subr.mxu0 0.0
    %235 = vmatpush1.msra.mxu0 0.0
    %236 = vmatprep.subr.mxu0 0.0
    %237 = vmatpush1.msra.mxu0 0.0
    %238 = vmatprep.subr.mxu0 0.0
    %239 = vmatpush1.msra.mxu0 0.0
    %240 = vmatprep.subr.mxu0 0.0
    %241 = vmatpush1.msra.mxu0 0.0
    %242 = vmatprep.subr.mxu0 0.0
    %243 = vmatpush1.msra.mxu0 0.0
    %244 = vmatprep.subr.mxu0 0.0
    %245 = vmatpush1.msra.mxu0 0.0
    %246 = vmatprep.subr.mxu0 0.0
    %247 = vmatpush1.msra.mxu0 0.0
    %248 = vmatprep.subr.mxu0 0.0
    %249 = vmatpush1.msra.mxu0 0.0
    %250 = vmatprep.subr.mxu0 0.0
    %251 = vmatpush1.msra.mxu0 0.0
    %252 = vmatprep.subr.mxu0 0.0
    %253 = vmatpush1.msra.mxu0 0.0
    %254 = vmatprep.subr.mxu0 0.0
    %255 = vmatpush1.msra.mxu0 0.0
    %256 = vmatprep.subr.mxu0 0.0
    %257 = vmatpush1.msra.mxu0 0.0
    %258 = vmatprep.subr.mxu0 0.0
    %259 = vmatpush1.msra.mxu0 0.0
    %260 = vmatprep.subr.mxu0 0.0
    %261 = vmatpush1.msra.mxu0 0.0
    %262 = vmatprep.subr.mxu0 0.0
    %263 = vmatpush1.msra.mxu0 0.0
    %264 = vmatprep.subr.mxu0 0.0
    %265 = vmatpush1.msra.mxu0 0.0
    %266 = vmatprep.subr.mxu0 0.0
    %267 = vmatpush1.msra.mxu0 0.0
    %268 = vmatprep.subr.mxu0 0.0
    %269 = vmatpush1.msra.mxu0 0.0
    %270 = vmatprep.mubr.f32.mxu0 0.0
    %271 = vmatmul.mubr.f32.gmra.mrb[0].mxu0 %v134
    %v272 = vpop.f32.mrb[0].mxu0
    %v273 = vadd.f32 0.0, %v272
    %v274 = vpop.f32.mrb[0].mxu0
    %275 = vdwg.mxu0
    %v276 = vcombine.high %v203, 0.0
    %v278 = vunpack.c.l.s4 1983009808
    %v279 = vunpack.c.0.s8 %v278
    %v280 = vlaneseq
    %v281 = vshrl.u32 %v280, 7
    %v282 = vsub.s32 %v279, %v281
    %v283 = vrot.slane %v203, %v282
    %v285 = vunpack.c.l.s4 1983009808
    %v286 = vunpack.c.0.s8 %v285
    %v287 = vlaneseq
    %v288 = vshrl.u32 %v287, 7
    %v289 = vsub.s32 %v286, %v288
    %v290 = vrot.slane %v276, %v289
    %v291 = vcombine.high %v273, 0.0
    %v293 = vunpack.c.l.s4 1983009808
    %v294 = vunpack.c.0.s8 %v293
    %v295 = vlaneseq
    %v296 = vshrl.u32 %v295, 7
    %v297 = vsub.s32 %v294, %v296
    %v298 = vrot.slane %v273, %v297
    %v300 = vunpack.c.l.s4 1983009808
    %v301 = vunpack.c.0.s8 %v300
    %v302 = vlaneseq
    %v303 = vshrl.u32 %v302, 7
    %v304 = vsub.s32 %v301, %v303
    %v305 = vrot.slane %v291, %v304
    %v306 = vcombine.low %v283, %v298
    %v307 = vcombine.high %v283, %v298
    %v309 = vunpack.c.l.s4 1934713408
    %v310 = vunpack.c.0.s8 %v309
    %v311 = vlaneseq
    %v312 = vshrl.u32 %v311, 7
    %v313 = vsub.s32 %v310, %v312
    %v314 = vrot.slane %v306, %v313
    %v316 = vunpack.c.l.s4 1934713408
    %v317 = vunpack.c.0.s8 %v316
    %v318 = vlaneseq
    %v319 = vshrl.u32 %v318, 7
    %v320 = vsub.s32 %v317, %v319
    %v321 = vrot.slane %v307, %v320
    %v322 = vcombine.low %v290, %v305
    %v323 = vcombine.high %v290, %v305
    %v325 = vunpack.c.l.s4 1934713408
    %v326 = vunpack.c.0.s8 %v325
    %v327 = vlaneseq
    %v328 = vshrl.u32 %v327, 7
    %v329 = vsub.s32 %v326, %v328
    %v330 = vrot.slane %v322, %v329
    %v332 = vunpack.c.l.s4 1934713408
    %v333 = vunpack.c.0.s8 %v332
    %v334 = vlaneseq
    %v335 = vshrl.u32 %v334, 7
    %v336 = vsub.s32 %v333, %v335
    %v337 = vrot.slane %v323, %v336
    %v338 = vcombine.high %v314, 0.0
    %v339 = vcombine.high %v321, 0.0
    %v340 = vcombine.high %v330, 0.0
    %v341 = vcombine.high %v337, 0.0
    %v342 = vld [vmem:[#allocation3] sm:$0xff]
    %v343 = vld [vmem:[#allocation3 + $0x8] sm:$0xff]
    %v344 = vld [vmem:[#allocation3 + $0x10] sm:$0xff]
    %v345 = vld [vmem:[#allocation3 + $0x18] sm:$0xff]
    %v346 = vld [vmem:[#allocation3 + $0x20] sm:$0xff]
    %v347 = vld [vmem:[#allocation3 + $0x28] sm:$0xff]
    %v348 = vld [vmem:[#allocation3 + $0x30] sm:$0xff]
    %v349 = vld [vmem:[#allocation3 + $0x38] sm:$0xff]
    %v350 = vld [vmem:[#allocation3 + $0x40] sm:$0xff]
    %v351 = vld [vmem:[#allocation3 + $0x48] sm:$0xff]
    %v352 = vld [vmem:[#allocation3 + $0x50] sm:$0xff]
    %v353 = vld [vmem:[#allocation3 + $0x58] sm:$0xff]
    %v354 = vld [vmem:[#allocation3 + $0x60] sm:$0xff]
    %v355 = vld [vmem:[#allocation3 + $0x68] sm:$0xff]
    %v356 = vld [vmem:[#allocation3 + $0x70] sm:$0xff]
    %v357 = vld [vmem:[#allocation3 + $0x78] sm:$0xff]
    %v358 = vld [vmem:[#allocation6] sm:$0xff]
    %v359 = vld [vmem:[#allocation6 + $0x8] sm:$0xff]
    %v360 = vld [vmem:[#allocation6 + $0x10] sm:$0xff]
    %v361 = vld [vmem:[#allocation6 + $0x18] sm:$0xff]
    %v362 = vld [vmem:[#allocation6 + $0x20] sm:$0xff]
    %v363 = vld [vmem:[#allocation6 + $0x28] sm:$0xff]
    %v364 = vld [vmem:[#allocation6 + $0x30] sm:$0xff]
    %v365 = vld [vmem:[#allocation6 + $0x38] sm:$0xff]
    %v366 = vld [vmem:[#allocation6 + $0x40] sm:$0xff]
    %v367 = vld [vmem:[#allocation6 + $0x48] sm:$0xff]
    %v368 = vld [vmem:[#allocation6 + $0x50] sm:$0xff]
    %v369 = vld [vmem:[#allocation6 + $0x58] sm:$0xff]
    %v370 = vld [vmem:[#allocation6 + $0x60] sm:$0xff]
    %v371 = vld [vmem:[#allocation6 + $0x68] sm:$0xff]
    %v372 = vld [vmem:[#allocation6 + $0x70] sm:$0xff]
    %v373 = vld [vmem:[#allocation6 + $0x78] sm:$0xff]
    %vm374 = vcmask 261120
    %v376 = vsel %vm374, %v314, 0
    %378 = vmatprep.subr.mxu0 0.0
    %379 = vmatpush1.msra.mxu0 %v342
    %380 = vmatprep.subr.mxu0 0.0
    %381 = vmatpush1.msra.mxu0 %v343
    %382 = vmatprep.subr.mxu0 0.0
    %383 = vmatpush1.msra.mxu0 %v344
    %384 = vmatprep.subr.mxu0 0.0
    %385 = vmatpush1.msra.mxu0 %v345
    %386 = vmatprep.subr.mxu0 0.0
    %387 = vmatpush1.msra.mxu0 0.0
    %388 = vmatprep.subr.mxu0 0.0
    %389 = vmatpush1.msra.mxu0 0.0
    %390 = vmatprep.subr.mxu0 0.0
    %391 = vmatpush1.msra.mxu0 0.0
    %392 = vmatprep.subr.mxu0 0.0
    %393 = vmatpush1.msra.mxu0 0.0
    %394 = vmatprep.subr.mxu0 0.0
    %395 = vmatpush1.msra.mxu0 0.0
    %396 = vmatprep.subr.mxu0 0.0
    %397 = vmatpush1.msra.mxu0 0.0
    %398 = vmatprep.subr.mxu0 0.0
    %399 = vmatpush1.msra.mxu0 0.0
    %400 = vmatprep.subr.mxu0 0.0
    %401 = vmatpush1.msra.mxu0 0.0
    %402 = vmatprep.subr.mxu0 0.0
    %403 = vmatpush1.msra.mxu0 0.0
    %404 = vmatprep.subr.mxu0 0.0
    %405 = vmatpush1.msra.mxu0 0.0
    %406 = vmatprep.subr.mxu0 0.0
    %407 = vmatpush1.msra.mxu0 0.0
    %408 = vmatprep.subr.mxu0 0.0
    %409 = vmatpush1.msra.mxu0 0.0
    %410 = vmatprep.subr.mxu0 0.0
    %411 = vmatpush1.msra.mxu0 0.0
    %412 = vmatprep.subr.mxu0 0.0
    %413 = vmatpush1.msra.mxu0 0.0
    %414 = vmatprep.subr.mxu0 0.0
    %415 = vmatpush1.msra.mxu0 0.0
    %416 = vmatprep.subr.mxu0 0.0
    %417 = vmatpush1.msra.mxu0 0.0
    %418 = vmatprep.subr.mxu0 0.0
    %419 = vmatpush1.msra.mxu0 0.0
    %420 = vmatprep.subr.mxu0 0.0
    %421 = vmatpush1.msra.mxu0 0.0
    %422 = vmatprep.subr.mxu0 0.0
    %423 = vmatpush1.msra.mxu0 0.0
    %424 = vmatprep.subr.mxu0 0.0
    %425 = vmatpush1.msra.mxu0 0.0
    %426 = vmatprep.subr.mxu0 0.0
    %427 = vmatpush1.msra.mxu0 0.0
    %428 = vmatprep.subr.mxu0 0.0
    %429 = vmatpush1.msra.mxu0 0.0
    %430 = vmatprep.subr.mxu0 0.0
    %431 = vmatpush1.msra.mxu0 0.0
    %432 = vmatprep.subr.mxu0 0.0
    %433 = vmatpush1.msra.mxu0 0.0
    %434 = vmatprep.subr.mxu0 0.0
    %435 = vmatpush1.msra.mxu0 0.0
    %436 = vmatprep.subr.mxu0 0.0
    %437 = vmatpush1.msra.mxu0 0.0
    %438 = vmatprep.subr.mxu0 0.0
    %439 = vmatpush1.msra.mxu0 0.0
    %440 = vmatprep.subr.mxu0 0.0
    %441 = vmatpush1.msra.mxu0 0.0
    %442 = vmatprep.mubr.f32.mxu0 0.0
    %443 = vmatmul.mubr.f32.gmra.mrb[0].mxu0 %v376
    %v444 = vpop.f32.mrb[0].mxu0
    %v445 = vadd.f32 0.0, %v444
    %v446 = vpop.f32.mrb[0].mxu0
    %447 = vdwg.mxu0
    %v449 = vsel %vm374, %v338, 0
    %451 = vmatprep.subr.mxu0 0.0
    %452 = vmatpush1.msra.mxu0 %v346
    %453 = vmatprep.subr.mxu0 0.0
    %454 = vmatpush1.msra.mxu0 %v347
    %455 = vmatprep.subr.mxu0 0.0
    %456 = vmatpush1.msra.mxu0 %v348
    %457 = vmatprep.subr.mxu0 0.0
    %458 = vmatpush1.msra.mxu0 %v349
    %459 = vmatprep.subr.mxu0 0.0
    %460 = vmatpush1.msra.mxu0 0.0
    %461 = vmatprep.subr.mxu0 0.0
    %462 = vmatpush1.msra.mxu0 0.0
    %463 = vmatprep.subr.mxu0 0.0
    %464 = vmatpush1.msra.mxu0 0.0
    %465 = vmatprep.subr.mxu0 0.0
    %466 = vmatpush1.msra.mxu0 0.0
    %467 = vmatprep.subr.mxu0 0.0
    %468 = vmatpush1.msra.mxu0 0.0
    %469 = vmatprep.subr.mxu0 0.0
    %470 = vmatpush1.msra.mxu0 0.0
    %471 = vmatprep.subr.mxu0 0.0
    %472 = vmatpush1.msra.mxu0 0.0
    %473 = vmatprep.subr.mxu0 0.0
    %474 = vmatpush1.msra.mxu0 0.0
    %475 = vmatprep.subr.mxu0 0.0
    %476 = vmatpush1.msra.mxu0 0.0
    %477 = vmatprep.subr.mxu0 0.0
    %478 = vmatpush1.msra.mxu0 0.0
    %479 = vmatprep.subr.mxu0 0.0
    %480 = vmatpush1.msra.mxu0 0.0
    %481 = vmatprep.subr.mxu0 0.0
    %482 = vmatpush1.msra.mxu0 0.0
    %483 = vmatprep.subr.mxu0 0.0
    %484 = vmatpush1.msra.mxu0 0.0
    %485 = vmatprep.subr.mxu0 0.0
    %486 = vmatpush1.msra.mxu0 0.0
    %487 = vmatprep.subr.mxu0 0.0
    %488 = vmatpush1.msra.mxu0 0.0
    %489 = vmatprep.subr.mxu0 0.0
    %490 = vmatpush1.msra.mxu0 0.0
    %491 = vmatprep.subr.mxu0 0.0
    %492 = vmatpush1.msra.mxu0 0.0
    %493 = vmatprep.subr.mxu0 0.0
    %494 = vmatpush1.msra.mxu0 0.0
    %495 = vmatprep.subr.mxu0 0.0
    %496 = vmatpush1.msra.mxu0 0.0
    %497 = vmatprep.subr.mxu0 0.0
    %498 = vmatpush1.msra.mxu0 0.0
    %499 = vmatprep.subr.mxu0 0.0
    %500 = vmatpush1.msra.mxu0 0.0
    %501 = vmatprep.subr.mxu0 0.0
    %502 = vmatpush1.msra.mxu0 0.0
    %503 = vmatprep.subr.mxu0 0.0
    %504 = vmatpush1.msra.mxu0 0.0
    %505 = vmatprep.subr.mxu0 0.0
    %506 = vmatpush1.msra.mxu0 0.0
    %507 = vmatprep.subr.mxu0 0.0
    %508 = vmatpush1.msra.mxu0 0.0
    %509 = vmatprep.subr.mxu0 0.0
    %510 = vmatpush1.msra.mxu0 0.0
    %511 = vmatprep.subr.mxu0 0.0
    %512 = vmatpush1.msra.mxu0 0.0
    %513 = vmatprep.subr.mxu0 0.0
    %514 = vmatpush1.msra.mxu0 0.0
    %515 = vmatprep.mubr.f32.mxu0 0.0
    %516 = vmatmul.mubr.f32.gmra.mrb[0].mxu0 %v449
    %v517 = vpop.f32.mrb[0].mxu0
    %v518 = vadd.f32 0.0, %v517
    %v519 = vpop.f32.mrb[0].mxu0
    %520 = vdwg.mxu0
    %v522 = vsel %vm374, %v321, 0
    %524 = vmatprep.subr.mxu0 0.0
    %525 = vmatpush1.msra.mxu0 %v350
    %526 = vmatprep.subr.mxu0 0.0
    %527 = vmatpush1.msra.mxu0 %v351
    %528 = vmatprep.subr.mxu0 0.0
    %529 = vmatpush1.msra.mxu0 %v352
    %530 = vmatprep.subr.mxu0 0.0
    %531 = vmatpush1.msra.mxu0 %v353
    %532 = vmatprep.subr.mxu0 0.0
    %533 = vmatpush1.msra.mxu0 0.0
    %534 = vmatprep.subr.mxu0 0.0
    %535 = vmatpush1.msra.mxu0 0.0
    %536 = vmatprep.subr.mxu0 0.0
    %537 = vmatpush1.msra.mxu0 0.0
    %538 = vmatprep.subr.mxu0 0.0
    %539 = vmatpush1.msra.mxu0 0.0
    %540 = vmatprep.subr.mxu0 0.0
    %541 = vmatpush1.msra.mxu0 0.0
    %542 = vmatprep.subr.mxu0 0.0
    %543 = vmatpush1.msra.mxu0 0.0
    %544 = vmatprep.subr.mxu0 0.0
    %545 = vmatpush1.msra.mxu0 0.0
    %546 = vmatprep.subr.mxu0 0.0
    %547 = vmatpush1.msra.mxu0 0.0
    %548 = vmatprep.subr.mxu0 0.0
    %549 = vmatpush1.msra.mxu0 0.0
    %550 = vmatprep.subr.mxu0 0.0
    %551 = vmatpush1.msra.mxu0 0.0
    %552 = vmatprep.subr.mxu0 0.0
    %553 = vmatpush1.msra.mxu0 0.0
    %554 = vmatprep.subr.mxu0 0.0
    %555 = vmatpush1.msra.mxu0 0.0
    %556 = vmatprep.subr.mxu0 0.0
    %557 = vmatpush1.msra.mxu0 0.0
    %558 = vmatprep.subr.mxu0 0.0
    %559 = vmatpush1.msra.mxu0 0.0
    %560 = vmatprep.subr.mxu0 0.0
    %561 = vmatpush1.msra.mxu0 0.0
    %562 = vmatprep.subr.mxu0 0.0
    %563 = vmatpush1.msra.mxu0 0.0
    %564 = vmatprep.subr.mxu0 0.0
    %565 = vmatpush1.msra.mxu0 0.0
    %566 = vmatprep.subr.mxu0 0.0
    %567 = vmatpush1.msra.mxu0 0.0
    %568 = vmatprep.subr.mxu0 0.0
    %569 = vmatpush1.msra.mxu0 0.0
    %570 = vmatprep.subr.mxu0 0.0
    %571 = vmatpush1.msra.mxu0 0.0
    %572 = vmatprep.subr.mxu0 0.0
    %573 = vmatpush1.msra.mxu0 0.0
    %574 = vmatprep.subr.mxu0 0.0
    %575 = vmatpush1.msra.mxu0 0.0
    %576 = vmatprep.subr.mxu0 0.0
    %577 = vmatpush1.msra.mxu0 0.0
    %578 = vmatprep.subr.mxu0 0.0
    %579 = vmatpush1.msra.mxu0 0.0
    %580 = vmatprep.subr.mxu0 0.0
    %581 = vmatpush1.msra.mxu0 0.0
    %582 = vmatprep.subr.mxu0 0.0
    %583 = vmatpush1.msra.mxu0 0.0
    %584 = vmatprep.subr.mxu0 0.0
    %585 = vmatpush1.msra.mxu0 0.0
    %586 = vmatprep.subr.mxu0 0.0
    %587 = vmatpush1.msra.mxu0 0.0
    %588 = vmatprep.mubr.f32.mxu0 0.0
    %589 = vmatmul.mubr.f32.gmra.mrb[0].mxu0 %v522
    %v590 = vpop.f32.mrb[0].mxu0
    %v591 = vadd.f32 0.0, %v590
    %v592 = vpop.f32.mrb[0].mxu0
    %593 = vdwg.mxu0
    %v595 = vsel %vm374, %v339, 0
    %597 = vmatprep.subr.mxu0 0.0
    %598 = vmatpush1.msra.mxu0 %v354
    %599 = vmatprep.subr.mxu0 0.0
    %600 = vmatpush1.msra.mxu0 %v355
    %601 = vmatprep.subr.mxu0 0.0
    %602 = vmatpush1.msra.mxu0 %v356
    %603 = vmatprep.subr.mxu0 0.0
    %604 = vmatpush1.msra.mxu0 %v357
    %605 = vmatprep.subr.mxu0 0.0
    %606 = vmatpush1.msra.mxu0 0.0
    %607 = vmatprep.subr.mxu0 0.0
    %608 = vmatpush1.msra.mxu0 0.0
    %609 = vmatprep.subr.mxu0 0.0
    %610 = vmatpush1.msra.mxu0 0.0
    %611 = vmatprep.subr.mxu0 0.0
    %612 = vmatpush1.msra.mxu0 0.0
    %613 = vmatprep.subr.mxu0 0.0
    %614 = vmatpush1.msra.mxu0 0.0
    %615 = vmatprep.subr.mxu0 0.0
    %616 = vmatpush1.msra.mxu0 0.0
    %617 = vmatprep.subr.mxu0 0.0
    %618 = vmatpush1.msra.mxu0 0.0
    %619 = vmatprep.subr.mxu0 0.0
    %620 = vmatpush1.msra.mxu0 0.0
    %621 = vmatprep.subr.mxu0 0.0
    %622 = vmatpush1.msra.mxu0 0.0
    %623 = vmatprep.subr.mxu0 0.0
    %624 = vmatpush1.msra.mxu0 0.0
    %625 = vmatprep.subr.mxu0 0.0
    %626 = vmatpush1.msra.mxu0 0.0
    %627 = vmatprep.subr.mxu0 0.0
    %628 = vmatpush1.msra.mxu0 0.0
    %629 = vmatprep.subr.mxu0 0.0
    %630 = vmatpush1.msra.mxu0 0.0
    %631 = vmatprep.subr.mxu0 0.0
    %632 = vmatpush1.msra.mxu0 0.0
    %633 = vmatprep.subr.mxu0 0.0
    %634 = vmatpush1.msra.mxu0 0.0
    %635 = vmatprep.subr.mxu0 0.0
    %636 = vmatpush1.msra.mxu0 0.0
    %637 = vmatprep.subr.mxu0 0.0
    %638 = vmatpush1.msra.mxu0 0.0
    %639 = vmatprep.subr.mxu0 0.0
    %640 = vmatpush1.msra.mxu0 0.0
    %641 = vmatprep.subr.mxu0 0.0
    %642 = vmatpush1.msra.mxu0 0.0
    %643 = vmatprep.subr.mxu0 0.0
    %644 = vmatpush1.msra.mxu0 0.0
    %645 = vmatprep.subr.mxu0 0.0
    %646 = vmatpush1.msra.mxu0 0.0
    %647 = vmatprep.subr.mxu0 0.0
    %648 = vmatpush1.msra.mxu0 0.0
    %649 = vmatprep.subr.mxu0 0.0
    %650 = vmatpush1.msra.mxu0 0.0
    %651 = vmatprep.subr.mxu0 0.0
    %652 = vmatpush1.msra.mxu0 0.0
    %653 = vmatprep.subr.mxu0 0.0
    %654 = vmatpush1.msra.mxu0 0.0
    %655 = vmatprep.subr.mxu0 0.0
    %656 = vmatpush1.msra.mxu0 0.0
    %657 = vmatprep.subr.mxu0 0.0
    %658 = vmatpush1.msra.mxu0 0.0
    %659 = vmatprep.subr.mxu0 0.0
    %660 = vmatpush1.msra.mxu0 0.0
    %661 = vmatprep.mubr.f32.mxu0 0.0
    %662 = vmatmul.mubr.f32.gmra.mrb[0].mxu0 %v595
    %v663 = vpop.f32.mrb[0].mxu0
    %v664 = vadd.f32 0.0, %v663
    %v665 = vpop.f32.mrb[0].mxu0
    %666 = vdwg.mxu0
    %v668 = vsel %vm374, %v330, 0
    %670 = vmatprep.subr.mxu0 0.0
    %671 = vmatpush1.msra.mxu0 %v358
    %672 = vmatprep.subr.mxu0 0.0
    %673 = vmatpush1.msra.mxu0 %v359
    %674 = vmatprep.subr.mxu0 0.0
    %675 = vmatpush1.msra.mxu0 %v360
    %676 = vmatprep.subr.mxu0 0.0
    %677 = vmatpush1.msra.mxu0 %v361
    %678 = vmatprep.subr.mxu0 0.0
    %679 = vmatpush1.msra.mxu0 0.0
    %680 = vmatprep.subr.mxu0 0.0
    %681 = vmatpush1.msra.mxu0 0.0
    %682 = vmatprep.subr.mxu0 0.0
    %683 = vmatpush1.msra.mxu0 0.0
    %684 = vmatprep.subr.mxu0 0.0
    %685 = vmatpush1.msra.mxu0 0.0
    %686 = vmatprep.subr.mxu0 0.0
    %687 = vmatpush1.msra.mxu0 0.0
    %688 = vmatprep.subr.mxu0 0.0
    %689 = vmatpush1.msra.mxu0 0.0
    %690 = vmatprep.subr.mxu0 0.0
    %691 = vmatpush1.msra.mxu0 0.0
    %692 = vmatprep.subr.mxu0 0.0
    %693 = vmatpush1.msra.mxu0 0.0
    %694 = vmatprep.subr.mxu0 0.0
    %695 = vmatpush1.msra.mxu0 0.0
    %696 = vmatprep.subr.mxu0 0.0
    %697 = vmatpush1.msra.mxu0 0.0
    %698 = vmatprep.subr.mxu0 0.0
    %699 = vmatpush1.msra.mxu0 0.0
    %700 = vmatprep.subr.mxu0 0.0
    %701 = vmatpush1.msra.mxu0 0.0
    %702 = vmatprep.subr.mxu0 0.0
    %703 = vmatpush1.msra.mxu0 0.0
    %704 = vmatprep.subr.mxu0 0.0
    %705 = vmatpush1.msra.mxu0 0.0
    %706 = vmatprep.subr.mxu0 0.0
    %707 = vmatpush1.msra.mxu0 0.0
    %708 = vmatprep.subr.mxu0 0.0
    %709 = vmatpush1.msra.mxu0 0.0
    %710 = vmatprep.subr.mxu0 0.0
    %711 = vmatpush1.msra.mxu0 0.0
    %712 = vmatprep.subr.mxu0 0.0
    %713 = vmatpush1.msra.mxu0 0.0
    %714 = vmatprep.subr.mxu0 0.0
    %715 = vmatpush1.msra.mxu0 0.0
    %716 = vmatprep.subr.mxu0 0.0
    %717 = vmatpush1.msra.mxu0 0.0
    %718 = vmatprep.subr.mxu0 0.0
    %719 = vmatpush1.msra.mxu0 0.0
    %720 = vmatprep.subr.mxu0 0.0
    %721 = vmatpush1.msra.mxu0 0.0
    %722 = vmatprep.subr.mxu0 0.0
    %723 = vmatpush1.msra.mxu0 0.0
    %724 = vmatprep.subr.mxu0 0.0
    %725 = vmatpush1.msra.mxu0 0.0
    %726 = vmatprep.subr.mxu0 0.0
    %727 = vmatpush1.msra.mxu0 0.0
    %728 = vmatprep.subr.mxu0 0.0
    %729 = vmatpush1.msra.mxu0 0.0
    %730 = vmatprep.subr.mxu0 0.0
    %731 = vmatpush1.msra.mxu0 0.0
    %732 = vmatprep.subr.mxu0 0.0
    %733 = vmatpush1.msra.mxu0 0.0
    %734 = vmatprep.mubr.f32.mxu0 0.0
    %735 = vmatmul.mubr.f32.gmra.mrb[0].mxu0 %v668
    %v736 = vpop.f32.mrb[0].mxu0
    %v737 = vadd.f32 0.0, %v736
    %v738 = vpop.f32.mrb[0].mxu0
    %739 = vdwg.mxu0
    %v741 = vsel %vm374, %v340, 0
    %743 = vmatprep.subr.mxu0 0.0
    %744 = vmatpush1.msra.mxu0 %v362
    %745 = vmatprep.subr.mxu0 0.0
    %746 = vmatpush1.msra.mxu0 %v363
    %747 = vmatprep.subr.mxu0 0.0
    %748 = vmatpush1.msra.mxu0 %v364
    %749 = vmatprep.subr.mxu0 0.0
    %750 = vmatpush1.msra.mxu0 %v365
    %751 = vmatprep.subr.mxu0 0.0
    %752 = vmatpush1.msra.mxu0 0.0
    %753 = vmatprep.subr.mxu0 0.0
    %754 = vmatpush1.msra.mxu0 0.0
    %755 = vmatprep.subr.mxu0 0.0
    %756 = vmatpush1.msra.mxu0 0.0
    %757 = vmatprep.subr.mxu0 0.0
    %758 = vmatpush1.msra.mxu0 0.0
    %759 = vmatprep.subr.mxu0 0.0
    %760 = vmatpush1.msra.mxu0 0.0
    %761 = vmatprep.subr.mxu0 0.0
    %762 = vmatpush1.msra.mxu0 0.0
    %763 = vmatprep.subr.mxu0 0.0
    %764 = vmatpush1.msra.mxu0 0.0
    %765 = vmatprep.subr.mxu0 0.0
    %766 = vmatpush1.msra.mxu0 0.0
    %767 = vmatprep.subr.mxu0 0.0
    %768 = vmatpush1.msra.mxu0 0.0
    %769 = vmatprep.subr.mxu0 0.0
    %770 = vmatpush1.msra.mxu0 0.0
    %771 = vmatprep.subr.mxu0 0.0
    %772 = vmatpush1.msra.mxu0 0.0
    %773 = vmatprep.subr.mxu0 0.0
    %774 = vmatpush1.msra.mxu0 0.0
    %775 = vmatprep.subr.mxu0 0.0
    %776 = vmatpush1.msra.mxu0 0.0
    %777 = vmatprep.subr.mxu0 0.0
    %778 = vmatpush1.msra.mxu0 0.0
    %779 = vmatprep.subr.mxu0 0.0
    %780 = vmatpush1.msra.mxu0 0.0
    %781 = vmatprep.subr.mxu0 0.0
    %782 = vmatpush1.msra.mxu0 0.0
    %783 = vmatprep.subr.mxu0 0.0
    %784 = vmatpush1.msra.mxu0 0.0
    %785 = vmatprep.subr.mxu0 0.0
    %786 = vmatpush1.msra.mxu0 0.0
    %787 = vmatprep.subr.mxu0 0.0
    %788 = vmatpush1.msra.mxu0 0.0
    %789 = vmatprep.subr.mxu0 0.0
    %790 = vmatpush1.msra.mxu0 0.0
    %791 = vmatprep.subr.mxu0 0.0
    %792 = vmatpush1.msra.mxu0 0.0
    %793 = vmatprep.subr.mxu0 0.0
    %794 = vmatpush1.msra.mxu0 0.0
    %795 = vmatprep.subr.mxu0 0.0
    %796 = vmatpush1.msra.mxu0 0.0
    %797 = vmatprep.subr.mxu0 0.0
    %798 = vmatpush1.msra.mxu0 0.0
    %799 = vmatprep.subr.mxu0 0.0
    %800 = vmatpush1.msra.mxu0 0.0
    %801 = vmatprep.subr.mxu0 0.0
    %802 = vmatpush1.msra.mxu0 0.0
    %803 = vmatprep.subr.mxu0 0.0
    %804 = vmatpush1.msra.mxu0 0.0
    %805 = vmatprep.subr.mxu0 0.0
    %806 = vmatpush1.msra.mxu0 0.0
    %807 = vmatprep.mubr.f32.mxu0 0.0
    %808 = vmatmul.mubr.f32.gmra.mrb[0].mxu0 %v741
    %v809 = vpop.f32.mrb[0].mxu0
    %v810 = vadd.f32 0.0, %v809
    %v811 = vpop.f32.mrb[0].mxu0
    %812 = vdwg.mxu0
    %v814 = vsel %vm374, %v337, 0
    %816 = vmatprep.subr.mxu0 0.0
    %817 = vmatpush1.msra.mxu0 %v366
    %818 = vmatprep.subr.mxu0 0.0
    %819 = vmatpush1.msra.mxu0 %v367
    %820 = vmatprep.subr.mxu0 0.0
    %821 = vmatpush1.msra.mxu0 %v368
    %822 = vmatprep.subr.mxu0 0.0
    %823 = vmatpush1.msra.mxu0 %v369
    %824 = vmatprep.subr.mxu0 0.0
    %825 = vmatpush1.msra.mxu0 0.0
    %826 = vmatprep.subr.mxu0 0.0
    %827 = vmatpush1.msra.mxu0 0.0
    %828 = vmatprep.subr.mxu0 0.0
    %829 = vmatpush1.msra.mxu0 0.0
    %830 = vmatprep.subr.mxu0 0.0
    %831 = vmatpush1.msra.mxu0 0.0
    %832 = vmatprep.subr.mxu0 0.0
    %833 = vmatpush1.msra.mxu0 0.0
    %834 = vmatprep.subr.mxu0 0.0
    %835 = vmatpush1.msra.mxu0 0.0
    %836 = vmatprep.subr.mxu0 0.0
    %837 = vmatpush1.msra.mxu0 0.0
    %838 = vmatprep.subr.mxu0 0.0
    %839 = vmatpush1.msra.mxu0 0.0
    %840 = vmatprep.subr.mxu0 0.0
    %841 = vmatpush1.msra.mxu0 0.0
    %842 = vmatprep.subr.mxu0 0.0
    %843 = vmatpush1.msra.mxu0 0.0
    %844 = vmatprep.subr.mxu0 0.0
    %845 = vmatpush1.msra.mxu0 0.0
    %846 = vmatprep.subr.mxu0 0.0
    %847 = vmatpush1.msra.mxu0 0.0
    %848 = vmatprep.subr.mxu0 0.0
    %849 = vmatpush1.msra.mxu0 0.0
    %850 = vmatprep.subr.mxu0 0.0
    %851 = vmatpush1.msra.mxu0 0.0
    %852 = vmatprep.subr.mxu0 0.0
    %853 = vmatpush1.msra.mxu0 0.0
    %854 = vmatprep.subr.mxu0 0.0
    %855 = vmatpush1.msra.mxu0 0.0
    %856 = vmatprep.subr.mxu0 0.0
    %857 = vmatpush1.msra.mxu0 0.0
    %858 = vmatprep.subr.mxu0 0.0
    %859 = vmatpush1.msra.mxu0 0.0
    %860 = vmatprep.subr.mxu0 0.0
    %861 = vmatpush1.msra.mxu0 0.0
    %862 = vmatprep.subr.mxu0 0.0
    %863 = vmatpush1.msra.mxu0 0.0
    %864 = vmatprep.subr.mxu0 0.0
    %865 = vmatpush1.msra.mxu0 0.0
    %866 = vmatprep.subr.mxu0 0.0
    %867 = vmatpush1.msra.mxu0 0.0
    %868 = vmatprep.subr.mxu0 0.0
    %869 = vmatpush1.msra.mxu0 0.0
    %870 = vmatprep.subr.mxu0 0.0
    %871 = vmatpush1.msra.mxu0 0.0
    %872 = vmatprep.subr.mxu0 0.0
    %873 = vmatpush1.msra.mxu0 0.0
    %874 = vmatprep.subr.mxu0 0.0
    %875 = vmatpush1.msra.mxu0 0.0
    %876 = vmatprep.subr.mxu0 0.0
    %877 = vmatpush1.msra.mxu0 0.0
    %878 = vmatprep.subr.mxu0 0.0
    %879 = vmatpush1.msra.mxu0 0.0
    %880 = vmatprep.mubr.f32.mxu0 0.0
    %881 = vmatmul.mubr.f32.gmra.mrb[0].mxu0 %v814
    %v882 = vpop.f32.mrb[0].mxu0
    %v883 = vadd.f32 0.0, %v882
    %v884 = vpop.f32.mrb[0].mxu0
    %885 = vdwg.mxu0
    %v887 = vsel %vm374, %v341, 0
    %889 = vmatprep.subr.mxu0 0.0
    %890 = vmatpush1.msra.mxu0 %v370
    %891 = vmatprep.subr.mxu0 0.0
    %892 = vmatpush1.msra.mxu0 %v371
    %893 = vmatprep.subr.mxu0 0.0
    %894 = vmatpush1.msra.mxu0 %v372
    %895 = vmatprep.subr.mxu0 0.0
    %896 = vmatpush1.msra.mxu0 %v373
    %897 = vmatprep.subr.mxu0 0.0
    %898 = vmatpush1.msra.mxu0 0.0
    %899 = vmatprep.subr.mxu0 0.0
    %900 = vmatpush1.msra.mxu0 0.0
    %901 = vmatprep.subr.mxu0 0.0
    %902 = vmatpush1.msra.mxu0 0.0
    %903 = vmatprep.subr.mxu0 0.0
    %904 = vmatpush1.msra.mxu0 0.0
    %905 = vmatprep.subr.mxu0 0.0
    %906 = vmatpush1.msra.mxu0 0.0
    %907 = vmatprep.subr.mxu0 0.0
    %908 = vmatpush1.msra.mxu0 0.0
    %909 = vmatprep.subr.mxu0 0.0
    %910 = vmatpush1.msra.mxu0 0.0
    %911 = vmatprep.subr.mxu0 0.0
    %912 = vmatpush1.msra.mxu0 0.0
    %913 = vmatprep.subr.mxu0 0.0
    %914 = vmatpush1.msra.mxu0 0.0
    %915 = vmatprep.subr.mxu0 0.0
    %916 = vmatpush1.msra.mxu0 0.0
    %917 = vmatprep.subr.mxu0 0.0
    %918 = vmatpush1.msra.mxu0 0.0
    %919 = vmatprep.subr.mxu0 0.0
    %920 = vmatpush1.msra.mxu0 0.0
    %921 = vmatprep.subr.mxu0 0.0
    %922 = vmatpush1.msra.mxu0 0.0
    %923 = vmatprep.subr.mxu0 0.0
    %924 = vmatpush1.msra.mxu0 0.0
    %925 = vmatprep.subr.mxu0 0.0
    %926 = vmatpush1.msra.mxu0 0.0
    %927 = vmatprep.subr.mxu0 0.0
    %928 = vmatpush1.msra.mxu0 0.0
    %929 = vmatprep.subr.mxu0 0.0
    %930 = vmatpush1.msra.mxu0 0.0
    %931 = vmatprep.subr.mxu0 0.0
    %932 = vmatpush1.msra.mxu0 0.0
    %933 = vmatprep.subr.mxu0 0.0
    %934 = vmatpush1.msra.mxu0 0.0
    %935 = vmatprep.subr.mxu0 0.0
    %936 = vmatpush1.msra.mxu0 0.0
    %937 = vmatprep.subr.mxu0 0.0
    %938 = vmatpush1.msra.mxu0 0.0
    %939 = vmatprep.subr.mxu0 0.0
    %940 = vmatpush1.msra.mxu0 0.0
    %941 = vmatprep.subr.mxu0 0.0
    %942 = vmatpush1.msra.mxu0 0.0
    %943 = vmatprep.subr.mxu0 0.0
    %944 = vmatpush1.msra.mxu0 0.0
    %945 = vmatprep.subr.mxu0 0.0
    %946 = vmatpush1.msra.mxu0 0.0
    %947 = vmatprep.subr.mxu0 0.0
    %948 = vmatpush1.msra.mxu0 0.0
    %949 = vmatprep.subr.mxu0 0.0
    %950 = vmatpush1.msra.mxu0 0.0
    %951 = vmatprep.subr.mxu0 0.0
    %952 = vmatpush1.msra.mxu0 0.0
    %953 = vmatprep.mubr.f32.mxu0 0.0
    %954 = vmatmul.mubr.f32.gmra.mrb[0].mxu0 %v887
    %v955 = vpop.f32.mrb[0].mxu0
    %v956 = vadd.f32 0.0, %v955
    %v957 = vpop.f32.mrb[0].mxu0
    %958 = vdwg.mxu0
    %v959 = vsub.f32 %v445, %v737
    %v960 = vsub.f32 %v518, %v810
    %v961 = vsub.f32 %v591, %v883
    %v962 = vsub.f32 %v664, %v956
    %963 = vmatprep.subr.mxu0 0.0
    %964 = vmatpush1.msra.mxu0 %v342
    %965 = vmatprep.subr.mxu0 0.0
    %966 = vmatpush1.msra.mxu0 %v343
    %967 = vmatprep.subr.mxu0 0.0
    %968 = vmatpush1.msra.mxu0 %v344
    %969 = vmatprep.subr.mxu0 0.0
    %970 = vmatpush1.msra.mxu0 %v345
    %971 = vmatprep.subr.mxu0 0.0
    %972 = vmatpush1.msra.mxu0 0.0
    %973 = vmatprep.subr.mxu0 0.0
    %974 = vmatpush1.msra.mxu0 0.0
    %975 = vmatprep.subr.mxu0 0.0
    %976 = vmatpush1.msra.mxu0 0.0
    %977 = vmatprep.subr.mxu0 0.0
    %978 = vmatpush1.msra.mxu0 0.0
    %979 = vmatprep.subr.mxu0 0.0
    %980 = vmatpush1.msra.mxu0 0.0
    %981 = vmatprep.subr.mxu0 0.0
    %982 = vmatpush1.msra.mxu0 0.0
    %983 = vmatprep.subr.mxu0 0.0
    %984 = vmatpush1.msra.mxu0 0.0
    %985 = vmatprep.subr.mxu0 0.0
    %986 = vmatpush1.msra.mxu0 0.0
    %987 = vmatprep.subr.mxu0 0.0
    %988 = vmatpush1.msra.mxu0 0.0
    %989 = vmatprep.subr.mxu0 0.0
    %990 = vmatpush1.msra.mxu0 0.0
    %991 = vmatprep.subr.mxu0 0.0
    %992 = vmatpush1.msra.mxu0 0.0
    %993 = vmatprep.subr.mxu0 0.0
    %994 = vmatpush1.msra.mxu0 0.0
    %995 = vmatprep.subr.mxu0 0.0
    %996 = vmatpush1.msra.mxu0 0.0
    %997 = vmatprep.subr.mxu0 0.0
    %998 = vmatpush1.msra.mxu0 0.0
    %999 = vmatprep.subr.mxu0 0.0
    %1000 = vmatpush1.msra.mxu0 0.0
    %1001 = vmatprep.subr.mxu0 0.0
    %1002 = vmatpush1.msra.mxu0 0.0
    %1003 = vmatprep.subr.mxu0 0.0
    %1004 = vmatpush1.msra.mxu0 0.0
    %1005 = vmatprep.subr.mxu0 0.0
    %1006 = vmatpush1.msra.mxu0 0.0
    %1007 = vmatprep.subr.mxu0 0.0
    %1008 = vmatpush1.msra.mxu0 0.0
    %1009 = vmatprep.subr.mxu0 0.0
    %1010 = vmatpush1.msra.mxu0 0.0
    %1011 = vmatprep.subr.mxu0 0.0
    %1012 = vmatpush1.msra.mxu0 0.0
    %1013 = vmatprep.subr.mxu0 0.0
    %1014 = vmatpush1.msra.mxu0 0.0
    %1015 = vmatprep.subr.mxu0 0.0
    %1016 = vmatpush1.msra.mxu0 0.0
    %1017 = vmatprep.subr.mxu0 0.0
    %1018 = vmatpush1.msra.mxu0 0.0
    %1019 = vmatprep.subr.mxu0 0.0
    %1020 = vmatpush1.msra.mxu0 0.0
    %1021 = vmatprep.subr.mxu0 0.0
    %1022 = vmatpush1.msra.mxu0 0.0
    %1023 = vmatprep.subr.mxu0 0.0
    %1024 = vmatpush1.msra.mxu0 0.0
    %1025 = vmatprep.subr.mxu0 0.0
    %1026 = vmatpush1.msra.mxu0 0.0
    %1027 = vmatprep.mubr.f32.mxu0 0.0
    %1028 = vmatmul.mubr.f32.gmra.mrb[0].mxu0 %v668
    %v1029 = vpop.f32.mrb[0].mxu0
    %v1030 = vadd.f32 0.0, %v1029
    %v1031 = vpop.f32.mrb[0].mxu0
    %1032 = vdwg.mxu0
    %1033 = vmatprep.subr.mxu0 0.0
    %1034 = vmatpush1.msra.mxu0 %v346
    %1035 = vmatprep.subr.mxu0 0.0
    %1036 = vmatpush1.msra.mxu0 %v347
    %1037 = vmatprep.subr.mxu0 0.0
    %1038 = vmatpush1.msra.mxu0 %v348
    %1039 = vmatprep.subr.mxu0 0.0
    %1040 = vmatpush1.msra.mxu0 %v349
    %1041 = vmatprep.subr.mxu0 0.0
    %1042 = vmatpush1.msra.mxu0 0.0
    %1043 = vmatprep.subr.mxu0 0.0
    %1044 = vmatpush1.msra.mxu0 0.0
    %1045 = vmatprep.subr.mxu0 0.0
    %1046 = vmatpush1.msra.mxu0 0.0
    %1047 = vmatprep.subr.mxu0 0.0
    %1048 = vmatpush1.msra.mxu0 0.0
    %1049 = vmatprep.subr.mxu0 0.0
    %1050 = vmatpush1.msra.mxu0 0.0
    %1051 = vmatprep.subr.mxu0 0.0
    %1052 = vmatpush1.msra.mxu0 0.0
    %1053 = vmatprep.subr.mxu0 0.0
    %1054 = vmatpush1.msra.mxu0 0.0
    %1055 = vmatprep.subr.mxu0 0.0
    %1056 = vmatpush1.msra.mxu0 0.0
    %1057 = vmatprep.subr.mxu0 0.0
    %1058 = vmatpush1.msra.mxu0 0.0
    %1059 = vmatprep.subr.mxu0 0.0
    %1060 = vmatpush1.msra.mxu0 0.0
    %1061 = vmatprep.subr.mxu0 0.0
    %1062 = vmatpush1.msra.mxu0 0.0
    %1063 = vmatprep.subr.mxu0 0.0
    %1064 = vmatpush1.msra.mxu0 0.0
    %1065 = vmatprep.subr.mxu0 0.0
    %1066 = vmatpush1.msra.mxu0 0.0
    %1067 = vmatprep.subr.mxu0 0.0
    %1068 = vmatpush1.msra.mxu0 0.0
    %1069 = vmatprep.subr.mxu0 0.0
    %1070 = vmatpush1.msra.mxu0 0.0
    %1071 = vmatprep.subr.mxu0 0.0
    %1072 = vmatpush1.msra.mxu0 0.0
    %1073 = vmatprep.subr.mxu0 0.0
    %1074 = vmatpush1.msra.mxu0 0.0
    %1075 = vmatprep.subr.mxu0 0.0
    %1076 = vmatpush1.msra.mxu0 0.0
    %1077 = vmatprep.subr.mxu0 0.0
    %1078 = vmatpush1.msra.mxu0 0.0
    %1079 = vmatprep.subr.mxu0 0.0
    %1080 = vmatpush1.msra.mxu0 0.0
    %1081 = vmatprep.subr.mxu0 0.0
    %1082 = vmatpush1.msra.mxu0 0.0
    %1083 = vmatprep.subr.mxu0 0.0
    %1084 = vmatpush1.msra.mxu0 0.0
    %1085 = vmatprep.subr.mxu0 0.0
    %1086 = vmatpush1.msra.mxu0 0.0
    %1087 = vmatprep.subr.mxu0 0.0
    %1088 = vmatpush1.msra.mxu0 0.0
    %1089 = vmatprep.subr.mxu0 0.0
    %1090 = vmatpush1.msra.mxu0 0.0
    %1091 = vmatprep.subr.mxu0 0.0
    %1092 = vmatpush1.msra.mxu0 0.0
    %1093 = vmatprep.subr.mxu0 0.0
    %1094 = vmatpush1.msra.mxu0 0.0
    %1095 = vmatprep.subr.mxu0 0.0
    %1096 = vmatpush1.msra.mxu0 0.0
    %1097 = vmatprep.mubr.f32.mxu0 0.0
    %1098 = vmatmul.mubr.f32.gmra.mrb[0].mxu0 %v741
    %v1099 = vpop.f32.mrb[0].mxu0
    %v1100 = vadd.f32 0.0, %v1099
    %v1101 = vpop.f32.mrb[0].mxu0
    %1102 = vdwg.mxu0
    %1103 = vmatprep.subr.mxu0 0.0
    %1104 = vmatpush1.msra.mxu0 %v350
    %1105 = vmatprep.subr.mxu0 0.0
    %1106 = vmatpush1.msra.mxu0 %v351
    %1107 = vmatprep.subr.mxu0 0.0
    %1108 = vmatpush1.msra.mxu0 %v352
    %1109 = vmatprep.subr.mxu0 0.0
    %1110 = vmatpush1.msra.mxu0 %v353
    %1111 = vmatprep.subr.mxu0 0.0
    %1112 = vmatpush1.msra.mxu0 0.0
    %1113 = vmatprep.subr.mxu0 0.0
    %1114 = vmatpush1.msra.mxu0 0.0
    %1115 = vmatprep.subr.mxu0 0.0
    %1116 = vmatpush1.msra.mxu0 0.0
    %1117 = vmatprep.subr.mxu0 0.0
    %1118 = vmatpush1.msra.mxu0 0.0
    %1119 = vmatprep.subr.mxu0 0.0
    %1120 = vmatpush1.msra.mxu0 0.0
    %1121 = vmatprep.subr.mxu0 0.0
    %1122 = vmatpush1.msra.mxu0 0.0
    %1123 = vmatprep.subr.mxu0 0.0
    %1124 = vmatpush1.msra.mxu0 0.0
    %1125 = vmatprep.subr.mxu0 0.0
    %1126 = vmatpush1.msra.mxu0 0.0
    %1127 = vmatprep.subr.mxu0 0.0
    %1128 = vmatpush1.msra.mxu0 0.0
    %1129 = vmatprep.subr.mxu0 0.0
    %1130 = vmatpush1.msra.mxu0 0.0
    %1131 = vmatprep.subr.mxu0 0.0
    %1132 = vmatpush1.msra.mxu0 0.0
    %1133 = vmatprep.subr.mxu0 0.0
    %1134 = vmatpush1.msra.mxu0 0.0
    %1135 = vmatprep.subr.mxu0 0.0
    %1136 = vmatpush1.msra.mxu0 0.0
    %1137 = vmatprep.subr.mxu0 0.0
    %1138 = vmatpush1.msra.mxu0 0.0
    %1139 = vmatprep.subr.mxu0 0.0
    %1140 = vmatpush1.msra.mxu0 0.0
    %1141 = vmatprep.subr.mxu0 0.0
    %1142 = vmatpush1.msra.mxu0 0.0
    %1143 = vmatprep.subr.mxu0 0.0
    %1144 = vmatpush1.msra.mxu0 0.0
    %1145 = vmatprep.subr.mxu0 0.0
    %1146 = vmatpush1.msra.mxu0 0.0
    %1147 = vmatprep.subr.mxu0 0.0
    %1148 = vmatpush1.msra.mxu0 0.0
    %1149 = vmatprep.subr.mxu0 0.0
    %1150 = vmatpush1.msra.mxu0 0.0
    %1151 = vmatprep.subr.mxu0 0.0
    %1152 = vmatpush1.msra.mxu0 0.0
    %1153 = vmatprep.subr.mxu0 0.0
    %1154 = vmatpush1.msra.mxu0 0.0
    %1155 = vmatprep.subr.mxu0 0.0
    %1156 = vmatpush1.msra.mxu0 0.0
    %1157 = vmatprep.subr.mxu0 0.0
    %1158 = vmatpush1.msra.mxu0 0.0
    %1159 = vmatprep.subr.mxu0 0.0
    %1160 = vmatpush1.msra.mxu0 0.0
    %1161 = vmatprep.subr.mxu0 0.0
    %1162 = vmatpush1.msra.mxu0 0.0
    %1163 = vmatprep.subr.mxu0 0.0
    %1164 = vmatpush1.msra.mxu0 0.0
    %1165 = vmatprep.subr.mxu0 0.0
    %1166 = vmatpush1.msra.mxu0 0.0
    %1167 = vmatprep.mubr.f32.mxu0 0.0
    %1168 = vmatmul.mubr.f32.gmra.mrb[0].mxu0 %v814
    %v1169 = vpop.f32.mrb[0].mxu0
    %v1170 = vadd.f32 0.0, %v1169
    %v1171 = vpop.f32.mrb[0].mxu0
    %1172 = vdwg.mxu0
    %1173 = vmatprep.subr.mxu0 0.0
    %1174 = vmatpush1.msra.mxu0 %v354
    %1175 = vmatprep.subr.mxu0 0.0
    %1176 = vmatpush1.msra.mxu0 %v355
    %1177 = vmatprep.subr.mxu0 0.0
    %1178 = vmatpush1.msra.mxu0 %v356
    %1179 = vmatprep.subr.mxu0 0.0
    %1180 = vmatpush1.msra.mxu0 %v357
    %1181 = vmatprep.subr.mxu0 0.0
    %1182 = vmatpush1.msra.mxu0 0.0
    %1183 = vmatprep.subr.mxu0 0.0
    %1184 = vmatpush1.msra.mxu0 0.0
    %1185 = vmatprep.subr.mxu0 0.0
    %1186 = vmatpush1.msra.mxu0 0.0
    %1187 = vmatprep.subr.mxu0 0.0
    %1188 = vmatpush1.msra.mxu0 0.0
    %1189 = vmatprep.subr.mxu0 0.0
    %1190 = vmatpush1.msra.mxu0 0.0
    %1191 = vmatprep.subr.mxu0 0.0
    %1192 = vmatpush1.msra.mxu0 0.0
    %1193 = vmatprep.subr.mxu0 0.0
    %1194 = vmatpush1.msra.mxu0 0.0
    %1195 = vmatprep.subr.mxu0 0.0
    %1196 = vmatpush1.msra.mxu0 0.0
    %1197 = vmatprep.subr.mxu0 0.0
    %1198 = vmatpush1.msra.mxu0 0.0
    %1199 = vmatprep.subr.mxu0 0.0
    %1200 = vmatpush1.msra.mxu0 0.0
    %1201 = vmatprep.subr.mxu0 0.0
    %1202 = vmatpush1.msra.mxu0 0.0
    %1203 = vmatprep.subr.mxu0 0.0
    %1204 = vmatpush1.msra.mxu0 0.0
    %1205 = vmatprep.subr.mxu0 0.0
    %1206 = vmatpush1.msra.mxu0 0.0
    %1207 = vmatprep.subr.mxu0 0.0
    %1208 = vmatpush1.msra.mxu0 0.0
    %1209 = vmatprep.subr.mxu0 0.0
    %1210 = vmatpush1.msra.mxu0 0.0
    %1211 = vmatprep.subr.mxu0 0.0
    %1212 = vmatpush1.msra.mxu0 0.0
    %1213 = vmatprep.subr.mxu0 0.0
    %1214 = vmatpush1.msra.mxu0 0.0
    %1215 = vmatprep.subr.mxu0 0.0
    %1216 = vmatpush1.msra.mxu0 0.0
    %1217 = vmatprep.subr.mxu0 0.0
    %1218 = vmatpush1.msra.mxu0 0.0
    %1219 = vmatprep.subr.mxu0 0.0
    %1220 = vmatpush1.msra.mxu0 0.0
    %1221 = vmatprep.subr.mxu0 0.0
    %1222 = vmatpush1.msra.mxu0 0.0
    %1223 = vmatprep.subr.mxu0 0.0
    %1224 = vmatpush1.msra.mxu0 0.0
    %1225 = vmatprep.subr.mxu0 0.0
    %1226 = vmatpush1.msra.mxu0 0.0
    %1227 = vmatprep.subr.mxu0 0.0
    %1228 = vmatpush1.msra.mxu0 0.0
    %1229 = vmatprep.subr.mxu0 0.0
    %1230 = vmatpush1.msra.mxu0 0.0
    %1231 = vmatprep.subr.mxu0 0.0
    %1232 = vmatpush1.msra.mxu0 0.0
    %1233 = vmatprep.subr.mxu0 0.0
    %1234 = vmatpush1.msra.mxu0 0.0
    %1235 = vmatprep.subr.mxu0 0.0
    %1236 = vmatpush1.msra.mxu0 0.0
    %1237 = vmatprep.mubr.f32.mxu0 0.0
    %1238 = vmatmul.mubr.f32.gmra.mrb[0].mxu0 %v887
    %v1239 = vpop.f32.mrb[0].mxu0
    %v1240 = vadd.f32 0.0, %v1239
    %v1241 = vpop.f32.mrb[0].mxu0
    %1242 = vdwg.mxu0
    %1243 = vmatprep.subr.mxu0 0.0
    %1244 = vmatpush1.msra.mxu0 %v358
    %1245 = vmatprep.subr.mxu0 0.0
    %1246 = vmatpush1.msra.mxu0 %v359
    %1247 = vmatprep.subr.mxu0 0.0
    %1248 = vmatpush1.msra.mxu0 %v360
    %1249 = vmatprep.subr.mxu0 0.0
    %1250 = vmatpush1.msra.mxu0 %v361
    %1251 = vmatprep.subr.mxu0 0.0
    %1252 = vmatpush1.msra.mxu0 0.0
    %1253 = vmatprep.subr.mxu0 0.0
    %1254 = vmatpush1.msra.mxu0 0.0
    %1255 = vmatprep.subr.mxu0 0.0
    %1256 = vmatpush1.msra.mxu0 0.0
    %1257 = vmatprep.subr.mxu0 0.0
    %1258 = vmatpush1.msra.mxu0 0.0
    %1259 = vmatprep.subr.mxu0 0.0
    %1260 = vmatpush1.msra.mxu0 0.0
    %1261 = vmatprep.subr.mxu0 0.0
    %1262 = vmatpush1.msra.mxu0 0.0
    %1263 = vmatprep.subr.mxu0 0.0
    %1264 = vmatpush1.msra.mxu0 0.0
    %1265 = vmatprep.subr.mxu0 0.0
    %1266 = vmatpush1.msra.mxu0 0.0
    %1267 = vmatprep.subr.mxu0 0.0
    %1268 = vmatpush1.msra.mxu0 0.0
    %1269 = vmatprep.subr.mxu0 0.0
    %1270 = vmatpush1.msra.mxu0 0.0
    %1271 = vmatprep.subr.mxu0 0.0
    %1272 = vmatpush1.msra.mxu0 0.0
    %1273 = vmatprep.subr.mxu0 0.0
    %1274 = vmatpush1.msra.mxu0 0.0
    %1275 = vmatprep.subr.mxu0 0.0
    %1276 = vmatpush1.msra.mxu0 0.0
    %1277 = vmatprep.subr.mxu0 0.0
    %1278 = vmatpush1.msra.mxu0 0.0
    %1279 = vmatprep.subr.mxu0 0.0
    %1280 = vmatpush1.msra.mxu0 0.0
    %1281 = vmatprep.subr.mxu0 0.0
    %1282 = vmatpush1.msra.mxu0 0.0
    %1283 = vmatprep.subr.mxu0 0.0
    %1284 = vmatpush1.msra.mxu0 0.0
    %1285 = vmatprep.subr.mxu0 0.0
    %1286 = vmatpush1.msra.mxu0 0.0
    %1287 = vmatprep.subr.mxu0 0.0
    %1288 = vmatpush1.msra.mxu0 0.0
    %1289 = vmatprep.subr.mxu0 0.0
    %1290 = vmatpush1.msra.mxu0 0.0
    %1291 = vmatprep.subr.mxu0 0.0
    %1292 = vmatpush1.msra.mxu0 0.0
    %1293 = vmatprep.subr.mxu0 0.0
    %1294 = vmatpush1.msra.mxu0 0.0
    %1295 = vmatprep.subr.mxu0 0.0
    %1296 = vmatpush1.msra.mxu0 0.0
    %1297 = vmatprep.subr.mxu0 0.0
    %1298 = vmatpush1.msra.mxu0 0.0
    %1299 = vmatprep.subr.mxu0 0.0
    %1300 = vmatpush1.msra.mxu0 0.0
    %1301 = vmatprep.subr.mxu0 0.0
    %1302 = vmatpush1.msra.mxu0 0.0
    %1303 = vmatprep.subr.mxu0 0.0
    %1304 = vmatpush1.msra.mxu0 0.0
    %1305 = vmatprep.subr.mxu0 0.0
    %1306 = vmatpush1.msra.mxu0 0.0
    %1307 = vmatprep.mubr.f32.mxu0 0.0
    %1308 = vmatmul.mubr.f32.gmra.mrb[0].mxu0 %v376
    %v1309 = vpop.f32.mrb[0].mxu0
    %v1310 = vadd.f32 %v1030, %v1309
    %v1311 = vpop.f32.mrb[0].mxu0
    %1312 = vdwg.mxu0
    %1313 = vmatprep.subr.mxu0 0.0
    %1314 = vmatpush1.msra.mxu0 %v362
    %1315 = vmatprep.subr.mxu0 0.0
    %1316 = vmatpush1.msra.mxu0 %v363
    %1317 = vmatprep.subr.mxu0 0.0
    %1318 = vmatpush1.msra.mxu0 %v364
    %1319 = vmatprep.subr.mxu0 0.0
    %1320 = vmatpush1.msra.mxu0 %v365
    %1321 = vmatprep.subr.mxu0 0.0
    %1322 = vmatpush1.msra.mxu0 0.0
    %1323 = vmatprep.subr.mxu0 0.0
    %1324 = vmatpush1.msra.mxu0 0.0
    %1325 = vmatprep.subr.mxu0 0.0
    %1326 = vmatpush1.msra.mxu0 0.0
    %1327 = vmatprep.subr.mxu0 0.0
    %1328 = vmatpush1.msra.mxu0 0.0
    %1329 = vmatprep.subr.mxu0 0.0
    %1330 = vmatpush1.msra.mxu0 0.0
    %1331 = vmatprep.subr.mxu0 0.0
    %1332 = vmatpush1.msra.mxu0 0.0
    %1333 = vmatprep.subr.mxu0 0.0
    %1334 = vmatpush1.msra.mxu0 0.0
    %1335 = vmatprep.subr.mxu0 0.0
    %1336 = vmatpush1.msra.mxu0 0.0
    %1337 = vmatprep.subr.mxu0 0.0
    %1338 = vmatpush1.msra.mxu0 0.0
    %1339 = vmatprep.subr.mxu0 0.0
    %1340 = vmatpush1.msra.mxu0 0.0
    %1341 = vmatprep.subr.mxu0 0.0
    %1342 = vmatpush1.msra.mxu0 0.0
    %1343 = vmatprep.subr.mxu0 0.0
    %1344 = vmatpush1.msra.mxu0 0.0
    %1345 = vmatprep.subr.mxu0 0.0
    %1346 = vmatpush1.msra.mxu0 0.0
    %1347 = vmatprep.subr.mxu0 0.0
    %1348 = vmatpush1.msra.mxu0 0.0
    %1349 = vmatprep.subr.mxu0 0.0
    %1350 = vmatpush1.msra.mxu0 0.0
    %1351 = vmatprep.subr.mxu0 0.0
    %1352 = vmatpush1.msra.mxu0 0.0
    %1353 = vmatprep.subr.mxu0 0.0
    %1354 = vmatpush1.msra.mxu0 0.0
    %1355 = vmatprep.subr.mxu0 0.0
    %1356 = vmatpush1.msra.mxu0 0.0
    %1357 = vmatprep.subr.mxu0 0.0
    %1358 = vmatpush1.msra.mxu0 0.0
    %1359 = vmatprep.subr.mxu0 0.0
    %1360 = vmatpush1.msra.mxu0 0.0
    %1361 = vmatprep.subr.mxu0 0.0
    %1362 = vmatpush1.msra.mxu0 0.0
    %1363 = vmatprep.subr.mxu0 0.0
    %1364 = vmatpush1.msra.mxu0 0.0
    %1365 = vmatprep.subr.mxu0 0.0
    %1366 = vmatpush1.msra.mxu0 0.0
    %1367 = vmatprep.subr.mxu0 0.0
    %1368 = vmatpush1.msra.mxu0 0.0
    %1369 = vmatprep.subr.mxu0 0.0
    %1370 = vmatpush1.msra.mxu0 0.0
    %1371 = vmatprep.subr.mxu0 0.0
    %1372 = vmatpush1.msra.mxu0 0.0
    %1373 = vmatprep.subr.mxu0 0.0
    %1374 = vmatpush1.msra.mxu0 0.0
    %1375 = vmatprep.subr.mxu0 0.0
    %1376 = vmatpush1.msra.mxu0 0.0
    %1377 = vmatprep.mubr.f32.mxu0 0.0
    %1378 = vmatmul.mubr.f32.gmra.mrb[0].mxu0 %v449
    %v1379 = vpop.f32.mrb[0].mxu0
    %v1380 = vadd.f32 %v1100, %v1379
    %v1381 = vpop.f32.mrb[0].mxu0
    %1382 = vdwg.mxu0
    %1383 = vmatprep.subr.mxu0 0.0
    %1384 = vmatpush1.msra.mxu0 %v366
    %1385 = vmatprep.subr.mxu0 0.0
    %1386 = vmatpush1.msra.mxu0 %v367
    %1387 = vmatprep.subr.mxu0 0.0
    %1388 = vmatpush1.msra.mxu0 %v368
    %1389 = vmatprep.subr.mxu0 0.0
    %1390 = vmatpush1.msra.mxu0 %v369
    %1391 = vmatprep.subr.mxu0 0.0
    %1392 = vmatpush1.msra.mxu0 0.0
    %1393 = vmatprep.subr.mxu0 0.0
    %1394 = vmatpush1.msra.mxu0 0.0
    %1395 = vmatprep.subr.mxu0 0.0
    %1396 = vmatpush1.msra.mxu0 0.0
    %1397 = vmatprep.subr.mxu0 0.0
    %1398 = vmatpush1.msra.mxu0 0.0
    %1399 = vmatprep.subr.mxu0 0.0
    %1400 = vmatpush1.msra.mxu0 0.0
    %1401 = vmatprep.subr.mxu0 0.0
    %1402 = vmatpush1.msra.mxu0 0.0
    %1403 = vmatprep.subr.mxu0 0.0
    %1404 = vmatpush1.msra.mxu0 0.0
    %1405 = vmatprep.subr.mxu0 0.0
    %1406 = vmatpush1.msra.mxu0 0.0
    %1407 = vmatprep.subr.mxu0 0.0
    %1408 = vmatpush1.msra.mxu0 0.0
    %1409 = vmatprep.subr.mxu0 0.0
    %1410 = vmatpush1.msra.mxu0 0.0
    %1411 = vmatprep.subr.mxu0 0.0
    %1412 = vmatpush1.msra.mxu0 0.0
    %1413 = vmatprep.subr.mxu0 0.0
    %1414 = vmatpush1.msra.mxu0 0.0
    %1415 = vmatprep.subr.mxu0 0.0
    %1416 = vmatpush1.msra.mxu0 0.0
    %1417 = vmatprep.subr.mxu0 0.0
    %1418 = vmatpush1.msra.mxu0 0.0
    %1419 = vmatprep.subr.mxu0 0.0
    %1420 = vmatpush1.msra.mxu0 0.0
    %1421 = vmatprep.subr.mxu0 0.0
    %1422 = vmatpush1.msra.mxu0 0.0
    %1423 = vmatprep.subr.mxu0 0.0
    %1424 = vmatpush1.msra.mxu0 0.0
    %1425 = vmatprep.subr.mxu0 0.0
    %1426 = vmatpush1.msra.mxu0 0.0
    %1427 = vmatprep.subr.mxu0 0.0
    %1428 = vmatpush1.msra.mxu0 0.0
    %1429 = vmatprep.subr.mxu0 0.0
    %1430 = vmatpush1.msra.mxu0 0.0
    %1431 = vmatprep.subr.mxu0 0.0
    %1432 = vmatpush1.msra.mxu0 0.0
    %1433 = vmatprep.subr.mxu0 0.0
    %1434 = vmatpush1.msra.mxu0 0.0
    %1435 = vmatprep.subr.mxu0 0.0
    %1436 = vmatpush1.msra.mxu0 0.0
    %1437 = vmatprep.subr.mxu0 0.0
    %1438 = vmatpush1.msra.mxu0 0.0
    %1439 = vmatprep.subr.mxu0 0.0
    %1440 = vmatpush1.msra.mxu0 0.0
    %1441 = vmatprep.subr.mxu0 0.0
    %1442 = vmatpush1.msra.mxu0 0.0
    %1443 = vmatprep.subr.mxu0 0.0
    %1444 = vmatpush1.msra.mxu0 0.0
    %1445 = vmatprep.subr.mxu0 0.0
    %1446 = vmatpush1.msra.mxu0 0.0
    %1447 = vmatprep.mubr.f32.mxu0 0.0
    %1448 = vmatmul.mubr.f32.gmra.mrb[0].mxu0 %v522
    %v1449 = vpop.f32.mrb[0].mxu0
    %v1450 = vadd.f32 %v1170, %v1449
    %v1451 = vpop.f32.mrb[0].mxu0
    %1452 = vdwg.mxu0
    %1453 = vmatprep.subr.mxu0 0.0
    %1454 = vmatpush1.msra.mxu0 %v370
    %1455 = vmatprep.subr.mxu0 0.0
    %1456 = vmatpush1.msra.mxu0 %v371
    %1457 = vmatprep.subr.mxu0 0.0
    %1458 = vmatpush1.msra.mxu0 %v372
    %1459 = vmatprep.subr.mxu0 0.0
    %1460 = vmatpush1.msra.mxu0 %v373
    %1461 = vmatprep.subr.mxu0 0.0
    %1462 = vmatpush1.msra.mxu0 0.0
    %1463 = vmatprep.subr.mxu0 0.0
    %1464 = vmatpush1.msra.mxu0 0.0
    %1465 = vmatprep.subr.mxu0 0.0
    %1466 = vmatpush1.msra.mxu0 0.0
    %1467 = vmatprep.subr.mxu0 0.0
    %1468 = vmatpush1.msra.mxu0 0.0
    %1469 = vmatprep.subr.mxu0 0.0
    %1470 = vmatpush1.msra.mxu0 0.0
    %1471 = vmatprep.subr.mxu0 0.0
    %1472 = vmatpush1.msra.mxu0 0.0
    %1473 = vmatprep.subr.mxu0 0.0
    %1474 = vmatpush1.msra.mxu0 0.0
    %1475 = vmatprep.subr.mxu0 0.0
    %1476 = vmatpush1.msra.mxu0 0.0
    %1477 = vmatprep.subr.mxu0 0.0
    %1478 = vmatpush1.msra.mxu0 0.0
    %1479 = vmatprep.subr.mxu0 0.0
    %1480 = vmatpush1.msra.mxu0 0.0
    %1481 = vmatprep.subr.mxu0 0.0
    %1482 = vmatpush1.msra.mxu0 0.0
    %1483 = vmatprep.subr.mxu0 0.0
    %1484 = vmatpush1.msra.mxu0 0.0
    %1485 = vmatprep.subr.mxu0 0.0
    %1486 = vmatpush1.msra.mxu0 0.0
    %1487 = vmatprep.subr.mxu0 0.0
    %1488 = vmatpush1.msra.mxu0 0.0
    %1489 = vmatprep.subr.mxu0 0.0
    %1490 = vmatpush1.msra.mxu0 0.0
    %1491 = vmatprep.subr.mxu0 0.0
    %1492 = vmatpush1.msra.mxu0 0.0
    %1493 = vmatprep.subr.mxu0 0.0
    %1494 = vmatpush1.msra.mxu0 0.0
    %1495 = vmatprep.subr.mxu0 0.0
    %1496 = vmatpush1.msra.mxu0 0.0
    %1497 = vmatprep.subr.mxu0 0.0
    %1498 = vmatpush1.msra.mxu0 0.0
    %1499 = vmatprep.subr.mxu0 0.0
    %1500 = vmatpush1.msra.mxu0 0.0
    %1501 = vmatprep.subr.mxu0 0.0
    %1502 = vmatpush1.msra.mxu0 0.0
    %1503 = vmatprep.subr.mxu0 0.0
    %1504 = vmatpush1.msra.mxu0 0.0
    %1505 = vmatprep.subr.mxu0 0.0
    %1506 = vmatpush1.msra.mxu0 0.0
    %1507 = vmatprep.subr.mxu0 0.0
    %1508 = vmatpush1.msra.mxu0 0.0
    %1509 = vmatprep.subr.mxu0 0.0
    %1510 = vmatpush1.msra.mxu0 0.0
    %1511 = vmatprep.subr.mxu0 0.0
    %1512 = vmatpush1.msra.mxu0 0.0
    %1513 = vmatprep.subr.mxu0 0.0
    %1514 = vmatpush1.msra.mxu0 0.0
    %1515 = vmatprep.subr.mxu0 0.0
    %1516 = vmatpush1.msra.mxu0 0.0
    %1517 = vmatprep.mubr.f32.mxu0 0.0
    %1518 = vmatmul.mubr.f32.gmra.mrb[0].mxu0 %v595
    %v1519 = vpop.f32.mrb[0].mxu0
    %v1520 = vadd.f32 %v1240, %v1519
    %v1521 = vpop.f32.mrb[0].mxu0
    %1522 = vdwg.mxu0
    %v1523 = vcombine.low %v959, %v961
    %v1525 = vunpack.c.l.s4 1983009808
    %v1526 = vunpack.c.0.s8 %v1525
    %v1527 = vlaneseq
    %v1528 = vshrl.u32 %v1527, 7
    %v1529 = vsub.s32 %v1526, %v1528
    %v1530 = vrot.slane %v1523, %v1529
    %v1531 = vcombine.low %v960, %v962
    %v1533 = vunpack.c.l.s4 1983009808
    %v1534 = vunpack.c.0.s8 %v1533
    %v1535 = vlaneseq
    %v1536 = vshrl.u32 %v1535, 7
    %v1537 = vsub.s32 %v1534, %v1536
    %v1538 = vrot.slane %v1531, %v1537
    %v1539 = vcombine.low %v1310, %v1450
    %v1541 = vunpack.c.l.s4 1983009808
    %v1542 = vunpack.c.0.s8 %v1541
    %v1543 = vlaneseq
    %v1544 = vshrl.u32 %v1543, 7
    %v1545 = vsub.s32 %v1542, %v1544
    %v1546 = vrot.slane %v1539, %v1545
    %v1547 = vcombine.low %v1380, %v1520
    %v1549 = vunpack.c.l.s4 1983009808
    %v1550 = vunpack.c.0.s8 %v1549
    %v1551 = vlaneseq
    %v1552 = vshrl.u32 %v1551, 7
    %v1553 = vsub.s32 %v1550, %v1552
    %v1554 = vrot.slane %v1547, %v1553
    %v1555 = vcombine.low %v1530, %v1538
    %v1557 = vunpack.c.l.s4 1934713408
    %v1558 = vunpack.c.0.s8 %v1557
    %v1559 = vlaneseq
    %v1560 = vshrl.u32 %v1559, 7
    %v1561 = vsub.s32 %v1558, %v1560
    %v1562 = vrot.slane %v1555, %v1561
    %v1563 = vcombine.low %v1546, %v1554
    %v1565 = vunpack.c.l.s4 1934713408
    %v1566 = vunpack.c.0.s8 %v1565
    %v1567 = vlaneseq
    %v1568 = vshrl.u32 %v1567, 7
    %v1569 = vsub.s32 %v1566, %v1568
    %v1570 = vrot.slane %v1563, %v1569
    %v1571 = vcombine.low %v1562, %v1570
    %v1572 = vcombine.high %v1562, %v1570
    %v1573 = vld [vmem:[#allocation8] sm:$0xff]
    %v1574 = vld [vmem:[#allocation8 + $0x8] sm:$0xff]
    %v1575 = vld [vmem:[#allocation8 + $0x10] sm:$0xff]
    %v1576 = vld [vmem:[#allocation8 + $0x18] sm:$0xff]
    %v1577 = vld [vmem:[%s6] sm:$0x1]
    %v1579 = vlaneseq
    %v1580 = vshrl.u32 %v1579, 7
    %v1581 = vsub.s32 0, %v1580
    %v1582 = vrot.slane %v1577, %v1581
    %v1585 = vsel %vm374, %v125, 0
    %v1588 = vsel %vm374, %v126, 0
    %v1591 = vsel %vm374, %v127, 0
    %v1594 = vsel %vm374, %v128, 0
    %1596 = vmatprep.subr.mxu0 0.0
    %1597 = vmatpush1.msra.mxu0 %v1573
    %1598 = vmatprep.subr.mxu0 0.0
    %1599 = vmatpush1.msra.mxu0 %v1574
    %1600 = vmatprep.subr.mxu0 0.0
    %1601 = vmatpush1.msra.mxu0 %v1575
    %1602 = vmatprep.subr.mxu0 0.0
    %1603 = vmatpush1.msra.mxu0 %v1576
    %1604 = vmatprep.subr.mxu0 0.0
    %1605 = vmatpush1.msra.mxu0 0.0
    %1606 = vmatprep.subr.mxu0 0.0
    %1607 = vmatpush1.msra.mxu0 0.0
    %1608 = vmatprep.subr.mxu0 0.0
    %1609 = vmatpush1.msra.mxu0 0.0
    %1610 = vmatprep.subr.mxu0 0.0
    %1611 = vmatpush1.msra.mxu0 0.0
    %1612 = vmatprep.subr.mxu0 0.0
    %1613 = vmatpush1.msra.mxu0 0.0
    %1614 = vmatprep.subr.mxu0 0.0
    %1615 = vmatpush1.msra.mxu0 0.0
    %1616 = vmatprep.subr.mxu0 0.0
    %1617 = vmatpush1.msra.mxu0 0.0
    %1618 = vmatprep.subr.mxu0 0.0
    %1619 = vmatpush1.msra.mxu0 0.0
    %1620 = vmatprep.subr.mxu0 0.0
    %1621 = vmatpush1.msra.mxu0 0.0
    %1622 = vmatprep.subr.mxu0 0.0
    %1623 = vmatpush1.msra.mxu0 0.0
    %1624 = vmatprep.subr.mxu0 0.0
    %1625 = vmatpush1.msra.mxu0 0.0
    %1626 = vmatprep.subr.mxu0 0.0
    %1627 = vmatpush1.msra.mxu0 0.0
    %1628 = vmatprep.subr.mxu0 0.0
    %1629 = vmatpush1.msra.mxu0 0.0
    %1630 = vmatprep.subr.mxu0 0.0
    %1631 = vmatpush1.msra.mxu0 0.0
    %1632 = vmatprep.subr.mxu0 0.0
    %1633 = vmatpush1.msra.mxu0 0.0
    %1634 = vmatprep.subr.mxu0 0.0
    %1635 = vmatpush1.msra.mxu0 0.0
    %1636 = vmatprep.subr.mxu0 0.0
    %1637 = vmatpush1.msra.mxu0 0.0
    %1638 = vmatprep.subr.mxu0 0.0
    %1639 = vmatpush1.msra.mxu0 0.0
    %1640 = vmatprep.subr.mxu0 0.0
    %1641 = vmatpush1.msra.mxu0 0.0
    %1642 = vmatprep.subr.mxu0 0.0
    %1643 = vmatpush1.msra.mxu0 0.0
    %1644 = vmatprep.subr.mxu0 0.0
    %1645 = vmatpush1.msra.mxu0 0.0
    %1646 = vmatprep.subr.mxu0 0.0
    %1647 = vmatpush1.msra.mxu0 0.0
    %1648 = vmatprep.subr.mxu0 0.0
    %1649 = vmatpush1.msra.mxu0 0.0
    %1650 = vmatprep.subr.mxu0 0.0
    %1651 = vmatpush1.msra.mxu0 0.0
    %1652 = vmatprep.subr.mxu0 0.0
    %1653 = vmatpush1.msra.mxu0 0.0
    %1654 = vmatprep.subr.mxu0 0.0
    %1655 = vmatpush1.msra.mxu0 0.0
    %1656 = vmatprep.subr.mxu0 0.0
    %1657 = vmatpush1.msra.mxu0 0.0
    %1658 = vmatprep.subr.mxu0 0.0
    %1659 = vmatpush1.msra.mxu0 0.0
    %1660 = vmatprep.mubr.f32.mxu0 0.0
    %1661 = vmatmul.mubr.f32.gmra.mrb[0].mxu0 %v1585
    %v1662 = vpop.f32.mrb[0].mxu0
    %v1663 = vadd.f32 %v1582, %v1662
    %v1664 = vpop.f32.mrb[0].mxu0
    %1665 = vmatprep.mubr.f32.mxu0 0.0
    %1666 = vmatmul.mubr.f32.gmra.mrb[0].mxu0 %v1588
    %v1667 = vpop.f32.mrb[0].mxu0
    %v1668 = vadd.f32 %v1582, %v1667
    %v1669 = vpop.f32.mrb[0].mxu0
    %1670 = vmatprep.mubr.f32.mxu0 0.0
    %1671 = vmatmul.mubr.f32.gmra.mrb[0].mxu0 %v1591
    %v1672 = vpop.f32.mrb[0].mxu0
    %v1673 = vadd.f32 %v1582, %v1672
    %v1674 = vpop.f32.mrb[0].mxu0
    %1675 = vmatprep.mubr.f32.mxu0 0.0
    %1676 = vmatmul.mubr.f32.gmra.mrb[0].mxu0 %v1594
    %v1677 = vpop.f32.mrb[0].mxu0
    %v1678 = vadd.f32 %v1582, %v1677
    %v1679 = vpop.f32.mrb[0].mxu0
    %1680 = vdwg.mxu0
    %vm1681 = vcmask 64512
    %v1683 = vsel %vm1681, %v130, 0
    %v1686 = vsel %vm1681, %v131, 0
    %1688 = vmatprep.subr.mxu0 0.0
    %1689 = vmatpush1.msra.mxu0 %v1571
    %1690 = vmatprep.subr.mxu0 0.0
    %1691 = vmatpush1.msra.mxu0 0.0
    %1692 = vmatprep.subr.mxu0 0.0
    %1693 = vmatpush1.msra.mxu0 0.0
    %1694 = vmatprep.subr.mxu0 0.0
    %1695 = vmatpush1.msra.mxu0 0.0
    %1696 = vmatprep.subr.mxu0 0.0
    %1697 = vmatpush1.msra.mxu0 0.0
    %1698 = vmatprep.subr.mxu0 0.0
    %1699 = vmatpush1.msra.mxu0 0.0
    %1700 = vmatprep.subr.mxu0 0.0
    %1701 = vmatpush1.msra.mxu0 0.0
    %1702 = vmatprep.subr.mxu0 0.0
    %1703 = vmatpush1.msra.mxu0 0.0
    %1704 = vmatprep.subr.mxu0 0.0
    %1705 = vmatpush1.msra.mxu0 0.0
    %1706 = vmatprep.subr.mxu0 0.0
    %1707 = vmatpush1.msra.mxu0 0.0
    %1708 = vmatprep.subr.mxu0 0.0
    %1709 = vmatpush1.msra.mxu0 0.0
    %1710 = vmatprep.subr.mxu0 0.0
    %1711 = vmatpush1.msra.mxu0 0.0
    %1712 = vmatprep.subr.mxu0 0.0
    %1713 = vmatpush1.msra.mxu0 0.0
    %1714 = vmatprep.subr.mxu0 0.0
    %1715 = vmatpush1.msra.mxu0 0.0
    %1716 = vmatprep.subr.mxu0 0.0
    %1717 = vmatpush1.msra.mxu0 0.0
    %1718 = vmatprep.subr.mxu0 0.0
    %1719 = vmatpush1.msra.mxu0 0.0
    %1720 = vmatprep.subr.mxu0 0.0
    %1721 = vmatpush1.msra.mxu0 0.0
    %1722 = vmatprep.subr.mxu0 0.0
    %1723 = vmatpush1.msra.mxu0 0.0
    %1724 = vmatprep.subr.mxu0 0.0
    %1725 = vmatpush1.msra.mxu0 0.0
    %1726 = vmatprep.subr.mxu0 0.0
    %1727 = vmatpush1.msra.mxu0 0.0
    %1728 = vmatprep.subr.mxu0 0.0
    %1729 = vmatpush1.msra.mxu0 0.0
    %1730 = vmatprep.subr.mxu0 0.0
    %1731 = vmatpush1.msra.mxu0 0.0
    %1732 = vmatprep.subr.mxu0 0.0
    %1733 = vmatpush1.msra.mxu0 0.0
    %1734 = vmatprep.subr.mxu0 0.0
    %1735 = vmatpush1.msra.mxu0 0.0
    %1736 = vmatprep.subr.mxu0 0.0
    %1737 = vmatpush1.msra.mxu0 0.0
    %1738 = vmatprep.subr.mxu0 0.0
    %1739 = vmatpush1.msra.mxu0 0.0
    %1740 = vmatprep.subr.mxu0 0.0
    %1741 = vmatpush1.msra.mxu0 0.0
    %1742 = vmatprep.subr.mxu0 0.0
    %1743 = vmatpush1.msra.mxu0 0.0
    %1744 = vmatprep.subr.mxu0 0.0
    %1745 = vmatpush1.msra.mxu0 0.0
    %1746 = vmatprep.subr.mxu0 0.0
    %1747 = vmatpush1.msra.mxu0 0.0
    %1748 = vmatprep.subr.mxu0 0.0
    %1749 = vmatpush1.msra.mxu0 0.0
    %1750 = vmatprep.subr.mxu0 0.0
    %1751 = vmatpush1.msra.mxu0 0.0
    %1752 = vmatprep.mubr.f32.mxu0 0.0
    %1753 = vmatmul.mubr.f32.gmra.mrb[0].mxu0 %v1683
    %v1754 = vpop.f32.mrb[0].mxu0
    %v1755 = vadd.f32 %v1663, %v1754
    %v1756 = vpop.f32.mrb[0].mxu0
    %1757 = vmatprep.mubr.f32.mxu0 0.0
    %1758 = vmatmul.mubr.f32.gmra.mrb[0].mxu0 %v1686
    %v1759 = vpop.f32.mrb[0].mxu0
    %v1760 = vadd.f32 %v1668, %v1759
    %v1761 = vpop.f32.mrb[0].mxu0
    %1762 = vdwg.mxu0
    %1763 = vmatprep.subr.mxu0 0.0
    %1764 = vmatpush1.msra.mxu0 %v1572
    %1765 = vmatprep.subr.mxu0 0.0
    %1766 = vmatpush1.msra.mxu0 0.0
    %1767 = vmatprep.subr.mxu0 0.0
    %1768 = vmatpush1.msra.mxu0 0.0
    %1769 = vmatprep.subr.mxu0 0.0
    %1770 = vmatpush1.msra.mxu0 0.0
    %1771 = vmatprep.subr.mxu0 0.0
    %1772 = vmatpush1.msra.mxu0 0.0
    %1773 = vmatprep.subr.mxu0 0.0
    %1774 = vmatpush1.msra.mxu0 0.0
    %1775 = vmatprep.subr.mxu0 0.0
    %1776 = vmatpush1.msra.mxu0 0.0
    %1777 = vmatprep.subr.mxu0 0.0
    %1778 = vmatpush1.msra.mxu0 0.0
    %1779 = vmatprep.subr.mxu0 0.0
    %1780 = vmatpush1.msra.mxu0 0.0
    %1781 = vmatprep.subr.mxu0 0.0
    %1782 = vmatpush1.msra.mxu0 0.0
    %1783 = vmatprep.subr.mxu0 0.0
    %1784 = vmatpush1.msra.mxu0 0.0
    %1785 = vmatprep.subr.mxu0 0.0
    %1786 = vmatpush1.msra.mxu0 0.0
    %1787 = vmatprep.subr.mxu0 0.0
    %1788 = vmatpush1.msra.mxu0 0.0
    %1789 = vmatprep.subr.mxu0 0.0
    %1790 = vmatpush1.msra.mxu0 0.0
    %1791 = vmatprep.subr.mxu0 0.0
    %1792 = vmatpush1.msra.mxu0 0.0
    %1793 = vmatprep.subr.mxu0 0.0
    %1794 = vmatpush1.msra.mxu0 0.0
    %1795 = vmatprep.subr.mxu0 0.0
    %1796 = vmatpush1.msra.mxu0 0.0
    %1797 = vmatprep.subr.mxu0 0.0
    %1798 = vmatpush1.msra.mxu0 0.0
    %1799 = vmatprep.subr.mxu0 0.0
    %1800 = vmatpush1.msra.mxu0 0.0
    %1801 = vmatprep.subr.mxu0 0.0
    %1802 = vmatpush1.msra.mxu0 0.0
    %1803 = vmatprep.subr.mxu0 0.0
    %1804 = vmatpush1.msra.mxu0 0.0
    %1805 = vmatprep.subr.mxu0 0.0
    %1806 = vmatpush1.msra.mxu0 0.0
    %1807 = vmatprep.subr.mxu0 0.0
    %1808 = vmatpush1.msra.mxu0 0.0
    %1809 = vmatprep.subr.mxu0 0.0
    %1810 = vmatpush1.msra.mxu0 0.0
    %1811 = vmatprep.subr.mxu0 0.0
    %1812 = vmatpush1.msra.mxu0 0.0
    %1813 = vmatprep.subr.mxu0 0.0
    %1814 = vmatpush1.msra.mxu0 0.0
    %1815 = vmatprep.subr.mxu0 0.0
    %1816 = vmatpush1.msra.mxu0 0.0
    %1817 = vmatprep.subr.mxu0 0.0
    %1818 = vmatpush1.msra.mxu0 0.0
    %1819 = vmatprep.subr.mxu0 0.0
    %1820 = vmatpush1.msra.mxu0 0.0
    %1821 = vmatprep.subr.mxu0 0.0
    %1822 = vmatpush1.msra.mxu0 0.0
    %1823 = vmatprep.subr.mxu0 0.0
    %1824 = vmatpush1.msra.mxu0 0.0
    %1825 = vmatprep.subr.mxu0 0.0
    %1826 = vmatpush1.msra.mxu0 0.0
    %1827 = vmatprep.mubr.f32.mxu0 0.0
    %1828 = vmatmul.mubr.f32.gmra.mrb[0].mxu0 %v1683
    %v1829 = vpop.f32.mrb[0].mxu0
    %v1830 = vadd.f32 %v1673, %v1829
    %v1831 = vpop.f32.mrb[0].mxu0
    %1832 = vmatprep.mubr.f32.mxu0 0.0
    %1833 = vmatmul.mubr.f32.gmra.mrb[0].mxu0 %v1686
    %v1834 = vpop.f32.mrb[0].mxu0
    %v1835 = vadd.f32 %v1678, %v1834
    %v1836 = vpop.f32.mrb[0].mxu0
    %1837 = vdwg.mxu0
    %v1838 = vmul.f32 %v1755, 0.5
    %v1839 = vmul.f32 %v1760, 0.5
    %v1840 = vmul.f32 %v1830, 0.5
    %v1841 = vmul.f32 %v1835, 0.5
    %v1842 = vmul.f32 %v1755, 0.70710677
    %v1843 = vmul.f32 %v1760, 0.70710677
    %v1844 = vmul.f32 %v1830, 0.70710677
    %v1845 = vmul.f32 %v1835, 0.70710677
    %v1846 = verf.f32.pop %v1842
    %v1847 = verf.f32.pop %v1843
    %v1848 = verf.f32.pop %v1844
    %v1849 = verf.f32.pop %v1845
    %v1850 = vadd.f32 %v1846, 1.0
    %v1851 = vadd.f32 %v1847, 1.0
    %v1852 = vadd.f32 %v1848, 1.0
    %v1853 = vadd.f32 %v1849, 1.0
    %v1854 = vmul.f32 %v1838, %v1850
    %v1855 = vmul.f32 %v1839, %v1851
    %v1856 = vmul.f32 %v1840, %v1852
    %v1857 = vmul.f32 %v1841, %v1853
    %1858 = vmatprep.subr.mxu0 0.0
    %1859 = vmatpush1.msra.mxu0 %v1854
    %1860 = vmatprep.subr.mxu0 0.0
    %1861 = vmatpush1.msra.mxu0 %v1855
    %1862 = vmatprep.subr.mxu0 0.0
    %1863 = vmatpush1.msra.mxu0 0.0
    %1864 = vmatprep.subr.mxu0 0.0
    %1865 = vmatpush1.msra.mxu0 0.0
    %1866 = vmatprep.subr.mxu0 0.0
    %1867 = vmatpush1.msra.mxu0 0.0
    %1868 = vmatprep.subr.mxu0 0.0
    %1869 = vmatpush1.msra.mxu0 0.0
    %1870 = vmatprep.subr.mxu0 0.0
    %1871 = vmatpush1.msra.mxu0 0.0
    %1872 = vmatprep.subr.mxu0 0.0
    %1873 = vmatpush1.msra.mxu0 0.0
    %1874 = vmatprep.subr.mxu0 0.0
    %1875 = vmatpush1.msra.mxu0 0.0
    %1876 = vmatprep.subr.mxu0 0.0
    %1877 = vmatpush1.msra.mxu0 0.0
    %1878 = vmatprep.subr.mxu0 0.0
    %1879 = vmatpush1.msra.mxu0 0.0
    %1880 = vmatprep.subr.mxu0 0.0
    %1881 = vmatpush1.msra.mxu0 0.0
    %1882 = vmatprep.subr.mxu0 0.0
    %1883 = vmatpush1.msra.mxu0 0.0
    %1884 = vmatprep.subr.mxu0 0.0
    %1885 = vmatpush1.msra.mxu0 0.0
    %1886 = vmatprep.subr.mxu0 0.0
    %1887 = vmatpush1.msra.mxu0 0.0
    %1888 = vmatprep.subr.mxu0 0.0
    %1889 = vmatpush1.msra.mxu0 0.0
    %1890 = vmatprep.subr.mxu0 0.0
    %1891 = vmatpush1.msra.mxu0 0.0
    %1892 = vmatprep.subr.mxu0 0.0
    %1893 = vmatpush1.msra.mxu0 0.0
    %1894 = vmatprep.subr.mxu0 0.0
    %1895 = vmatpush1.msra.mxu0 0.0
    %1896 = vmatprep.subr.mxu0 0.0
    %1897 = vmatpush1.msra.mxu0 0.0
    %1898 = vmatprep.subr.mxu0 0.0
    %1899 = vmatpush1.msra.mxu0 0.0
    %1900 = vmatprep.subr.mxu0 0.0
    %1901 = vmatpush1.msra.mxu0 0.0
    %1902 = vmatprep.subr.mxu0 0.0
    %1903 = vmatpush1.msra.mxu0 0.0
    %1904 = vmatprep.subr.mxu0 0.0
    %1905 = vmatpush1.msra.mxu0 0.0
    %1906 = vmatprep.subr.mxu0 0.0
    %1907 = vmatpush1.msra.mxu0 0.0
    %1908 = vmatprep.subr.mxu0 0.0
    %1909 = vmatpush1.msra.mxu0 0.0
    %1910 = vmatprep.subr.mxu0 0.0
    %1911 = vmatpush1.msra.mxu0 0.0
    %1912 = vmatprep.subr.mxu0 0.0
    %1913 = vmatpush1.msra.mxu0 0.0
    %1914 = vmatprep.subr.mxu0 0.0
    %1915 = vmatpush1.msra.mxu0 0.0
    %1916 = vmatprep.subr.mxu0 0.0
    %1917 = vmatpush1.msra.mxu0 0.0
    %1918 = vmatprep.subr.mxu0 0.0
    %1919 = vmatpush1.msra.mxu0 0.0
    %1920 = vmatprep.subr.mxu0 0.0
    %1921 = vmatpush1.msra.mxu0 0.0
    %1922 = vmatprep.mubr.f32.mxu0 0.0
    %1923 = vmatmul.mubr.f32.gmra.mrb[0].mxu0 %v134
    %v1924 = vpop.f32.mrb[0].mxu0
    %v1925 = vadd.f32 0.0, %v1924
    %v1926 = vpop.f32.mrb[0].mxu0
    %1927 = vdwg.mxu0
    %1928 = vmatprep.subr.mxu0 0.0
    %1929 = vmatpush1.msra.mxu0 %v1856
    %1930 = vmatprep.subr.mxu0 0.0
    %1931 = vmatpush1.msra.mxu0 %v1857
    %1932 = vmatprep.subr.mxu0 0.0
    %1933 = vmatpush1.msra.mxu0 0.0
    %1934 = vmatprep.subr.mxu0 0.0
    %1935 = vmatpush1.msra.mxu0 0.0
    %1936 = vmatprep.subr.mxu0 0.0
    %1937 = vmatpush1.msra.mxu0 0.0
    %1938 = vmatprep.subr.mxu0 0.0
    %1939 = vmatpush1.msra.mxu0 0.0
    %1940 = vmatprep.subr.mxu0 0.0
    %1941 = vmatpush1.msra.mxu0 0.0
    %1942 = vmatprep.subr.mxu0 0.0
    %1943 = vmatpush1.msra.mxu0 0.0
    %1944 = vmatprep.subr.mxu0 0.0
    %1945 = vmatpush1.msra.mxu0 0.0
    %1946 = vmatprep.subr.mxu0 0.0
    %1947 = vmatpush1.msra.mxu0 0.0
    %1948 = vmatprep.subr.mxu0 0.0
    %1949 = vmatpush1.msra.mxu0 0.0
    %1950 = vmatprep.subr.mxu0 0.0
    %1951 = vmatpush1.msra.mxu0 0.0
    %1952 = vmatprep.subr.mxu0 0.0
    %1953 = vmatpush1.msra.mxu0 0.0
    %1954 = vmatprep.subr.mxu0 0.0
    %1955 = vmatpush1.msra.mxu0 0.0
    %1956 = vmatprep.subr.mxu0 0.0
    %1957 = vmatpush1.msra.mxu0 0.0
    %1958 = vmatprep.subr.mxu0 0.0
    %1959 = vmatpush1.msra.mxu0 0.0
    %1960 = vmatprep.subr.mxu0 0.0
    %1961 = vmatpush1.msra.mxu0 0.0
    %1962 = vmatprep.subr.mxu0 0.0
    %1963 = vmatpush1.msra.mxu0 0.0
    %1964 = vmatprep.subr.mxu0 0.0
    %1965 = vmatpush1.msra.mxu0 0.0
    %1966 = vmatprep.subr.mxu0 0.0
    %1967 = vmatpush1.msra.mxu0 0.0
    %1968 = vmatprep.subr.mxu0 0.0
    %1969 = vmatpush1.msra.mxu0 0.0
    %1970 = vmatprep.subr.mxu0 0.0
    %1971 = vmatpush1.msra.mxu0 0.0
    %1972 = vmatprep.subr.mxu0 0.0
    %1973 = vmatpush1.msra.mxu0 0.0
    %1974 = vmatprep.subr.mxu0 0.0
    %1975 = vmatpush1.msra.mxu0 0.0
    %1976 = vmatprep.subr.mxu0 0.0
    %1977 = vmatpush1.msra.mxu0 0.0
    %1978 = vmatprep.subr.mxu0 0.0
    %1979 = vmatpush1.msra.mxu0 0.0
    %1980 = vmatprep.subr.mxu0 0.0
    %1981 = vmatpush1.msra.mxu0 0.0
    %1982 = vmatprep.subr.mxu0 0.0
    %1983 = vmatpush1.msra.mxu0 0.0
    %1984 = vmatprep.subr.mxu0 0.0
    %1985 = vmatpush1.msra.mxu0 0.0
    %1986 = vmatprep.subr.mxu0 0.0
    %1987 = vmatpush1.msra.mxu0 0.0
    %1988 = vmatprep.subr.mxu0 0.0
    %1989 = vmatpush1.msra.mxu0 0.0
    %1990 = vmatprep.subr.mxu0 0.0
    %1991 = vmatpush1.msra.mxu0 0.0
    %1992 = vmatprep.mubr.f32.mxu0 0.0
    %1993 = vmatmul.mubr.f32.gmra.mrb[0].mxu0 %v134
    %v1994 = vpop.f32.mrb[0].mxu0
    %v1995 = vadd.f32 0.0, %v1994
    %v1996 = vpop.f32.mrb[0].mxu0
    %1997 = vdwg.mxu0
    %v1998 = vcombine.high %v1925, 0.0
    %v2000 = vunpack.c.l.s4 1983009808
    %v2001 = vunpack.c.0.s8 %v2000
    %v2002 = vlaneseq
    %v2003 = vshrl.u32 %v2002, 7
    %v2004 = vsub.s32 %v2001, %v2003
    %v2005 = vrot.slane %v1925, %v2004
    %v2007 = vunpack.c.l.s4 1983009808
    %v2008 = vunpack.c.0.s8 %v2007
    %v2009 = vlaneseq
    %v2010 = vshrl.u32 %v2009, 7
    %v2011 = vsub.s32 %v2008, %v2010
    %v2012 = vrot.slane %v1998, %v2011
    %v2013 = vcombine.high %v1995, 0.0
    %v2015 = vunpack.c.l.s4 1983009808
    %v2016 = vunpack.c.0.s8 %v2015
    %v2017 = vlaneseq
    %v2018 = vshrl.u32 %v2017, 7
    %v2019 = vsub.s32 %v2016, %v2018
    %v2020 = vrot.slane %v1995, %v2019
    %v2022 = vunpack.c.l.s4 1983009808
    %v2023 = vunpack.c.0.s8 %v2022
    %v2024 = vlaneseq
    %v2025 = vshrl.u32 %v2024, 7
    %v2026 = vsub.s32 %v2023, %v2025
    %v2027 = vrot.slane %v2013, %v2026
    %v2028 = vcombine.low %v2005, %v2020
    %v2029 = vcombine.high %v2005, %v2020
    %v2031 = vunpack.c.l.s4 1934713408
    %v2032 = vunpack.c.0.s8 %v2031
    %v2033 = vlaneseq
    %v2034 = vshrl.u32 %v2033, 7
    %v2035 = vsub.s32 %v2032, %v2034
    %v2036 = vrot.slane %v2028, %v2035
    %v2038 = vunpack.c.l.s4 1934713408
    %v2039 = vunpack.c.0.s8 %v2038
    %v2040 = vlaneseq
    %v2041 = vshrl.u32 %v2040, 7
    %v2042 = vsub.s32 %v2039, %v2041
    %v2043 = vrot.slane %v2029, %v2042
    %v2044 = vcombine.low %v2012, %v2027
    %v2045 = vcombine.high %v2012, %v2027
    %v2047 = vunpack.c.l.s4 1934713408
    %v2048 = vunpack.c.0.s8 %v2047
    %v2049 = vlaneseq
    %v2050 = vshrl.u32 %v2049, 7
    %v2051 = vsub.s32 %v2048, %v2050
    %v2052 = vrot.slane %v2044, %v2051
    %v2054 = vunpack.c.l.s4 1934713408
    %v2055 = vunpack.c.0.s8 %v2054
    %v2056 = vlaneseq
    %v2057 = vshrl.u32 %v2056, 7
    %v2058 = vsub.s32 %v2055, %v2057
    %v2059 = vrot.slane %v2045, %v2058
    %v2060 = vcombine.high %v2036, 0.0
    %v2061 = vcombine.high %v2043, 0.0
    %v2062 = vcombine.high %v2052, 0.0
    %v2063 = vcombine.high %v2059, 0.0
    %s2064 = scalar_lea.vmem [#allocation3], 128
    %v2065 = vld [vmem:[%s2064] sm:$0xff]
    %v2066 = vld [vmem:[%s2064 + $0x8] sm:$0xff]
    %v2067 = vld [vmem:[%s2064 + $0x10] sm:$0xff]
    %v2068 = vld [vmem:[%s2064 + $0x18] sm:$0xff]
    %v2069 = vld [vmem:[%s2064 + $0x20] sm:$0xff]
    %v2070 = vld [vmem:[%s2064 + $0x28] sm:$0xff]
    %v2071 = vld [vmem:[%s2064 + $0x30] sm:$0xff]
    %v2072 = vld [vmem:[%s2064 + $0x38] sm:$0xff]
    %v2073 = vld [vmem:[%s2064 + $0x40] sm:$0xff]
    %v2074 = vld [vmem:[%s2064 + $0x48] sm:$0xff]
    %v2075 = vld [vmem:[%s2064 + $0x50] sm:$0xff]
    %v2076 = vld [vmem:[%s2064 + $0x58] sm:$0xff]
    %v2077 = vld [vmem:[%s2064 + $0x60] sm:$0xff]
    %v2078 = vld [vmem:[%s2064 + $0x68] sm:$0xff]
    %v2079 = vld [vmem:[%s2064 + $0x70] sm:$0xff]
    %v2080 = vld [vmem:[%s2064 + $0x78] sm:$0xff]
    %s2081 = scalar_lea.vmem [#allocation6], 128
    %v2082 = vld [vmem:[%s2081] sm:$0xff]
    %v2083 = vld [vmem:[%s2081 + $0x8] sm:$0xff]
    %v2084 = vld [vmem:[%s2081 + $0x10] sm:$0xff]
    %v2085 = vld [vmem:[%s2081 + $0x18] sm:$0xff]
    %v2086 = vld [vmem:[%s2081 + $0x20] sm:$0xff]
    %v2087 = vld [vmem:[%s2081 + $0x28] sm:$0xff]
    %v2088 = vld [vmem:[%s2081 + $0x30] sm:$0xff]
    %v2089 = vld [vmem:[%s2081 + $0x38] sm:$0xff]
    %v2090 = vld [vmem:[%s2081 + $0x40] sm:$0xff]
    %v2091 = vld [vmem:[%s2081 + $0x48] sm:$0xff]
    %v2092 = vld [vmem:[%s2081 + $0x50] sm:$0xff]
    %v2093 = vld [vmem:[%s2081 + $0x58] sm:$0xff]
    %v2094 = vld [vmem:[%s2081 + $0x60] sm:$0xff]
    %v2095 = vld [vmem:[%s2081 + $0x68] sm:$0xff]
    %v2096 = vld [vmem:[%s2081 + $0x70] sm:$0xff]
    %v2097 = vld [vmem:[%s2081 + $0x78] sm:$0xff]
    %v2099 = vsel %vm374, %v2036, 0
    %2101 = vmatprep.subr.mxu0 0.0
    %2102 = vmatpush1.msra.mxu0 %v2065
    %2103 = vmatprep.subr.mxu0 0.0
    %2104 = vmatpush1.msra.mxu0 %v2066
    %2105 = vmatprep.subr.mxu0 0.0
    %2106 = vmatpush1.msra.mxu0 %v2067
    %2107 = vmatprep.subr.mxu0 0.0
    %2108 = vmatpush1.msra.mxu0 %v2068
    %2109 = vmatprep.subr.mxu0 0.0
    %2110 = vmatpush1.msra.mxu0 0.0
    %2111 = vmatprep.subr.mxu0 0.0
    %2112 = vmatpush1.msra.mxu0 0.0
    %2113 = vmatprep.subr.mxu0 0.0
    %2114 = vmatpush1.msra.mxu0 0.0
    %2115 = vmatprep.subr.mxu0 0.0
    %2116 = vmatpush1.msra.mxu0 0.0
    %2117 = vmatprep.subr.mxu0 0.0
    %2118 = vmatpush1.msra.mxu0 0.0
    %2119 = vmatprep.subr.mxu0 0.0
    %2120 = vmatpush1.msra.mxu0 0.0
    %2121 = vmatprep.subr.mxu0 0.0
    %2122 = vmatpush1.msra.mxu0 0.0
    %2123 = vmatprep.subr.mxu0 0.0
    %2124 = vmatpush1.msra.mxu0 0.0
    %2125 = vmatprep.subr.mxu0 0.0
    %2126 = vmatpush1.msra.mxu0 0.0
    %2127 = vmatprep.subr.mxu0 0.0
    %2128 = vmatpush1.msra.mxu0 0.0
    %2129 = vmatprep.subr.mxu0 0.0
    %2130 = vmatpush1.msra.mxu0 0.0
    %2131 = vmatprep.subr.mxu0 0.0
    %2132 = vmatpush1.msra.mxu0 0.0
    %2133 = vmatprep.subr.mxu0 0.0
    %2134 = vmatpush1.msra.mxu0 0.0
    %2135 = vmatprep.subr.mxu0 0.0
    %2136 = vmatpush1.msra.mxu0 0.0
    %2137 = vmatprep.subr.mxu0 0.0
    %2138 = vmatpush1.msra.mxu0 0.0
    %2139 = vmatprep.subr.mxu0 0.0
    %2140 = vmatpush1.msra.mxu0 0.0
    %2141 = vmatprep.subr.mxu0 0.0
    %2142 = vmatpush1.msra.mxu0 0.0
    %2143 = vmatprep.subr.mxu0 0.0
    %2144 = vmatpush1.msra.mxu0 0.0
    %2145 = vmatprep.subr.mxu0 0.0
    %2146 = vmatpush1.msra.mxu0 0.0
    %2147 = vmatprep.subr.mxu0 0.0
    %2148 = vmatpush1.msra.mxu0 0.0
    %2149 = vmatprep.subr.mxu0 0.0
    %2150 = vmatpush1.msra.mxu0 0.0
    %2151 = vmatprep.subr.mxu0 0.0
    %2152 = vmatpush1.msra.mxu0 0.0
    %2153 = vmatprep.subr.mxu0 0.0
    %2154 = vmatpush1.msra.mxu0 0.0
    %2155 = vmatprep.subr.mxu0 0.0
    %2156 = vmatpush1.msra.mxu0 0.0
    %2157 = vmatprep.subr.mxu0 0.0
    %2158 = vmatpush1.msra.mxu0 0.0
    %2159 = vmatprep.subr.mxu0 0.0
    %2160 = vmatpush1.msra.mxu0 0.0
    %2161 = vmatprep.subr.mxu0 0.0
    %2162 = vmatpush1.msra.mxu0 0.0
    %2163 = vmatprep.subr.mxu0 0.0
    %2164 = vmatpush1.msra.mxu0 0.0
    %2165 = vmatprep.mubr.f32.mxu0 0.0
    %2166 = vmatmul.mubr.f32.gmra.mrb[0].mxu0 %v2099
    %v2167 = vpop.f32.mrb[0].mxu0
    %v2168 = vadd.f32 0.0, %v2167
    %v2169 = vpop.f32.mrb[0].mxu0
    %2170 = vdwg.mxu0
    %v2172 = vsel %vm374, %v2060, 0
    %2174 = vmatprep.subr.mxu0 0.0
    %2175 = vmatpush1.msra.mxu0 %v2069
    %2176 = vmatprep.subr.mxu0 0.0
    %2177 = vmatpush1.msra.mxu0 %v2070
    %2178 = vmatprep.subr.mxu0 0.0
    %2179 = vmatpush1.msra.mxu0 %v2071
    %2180 = vmatprep.subr.mxu0 0.0
    %2181 = vmatpush1.msra.mxu0 %v2072
    %2182 = vmatprep.subr.mxu0 0.0
    %2183 = vmatpush1.msra.mxu0 0.0
    %2184 = vmatprep.subr.mxu0 0.0
    %2185 = vmatpush1.msra.mxu0 0.0
    %2186 = vmatprep.subr.mxu0 0.0
    %2187 = vmatpush1.msra.mxu0 0.0
    %2188 = vmatprep.subr.mxu0 0.0
    %2189 = vmatpush1.msra.mxu0 0.0
    %2190 = vmatprep.subr.mxu0 0.0
    %2191 = vmatpush1.msra.mxu0 0.0
    %2192 = vmatprep.subr.mxu0 0.0
    %2193 = vmatpush1.msra.mxu0 0.0
    %2194 = vmatprep.subr.mxu0 0.0
    %2195 = vmatpush1.msra.mxu0 0.0
    %2196 = vmatprep.subr.mxu0 0.0
    %2197 = vmatpush1.msra.mxu0 0.0
    %2198 = vmatprep.subr.mxu0 0.0
    %2199 = vmatpush1.msra.mxu0 0.0
    %2200 = vmatprep.subr.mxu0 0.0
    %2201 = vmatpush1.msra.mxu0 0.0
    %2202 = vmatprep.subr.mxu0 0.0
    %2203 = vmatpush1.msra.mxu0 0.0
    %2204 = vmatprep.subr.mxu0 0.0
    %2205 = vmatpush1.msra.mxu0 0.0
    %2206 = vmatprep.subr.mxu0 0.0
    %2207 = vmatpush1.msra.mxu0 0.0
    %2208 = vmatprep.subr.mxu0 0.0
    %2209 = vmatpush1.msra.mxu0 0.0
    %2210 = vmatprep.subr.mxu0 0.0
    %2211 = vmatpush1.msra.mxu0 0.0
    %2212 = vmatprep.subr.mxu0 0.0
    %2213 = vmatpush1.msra.mxu0 0.0
    %2214 = vmatprep.subr.mxu0 0.0
    %2215 = vmatpush1.msra.mxu0 0.0
    %2216 = vmatprep.subr.mxu0 0.0
    %2217 = vmatpush1.msra.mxu0 0.0
    %2218 = vmatprep.subr.mxu0 0.0
    %2219 = vmatpush1.msra.mxu0 0.0
    %2220 = vmatprep.subr.mxu0 0.0
    %2221 = vmatpush1.msra.mxu0 0.0
    %2222 = vmatprep.subr.mxu0 0.0
    %2223 = vmatpush1.msra.mxu0 0.0
    %2224 = vmatprep.subr.mxu0 0.0
    %2225 = vmatpush1.msra.mxu0 0.0
    %2226 = vmatprep.subr.mxu0 0.0
    %2227 = vmatpush1.msra.mxu0 0.0
    %2228 = vmatprep.subr.mxu0 0.0
    %2229 = vmatpush1.msra.mxu0 0.0
    %2230 = vmatprep.subr.mxu0 0.0
    %2231 = vmatpush1.msra.mxu0 0.0
    %2232 = vmatprep.subr.mxu0 0.0
    %2233 = vmatpush1.msra.mxu0 0.0
    %2234 = vmatprep.subr.mxu0 0.0
    %2235 = vmatpush1.msra.mxu0 0.0
    %2236 = vmatprep.subr.mxu0 0.0
    %2237 = vmatpush1.msra.mxu0 0.0
    %2238 = vmatprep.mubr.f32.mxu0 0.0
    %2239 = vmatmul.mubr.f32.gmra.mrb[0].mxu0 %v2172
    %v2240 = vpop.f32.mrb[0].mxu0
    %v2241 = vadd.f32 0.0, %v2240
    %v2242 = vpop.f32.mrb[0].mxu0
    %2243 = vdwg.mxu0
    %v2245 = vsel %vm374, %v2043, 0
    %2247 = vmatprep.subr.mxu0 0.0
    %2248 = vmatpush1.msra.mxu0 %v2073
    %2249 = vmatprep.subr.mxu0 0.0
    %2250 = vmatpush1.msra.mxu0 %v2074
    %2251 = vmatprep.subr.mxu0 0.0
    %2252 = vmatpush1.msra.mxu0 %v2075
    %2253 = vmatprep.subr.mxu0 0.0
    %2254 = vmatpush1.msra.mxu0 %v2076
    %2255 = vmatprep.subr.mxu0 0.0
    %2256 = vmatpush1.msra.mxu0 0.0
    %2257 = vmatprep.subr.mxu0 0.0
    %2258 = vmatpush1.msra.mxu0 0.0
    %2259 = vmatprep.subr.mxu0 0.0
    %2260 = vmatpush1.msra.mxu0 0.0
    %2261 = vmatprep.subr.mxu0 0.0
    %2262 = vmatpush1.msra.mxu0 0.0
    %2263 = vmatprep.subr.mxu0 0.0
    %2264 = vmatpush1.msra.mxu0 0.0
    %2265 = vmatprep.subr.mxu0 0.0
    %2266 = vmatpush1.msra.mxu0 0.0
    %2267 = vmatprep.subr.mxu0 0.0
    %2268 = vmatpush1.msra.mxu0 0.0
    %2269 = vmatprep.subr.mxu0 0.0
    %2270 = vmatpush1.msra.mxu0 0.0
    %2271 = vmatprep.subr.mxu0 0.0
    %2272 = vmatpush1.msra.mxu0 0.0
    %2273 = vmatprep.subr.mxu0 0.0
    %2274 = vmatpush1.msra.mxu0 0.0
    %2275 = vmatprep.subr.mxu0 0.0
    %2276 = vmatpush1.msra.mxu0 0.0
    %2277 = vmatprep.subr.mxu0 0.0
    %2278 = vmatpush1.msra.mxu0 0.0
    %2279 = vmatprep.subr.mxu0 0.0
    %2280 = vmatpush1.msra.mxu0 0.0
    %2281 = vmatprep.subr.mxu0 0.0
    %2282 = vmatpush1.msra.mxu0 0.0
    %2283 = vmatprep.subr.mxu0 0.0
    %2284 = vmatpush1.msra.mxu0 0.0
    %2285 = vmatprep.subr.mxu0 0.0
    %2286 = vmatpush1.msra.mxu0 0.0
    %2287 = vmatprep.subr.mxu0 0.0
    %2288 = vmatpush1.msra.mxu0 0.0
    %2289 = vmatprep.subr.mxu0 0.0
    %2290 = vmatpush1.msra.mxu0 0.0
    %2291 = vmatprep.subr.mxu0 0.0
    %2292 = vmatpush1.msra.mxu0 0.0
    %2293 = vmatprep.subr.mxu0 0.0
    %2294 = vmatpush1.msra.mxu0 0.0
    %2295 = vmatprep.subr.mxu0 0.0
    %2296 = vmatpush1.msra.mxu0 0.0
    %2297 = vmatprep.subr.mxu0 0.0
    %2298 = vmatpush1.msra.mxu0 0.0
    %2299 = vmatprep.subr.mxu0 0.0
    %2300 = vmatpush1.msra.mxu0 0.0
    %2301 = vmatprep.subr.mxu0 0.0
    %2302 = vmatpush1.msra.mxu0 0.0
    %2303 = vmatprep.subr.mxu0 0.0
    %2304 = vmatpush1.msra.mxu0 0.0
    %2305 = vmatprep.subr.mxu0 0.0
    %2306 = vmatpush1.msra.mxu0 0.0
    %2307 = vmatprep.subr.mxu0 0.0
    %2308 = vmatpush1.msra.mxu0 0.0
    %2309 = vmatprep.subr.mxu0 0.0
    %2310 = vmatpush1.msra.mxu0 0.0
    %2311 = vmatprep.mubr.f32.mxu0 0.0
    %2312 = vmatmul.mubr.f32.gmra.mrb[0].mxu0 %v2245
    %v2313 = vpop.f32.mrb[0].mxu0
    %v2314 = vadd.f32 0.0, %v2313
    %v2315 = vpop.f32.mrb[0].mxu0
    %2316 = vdwg.mxu0
    %v2318 = vsel %vm374, %v2061, 0
    %2320 = vmatprep.subr.mxu0 0.0
    %2321 = vmatpush1.msra.mxu0 %v2077
    %2322 = vmatprep.subr.mxu0 0.0
    %2323 = vmatpush1.msra.mxu0 %v2078
    %2324 = vmatprep.subr.mxu0 0.0
    %2325 = vmatpush1.msra.mxu0 %v2079
    %2326 = vmatprep.subr.mxu0 0.0
    %2327 = vmatpush1.msra.mxu0 %v2080
    %2328 = vmatprep.subr.mxu0 0.0
    %2329 = vmatpush1.msra.mxu0 0.0
    %2330 = vmatprep.subr.mxu0 0.0
    %2331 = vmatpush1.msra.mxu0 0.0
    %2332 = vmatprep.subr.mxu0 0.0
    %2333 = vmatpush1.msra.mxu0 0.0
    %2334 = vmatprep.subr.mxu0 0.0
    %2335 = vmatpush1.msra.mxu0 0.0
    %2336 = vmatprep.subr.mxu0 0.0
    %2337 = vmatpush1.msra.mxu0 0.0
    %2338 = vmatprep.subr.mxu0 0.0
    %2339 = vmatpush1.msra.mxu0 0.0
    %2340 = vmatprep.subr.mxu0 0.0
    %2341 = vmatpush1.msra.mxu0 0.0
    %2342 = vmatprep.subr.mxu0 0.0
    %2343 = vmatpush1.msra.mxu0 0.0
    %2344 = vmatprep.subr.mxu0 0.0
    %2345 = vmatpush1.msra.mxu0 0.0
    %2346 = vmatprep.subr.mxu0 0.0
    %2347 = vmatpush1.msra.mxu0 0.0
    %2348 = vmatprep.subr.mxu0 0.0
    %2349 = vmatpush1.msra.mxu0 0.0
    %2350 = vmatprep.subr.mxu0 0.0
    %2351 = vmatpush1.msra.mxu0 0.0
    %2352 = vmatprep.subr.mxu0 0.0
    %2353 = vmatpush1.msra.mxu0 0.0
    %2354 = vmatprep.subr.mxu0 0.0
    %2355 = vmatpush1.msra.mxu0 0.0
    %2356 = vmatprep.subr.mxu0 0.0
    %2357 = vmatpush1.msra.mxu0 0.0
    %2358 = vmatprep.subr.mxu0 0.0
    %2359 = vmatpush1.msra.mxu0 0.0
    %2360 = vmatprep.subr.mxu0 0.0
    %2361 = vmatpush1.msra.mxu0 0.0
    %2362 = vmatprep.subr.mxu0 0.0
    %2363 = vmatpush1.msra.mxu0 0.0
    %2364 = vmatprep.subr.mxu0 0.0
    %2365 = vmatpush1.msra.mxu0 0.0
    %2366 = vmatprep.subr.mxu0 0.0
    %2367 = vmatpush1.msra.mxu0 0.0
    %2368 = vmatprep.subr.mxu0 0.0
    %2369 = vmatpush1.msra.mxu0 0.0
    %2370 = vmatprep.subr.mxu0 0.0
    %2371 = vmatpush1.msra.mxu0 0.0
    %2372 = vmatprep.subr.mxu0 0.0
    %2373 = vmatpush1.msra.mxu0 0.0
    %2374 = vmatprep.subr.mxu0 0.0
    %2375 = vmatpush1.msra.mxu0 0.0
    %2376 = vmatprep.subr.mxu0 0.0
    %2377 = vmatpush1.msra.mxu0 0.0
    %2378 = vmatprep.subr.mxu0 0.0
    %2379 = vmatpush1.msra.mxu0 0.0
    %2380 = vmatprep.subr.mxu0 0.0
    %2381 = vmatpush1.msra.mxu0 0.0
    %2382 = vmatprep.subr.mxu0 0.0
    %2383 = vmatpush1.msra.mxu0 0.0
    %2384 = vmatprep.mubr.f32.mxu0 0.0
    %2385 = vmatmul.mubr.f32.gmra.mrb[0].mxu0 %v2318
    %v2386 = vpop.f32.mrb[0].mxu0
    %v2387 = vadd.f32 0.0, %v2386
    %v2388 = vpop.f32.mrb[0].mxu0
    %2389 = vdwg.mxu0
    %v2391 = vsel %vm374, %v2052, 0
    %2393 = vmatprep.subr.mxu0 0.0
    %2394 = vmatpush1.msra.mxu0 %v2082
    %2395 = vmatprep.subr.mxu0 0.0
    %2396 = vmatpush1.msra.mxu0 %v2083
    %2397 = vmatprep.subr.mxu0 0.0
    %2398 = vmatpush1.msra.mxu0 %v2084
    %2399 = vmatprep.subr.mxu0 0.0
    %2400 = vmatpush1.msra.mxu0 %v2085
    %2401 = vmatprep.subr.mxu0 0.0
    %2402 = vmatpush1.msra.mxu0 0.0
    %2403 = vmatprep.subr.mxu0 0.0
    %2404 = vmatpush1.msra.mxu0 0.0
    %2405 = vmatprep.subr.mxu0 0.0
    %2406 = vmatpush1.msra.mxu0 0.0
    %2407 = vmatprep.subr.mxu0 0.0
    %2408 = vmatpush1.msra.mxu0 0.0
    %2409 = vmatprep.subr.mxu0 0.0
    %2410 = vmatpush1.msra.mxu0 0.0
    %2411 = vmatprep.subr.mxu0 0.0
    %2412 = vmatpush1.msra.mxu0 0.0
    %2413 = vmatprep.subr.mxu0 0.0
    %2414 = vmatpush1.msra.mxu0 0.0
    %2415 = vmatprep.subr.mxu0 0.0
    %2416 = vmatpush1.msra.mxu0 0.0
    %2417 = vmatprep.subr.mxu0 0.0
    %2418 = vmatpush1.msra.mxu0 0.0
    %2419 = vmatprep.subr.mxu0 0.0
    %2420 = vmatpush1.msra.mxu0 0.0
    %2421 = vmatprep.subr.mxu0 0.0
    %2422 = vmatpush1.msra.mxu0 0.0
    %2423 = vmatprep.subr.mxu0 0.0
    %2424 = vmatpush1.msra.mxu0 0.0
    %2425 = vmatprep.subr.mxu0 0.0
    %2426 = vmatpush1.msra.mxu0 0.0
    %2427 = vmatprep.subr.mxu0 0.0
    %2428 = vmatpush1.msra.mxu0 0.0
    %2429 = vmatprep.subr.mxu0 0.0
    %2430 = vmatpush1.msra.mxu0 0.0
    %2431 = vmatprep.subr.mxu0 0.0
    %2432 = vmatpush1.msra.mxu0 0.0
    %2433 = vmatprep.subr.mxu0 0.0
    %2434 = vmatpush1.msra.mxu0 0.0
    %2435 = vmatprep.subr.mxu0 0.0
    %2436 = vmatpush1.msra.mxu0 0.0
    %2437 = vmatprep.subr.mxu0 0.0
    %2438 = vmatpush1.msra.mxu0 0.0
    %2439 = vmatprep.subr.mxu0 0.0
    %2440 = vmatpush1.msra.mxu0 0.0
    %2441 = vmatprep.subr.mxu0 0.0
    %2442 = vmatpush1.msra.mxu0 0.0
    %2443 = vmatprep.subr.mxu0 0.0
    %2444 = vmatpush1.msra.mxu0 0.0
    %2445 = vmatprep.subr.mxu0 0.0
    %2446 = vmatpush1.msra.mxu0 0.0
    %2447 = vmatprep.subr.mxu0 0.0
    %2448 = vmatpush1.msra.mxu0 0.0
    %2449 = vmatprep.subr.mxu0 0.0
    %2450 = vmatpush1.msra.mxu0 0.0
    %2451 = vmatprep.subr.mxu0 0.0
    %2452 = vmatpush1.msra.mxu0 0.0
    %2453 = vmatprep.subr.mxu0 0.0
    %2454 = vmatpush1.msra.mxu0 0.0
    %2455 = vmatprep.subr.mxu0 0.0
    %2456 = vmatpush1.msra.mxu0 0.0
    %2457 = vmatprep.mubr.f32.mxu0 0.0
    %2458 = vmatmul.mubr.f32.gmra.mrb[0].mxu0 %v2391
    %v2459 = vpop.f32.mrb[0].mxu0
    %v2460 = vadd.f32 0.0, %v2459
    %v2461 = vpop.f32.mrb[0].mxu0
    %2462 = vdwg.mxu0
    %v2464 = vsel %vm374, %v2062, 0
    %2466 = vmatprep.subr.mxu0 0.0
    %2467 = vmatpush1.msra.mxu0 %v2086
    %2468 = vmatprep.subr.mxu0 0.0
    %2469 = vmatpush1.msra.mxu0 %v2087
    %2470 = vmatprep.subr.mxu0 0.0
    %2471 = vmatpush1.msra.mxu0 %v2088
    %2472 = vmatprep.subr.mxu0 0.0
    %2473 = vmatpush1.msra.mxu0 %v2089
    %2474 = vmatprep.subr.mxu0 0.0
    %2475 = vmatpush1.msra.mxu0 0.0
    %2476 = vmatprep.subr.mxu0 0.0
    %2477 = vmatpush1.msra.mxu0 0.0
    %2478 = vmatprep.subr.mxu0 0.0
    %2479 = vmatpush1.msra.mxu0 0.0
    %2480 = vmatprep.subr.mxu0 0.0
    %2481 = vmatpush1.msra.mxu0 0.0
    %2482 = vmatprep.subr.mxu0 0.0
    %2483 = vmatpush1.msra.mxu0 0.0
    %2484 = vmatprep.subr.mxu0 0.0
    %2485 = vmatpush1.msra.mxu0 0.0
    %2486 = vmatprep.subr.mxu0 0.0
    %2487 = vmatpush1.msra.mxu0 0.0
    %2488 = vmatprep.subr.mxu0 0.0
    %2489 = vmatpush1.msra.mxu0 0.0
    %2490 = vmatprep.subr.mxu0 0.0
    %2491 = vmatpush1.msra.mxu0 0.0
    %2492 = vmatprep.subr.mxu0 0.0
    %2493 = vmatpush1.msra.mxu0 0.0
    %2494 = vmatprep.subr.mxu0 0.0
    %2495 = vmatpush1.msra.mxu0 0.0
    %2496 = vmatprep.subr.mxu0 0.0
    %2497 = vmatpush1.msra.mxu0 0.0
    %2498 = vmatprep.subr.mxu0 0.0
    %2499 = vmatpush1.msra.mxu0 0.0
    %2500 = vmatprep.subr.mxu0 0.0
    %2501 = vmatpush1.msra.mxu0 0.0
    %2502 = vmatprep.subr.mxu0 0.0
    %2503 = vmatpush1.msra.mxu0 0.0
    %2504 = vmatprep.subr.mxu0 0.0
    %2505 = vmatpush1.msra.mxu0 0.0
    %2506 = vmatprep.subr.mxu0 0.0
    %2507 = vmatpush1.msra.mxu0 0.0
    %2508 = vmatprep.subr.mxu0 0.0
    %2509 = vmatpush1.msra.mxu0 0.0
    %2510 = vmatprep.subr.mxu0 0.0
    %2511 = vmatpush1.msra.mxu0 0.0
    %2512 = vmatprep.subr.mxu0 0.0
    %2513 = vmatpush1.msra.mxu0 0.0
    %2514 = vmatprep.subr.mxu0 0.0
    %2515 = vmatpush1.msra.mxu0 0.0
    %2516 = vmatprep.subr.mxu0 0.0
    %2517 = vmatpush1.msra.mxu0 0.0
    %2518 = vmatprep.subr.mxu0 0.0
    %2519 = vmatpush1.msra.mxu0 0.0
    %2520 = vmatprep.subr.mxu0 0.0
    %2521 = vmatpush1.msra.mxu0 0.0
    %2522 = vmatprep.subr.mxu0 0.0
    %2523 = vmatpush1.msra.mxu0 0.0
    %2524 = vmatprep.subr.mxu0 0.0
    %2525 = vmatpush1.msra.mxu0 0.0
    %2526 = vmatprep.subr.mxu0 0.0
    %2527 = vmatpush1.msra.mxu0 0.0
    %2528 = vmatprep.subr.mxu0 0.0
    %2529 = vmatpush1.msra.mxu0 0.0
    %2530 = vmatprep.mubr.f32.mxu0 0.0
    %2531 = vmatmul.mubr.f32.gmra.mrb[0].mxu0 %v2464
    %v2532 = vpop.f32.mrb[0].mxu0
    %v2533 = vadd.f32 0.0, %v2532
    %v2534 = vpop.f32.mrb[0].mxu0
    %2535 = vdwg.mxu0
    %v2537 = vsel %vm374, %v2059, 0
    %2539 = vmatprep.subr.mxu0 0.0
    %2540 = vmatpush1.msra.mxu0 %v2090
    %2541 = vmatprep.subr.mxu0 0.0
    %2542 = vmatpush1.msra.mxu0 %v2091
    %2543 = vmatprep.subr.mxu0 0.0
    %2544 = vmatpush1.msra.mxu0 %v2092
    %2545 = vmatprep.subr.mxu0 0.0
    %2546 = vmatpush1.msra.mxu0 %v2093
    %2547 = vmatprep.subr.mxu0 0.0
    %2548 = vmatpush1.msra.mxu0 0.0
    %2549 = vmatprep.subr.mxu0 0.0
    %2550 = vmatpush1.msra.mxu0 0.0
    %2551 = vmatprep.subr.mxu0 0.0
    %2552 = vmatpush1.msra.mxu0 0.0
    %2553 = vmatprep.subr.mxu0 0.0
    %2554 = vmatpush1.msra.mxu0 0.0
    %2555 = vmatprep.subr.mxu0 0.0
    %2556 = vmatpush1.msra.mxu0 0.0
    %2557 = vmatprep.subr.mxu0 0.0
    %2558 = vmatpush1.msra.mxu0 0.0
    %2559 = vmatprep.subr.mxu0 0.0
    %2560 = vmatpush1.msra.mxu0 0.0
    %2561 = vmatprep.subr.mxu0 0.0
    %2562 = vmatpush1.msra.mxu0 0.0
    %2563 = vmatprep.subr.mxu0 0.0
    %2564 = vmatpush1.msra.mxu0 0.0
    %2565 = vmatprep.subr.mxu0 0.0
    %2566 = vmatpush1.msra.mxu0 0.0
    %2567 = vmatprep.subr.mxu0 0.0
    %2568 = vmatpush1.msra.mxu0 0.0
    %2569 = vmatprep.subr.mxu0 0.0
    %2570 = vmatpush1.msra.mxu0 0.0
    %2571 = vmatprep.subr.mxu0 0.0
    %2572 = vmatpush1.msra.mxu0 0.0
    %2573 = vmatprep.subr.mxu0 0.0
    %2574 = vmatpush1.msra.mxu0 0.0
    %2575 = vmatprep.subr.mxu0 0.0
    %2576 = vmatpush1.msra.mxu0 0.0
    %2577 = vmatprep.subr.mxu0 0.0
    %2578 = vmatpush1.msra.mxu0 0.0
    %2579 = vmatprep.subr.mxu0 0.0
    %2580 = vmatpush1.msra.mxu0 0.0
    %2581 = vmatprep.subr.mxu0 0.0
    %2582 = vmatpush1.msra.mxu0 0.0
    %2583 = vmatprep.subr.mxu0 0.0
    %2584 = vmatpush1.msra.mxu0 0.0
    %2585 = vmatprep.subr.mxu0 0.0
    %2586 = vmatpush1.msra.mxu0 0.0
    %2587 = vmatprep.subr.mxu0 0.0
    %2588 = vmatpush1.msra.mxu0 0.0
    %2589 = vmatprep.subr.mxu0 0.0
    %2590 = vmatpush1.msra.mxu0 0.0
    %2591 = vmatprep.subr.mxu0 0.0
    %2592 = vmatpush1.msra.mxu0 0.0
    %2593 = vmatprep.subr.mxu0 0.0
    %2594 = vmatpush1.msra.mxu0 0.0
    %2595 = vmatprep.subr.mxu0 0.0
    %2596 = vmatpush1.msra.mxu0 0.0
    %2597 = vmatprep.subr.mxu0 0.0
    %2598 = vmatpush1.msra.mxu0 0.0
    %2599 = vmatprep.subr.mxu0 0.0
    %2600 = vmatpush1.msra.mxu0 0.0
    %2601 = vmatprep.subr.mxu0 0.0
    %2602 = vmatpush1.msra.mxu0 0.0
    %2603 = vmatprep.mubr.f32.mxu0 0.0
    %2604 = vmatmul.mubr.f32.gmra.mrb[0].mxu0 %v2537
    %v2605 = vpop.f32.mrb[0].mxu0
    %v2606 = vadd.f32 0.0, %v2605
    %v2607 = vpop.f32.mrb[0].mxu0
    %2608 = vdwg.mxu0
    %v2610 = vsel %vm374, %v2063, 0
    %2612 = vmatprep.subr.mxu0 0.0
    %2613 = vmatpush1.msra.mxu0 %v2094
    %2614 = vmatprep.subr.mxu0 0.0
    %2615 = vmatpush1.msra.mxu0 %v2095
    %2616 = vmatprep.subr.mxu0 0.0
    %2617 = vmatpush1.msra.mxu0 %v2096
    %2618 = vmatprep.subr.mxu0 0.0
    %2619 = vmatpush1.msra.mxu0 %v2097
    %2620 = vmatprep.subr.mxu0 0.0
    %2621 = vmatpush1.msra.mxu0 0.0
    %2622 = vmatprep.subr.mxu0 0.0
    %2623 = vmatpush1.msra.mxu0 0.0
    %2624 = vmatprep.subr.mxu0 0.0
    %2625 = vmatpush1.msra.mxu0 0.0
    %2626 = vmatprep.subr.mxu0 0.0
    %2627 = vmatpush1.msra.mxu0 0.0
    %2628 = vmatprep.subr.mxu0 0.0
    %2629 = vmatpush1.msra.mxu0 0.0
    %2630 = vmatprep.subr.mxu0 0.0
    %2631 = vmatpush1.msra.mxu0 0.0
    %2632 = vmatprep.subr.mxu0 0.0
    %2633 = vmatpush1.msra.mxu0 0.0
    %2634 = vmatprep.subr.mxu0 0.0
    %2635 = vmatpush1.msra.mxu0 0.0
    %2636 = vmatprep.subr.mxu0 0.0
    %2637 = vmatpush1.msra.mxu0 0.0
    %2638 = vmatprep.subr.mxu0 0.0
    %2639 = vmatpush1.msra.mxu0 0.0
    %2640 = vmatprep.subr.mxu0 0.0
    %2641 = vmatpush1.msra.mxu0 0.0
    %2642 = vmatprep.subr.mxu0 0.0
    %2643 = vmatpush1.msra.mxu0 0.0
    %2644 = vmatprep.subr.mxu0 0.0
    %2645 = vmatpush1.msra.mxu0 0.0
    %2646 = vmatprep.subr.mxu0 0.0
    %2647 = vmatpush1.msra.mxu0 0.0
    %2648 = vmatprep.subr.mxu0 0.0
    %2649 = vmatpush1.msra.mxu0 0.0
    %2650 = vmatprep.subr.mxu0 0.0
    %2651 = vmatpush1.msra.mxu0 0.0
    %2652 = vmatprep.subr.mxu0 0.0
    %2653 = vmatpush1.msra.mxu0 0.0
    %2654 = vmatprep.subr.mxu0 0.0
    %2655 = vmatpush1.msra.mxu0 0.0
    %2656 = vmatprep.subr.mxu0 0.0
    %2657 = vmatpush1.msra.mxu0 0.0
    %2658 = vmatprep.subr.mxu0 0.0
    %2659 = vmatpush1.msra.mxu0 0.0
    %2660 = vmatprep.subr.mxu0 0.0
    %2661 = vmatpush1.msra.mxu0 0.0
    %2662 = vmatprep.subr.mxu0 0.0
    %2663 = vmatpush1.msra.mxu0 0.0
    %2664 = vmatprep.subr.mxu0 0.0
    %2665 = vmatpush1.msra.mxu0 0.0
    %2666 = vmatprep.subr.mxu0 0.0
    %2667 = vmatpush1.msra.mxu0 0.0
    %2668 = vmatprep.subr.mxu0 0.0
    %2669 = vmatpush1.msra.mxu0 0.0
    %2670 = vmatprep.subr.mxu0 0.0
    %2671 = vmatpush1.msra.mxu0 0.0
    %2672 = vmatprep.subr.mxu0 0.0
    %2673 = vmatpush1.msra.mxu0 0.0
    %2674 = vmatprep.subr.mxu0 0.0
    %2675 = vmatpush1.msra.mxu0 0.0
    %2676 = vmatprep.mubr.f32.mxu0 0.0
    %2677 = vmatmul.mubr.f32.gmra.mrb[0].mxu0 %v2610
    %v2678 = vpop.f32.mrb[0].mxu0
    %v2679 = vadd.f32 0.0, %v2678
    %v2680 = vpop.f32.mrb[0].mxu0
    %2681 = vdwg.mxu0
    %v2682 = vsub.f32 %v2168, %v2460
    %v2683 = vsub.f32 %v2241, %v2533
    %v2684 = vsub.f32 %v2314, %v2606
    %v2685 = vsub.f32 %v2387, %v2679
    %2686 = vmatprep.subr.mxu0 0.0
    %2687 = vmatpush1.msra.mxu0 %v2065
    %2688 = vmatprep.subr.mxu0 0.0
    %2689 = vmatpush1.msra.mxu0 %v2066
    %2690 = vmatprep.subr.mxu0 0.0
    %2691 = vmatpush1.msra.mxu0 %v2067
    %2692 = vmatprep.subr.mxu0 0.0
    %2693 = vmatpush1.msra.mxu0 %v2068
    %2694 = vmatprep.subr.mxu0 0.0
    %2695 = vmatpush1.msra.mxu0 0.0
    %2696 = vmatprep.subr.mxu0 0.0
    %2697 = vmatpush1.msra.mxu0 0.0
    %2698 = vmatprep.subr.mxu0 0.0
    %2699 = vmatpush1.msra.mxu0 0.0
    %2700 = vmatprep.subr.mxu0 0.0
    %2701 = vmatpush1.msra.mxu0 0.0
    %2702 = vmatprep.subr.mxu0 0.0
    %2703 = vmatpush1.msra.mxu0 0.0
    %2704 = vmatprep.subr.mxu0 0.0
    %2705 = vmatpush1.msra.mxu0 0.0
    %2706 = vmatprep.subr.mxu0 0.0
    %2707 = vmatpush1.msra.mxu0 0.0
    %2708 = vmatprep.subr.mxu0 0.0
    %2709 = vmatpush1.msra.mxu0 0.0
    %2710 = vmatprep.subr.mxu0 0.0
    %2711 = vmatpush1.msra.mxu0 0.0
    %2712 = vmatprep.subr.mxu0 0.0
    %2713 = vmatpush1.msra.mxu0 0.0
    %2714 = vmatprep.subr.mxu0 0.0
    %2715 = vmatpush1.msra.mxu0 0.0
    %2716 = vmatprep.subr.mxu0 0.0
    %2717 = vmatpush1.msra.mxu0 0.0
    %2718 = vmatprep.subr.mxu0 0.0
    %2719 = vmatpush1.msra.mxu0 0.0
    %2720 = vmatprep.subr.mxu0 0.0
    %2721 = vmatpush1.msra.mxu0 0.0
    %2722 = vmatprep.subr.mxu0 0.0
    %2723 = vmatpush1.msra.mxu0 0.0
    %2724 = vmatprep.subr.mxu0 0.0
    %2725 = vmatpush1.msra.mxu0 0.0
    %2726 = vmatprep.subr.mxu0 0.0
    %2727 = vmatpush1.msra.mxu0 0.0
    %2728 = vmatprep.subr.mxu0 0.0
    %2729 = vmatpush1.msra.mxu0 0.0
    %2730 = vmatprep.subr.mxu0 0.0
    %2731 = vmatpush1.msra.mxu0 0.0
    %2732 = vmatprep.subr.mxu0 0.0
    %2733 = vmatpush1.msra.mxu0 0.0
    %2734 = vmatprep.subr.mxu0 0.0
    %2735 = vmatpush1.msra.mxu0 0.0
    %2736 = vmatprep.subr.mxu0 0.0
    %2737 = vmatpush1.msra.mxu0 0.0
    %2738 = vmatprep.subr.mxu0 0.0
    %2739 = vmatpush1.msra.mxu0 0.0
    %2740 = vmatprep.subr.mxu0 0.0
    %2741 = vmatpush1.msra.mxu0 0.0
    %2742 = vmatprep.subr.mxu0 0.0
    %2743 = vmatpush1.msra.mxu0 0.0
    %2744 = vmatprep.subr.mxu0 0.0
    %2745 = vmatpush1.msra.mxu0 0.0
    %2746 = vmatprep.subr.mxu0 0.0
    %2747 = vmatpush1.msra.mxu0 0.0
    %2748 = vmatprep.subr.mxu0 0.0
    %2749 = vmatpush1.msra.mxu0 0.0
    %2750 = vmatprep.mubr.f32.mxu0 0.0
    %2751 = vmatmul.mubr.f32.gmra.mrb[0].mxu0 %v2391
    %v2752 = vpop.f32.mrb[0].mxu0
    %v2753 = vadd.f32 0.0, %v2752
    %v2754 = vpop.f32.mrb[0].mxu0
    %2755 = vdwg.mxu0
    %2756 = vmatprep.subr.mxu0 0.0
    %2757 = vmatpush1.msra.mxu0 %v2069
    %2758 = vmatprep.subr.mxu0 0.0
    %2759 = vmatpush1.msra.mxu0 %v2070
    %2760 = vmatprep.subr.mxu0 0.0
    %2761 = vmatpush1.msra.mxu0 %v2071
    %2762 = vmatprep.subr.mxu0 0.0
    %2763 = vmatpush1.msra.mxu0 %v2072
    %2764 = vmatprep.subr.mxu0 0.0
    %2765 = vmatpush1.msra.mxu0 0.0
    %2766 = vmatprep.subr.mxu0 0.0
    %2767 = vmatpush1.msra.mxu0 0.0
    %2768 = vmatprep.subr.mxu0 0.0
    %2769 = vmatpush1.msra.mxu0 0.0
    %2770 = vmatprep.subr.mxu0 0.0
    %2771 = vmatpush1.msra.mxu0 0.0
    %2772 = vmatprep.subr.mxu0 0.0
    %2773 = vmatpush1.msra.mxu0 0.0
    %2774 = vmatprep.subr.mxu0 0.0
    %2775 = vmatpush1.msra.mxu0 0.0
    %2776 = vmatprep.subr.mxu0 0.0
    %2777 = vmatpush1.msra.mxu0 0.0
    %2778 = vmatprep.subr.mxu0 0.0
    %2779 = vmatpush1.msra.mxu0 0.0
    %2780 = vmatprep.subr.mxu0 0.0
    %2781 = vmatpush1.msra.mxu0 0.0
    %2782 = vmatprep.subr.mxu0 0.0
    %2783 = vmatpush1.msra.mxu0 0.0
    %2784 = vmatprep.subr.mxu0 0.0
    %2785 = vmatpush1.msra.mxu0 0.0
    %2786 = vmatprep.subr.mxu0 0.0
    %2787 = vmatpush1.msra.mxu0 0.0
    %2788 = vmatprep.subr.mxu0 0.0
    %2789 = vmatpush1.msra.mxu0 0.0
    %2790 = vmatprep.subr.mxu0 0.0
    %2791 = vmatpush1.msra.mxu0 0.0
    %2792 = vmatprep.subr.mxu0 0.0
    %2793 = vmatpush1.msra.mxu0 0.0
    %2794 = vmatprep.subr.mxu0 0.0
    %2795 = vmatpush1.msra.mxu0 0.0
    %2796 = vmatprep.subr.mxu0 0.0
    %2797 = vmatpush1.msra.mxu0 0.0
    %2798 = vmatprep.subr.mxu0 0.0
    %2799 = vmatpush1.msra.mxu0 0.0
    %2800 = vmatprep.subr.mxu0 0.0
    %2801 = vmatpush1.msra.mxu0 0.0
    %2802 = vmatprep.subr.mxu0 0.0
    %2803 = vmatpush1.msra.mxu0 0.0
    %2804 = vmatprep.subr.mxu0 0.0
    %2805 = vmatpush1.msra.mxu0 0.0
    %2806 = vmatprep.subr.mxu0 0.0
    %2807 = vmatpush1.msra.mxu0 0.0
    %2808 = vmatprep.subr.mxu0 0.0
    %2809 = vmatpush1.msra.mxu0 0.0
    %2810 = vmatprep.subr.mxu0 0.0
    %2811 = vmatpush1.msra.mxu0 0.0
    %2812 = vmatprep.subr.mxu0 0.0
    %2813 = vmatpush1.msra.mxu0 0.0
    %2814 = vmatprep.subr.mxu0 0.0
    %2815 = vmatpush1.msra.mxu0 0.0
    %2816 = vmatprep.subr.mxu0 0.0
    %2817 = vmatpush1.msra.mxu0 0.0
    %2818 = vmatprep.subr.mxu0 0.0
    %2819 = vmatpush1.msra.mxu0 0.0
    %2820 = vmatprep.mubr.f32.mxu0 0.0
    %2821 = vmatmul.mubr.f32.gmra.mrb[0].mxu0 %v2464
    %v2822 = vpop.f32.mrb[0].mxu0
    %v2823 = vadd.f32 0.0, %v2822
    %v2824 = vpop.f32.mrb[0].mxu0
    %2825 = vdwg.mxu0
    %2826 = vmatprep.subr.mxu0 0.0
    %2827 = vmatpush1.msra.mxu0 %v2073
    %2828 = vmatprep.subr.mxu0 0.0
    %2829 = vmatpush1.msra.mxu0 %v2074
    %2830 = vmatprep.subr.mxu0 0.0
    %2831 = vmatpush1.msra.mxu0 %v2075
    %2832 = vmatprep.subr.mxu0 0.0
    %2833 = vmatpush1.msra.mxu0 %v2076
    %2834 = vmatprep.subr.mxu0 0.0
    %2835 = vmatpush1.msra.mxu0 0.0
    %2836 = vmatprep.subr.mxu0 0.0
    %2837 = vmatpush1.msra.mxu0 0.0
    %2838 = vmatprep.subr.mxu0 0.0
    %2839 = vmatpush1.msra.mxu0 0.0
    %2840 = vmatprep.subr.mxu0 0.0
    %2841 = vmatpush1.msra.mxu0 0.0
    %2842 = vmatprep.subr.mxu0 0.0
    %2843 = vmatpush1.msra.mxu0 0.0
    %2844 = vmatprep.subr.mxu0 0.0
    %2845 = vmatpush1.msra.mxu0 0.0
    %2846 = vmatprep.subr.mxu0 0.0
    %2847 = vmatpush1.msra.mxu0 0.0
    %2848 = vmatprep.subr.mxu0 0.0
    %2849 = vmatpush1.msra.mxu0 0.0
    %2850 = vmatprep.subr.mxu0 0.0
    %2851 = vmatpush1.msra.mxu0 0.0
    %2852 = vmatprep.subr.mxu0 0.0
    %2853 = vmatpush1.msra.mxu0 0.0
    %2854 = vmatprep.subr.mxu0 0.0
    %2855 = vmatpush1.msra.mxu0 0.0
    %2856 = vmatprep.subr.mxu0 0.0
    %2857 = vmatpush1.msra.mxu0 0.0
    %2858 = vmatprep.subr.mxu0 0.0
    %2859 = vmatpush1.msra.mxu0 0.0
    %2860 = vmatprep.subr.mxu0 0.0
    %2861 = vmatpush1.msra.mxu0 0.0
    %2862 = vmatprep.subr.mxu0 0.0
    %2863 = vmatpush1.msra.mxu0 0.0
    %2864 = vmatprep.subr.mxu0 0.0
    %2865 = vmatpush1.msra.mxu0 0.0
    %2866 = vmatprep.subr.mxu0 0.0
    %2867 = vmatpush1.msra.mxu0 0.0
    %2868 = vmatprep.subr.mxu0 0.0
    %2869 = vmatpush1.msra.mxu0 0.0
    %2870 = vmatprep.subr.mxu0 0.0
    %2871 = vmatpush1.msra.mxu0 0.0
    %2872 = vmatprep.subr.mxu0 0.0
    %2873 = vmatpush1.msra.mxu0 0.0
    %2874 = vmatprep.subr.mxu0 0.0
    %2875 = vmatpush1.msra.mxu0 0.0
    %2876 = vmatprep.subr.mxu0 0.0
    %2877 = vmatpush1.msra.mxu0 0.0
    %2878 = vmatprep.subr.mxu0 0.0
    %2879 = vmatpush1.msra.mxu0 0.0
    %2880 = vmatprep.subr.mxu0 0.0
    %2881 = vmatpush1.msra.mxu0 0.0
    %2882 = vmatprep.subr.mxu0 0.0
    %2883 = vmatpush1.msra.mxu0 0.0
    %2884 = vmatprep.subr.mxu0 0.0
    %2885 = vmatpush1.msra.mxu0 0.0
    %2886 = vmatprep.subr.mxu0 0.0
    %2887 = vmatpush1.msra.mxu0 0.0
    %2888 = vmatprep.subr.mxu0 0.0
    %2889 = vmatpush1.msra.mxu0 0.0
    %2890 = vmatprep.mubr.f32.mxu0 0.0
    %2891 = vmatmul.mubr.f32.gmra.mrb[0].mxu0 %v2537
    %v2892 = vpop.f32.mrb[0].mxu0
    %v2893 = vadd.f32 0.0, %v2892
    %v2894 = vpop.f32.mrb[0].mxu0
    %2895 = vdwg.mxu0
    %2896 = vmatprep.subr.mxu0 0.0
    %2897 = vmatpush1.msra.mxu0 %v2077
    %2898 = vmatprep.subr.mxu0 0.0
    %2899 = vmatpush1.msra.mxu0 %v2078
    %2900 = vmatprep.subr.mxu0 0.0
    %2901 = vmatpush1.msra.mxu0 %v2079
    %2902 = vmatprep.subr.mxu0 0.0
    %2903 = vmatpush1.msra.mxu0 %v2080
    %2904 = vmatprep.subr.mxu0 0.0
    %2905 = vmatpush1.msra.mxu0 0.0
    %2906 = vmatprep.subr.mxu0 0.0
    %2907 = vmatpush1.msra.mxu0 0.0
    %2908 = vmatprep.subr.mxu0 0.0
    %2909 = vmatpush1.msra.mxu0 0.0
    %2910 = vmatprep.subr.mxu0 0.0
    %2911 = vmatpush1.msra.mxu0 0.0
    %2912 = vmatprep.subr.mxu0 0.0
    %2913 = vmatpush1.msra.mxu0 0.0
    %2914 = vmatprep.subr.mxu0 0.0
    %2915 = vmatpush1.msra.mxu0 0.0
    %2916 = vmatprep.subr.mxu0 0.0
    %2917 = vmatpush1.msra.mxu0 0.0
    %2918 = vmatprep.subr.mxu0 0.0
    %2919 = vmatpush1.msra.mxu0 0.0
    %2920 = vmatprep.subr.mxu0 0.0
    %2921 = vmatpush1.msra.mxu0 0.0
    %2922 = vmatprep.subr.mxu0 0.0
    %2923 = vmatpush1.msra.mxu0 0.0
    %2924 = vmatprep.subr.mxu0 0.0
    %2925 = vmatpush1.msra.mxu0 0.0
    %2926 = vmatprep.subr.mxu0 0.0
    %2927 = vmatpush1.msra.mxu0 0.0
    %2928 = vmatprep.subr.mxu0 0.0
    %2929 = vmatpush1.msra.mxu0 0.0
    %2930 = vmatprep.subr.mxu0 0.0
    %2931 = vmatpush1.msra.mxu0 0.0
    %2932 = vmatprep.subr.mxu0 0.0
    %2933 = vmatpush1.msra.mxu0 0.0
    %2934 = vmatprep.subr.mxu0 0.0
    %2935 = vmatpush1.msra.mxu0 0.0
    %2936 = vmatprep.subr.mxu0 0.0
    %2937 = vmatpush1.msra.mxu0 0.0
    %2938 = vmatprep.subr.mxu0 0.0
    %2939 = vmatpush1.msra.mxu0 0.0
    %2940 = vmatprep.subr.mxu0 0.0
    %2941 = vmatpush1.msra.mxu0 0.0
    %2942 = vmatprep.subr.mxu0 0.0
    %2943 = vmatpush1.msra.mxu0 0.0
    %2944 = vmatprep.subr.mxu0 0.0
    %2945 = vmatpush1.msra.mxu0 0.0
    %2946 = vmatprep.subr.mxu0 0.0
    %2947 = vmatpush1.msra.mxu0 0.0
    %2948 = vmatprep.subr.mxu0 0.0
    %2949 = vmatpush1.msra.mxu0 0.0
    %2950 = vmatprep.subr.mxu0 0.0
    %2951 = vmatpush1.msra.mxu0 0.0
    %2952 = vmatprep.subr.mxu0 0.0
    %2953 = vmatpush1.msra.mxu0 0.0
    %2954 = vmatprep.subr.mxu0 0.0
    %2955 = vmatpush1.msra.mxu0 0.0
    %2956 = vmatprep.subr.mxu0 0.0
    %2957 = vmatpush1.msra.mxu0 0.0
    %2958 = vmatprep.subr.mxu0 0.0
    %2959 = vmatpush1.msra.mxu0 0.0
    %2960 = vmatprep.mubr.f32.mxu0 0.0
    %2961 = vmatmul.mubr.f32.gmra.mrb[0].mxu0 %v2610
    %v2962 = vpop.f32.mrb[0].mxu0
    %v2963 = vadd.f32 0.0, %v2962
    %v2964 = vpop.f32.mrb[0].mxu0
    %2965 = vdwg.mxu0
    %2966 = vmatprep.subr.mxu0 0.0
    %2967 = vmatpush1.msra.mxu0 %v2082
    %2968 = vmatprep.subr.mxu0 0.0
    %2969 = vmatpush1.msra.mxu0 %v2083
    %2970 = vmatprep.subr.mxu0 0.0
    %2971 = vmatpush1.msra.mxu0 %v2084
    %2972 = vmatprep.subr.mxu0 0.0
    %2973 = vmatpush1.msra.mxu0 %v2085
    %2974 = vmatprep.subr.mxu0 0.0
    %2975 = vmatpush1.msra.mxu0 0.0
    %2976 = vmatprep.subr.mxu0 0.0
    %2977 = vmatpush1.msra.mxu0 0.0
    %2978 = vmatprep.subr.mxu0 0.0
    %2979 = vmatpush1.msra.mxu0 0.0
    %2980 = vmatprep.subr.mxu0 0.0
    %2981 = vmatpush1.msra.mxu0 0.0
    %2982 = vmatprep.subr.mxu0 0.0
    %2983 = vmatpush1.msra.mxu0 0.0
    %2984 = vmatprep.subr.mxu0 0.0
    %2985 = vmatpush1.msra.mxu0 0.0
    %2986 = vmatprep.subr.mxu0 0.0
    %2987 = vmatpush1.msra.mxu0 0.0
    %2988 = vmatprep.subr.mxu0 0.0
    %2989 = vmatpush1.msra.mxu0 0.0
    %2990 = vmatprep.subr.mxu0 0.0
    %2991 = vmatpush1.msra.mxu0 0.0
    %2992 = vmatprep.subr.mxu0 0.0
    %2993 = vmatpush1.msra.mxu0 0.0
    %2994 = vmatprep.subr.mxu0 0.0
    %2995 = vmatpush1.msra.mxu0 0.0
    %2996 = vmatprep.subr.mxu0 0.0
    %2997 = vmatpush1.msra.mxu0 0.0
    %2998 = vmatprep.subr.mxu0 0.0
    %2999 = vmatpush1.msra.mxu0 0.0
    %3000 = vmatprep.subr.mxu0 0.0
    %3001 = vmatpush1.msra.mxu0 0.0
    %3002 = vmatprep.subr.mxu0 0.0
    %3003 = vmatpush1.msra.mxu0 0.0
    %3004 = vmatprep.subr.mxu0 0.0
    %3005 = vmatpush1.msra.mxu0 0.0
    %3006 = vmatprep.subr.mxu0 0.0
    %3007 = vmatpush1.msra.mxu0 0.0
    %3008 = vmatprep.subr.mxu0 0.0
    %3009 = vmatpush1.msra.mxu0 0.0
    %3010 = vmatprep.subr.mxu0 0.0
    %3011 = vmatpush1.msra.mxu0 0.0
    %3012 = vmatprep.subr.mxu0 0.0
    %3013 = vmatpush1.msra.mxu0 0.0
    %3014 = vmatprep.subr.mxu0 0.0
    %3015 = vmatpush1.msra.mxu0 0.0
    %3016 = vmatprep.subr.mxu0 0.0
    %3017 = vmatpush1.msra.mxu0 0.0
    %3018 = vmatprep.subr.mxu0 0.0
    %3019 = vmatpush1.msra.mxu0 0.0
    %3020 = vmatprep.subr.mxu0 0.0
    %3021 = vmatpush1.msra.mxu0 0.0
    %3022 = vmatprep.subr.mxu0 0.0
    %3023 = vmatpush1.msra.mxu0 0.0
    %3024 = vmatprep.subr.mxu0 0.0
    %3025 = vmatpush1.msra.mxu0 0.0
    %3026 = vmatprep.subr.mxu0 0.0
    %3027 = vmatpush1.msra.mxu0 0.0
    %3028 = vmatprep.subr.mxu0 0.0
    %3029 = vmatpush1.msra.mxu0 0.0
    %3030 = vmatprep.mubr.f32.mxu0 0.0
    %3031 = vmatmul.mubr.f32.gmra.mrb[0].mxu0 %v2099
    %v3032 = vpop.f32.mrb[0].mxu0
    %v3033 = vadd.f32 %v2753, %v3032
    %v3034 = vpop.f32.mrb[0].mxu0
    %3035 = vdwg.mxu0
    %3036 = vmatprep.subr.mxu0 0.0
    %3037 = vmatpush1.msra.mxu0 %v2086
    %3038 = vmatprep.subr.mxu0 0.0
    %3039 = vmatpush1.msra.mxu0 %v2087
    %3040 = vmatprep.subr.mxu0 0.0
    %3041 = vmatpush1.msra.mxu0 %v2088
    %3042 = vmatprep.subr.mxu0 0.0
    %3043 = vmatpush1.msra.mxu0 %v2089
    %3044 = vmatprep.subr.mxu0 0.0
    %3045 = vmatpush1.msra.mxu0 0.0
    %3046 = vmatprep.subr.mxu0 0.0
    %3047 = vmatpush1.msra.mxu0 0.0
    %3048 = vmatprep.subr.mxu0 0.0
    %3049 = vmatpush1.msra.mxu0 0.0
    %3050 = vmatprep.subr.mxu0 0.0
    %3051 = vmatpush1.msra.mxu0 0.0
    %3052 = vmatprep.subr.mxu0 0.0
    %3053 = vmatpush1.msra.mxu0 0.0
    %3054 = vmatprep.subr.mxu0 0.0
    %3055 = vmatpush1.msra.mxu0 0.0
    %3056 = vmatprep.subr.mxu0 0.0
    %3057 = vmatpush1.msra.mxu0 0.0
    %3058 = vmatprep.subr.mxu0 0.0
    %3059 = vmatpush1.msra.mxu0 0.0
    %3060 = vmatprep.subr.mxu0 0.0
    %3061 = vmatpush1.msra.mxu0 0.0
    %3062 = vmatprep.subr.mxu0 0.0
    %3063 = vmatpush1.msra.mxu0 0.0
    %3064 = vmatprep.subr.mxu0 0.0
    %3065 = vmatpush1.msra.mxu0 0.0
    %3066 = vmatprep.subr.mxu0 0.0
    %3067 = vmatpush1.msra.mxu0 0.0
    %3068 = vmatprep.subr.mxu0 0.0
    %3069 = vmatpush1.msra.mxu0 0.0
    %3070 = vmatprep.subr.mxu0 0.0
    %3071 = vmatpush1.msra.mxu0 0.0
    %3072 = vmatprep.subr.mxu0 0.0
    %3073 = vmatpush1.msra.mxu0 0.0
    %3074 = vmatprep.subr.mxu0 0.0
    %3075 = vmatpush1.msra.mxu0 0.0
    %3076 = vmatprep.subr.mxu0 0.0
    %3077 = vmatpush1.msra.mxu0 0.0
    %3078 = vmatprep.subr.mxu0 0.0
    %3079 = vmatpush1.msra.mxu0 0.0
    %3080 = vmatprep.subr.mxu0 0.0
    %3081 = vmatpush1.msra.mxu0 0.0
    %3082 = vmatprep.subr.mxu0 0.0
    %3083 = vmatpush1.msra.mxu0 0.0
    %3084 = vmatprep.subr.mxu0 0.0
    %3085 = vmatpush1.msra.mxu0 0.0
    %3086 = vmatprep.subr.mxu0 0.0
    %3087 = vmatpush1.msra.mxu0 0.0
    %3088 = vmatprep.subr.mxu0 0.0
    %3089 = vmatpush1.msra.mxu0 0.0
    %3090 = vmatprep.subr.mxu0 0.0
    %3091 = vmatpush1.msra.mxu0 0.0
    %3092 = vmatprep.subr.mxu0 0.0
    %3093 = vmatpush1.msra.mxu0 0.0
    %3094 = vmatprep.subr.mxu0 0.0
    %3095 = vmatpush1.msra.mxu0 0.0
    %3096 = vmatprep.subr.mxu0 0.0
    %3097 = vmatpush1.msra.mxu0 0.0
    %3098 = vmatprep.subr.mxu0 0.0
    %3099 = vmatpush1.msra.mxu0 0.0
    %3100 = vmatprep.mubr.f32.mxu0 0.0
    %3101 = vmatmul.mubr.f32.gmra.mrb[0].mxu0 %v2172
    %v3102 = vpop.f32.mrb[0].mxu0
    %v3103 = vadd.f32 %v2823, %v3102
    %v3104 = vpop.f32.mrb[0].mxu0
    %3105 = vdwg.mxu0
    %3106 = vmatprep.subr.mxu0 0.0
    %3107 = vmatpush1.msra.mxu0 %v2090
    %3108 = vmatprep.subr.mxu0 0.0
    %3109 = vmatpush1.msra.mxu0 %v2091
    %3110 = vmatprep.subr.mxu0 0.0
    %3111 = vmatpush1.msra.mxu0 %v2092
    %3112 = vmatprep.subr.mxu0 0.0
    %3113 = vmatpush1.msra.mxu0 %v2093
    %3114 = vmatprep.subr.mxu0 0.0
    %3115 = vmatpush1.msra.mxu0 0.0
    %3116 = vmatprep.subr.mxu0 0.0
    %3117 = vmatpush1.msra.mxu0 0.0
    %3118 = vmatprep.subr.mxu0 0.0
    %3119 = vmatpush1.msra.mxu0 0.0
    %3120 = vmatprep.subr.mxu0 0.0
    %3121 = vmatpush1.msra.mxu0 0.0
    %3122 = vmatprep.subr.mxu0 0.0
    %3123 = vmatpush1.msra.mxu0 0.0
    %3124 = vmatprep.subr.mxu0 0.0
    %3125 = vmatpush1.msra.mxu0 0.0
    %3126 = vmatprep.subr.mxu0 0.0
    %3127 = vmatpush1.msra.mxu0 0.0
    %3128 = vmatprep.subr.mxu0 0.0
    %3129 = vmatpush1.msra.mxu0 0.0
    %3130 = vmatprep.subr.mxu0 0.0
    %3131 = vmatpush1.msra.mxu0 0.0
    %3132 = vmatprep.subr.mxu0 0.0
    %3133 = vmatpush1.msra.mxu0 0.0
    %3134 = vmatprep.subr.mxu0 0.0
    %3135 = vmatpush1.msra.mxu0 0.0
    %3136 = vmatprep.subr.mxu0 0.0
    %3137 = vmatpush1.msra.mxu0 0.0
    %3138 = vmatprep.subr.mxu0 0.0
    %3139 = vmatpush1.msra.mxu0 0.0
    %3140 = vmatprep.subr.mxu0 0.0
    %3141 = vmatpush1.msra.mxu0 0.0
    %3142 = vmatprep.subr.mxu0 0.0
    %3143 = vmatpush1.msra.mxu0 0.0
    %3144 = vmatprep.subr.mxu0 0.0
    %3145 = vmatpush1.msra.mxu0 0.0
    %3146 = vmatprep.subr.mxu0 0.0
    %3147 = vmatpush1.msra.mxu0 0.0
    %3148 = vmatprep.subr.mxu0 0.0
    %3149 = vmatpush1.msra.mxu0 0.0
    %3150 = vmatprep.subr.mxu0 0.0
    %3151 = vmatpush1.msra.mxu0 0.0
    %3152 = vmatprep.subr.mxu0 0.0
    %3153 = vmatpush1.msra.mxu0 0.0
    %3154 = vmatprep.subr.mxu0 0.0
    %3155 = vmatpush1.msra.mxu0 0.0
    %3156 = vmatprep.subr.mxu0 0.0
    %3157 = vmatpush1.msra.mxu0 0.0
    %3158 = vmatprep.subr.mxu0 0.0
    %3159 = vmatpush1.msra.mxu0 0.0
    %3160 = vmatprep.subr.mxu0 0.0
    %3161 = vmatpush1.msra.mxu0 0.0
    %3162 = vmatprep.subr.mxu0 0.0
    %3163 = vmatpush1.msra.mxu0 0.0
    %3164 = vmatprep.subr.mxu0 0.0
    %3165 = vmatpush1.msra.mxu0 0.0
    %3166 = vmatprep.subr.mxu0 0.0
    %3167 = vmatpush1.msra.mxu0 0.0
    %3168 = vmatprep.subr.mxu0 0.0
    %3169 = vmatpush1.msra.mxu0 0.0
    %3170 = vmatprep.mubr.f32.mxu0 0.0
    %3171 = vmatmul.mubr.f32.gmra.mrb[0].mxu0 %v2245
    %v3172 = vpop.f32.mrb[0].mxu0
    %v3173 = vadd.f32 %v2893, %v3172
    %v3174 = vpop.f32.mrb[0].mxu0
    %3175 = vdwg.mxu0
    %3176 = vmatprep.subr.mxu0 0.0
    %3177 = vmatpush1.msra.mxu0 %v2094
    %3178 = vmatprep.subr.mxu0 0.0
    %3179 = vmatpush1.msra.mxu0 %v2095
    %3180 = vmatprep.subr.mxu0 0.0
    %3181 = vmatpush1.msra.mxu0 %v2096
    %3182 = vmatprep.subr.mxu0 0.0
    %3183 = vmatpush1.msra.mxu0 %v2097
    %3184 = vmatprep.subr.mxu0 0.0
    %3185 = vmatpush1.msra.mxu0 0.0
    %3186 = vmatprep.subr.mxu0 0.0
    %3187 = vmatpush1.msra.mxu0 0.0
    %3188 = vmatprep.subr.mxu0 0.0
    %3189 = vmatpush1.msra.mxu0 0.0
    %3190 = vmatprep.subr.mxu0 0.0
    %3191 = vmatpush1.msra.mxu0 0.0
    %3192 = vmatprep.subr.mxu0 0.0
    %3193 = vmatpush1.msra.mxu0 0.0
    %3194 = vmatprep.subr.mxu0 0.0
    %3195 = vmatpush1.msra.mxu0 0.0
    %3196 = vmatprep.subr.mxu0 0.0
    %3197 = vmatpush1.msra.mxu0 0.0
    %3198 = vmatprep.subr.mxu0 0.0
    %3199 = vmatpush1.msra.mxu0 0.0
    %3200 = vmatprep.subr.mxu0 0.0
    %3201 = vmatpush1.msra.mxu0 0.0
    %3202 = vmatprep.subr.mxu0 0.0
    %3203 = vmatpush1.msra.mxu0 0.0
    %3204 = vmatprep.subr.mxu0 0.0
    %3205 = vmatpush1.msra.mxu0 0.0
    %3206 = vmatprep.subr.mxu0 0.0
    %3207 = vmatpush1.msra.mxu0 0.0
    %3208 = vmatprep.subr.mxu0 0.0
    %3209 = vmatpush1.msra.mxu0 0.0
    %3210 = vmatprep.subr.mxu0 0.0
    %3211 = vmatpush1.msra.mxu0 0.0
    %3212 = vmatprep.subr.mxu0 0.0
    %3213 = vmatpush1.msra.mxu0 0.0
    %3214 = vmatprep.subr.mxu0 0.0
    %3215 = vmatpush1.msra.mxu0 0.0
    %3216 = vmatprep.subr.mxu0 0.0
    %3217 = vmatpush1.msra.mxu0 0.0
    %3218 = vmatprep.subr.mxu0 0.0
    %3219 = vmatpush1.msra.mxu0 0.0
    %3220 = vmatprep.subr.mxu0 0.0
    %3221 = vmatpush1.msra.mxu0 0.0
    %3222 = vmatprep.subr.mxu0 0.0
    %3223 = vmatpush1.msra.mxu0 0.0
    %3224 = vmatprep.subr.mxu0 0.0
    %3225 = vmatpush1.msra.mxu0 0.0
    %3226 = vmatprep.subr.mxu0 0.0
    %3227 = vmatpush1.msra.mxu0 0.0
    %3228 = vmatprep.subr.mxu0 0.0
    %3229 = vmatpush1.msra.mxu0 0.0
    %3230 = vmatprep.subr.mxu0 0.0
    %3231 = vmatpush1.msra.mxu0 0.0
    %3232 = vmatprep.subr.mxu0 0.0
    %3233 = vmatpush1.msra.mxu0 0.0
    %3234 = vmatprep.subr.mxu0 0.0
    %3235 = vmatpush1.msra.mxu0 0.0
    %3236 = vmatprep.subr.mxu0 0.0
    %3237 = vmatpush1.msra.mxu0 0.0
    %3238 = vmatprep.subr.mxu0 0.0
    %3239 = vmatpush1.msra.mxu0 0.0
    %3240 = vmatprep.mubr.f32.mxu0 0.0
    %3241 = vmatmul.mubr.f32.gmra.mrb[0].mxu0 %v2318
    %v3242 = vpop.f32.mrb[0].mxu0
    %v3243 = vadd.f32 %v2963, %v3242
    %v3244 = vpop.f32.mrb[0].mxu0
    %3245 = vdwg.mxu0
    %v3246 = vcombine.low %v2682, %v2684
    %v3248 = vunpack.c.l.s4 1983009808
    %v3249 = vunpack.c.0.s8 %v3248
    %v3250 = vlaneseq
    %v3251 = vshrl.u32 %v3250, 7
    %v3252 = vsub.s32 %v3249, %v3251
    %v3253 = vrot.slane %v3246, %v3252
    %v3254 = vcombine.low %v2683, %v2685
    %v3256 = vunpack.c.l.s4 1983009808
    %v3257 = vunpack.c.0.s8 %v3256
    %v3258 = vlaneseq
    %v3259 = vshrl.u32 %v3258, 7
    %v3260 = vsub.s32 %v3257, %v3259
    %v3261 = vrot.slane %v3254, %v3260
    %v3262 = vcombine.low %v3033, %v3173
    %v3264 = vunpack.c.l.s4 1983009808
    %v3265 = vunpack.c.0.s8 %v3264
    %v3266 = vlaneseq
    %v3267 = vshrl.u32 %v3266, 7
    %v3268 = vsub.s32 %v3265, %v3267
    %v3269 = vrot.slane %v3262, %v3268
    %v3270 = vcombine.low %v3103, %v3243
    %v3272 = vunpack.c.l.s4 1983009808
    %v3273 = vunpack.c.0.s8 %v3272
    %v3274 = vlaneseq
    %v3275 = vshrl.u32 %v3274, 7
    %v3276 = vsub.s32 %v3273, %v3275
    %v3277 = vrot.slane %v3270, %v3276
    %v3278 = vcombine.low %v3253, %v3261
    %v3280 = vunpack.c.l.s4 1934713408
    %v3281 = vunpack.c.0.s8 %v3280
    %v3282 = vlaneseq
    %v3283 = vshrl.u32 %v3282, 7
    %v3284 = vsub.s32 %v3281, %v3283
    %v3285 = vrot.slane %v3278, %v3284
    %v3286 = vcombine.low %v3269, %v3277
    %v3288 = vunpack.c.l.s4 1934713408
    %v3289 = vunpack.c.0.s8 %v3288
    %v3290 = vlaneseq
    %v3291 = vshrl.u32 %v3290, 7
    %v3292 = vsub.s32 %v3289, %v3291
    %v3293 = vrot.slane %v3286, %v3292
    %v3294 = vcombine.low %v3285, %v3293
    %v3295 = vcombine.high %v3285, %v3293
    %s3296 = scalar_lea.vmem [#allocation8], 32
    %v3297 = vld [vmem:[%s3296] sm:$0xff]
    %v3298 = vld [vmem:[%s3296 + $0x8] sm:$0xff]
    %v3299 = vld [vmem:[%s3296 + $0x10] sm:$0xff]
    %v3300 = vld [vmem:[%s3296 + $0x18] sm:$0xff]
    %s3301 = scalar_lea.vmem %s6, 1
    %v3302 = vld [vmem:[%s3301] sm:$0x1]
    %v3304 = vlaneseq
    %v3305 = vshrl.u32 %v3304, 7
    %v3306 = vsub.s32 0, %v3305
    %v3307 = vrot.slane %v3302, %v3306
    %v3310 = vsel %vm374, %v1854, 0
    %v3313 = vsel %vm374, %v1855, 0
    %v3316 = vsel %vm374, %v1856, 0
    %v3319 = vsel %vm374, %v1857, 0
    %3321 = vmatprep.subr.mxu0 0.0
    %3322 = vmatpush1.msra.mxu0 %v3297
    %3323 = vmatprep.subr.mxu0 0.0
    %3324 = vmatpush1.msra.mxu0 %v3298
    %3325 = vmatprep.subr.mxu0 0.0
    %3326 = vmatpush1.msra.mxu0 %v3299
    %3327 = vmatprep.subr.mxu0 0.0
    %3328 = vmatpush1.msra.mxu0 %v3300
    %3329 = vmatprep.subr.mxu0 0.0
    %3330 = vmatpush1.msra.mxu0 0.0
    %3331 = vmatprep.subr.mxu0 0.0
    %3332 = vmatpush1.msra.mxu0 0.0
    %3333 = vmatprep.subr.mxu0 0.0
    %3334 = vmatpush1.msra.mxu0 0.0
    %3335 = vmatprep.subr.mxu0 0.0
    %3336 = vmatpush1.msra.mxu0 0.0
    %3337 = vmatprep.subr.mxu0 0.0
    %3338 = vmatpush1.msra.mxu0 0.0
    %3339 = vmatprep.subr.mxu0 0.0
    %3340 = vmatpush1.msra.mxu0 0.0
    %3341 = vmatprep.subr.mxu0 0.0
    %3342 = vmatpush1.msra.mxu0 0.0
    %3343 = vmatprep.subr.mxu0 0.0
    %3344 = vmatpush1.msra.mxu0 0.0
    %3345 = vmatprep.subr.mxu0 0.0
    %3346 = vmatpush1.msra.mxu0 0.0
    %3347 = vmatprep.subr.mxu0 0.0
    %3348 = vmatpush1.msra.mxu0 0.0
    %3349 = vmatprep.subr.mxu0 0.0
    %3350 = vmatpush1.msra.mxu0 0.0
    %3351 = vmatprep.subr.mxu0 0.0
    %3352 = vmatpush1.msra.mxu0 0.0
    %3353 = vmatprep.subr.mxu0 0.0
    %3354 = vmatpush1.msra.mxu0 0.0
    %3355 = vmatprep.subr.mxu0 0.0
    %3356 = vmatpush1.msra.mxu0 0.0
    %3357 = vmatprep.subr.mxu0 0.0
    %3358 = vmatpush1.msra.mxu0 0.0
    %3359 = vmatprep.subr.mxu0 0.0
    %3360 = vmatpush1.msra.mxu0 0.0
    %3361 = vmatprep.subr.mxu0 0.0
    %3362 = vmatpush1.msra.mxu0 0.0
    %3363 = vmatprep.subr.mxu0 0.0
    %3364 = vmatpush1.msra.mxu0 0.0
    %3365 = vmatprep.subr.mxu0 0.0
    %3366 = vmatpush1.msra.mxu0 0.0
    %3367 = vmatprep.subr.mxu0 0.0
    %3368 = vmatpush1.msra.mxu0 0.0
    %3369 = vmatprep.subr.mxu0 0.0
    %3370 = vmatpush1.msra.mxu0 0.0
    %3371 = vmatprep.subr.mxu0 0.0
    %3372 = vmatpush1.msra.mxu0 0.0
    %3373 = vmatprep.subr.mxu0 0.0
    %3374 = vmatpush1.msra.mxu0 0.0
    %3375 = vmatprep.subr.mxu0 0.0
    %3376 = vmatpush1.msra.mxu0 0.0
    %3377 = vmatprep.subr.mxu0 0.0
    %3378 = vmatpush1.msra.mxu0 0.0
    %3379 = vmatprep.subr.mxu0 0.0
    %3380 = vmatpush1.msra.mxu0 0.0
    %3381 = vmatprep.subr.mxu0 0.0
    %3382 = vmatpush1.msra.mxu0 0.0
    %3383 = vmatprep.subr.mxu0 0.0
    %3384 = vmatpush1.msra.mxu0 0.0
    %3385 = vmatprep.mubr.f32.mxu0 0.0
    %3386 = vmatmul.mubr.f32.gmra.mrb[0].mxu0 %v3310
    %v3387 = vpop.f32.mrb[0].mxu0
    %v3388 = vadd.f32 %v3307, %v3387
    %v3389 = vpop.f32.mrb[0].mxu0
    %3390 = vmatprep.mubr.f32.mxu0 0.0
    %3391 = vmatmul.mubr.f32.gmra.mrb[0].mxu0 %v3313
    %v3392 = vpop.f32.mrb[0].mxu0
    %v3393 = vadd.f32 %v3307, %v3392
    %v3394 = vpop.f32.mrb[0].mxu0
    %3395 = vmatprep.mubr.f32.mxu0 0.0
    %3396 = vmatmul.mubr.f32.gmra.mrb[0].mxu0 %v3316
    %v3397 = vpop.f32.mrb[0].mxu0
    %v3398 = vadd.f32 %v3307, %v3397
    %v3399 = vpop.f32.mrb[0].mxu0
    %3400 = vmatprep.mubr.f32.mxu0 0.0
    %3401 = vmatmul.mubr.f32.gmra.mrb[0].mxu0 %v3319
    %v3402 = vpop.f32.mrb[0].mxu0
    %v3403 = vadd.f32 %v3307, %v3402
    %v3404 = vpop.f32.mrb[0].mxu0
    %3405 = vdwg.mxu0
    %3406 = vmatprep.subr.mxu0 0.0
    %3407 = vmatpush1.msra.mxu0 %v3294
    %3408 = vmatprep.subr.mxu0 0.0
    %3409 = vmatpush1.msra.mxu0 0.0
    %3410 = vmatprep.subr.mxu0 0.0
    %3411 = vmatpush1.msra.mxu0 0.0
    %3412 = vmatprep.subr.mxu0 0.0
    %3413 = vmatpush1.msra.mxu0 0.0
    %3414 = vmatprep.subr.mxu0 0.0
    %3415 = vmatpush1.msra.mxu0 0.0
    %3416 = vmatprep.subr.mxu0 0.0
    %3417 = vmatpush1.msra.mxu0 0.0
    %3418 = vmatprep.subr.mxu0 0.0
    %3419 = vmatpush1.msra.mxu0 0.0
    %3420 = vmatprep.subr.mxu0 0.0
    %3421 = vmatpush1.msra.mxu0 0.0
    %3422 = vmatprep.subr.mxu0 0.0
    %3423 = vmatpush1.msra.mxu0 0.0
    %3424 = vmatprep.subr.mxu0 0.0
    %3425 = vmatpush1.msra.mxu0 0.0
    %3426 = vmatprep.subr.mxu0 0.0
    %3427 = vmatpush1.msra.mxu0 0.0
    %3428 = vmatprep.subr.mxu0 0.0
    %3429 = vmatpush1.msra.mxu0 0.0
    %3430 = vmatprep.subr.mxu0 0.0
    %3431 = vmatpush1.msra.mxu0 0.0
    %3432 = vmatprep.subr.mxu0 0.0
    %3433 = vmatpush1.msra.mxu0 0.0
    %3434 = vmatprep.subr.mxu0 0.0
    %3435 = vmatpush1.msra.mxu0 0.0
    %3436 = vmatprep.subr.mxu0 0.0
    %3437 = vmatpush1.msra.mxu0 0.0
    %3438 = vmatprep.subr.mxu0 0.0
    %3439 = vmatpush1.msra.mxu0 0.0
    %3440 = vmatprep.subr.mxu0 0.0
    %3441 = vmatpush1.msra.mxu0 0.0
    %3442 = vmatprep.subr.mxu0 0.0
    %3443 = vmatpush1.msra.mxu0 0.0
    %3444 = vmatprep.subr.mxu0 0.0
    %3445 = vmatpush1.msra.mxu0 0.0
    %3446 = vmatprep.subr.mxu0 0.0
    %3447 = vmatpush1.msra.mxu0 0.0
    %3448 = vmatprep.subr.mxu0 0.0
    %3449 = vmatpush1.msra.mxu0 0.0
    %3450 = vmatprep.subr.mxu0 0.0
    %3451 = vmatpush1.msra.mxu0 0.0
    %3452 = vmatprep.subr.mxu0 0.0
    %3453 = vmatpush1.msra.mxu0 0.0
    %3454 = vmatprep.subr.mxu0 0.0
    %3455 = vmatpush1.msra.mxu0 0.0
    %3456 = vmatprep.subr.mxu0 0.0
    %3457 = vmatpush1.msra.mxu0 0.0
    %3458 = vmatprep.subr.mxu0 0.0
    %3459 = vmatpush1.msra.mxu0 0.0
    %3460 = vmatprep.subr.mxu0 0.0
    %3461 = vmatpush1.msra.mxu0 0.0
    %3462 = vmatprep.subr.mxu0 0.0
    %3463 = vmatpush1.msra.mxu0 0.0
    %3464 = vmatprep.subr.mxu0 0.0
    %3465 = vmatpush1.msra.mxu0 0.0
    %3466 = vmatprep.subr.mxu0 0.0
    %3467 = vmatpush1.msra.mxu0 0.0
    %3468 = vmatprep.subr.mxu0 0.0
    %3469 = vmatpush1.msra.mxu0 0.0
    %3470 = vmatprep.mubr.f32.mxu0 0.0
    %3471 = vmatmul.mubr.f32.gmra.mrb[0].mxu0 %v1683
    %v3472 = vpop.f32.mrb[0].mxu0
    %v3473 = vadd.f32 %v3388, %v3472
    %v3474 = vpop.f32.mrb[0].mxu0
    %3475 = vmatprep.mubr.f32.mxu0 0.0
    %3476 = vmatmul.mubr.f32.gmra.mrb[0].mxu0 %v1686
    %v3477 = vpop.f32.mrb[0].mxu0
    %v3478 = vadd.f32 %v3393, %v3477
    %v3479 = vpop.f32.mrb[0].mxu0
    %3480 = vdwg.mxu0
    %3481 = vmatprep.subr.mxu0 0.0
    %3482 = vmatpush1.msra.mxu0 %v3295
    %3483 = vmatprep.subr.mxu0 0.0
    %3484 = vmatpush1.msra.mxu0 0.0
    %3485 = vmatprep.subr.mxu0 0.0
    %3486 = vmatpush1.msra.mxu0 0.0
    %3487 = vmatprep.subr.mxu0 0.0
    %3488 = vmatpush1.msra.mxu0 0.0
    %3489 = vmatprep.subr.mxu0 0.0
    %3490 = vmatpush1.msra.mxu0 0.0
    %3491 = vmatprep.subr.mxu0 0.0
    %3492 = vmatpush1.msra.mxu0 0.0
    %3493 = vmatprep.subr.mxu0 0.0
    %3494 = vmatpush1.msra.mxu0 0.0
    %3495 = vmatprep.subr.mxu0 0.0
    %3496 = vmatpush1.msra.mxu0 0.0
    %3497 = vmatprep.subr.mxu0 0.0
    %3498 = vmatpush1.msra.mxu0 0.0
    %3499 = vmatprep.subr.mxu0 0.0
    %3500 = vmatpush1.msra.mxu0 0.0
    %3501 = vmatprep.subr.mxu0 0.0
    %3502 = vmatpush1.msra.mxu0 0.0
    %3503 = vmatprep.subr.mxu0 0.0
    %3504 = vmatpush1.msra.mxu0 0.0
    %3505 = vmatprep.subr.mxu0 0.0
    %3506 = vmatpush1.msra.mxu0 0.0
    %3507 = vmatprep.subr.mxu0 0.0
    %3508 = vmatpush1.msra.mxu0 0.0
    %3509 = vmatprep.subr.mxu0 0.0
    %3510 = vmatpush1.msra.mxu0 0.0
    %3511 = vmatprep.subr.mxu0 0.0
    %3512 = vmatpush1.msra.mxu0 0.0
    %3513 = vmatprep.subr.mxu0 0.0
    %3514 = vmatpush1.msra.mxu0 0.0
    %3515 = vmatprep.subr.mxu0 0.0
    %3516 = vmatpush1.msra.mxu0 0.0
    %3517 = vmatprep.subr.mxu0 0.0
    %3518 = vmatpush1.msra.mxu0 0.0
    %3519 = vmatprep.subr.mxu0 0.0
    %3520 = vmatpush1.msra.mxu0 0.0
    %3521 = vmatprep.subr.mxu0 0.0
    %3522 = vmatpush1.msra.mxu0 0.0
    %3523 = vmatprep.subr.mxu0 0.0
    %3524 = vmatpush1.msra.mxu0 0.0
    %3525 = vmatprep.subr.mxu0 0.0
    %3526 = vmatpush1.msra.mxu0 0.0
    %3527 = vmatprep.subr.mxu0 0.0
    %3528 = vmatpush1.msra.mxu0 0.0
    %3529 = vmatprep.subr.mxu0 0.0
    %3530 = vmatpush1.msra.mxu0 0.0
    %3531 = vmatprep.subr.mxu0 0.0
    %3532 = vmatpush1.msra.mxu0 0.0
    %3533 = vmatprep.subr.mxu0 0.0
    %3534 = vmatpush1.msra.mxu0 0.0
    %3535 = vmatprep.subr.mxu0 0.0
    %3536 = vmatpush1.msra.mxu0 0.0
    %3537 = vmatprep.subr.mxu0 0.0
    %3538 = vmatpush1.msra.mxu0 0.0
    %3539 = vmatprep.subr.mxu0 0.0
    %3540 = vmatpush1.msra.mxu0 0.0
    %3541 = vmatprep.subr.mxu0 0.0
    %3542 = vmatpush1.msra.mxu0 0.0
    %3543 = vmatprep.subr.mxu0 0.0
    %3544 = vmatpush1.msra.mxu0 0.0
    %3545 = vmatprep.mubr.f32.mxu0 0.0
    %3546 = vmatmul.mubr.f32.gmra.mrb[0].mxu0 %v1683
    %v3547 = vpop.f32.mrb[0].mxu0
    %v3548 = vadd.f32 %v3398, %v3547
    %v3549 = vpop.f32.mrb[0].mxu0
    %3550 = vmatprep.mubr.f32.mxu0 0.0
    %3551 = vmatmul.mubr.f32.gmra.mrb[0].mxu0 %v1686
    %v3552 = vpop.f32.mrb[0].mxu0
    %v3553 = vadd.f32 %v3403, %v3552
    %v3554 = vpop.f32.mrb[0].mxu0
    %3555 = vdwg.mxu0
    %v3556 = vmul.f32 %v3473, 0.5
    %v3557 = vmul.f32 %v3478, 0.5
    %v3558 = vmul.f32 %v3548, 0.5
    %v3559 = vmul.f32 %v3553, 0.5
    %v3560 = vmul.f32 %v3473, 0.70710677
    %v3561 = vmul.f32 %v3478, 0.70710677
    %v3562 = vmul.f32 %v3548, 0.70710677
    %v3563 = vmul.f32 %v3553, 0.70710677
    %v3564 = verf.f32.pop %v3560
    %v3565 = verf.f32.pop %v3561
    %v3566 = verf.f32.pop %v3562
    %v3567 = verf.f32.pop %v3563
    %v3568 = vadd.f32 %v3564, 1.0
    %v3569 = vadd.f32 %v3565, 1.0
    %v3570 = vadd.f32 %v3566, 1.0
    %v3571 = vadd.f32 %v3567, 1.0
    %v3572 = vmul.f32 %v3556, %v3568
    %v3573 = vmul.f32 %v3557, %v3569
    %v3574 = vmul.f32 %v3558, %v3570
    %v3575 = vmul.f32 %v3559, %v3571
    %3576 = vmatprep.subr.mxu0 0.0
    %3577 = vmatpush1.msra.mxu0 %v3572
    %3578 = vmatprep.subr.mxu0 0.0
    %3579 = vmatpush1.msra.mxu0 %v3573
    %3580 = vmatprep.subr.mxu0 0.0
    %3581 = vmatpush1.msra.mxu0 0.0
    %3582 = vmatprep.subr.mxu0 0.0
    %3583 = vmatpush1.msra.mxu0 0.0
    %3584 = vmatprep.subr.mxu0 0.0
    %3585 = vmatpush1.msra.mxu0 0.0
    %3586 = vmatprep.subr.mxu0 0.0
    %3587 = vmatpush1.msra.mxu0 0.0
    %3588 = vmatprep.subr.mxu0 0.0
    %3589 = vmatpush1.msra.mxu0 0.0
    %3590 = vmatprep.subr.mxu0 0.0
    %3591 = vmatpush1.msra.mxu0 0.0
    %3592 = vmatprep.subr.mxu0 0.0
    %3593 = vmatpush1.msra.mxu0 0.0
    %3594 = vmatprep.subr.mxu0 0.0
    %3595 = vmatpush1.msra.mxu0 0.0
    %3596 = vmatprep.subr.mxu0 0.0
    %3597 = vmatpush1.msra.mxu0 0.0
    %3598 = vmatprep.subr.mxu0 0.0
    %3599 = vmatpush1.msra.mxu0 0.0
    %3600 = vmatprep.subr.mxu0 0.0
    %3601 = vmatpush1.msra.mxu0 0.0
    %3602 = vmatprep.subr.mxu0 0.0
    %3603 = vmatpush1.msra.mxu0 0.0
    %3604 = vmatprep.subr.mxu0 0.0
    %3605 = vmatpush1.msra.mxu0 0.0
    %3606 = vmatprep.subr.mxu0 0.0
    %3607 = vmatpush1.msra.mxu0 0.0
    %3608 = vmatprep.subr.mxu0 0.0
    %3609 = vmatpush1.msra.mxu0 0.0
    %3610 = vmatprep.subr.mxu0 0.0
    %3611 = vmatpush1.msra.mxu0 0.0
    %3612 = vmatprep.subr.mxu0 0.0
    %3613 = vmatpush1.msra.mxu0 0.0
    %3614 = vmatprep.subr.mxu0 0.0
    %3615 = vmatpush1.msra.mxu0 0.0
    %3616 = vmatprep.subr.mxu0 0.0
    %3617 = vmatpush1.msra.mxu0 0.0
    %3618 = vmatprep.subr.mxu0 0.0
    %3619 = vmatpush1.msra.mxu0 0.0
    %3620 = vmatprep.subr.mxu0 0.0
    %3621 = vmatpush1.msra.mxu0 0.0
    %3622 = vmatprep.subr.mxu0 0.0
    %3623 = vmatpush1.msra.mxu0 0.0
    %3624 = vmatprep.subr.mxu0 0.0
    %3625 = vmatpush1.msra.mxu0 0.0
    %3626 = vmatprep.subr.mxu0 0.0
    %3627 = vmatpush1.msra.mxu0 0.0
    %3628 = vmatprep.subr.mxu0 0.0
    %3629 = vmatpush1.msra.mxu0 0.0
    %3630 = vmatprep.subr.mxu0 0.0
    %3631 = vmatpush1.msra.mxu0 0.0
    %3632 = vmatprep.subr.mxu0 0.0
    %3633 = vmatpush1.msra.mxu0 0.0
    %3634 = vmatprep.subr.mxu0 0.0
    %3635 = vmatpush1.msra.mxu0 0.0
    %3636 = vmatprep.subr.mxu0 0.0
    %3637 = vmatpush1.msra.mxu0 0.0
    %3638 = vmatprep.subr.mxu0 0.0
    %3639 = vmatpush1.msra.mxu0 0.0
    %3640 = vmatprep.mubr.f32.mxu0 0.0
    %3641 = vmatmul.mubr.f32.gmra.mrb[0].mxu0 %v134
    %v3642 = vpop.f32.mrb[0].mxu0
    %v3643 = vadd.f32 0.0, %v3642
    %v3644 = vpop.f32.mrb[0].mxu0
    %3645 = vdwg.mxu0
    %3646 = vmatprep.subr.mxu0 0.0
    %3647 = vmatpush1.msra.mxu0 %v3574
    %3648 = vmatprep.subr.mxu0 0.0
    %3649 = vmatpush1.msra.mxu0 %v3575
    %3650 = vmatprep.subr.mxu0 0.0
    %3651 = vmatpush1.msra.mxu0 0.0
    %3652 = vmatprep.subr.mxu0 0.0
    %3653 = vmatpush1.msra.mxu0 0.0
    %3654 = vmatprep.subr.mxu0 0.0
    %3655 = vmatpush1.msra.mxu0 0.0
    %3656 = vmatprep.subr.mxu0 0.0
    %3657 = vmatpush1.msra.mxu0 0.0
    %3658 = vmatprep.subr.mxu0 0.0
    %3659 = vmatpush1.msra.mxu0 0.0
    %3660 = vmatprep.subr.mxu0 0.0
    %3661 = vmatpush1.msra.mxu0 0.0
    %3662 = vmatprep.subr.mxu0 0.0
    %3663 = vmatpush1.msra.mxu0 0.0
    %3664 = vmatprep.subr.mxu0 0.0
    %3665 = vmatpush1.msra.mxu0 0.0
    %3666 = vmatprep.subr.mxu0 0.0
    %3667 = vmatpush1.msra.mxu0 0.0
    %3668 = vmatprep.subr.mxu0 0.0
    %3669 = vmatpush1.msra.mxu0 0.0
    %3670 = vmatprep.subr.mxu0 0.0
    %3671 = vmatpush1.msra.mxu0 0.0
    %3672 = vmatprep.subr.mxu0 0.0
    %3673 = vmatpush1.msra.mxu0 0.0
    %3674 = vmatprep.subr.mxu0 0.0
    %3675 = vmatpush1.msra.mxu0 0.0
    %3676 = vmatprep.subr.mxu0 0.0
    %3677 = vmatpush1.msra.mxu0 0.0
    %3678 = vmatprep.subr.mxu0 0.0
    %3679 = vmatpush1.msra.mxu0 0.0
    %3680 = vmatprep.subr.mxu0 0.0
    %3681 = vmatpush1.msra.mxu0 0.0
    %3682 = vmatprep.subr.mxu0 0.0
    %3683 = vmatpush1.msra.mxu0 0.0
    %3684 = vmatprep.subr.mxu0 0.0
    %3685 = vmatpush1.msra.mxu0 0.0
    %3686 = vmatprep.subr.mxu0 0.0
    %3687 = vmatpush1.msra.mxu0 0.0
    %3688 = vmatprep.subr.mxu0 0.0
    %3689 = vmatpush1.msra.mxu0 0.0
    %3690 = vmatprep.subr.mxu0 0.0
    %3691 = vmatpush1.msra.mxu0 0.0
    %3692 = vmatprep.subr.mxu0 0.0
    %3693 = vmatpush1.msra.mxu0 0.0
    %3694 = vmatprep.subr.mxu0 0.0
    %3695 = vmatpush1.msra.mxu0 0.0
    %3696 = vmatprep.subr.mxu0 0.0
    %3697 = vmatpush1.msra.mxu0 0.0
    %3698 = vmatprep.subr.mxu0 0.0
    %3699 = vmatpush1.msra.mxu0 0.0
    %3700 = vmatprep.subr.mxu0 0.0
    %3701 = vmatpush1.msra.mxu0 0.0
    %3702 = vmatprep.subr.mxu0 0.0
    %3703 = vmatpush1.msra.mxu0 0.0
    %3704 = vmatprep.subr.mxu0 0.0
    %3705 = vmatpush1.msra.mxu0 0.0
    %3706 = vmatprep.subr.mxu0 0.0
    %3707 = vmatpush1.msra.mxu0 0.0
    %3708 = vmatprep.subr.mxu0 0.0
    %3709 = vmatpush1.msra.mxu0 0.0
    %3710 = vmatprep.mubr.f32.mxu0 0.0
    %3711 = vmatmul.mubr.f32.gmra.mrb[0].mxu0 %v134
    %v3712 = vpop.f32.mrb[0].mxu0
    %v3713 = vadd.f32 0.0, %v3712
    %v3714 = vpop.f32.mrb[0].mxu0
    %3715 = vdwg.mxu0
    %v3716 = vcombine.high %v3643, 0.0
    %v3718 = vunpack.c.l.s4 1983009808
    %v3719 = vunpack.c.0.s8 %v3718
    %v3720 = vlaneseq
    %v3721 = vshrl.u32 %v3720, 7
    %v3722 = vsub.s32 %v3719, %v3721
    %v3723 = vrot.slane %v3643, %v3722
    %v3725 = vunpack.c.l.s4 1983009808
    %v3726 = vunpack.c.0.s8 %v3725
    %v3727 = vlaneseq
    %v3728 = vshrl.u32 %v3727, 7
    %v3729 = vsub.s32 %v3726, %v3728
    %v3730 = vrot.slane %v3716, %v3729
    %v3731 = vcombine.high %v3713, 0.0
    %v3733 = vunpack.c.l.s4 1983009808
    %v3734 = vunpack.c.0.s8 %v3733
    %v3735 = vlaneseq
    %v3736 = vshrl.u32 %v3735, 7
    %v3737 = vsub.s32 %v3734, %v3736
    %v3738 = vrot.slane %v3713, %v3737
    %v3740 = vunpack.c.l.s4 1983009808
    %v3741 = vunpack.c.0.s8 %v3740
    %v3742 = vlaneseq
    %v3743 = vshrl.u32 %v3742, 7
    %v3744 = vsub.s32 %v3741, %v3743
    %v3745 = vrot.slane %v3731, %v3744
    %v3746 = vcombine.low %v3723, %v3738
    %v3747 = vcombine.high %v3723, %v3738
    %v3749 = vunpack.c.l.s4 1934713408
    %v3750 = vunpack.c.0.s8 %v3749
    %v3751 = vlaneseq
    %v3752 = vshrl.u32 %v3751, 7
    %v3753 = vsub.s32 %v3750, %v3752
    %v3754 = vrot.slane %v3746, %v3753
    %v3756 = vunpack.c.l.s4 1934713408
    %v3757 = vunpack.c.0.s8 %v3756
    %v3758 = vlaneseq
    %v3759 = vshrl.u32 %v3758, 7
    %v3760 = vsub.s32 %v3757, %v3759
    %v3761 = vrot.slane %v3747, %v3760
    %v3762 = vcombine.low %v3730, %v3745
    %v3763 = vcombine.high %v3730, %v3745
    %v3765 = vunpack.c.l.s4 1934713408
    %v3766 = vunpack.c.0.s8 %v3765
    %v3767 = vlaneseq
    %v3768 = vshrl.u32 %v3767, 7
    %v3769 = vsub.s32 %v3766, %v3768
    %v3770 = vrot.slane %v3762, %v3769
    %v3772 = vunpack.c.l.s4 1934713408
    %v3773 = vunpack.c.0.s8 %v3772
    %v3774 = vlaneseq
    %v3775 = vshrl.u32 %v3774, 7
    %v3776 = vsub.s32 %v3773, %v3775
    %v3777 = vrot.slane %v3763, %v3776
    %v3778 = vcombine.high %v3754, 0.0
    %v3779 = vcombine.high %v3761, 0.0
    %v3780 = vcombine.high %v3770, 0.0
    %v3781 = vcombine.high %v3777, 0.0
    %s3782 = scalar_lea.vmem [#allocation3], 256
    %v3783 = vld [vmem:[%s3782] sm:$0xff]
    %v3784 = vld [vmem:[%s3782 + $0x8] sm:$0xff]
    %v3785 = vld [vmem:[%s3782 + $0x10] sm:$0xff]
    %v3786 = vld [vmem:[%s3782 + $0x18] sm:$0xff]
    %v3787 = vld [vmem:[%s3782 + $0x20] sm:$0xff]
    %v3788 = vld [vmem:[%s3782 + $0x28] sm:$0xff]
    %v3789 = vld [vmem:[%s3782 + $0x30] sm:$0xff]
    %v3790 = vld [vmem:[%s3782 + $0x38] sm:$0xff]
    %v3791 = vld [vmem:[%s3782 + $0x40] sm:$0xff]
    %v3792 = vld [vmem:[%s3782 + $0x48] sm:$0xff]
    %v3793 = vld [vmem:[%s3782 + $0x50] sm:$0xff]
    %v3794 = vld [vmem:[%s3782 + $0x58] sm:$0xff]
    %v3795 = vld [vmem:[%s3782 + $0x60] sm:$0xff]
    %v3796 = vld [vmem:[%s3782 + $0x68] sm:$0xff]
    %v3797 = vld [vmem:[%s3782 + $0x70] sm:$0xff]
    %v3798 = vld [vmem:[%s3782 + $0x78] sm:$0xff]
    %s3799 = scalar_lea.vmem [#allocation6], 256
    %v3800 = vld [vmem:[%s3799] sm:$0xff]
    %v3801 = vld [vmem:[%s3799 + $0x8] sm:$0xff]
    %v3802 = vld [vmem:[%s3799 + $0x10] sm:$0xff]
    %v3803 = vld [vmem:[%s3799 + $0x18] sm:$0xff]
    %v3804 = vld [vmem:[%s3799 + $0x20] sm:$0xff]
    %v3805 = vld [vmem:[%s3799 + $0x28] sm:$0xff]
    %v3806 = vld [vmem:[%s3799 + $0x30] sm:$0xff]
    %v3807 = vld [vmem:[%s3799 + $0x38] sm:$0xff]
    %v3808 = vld [vmem:[%s3799 + $0x40] sm:$0xff]
    %v3809 = vld [vmem:[%s3799 + $0x48] sm:$0xff]
    %v3810 = vld [vmem:[%s3799 + $0x50] sm:$0xff]
    %v3811 = vld [vmem:[%s3799 + $0x58] sm:$0xff]
    %v3812 = vld [vmem:[%s3799 + $0x60] sm:$0xff]
    %v3813 = vld [vmem:[%s3799 + $0x68] sm:$0xff]
    %v3814 = vld [vmem:[%s3799 + $0x70] sm:$0xff]
    %v3815 = vld [vmem:[%s3799 + $0x78] sm:$0xff]
    %v3817 = vsel %vm374, %v3754, 0
    %3819 = vmatprep.subr.mxu0 0.0
    %3820 = vmatpush1.msra.mxu0 %v3783
    %3821 = vmatprep.subr.mxu0 0.0
    %3822 = vmatpush1.msra.mxu0 %v3784
    %3823 = vmatprep.subr.mxu0 0.0
    %3824 = vmatpush1.msra.mxu0 %v3785
    %3825 = vmatprep.subr.mxu0 0.0
    %3826 = vmatpush1.msra.mxu0 %v3786
    %3827 = vmatprep.subr.mxu0 0.0
    %3828 = vmatpush1.msra.mxu0 0.0
    %3829 = vmatprep.subr.mxu0 0.0
    %3830 = vmatpush1.msra.mxu0 0.0
    %3831 = vmatprep.subr.mxu0 0.0
    %3832 = vmatpush1.msra.mxu0 0.0
    %3833 = vmatprep.subr.mxu0 0.0
    %3834 = vmatpush1.msra.mxu0 0.0
    %3835 = vmatprep.subr.mxu0 0.0
    %3836 = vmatpush1.msra.mxu0 0.0
    %3837 = vmatprep.subr.mxu0 0.0
    %3838 = vmatpush1.msra.mxu0 0.0
    %3839 = vmatprep.subr.mxu0 0.0
    %3840 = vmatpush1.msra.mxu0 0.0
    %3841 = vmatprep.subr.mxu0 0.0
    %3842 = vmatpush1.msra.mxu0 0.0
    %3843 = vmatprep.subr.mxu0 0.0
    %3844 = vmatpush1.msra.mxu0 0.0
    %3845 = vmatprep.subr.mxu0 0.0
    %3846 = vmatpush1.msra.mxu0 0.0
    %3847 = vmatprep.subr.mxu0 0.0
    %3848 = vmatpush1.msra.mxu0 0.0
    %3849 = vmatprep.subr.mxu0 0.0
    %3850 = vmatpush1.msra.mxu0 0.0
    %3851 = vmatprep.subr.mxu0 0.0
    %3852 = vmatpush1.msra.mxu0 0.0
    %3853 = vmatprep.subr.mxu0 0.0
    %3854 = vmatpush1.msra.mxu0 0.0
    %3855 = vmatprep.subr.mxu0 0.0
    %3856 = vmatpush1.msra.mxu0 0.0
    %3857 = vmatprep.subr.mxu0 0.0
    %3858 = vmatpush1.msra.mxu0 0.0
    %3859 = vmatprep.subr.mxu0 0.0
    %3860 = vmatpush1.msra.mxu0 0.0
    %3861 = vmatprep.subr.mxu0 0.0
    %3862 = vmatpush1.msra.mxu0 0.0
    %3863 = vmatprep.subr.mxu0 0.0
    %3864 = vmatpush1.msra.mxu0 0.0
    %3865 = vmatprep.subr.mxu0 0.0
    %3866 = vmatpush1.msra.mxu0 0.0
    %3867 = vmatprep.subr.mxu0 0.0
    %3868 = vmatpush1.msra.mxu0 0.0
    %3869 = vmatprep.subr.mxu0 0.0
    %3870 = vmatpush1.msra.mxu0 0.0
    %3871 = vmatprep.subr.mxu0 0.0
    %3872 = vmatpush1.msra.mxu0 0.0
    %3873 = vmatprep.subr.mxu0 0.0
    %3874 = vmatpush1.msra.mxu0 0.0
    %3875 = vmatprep.subr.mxu0 0.0
    %3876 = vmatpush1.msra.mxu0 0.0
    %3877 = vmatprep.subr.mxu0 0.0
    %3878 = vmatpush1.msra.mxu0 0.0
    %3879 = vmatprep.subr.mxu0 0.0
    %3880 = vmatpush1.msra.mxu0 0.0
    %3881 = vmatprep.subr.mxu0 0.0
    %3882 = vmatpush1.msra.mxu0 0.0
    %3883 = vmatprep.mubr.f32.mxu0 0.0
    %3884 = vmatmul.mubr.f32.gmra.mrb[0].mxu0 %v3817
    %v3885 = vpop.f32.mrb[0].mxu0
    %v3886 = vadd.f32 0.0, %v3885
    %v3887 = vpop.f32.mrb[0].mxu0
    %3888 = vdwg.mxu0
    %v3890 = vsel %vm374, %v3778, 0
    %3892 = vmatprep.subr.mxu0 0.0
    %3893 = vmatpush1.msra.mxu0 %v3787
    %3894 = vmatprep.subr.mxu0 0.0
    %3895 = vmatpush1.msra.mxu0 %v3788
    %3896 = vmatprep.subr.mxu0 0.0
    %3897 = vmatpush1.msra.mxu0 %v3789
    %3898 = vmatprep.subr.mxu0 0.0
    %3899 = vmatpush1.msra.mxu0 %v3790
    %3900 = vmatprep.subr.mxu0 0.0
    %3901 = vmatpush1.msra.mxu0 0.0
    %3902 = vmatprep.subr.mxu0 0.0
    %3903 = vmatpush1.msra.mxu0 0.0
    %3904 = vmatprep.subr.mxu0 0.0
    %3905 = vmatpush1.msra.mxu0 0.0
    %3906 = vmatprep.subr.mxu0 0.0
    %3907 = vmatpush1.msra.mxu0 0.0
    %3908 = vmatprep.subr.mxu0 0.0
    %3909 = vmatpush1.msra.mxu0 0.0
    %3910 = vmatprep.subr.mxu0 0.0
    %3911 = vmatpush1.msra.mxu0 0.0
    %3912 = vmatprep.subr.mxu0 0.0
    %3913 = vmatpush1.msra.mxu0 0.0
    %3914 = vmatprep.subr.mxu0 0.0
    %3915 = vmatpush1.msra.mxu0 0.0
    %3916 = vmatprep.subr.mxu0 0.0
    %3917 = vmatpush1.msra.mxu0 0.0
    %3918 = vmatprep.subr.mxu0 0.0
    %3919 = vmatpush1.msra.mxu0 0.0
    %3920 = vmatprep.subr.mxu0 0.0
    %3921 = vmatpush1.msra.mxu0 0.0
    %3922 = vmatprep.subr.mxu0 0.0
    %3923 = vmatpush1.msra.mxu0 0.0
    %3924 = vmatprep.subr.mxu0 0.0
    %3925 = vmatpush1.msra.mxu0 0.0
    %3926 = vmatprep.subr.mxu0 0.0
    %3927 = vmatpush1.msra.mxu0 0.0
    %3928 = vmatprep.subr.mxu0 0.0
    %3929 = vmatpush1.msra.mxu0 0.0
    %3930 = vmatprep.subr.mxu0 0.0
    %3931 = vmatpush1.msra.mxu0 0.0
    %3932 = vmatprep.subr.mxu0 0.0
    %3933 = vmatpush1.msra.mxu0 0.0
    %3934 = vmatprep.subr.mxu0 0.0
    %3935 = vmatpush1.msra.mxu0 0.0
    %3936 = vmatprep.subr.mxu0 0.0
    %3937 = vmatpush1.msra.mxu0 0.0
    %3938 = vmatprep.subr.mxu0 0.0
    %3939 = vmatpush1.msra.mxu0 0.0
    %3940 = vmatprep.subr.mxu0 0.0
    %3941 = vmatpush1.msra.mxu0 0.0
    %3942 = vmatprep.subr.mxu0 0.0
    %3943 = vmatpush1.msra.mxu0 0.0
    %3944 = vmatprep.subr.mxu0 0.0
    %3945 = vmatpush1.msra.mxu0 0.0
    %3946 = vmatprep.subr.mxu0 0.0
    %3947 = vmatpush1.msra.mxu0 0.0
    %3948 = vmatprep.subr.mxu0 0.0
    %3949 = vmatpush1.msra.mxu0 0.0
    %3950 = vmatprep.subr.mxu0 0.0
    %3951 = vmatpush1.msra.mxu0 0.0
    %3952 = vmatprep.subr.mxu0 0.0
    %3953 = vmatpush1.msra.mxu0 0.0
    %3954 = vmatprep.subr.mxu0 0.0
    %3955 = vmatpush1.msra.mxu0 0.0
    %3956 = vmatprep.mubr.f32.mxu0 0.0
    %3957 = vmatmul.mubr.f32.gmra.mrb[0].mxu0 %v3890
    %v3958 = vpop.f32.mrb[0].mxu0
    %v3959 = vadd.f32 0.0, %v3958
    %v3960 = vpop.f32.mrb[0].mxu0
    %3961 = vdwg.mxu0
    %v3963 = vsel %vm374, %v3761, 0
    %3965 = vmatprep.subr.mxu0 0.0
    %3966 = vmatpush1.msra.mxu0 %v3791
    %3967 = vmatprep.subr.mxu0 0.0
    %3968 = vmatpush1.msra.mxu0 %v3792
    %3969 = vmatprep.subr.mxu0 0.0
    %3970 = vmatpush1.msra.mxu0 %v3793
    %3971 = vmatprep.subr.mxu0 0.0
    %3972 = vmatpush1.msra.mxu0 %v3794
    %3973 = vmatprep.subr.mxu0 0.0
    %3974 = vmatpush1.msra.mxu0 0.0
    %3975 = vmatprep.subr.mxu0 0.0
    %3976 = vmatpush1.msra.mxu0 0.0
    %3977 = vmatprep.subr.mxu0 0.0
    %3978 = vmatpush1.msra.mxu0 0.0
    %3979 = vmatprep.subr.mxu0 0.0
    %3980 = vmatpush1.msra.mxu0 0.0
    %3981 = vmatprep.subr.mxu0 0.0
    %3982 = vmatpush1.msra.mxu0 0.0
    %3983 = vmatprep.subr.mxu0 0.0
    %3984 = vmatpush1.msra.mxu0 0.0
    %3985 = vmatprep.subr.mxu0 0.0
    %3986 = vmatpush1.msra.mxu0 0.0
    %3987 = vmatprep.subr.mxu0 0.0
    %3988 = vmatpush1.msra.mxu0 0.0
    %3989 = vmatprep.subr.mxu0 0.0
    %3990 = vmatpush1.msra.mxu0 0.0
    %3991 = vmatprep.subr.mxu0 0.0
    %3992 = vmatpush1.msra.mxu0 0.0
    %3993 = vmatprep.subr.mxu0 0.0
    %3994 = vmatpush1.msra.mxu0 0.0
    %3995 = vmatprep.subr.mxu0 0.0
    %3996 = vmatpush1.msra.mxu0 0.0
    %3997 = vmatprep.subr.mxu0 0.0
    %3998 = vmatpush1.msra.mxu0 0.0
    %3999 = vmatprep.subr.mxu0 0.0
    %4000 = vmatpush1.msra.mxu0 0.0
    %4001 = vmatprep.subr.mxu0 0.0
    %4002 = vmatpush1.msra.mxu0 0.0
    %4003 = vmatprep.subr.mxu0 0.0
    %4004 = vmatpush1.msra.mxu0 0.0
    %4005 = vmatprep.subr.mxu0 0.0
    %4006 = vmatpush1.msra.mxu0 0.0
    %4007 = vmatprep.subr.mxu0 0.0
    %4008 = vmatpush1.msra.mxu0 0.0
    %4009 = vmatprep.subr.mxu0 0.0
    %4010 = vmatpush1.msra.mxu0 0.0
    %4011 = vmatprep.subr.mxu0 0.0
    %4012 = vmatpush1.msra.mxu0 0.0
    %4013 = vmatprep.subr.mxu0 0.0
    %4014 = vmatpush1.msra.mxu0 0.0
    %4015 = vmatprep.subr.mxu0 0.0
    %4016 = vmatpush1.msra.mxu0 0.0
    %4017 = vmatprep.subr.mxu0 0.0
    %4018 = vmatpush1.msra.mxu0 0.0
    %4019 = vmatprep.subr.mxu0 0.0
    %4020 = vmatpush1.msra.mxu0 0.0
    %4021 = vmatprep.subr.mxu0 0.0
    %4022 = vmatpush1.msra.mxu0 0.0
    %4023 = vmatprep.subr.mxu0 0.0
    %4024 = vmatpush1.msra.mxu0 0.0
    %4025 = vmatprep.subr.mxu0 0.0
    %4026 = vmatpush1.msra.mxu0 0.0
    %4027 = vmatprep.subr.mxu0 0.0
    %4028 = vmatpush1.msra.mxu0 0.0
    %4029 = vmatprep.mubr.f32.mxu0 0.0
    %4030 = vmatmul.mubr.f32.gmra.mrb[0].mxu0 %v3963
    %v4031 = vpop.f32.mrb[0].mxu0
    %v4032 = vadd.f32 0.0, %v4031
    %v4033 = vpop.f32.mrb[0].mxu0
    %4034 = vdwg.mxu0
    %v4036 = vsel %vm374, %v3779, 0
    %4038 = vmatprep.subr.mxu0 0.0
    %4039 = vmatpush1.msra.mxu0 %v3795
    %4040 = vmatprep.subr.mxu0 0.0
    %4041 = vmatpush1.msra.mxu0 %v3796
    %4042 = vmatprep.subr.mxu0 0.0
    %4043 = vmatpush1.msra.mxu0 %v3797
    %4044 = vmatprep.subr.mxu0 0.0
    %4045 = vmatpush1.msra.mxu0 %v3798
    %4046 = vmatprep.subr.mxu0 0.0
    %4047 = vmatpush1.msra.mxu0 0.0
    %4048 = vmatprep.subr.mxu0 0.0
    %4049 = vmatpush1.msra.mxu0 0.0
    %4050 = vmatprep.subr.mxu0 0.0
    %4051 = vmatpush1.msra.mxu0 0.0
    %4052 = vmatprep.subr.mxu0 0.0
    %4053 = vmatpush1.msra.mxu0 0.0
    %4054 = vmatprep.subr.mxu0 0.0
    %4055 = vmatpush1.msra.mxu0 0.0
    %4056 = vmatprep.subr.mxu0 0.0
    %4057 = vmatpush1.msra.mxu0 0.0
    %4058 = vmatprep.subr.mxu0 0.0
    %4059 = vmatpush1.msra.mxu0 0.0
    %4060 = vmatprep.subr.mxu0 0.0
    %4061 = vmatpush1.msra.mxu0 0.0
    %4062 = vmatprep.subr.mxu0 0.0
    %4063 = vmatpush1.msra.mxu0 0.0
    %4064 = vmatprep.subr.mxu0 0.0
    %4065 = vmatpush1.msra.mxu0 0.0
    %4066 = vmatprep.subr.mxu0 0.0
    %4067 = vmatpush1.msra.mxu0 0.0
    %4068 = vmatprep.subr.mxu0 0.0
    %4069 = vmatpush1.msra.mxu0 0.0
    %4070 = vmatprep.subr.mxu0 0.0
    %4071 = vmatpush1.msra.mxu0 0.0
    %4072 = vmatprep.subr.mxu0 0.0
    %4073 = vmatpush1.msra.mxu0 0.0
    %4074 = vmatprep.subr.mxu0 0.0
    %4075 = vmatpush1.msra.mxu0 0.0
    %4076 = vmatprep.subr.mxu0 0.0
    %4077 = vmatpush1.msra.mxu0 0.0
    %4078 = vmatprep.subr.mxu0 0.0
    %4079 = vmatpush1.msra.mxu0 0.0
    %4080 = vmatprep.subr.mxu0 0.0
    %4081 = vmatpush1.msra.mxu0 0.0
    %4082 = vmatprep.subr.mxu0 0.0
    %4083 = vmatpush1.msra.mxu0 0.0
    %4084 = vmatprep.subr.mxu0 0.0
    %4085 = vmatpush1.msra.mxu0 0.0
    %4086 = vmatprep.subr.mxu0 0.0
    %4087 = vmatpush1.msra.mxu0 0.0
    %4088 = vmatprep.subr.mxu0 0.0
    %4089 = vmatpush1.msra.mxu0 0.0
    %4090 = vmatprep.subr.mxu0 0.0
    %4091 = vmatpush1.msra.mxu0 0.0
    %4092 = vmatprep.subr.mxu0 0.0
    %4093 = vmatpush1.msra.mxu0 0.0
    %4094 = vmatprep.subr.mxu0 0.0
    %4095 = vmatpush1.msra.mxu0 0.0
    %4096 = vmatprep.subr.mxu0 0.0
    %4097 = vmatpush1.msra.mxu0 0.0
    %4098 = vmatprep.subr.mxu0 0.0
    %4099 = vmatpush1.msra.mxu0 0.0
    %4100 = vmatprep.subr.mxu0 0.0
    %4101 = vmatpush1.msra.mxu0 0.0
    %4102 = vmatprep.mubr.f32.mxu0 0.0
    %4103 = vmatmul.mubr.f32.gmra.mrb[0].mxu0 %v4036
    %v4104 = vpop.f32.mrb[0].mxu0
    %v4105 = vadd.f32 0.0, %v4104
    %v4106 = vpop.f32.mrb[0].mxu0
    %4107 = vdwg.mxu0
    %v4109 = vsel %vm374, %v3770, 0
    %4111 = vmatprep.subr.mxu0 0.0
    %4112 = vmatpush1.msra.mxu0 %v3800
    %4113 = vmatprep.subr.mxu0 0.0
    %4114 = vmatpush1.msra.mxu0 %v3801
    %4115 = vmatprep.subr.mxu0 0.0
    %4116 = vmatpush1.msra.mxu0 %v3802
    %4117 = vmatprep.subr.mxu0 0.0
    %4118 = vmatpush1.msra.mxu0 %v3803
    %4119 = vmatprep.subr.mxu0 0.0
    %4120 = vmatpush1.msra.mxu0 0.0
    %4121 = vmatprep.subr.mxu0 0.0
    %4122 = vmatpush1.msra.mxu0 0.0
    %4123 = vmatprep.subr.mxu0 0.0
    %4124 = vmatpush1.msra.mxu0 0.0
    %4125 = vmatprep.subr.mxu0 0.0
    %4126 = vmatpush1.msra.mxu0 0.0
    %4127 = vmatprep.subr.mxu0 0.0
    %4128 = vmatpush1.msra.mxu0 0.0
    %4129 = vmatprep.subr.mxu0 0.0
    %4130 = vmatpush1.msra.mxu0 0.0
    %4131 = vmatprep.subr.mxu0 0.0
    %4132 = vmatpush1.msra.mxu0 0.0
    %4133 = vmatprep.subr.mxu0 0.0
    %4134 = vmatpush1.msra.mxu0 0.0
    %4135 = vmatprep.subr.mxu0 0.0
    %4136 = vmatpush1.msra.mxu0 0.0
    %4137 = vmatprep.subr.mxu0 0.0
    %4138 = vmatpush1.msra.mxu0 0.0
    %4139 = vmatprep.subr.mxu0 0.0
    %4140 = vmatpush1.msra.mxu0 0.0
    %4141 = vmatprep.subr.mxu0 0.0
    %4142 = vmatpush1.msra.mxu0 0.0
    %4143 = vmatprep.subr.mxu0 0.0
    %4144 = vmatpush1.msra.mxu0 0.0
    %4145 = vmatprep.subr.mxu0 0.0
    %4146 = vmatpush1.msra.mxu0 0.0
    %4147 = vmatprep.subr.mxu0 0.0
    %4148 = vmatpush1.msra.mxu0 0.0
    %4149 = vmatprep.subr.mxu0 0.0
    %4150 = vmatpush1.msra.mxu0 0.0
    %4151 = vmatprep.subr.mxu0 0.0
    %4152 = vmatpush1.msra.mxu0 0.0
    %4153 = vmatprep.subr.mxu0 0.0
    %4154 = vmatpush1.msra.mxu0 0.0
    %4155 = vmatprep.subr.mxu0 0.0
    %4156 = vmatpush1.msra.mxu0 0.0
    %4157 = vmatprep.subr.mxu0 0.0
    %4158 = vmatpush1.msra.mxu0 0.0
    %4159 = vmatprep.subr.mxu0 0.0
    %4160 = vmatpush1.msra.mxu0 0.0
    %4161 = vmatprep.subr.mxu0 0.0
    %4162 = vmatpush1.msra.mxu0 0.0
    %4163 = vmatprep.subr.mxu0 0.0
    %4164 = vmatpush1.msra.mxu0 0.0
    %4165 = vmatprep.subr.mxu0 0.0
    %4166 = vmatpush1.msra.mxu0 0.0
    %4167 = vmatprep.subr.mxu0 0.0
    %4168 = vmatpush1.msra.mxu0 0.0
    %4169 = vmatprep.subr.mxu0 0.0
    %4170 = vmatpush1.msra.mxu0 0.0
    %4171 = vmatprep.subr.mxu0 0.0
    %4172 = vmatpush1.msra.mxu0 0.0
    %4173 = vmatprep.subr.mxu0 0.0
    %4174 = vmatpush1.msra.mxu0 0.0
    %4175 = vmatprep.mubr.f32.mxu0 0.0
    %4176 = vmatmul.mubr.f32.gmra.mrb[0].mxu0 %v4109
    %v4177 = vpop.f32.mrb[0].mxu0
    %v4178 = vadd.f32 0.0, %v4177
    %v4179 = vpop.f32.mrb[0].mxu0
    %4180 = vdwg.mxu0
    %v4182 = vsel %vm374, %v3780, 0
    %4184 = vmatprep.subr.mxu0 0.0
    %4185 = vmatpush1.msra.mxu0 %v3804
    %4186 = vmatprep.subr.mxu0 0.0
    %4187 = vmatpush1.msra.mxu0 %v3805
    %4188 = vmatprep.subr.mxu0 0.0
    %4189 = vmatpush1.msra.mxu0 %v3806
    %4190 = vmatprep.subr.mxu0 0.0
    %4191 = vmatpush1.msra.mxu0 %v3807
    %4192 = vmatprep.subr.mxu0 0.0
    %4193 = vmatpush1.msra.mxu0 0.0
    %4194 = vmatprep.subr.mxu0 0.0
    %4195 = vmatpush1.msra.mxu0 0.0
    %4196 = vmatprep.subr.mxu0 0.0
    %4197 = vmatpush1.msra.mxu0 0.0
    %4198 = vmatprep.subr.mxu0 0.0
    %4199 = vmatpush1.msra.mxu0 0.0
    %4200 = vmatprep.subr.mxu0 0.0
    %4201 = vmatpush1.msra.mxu0 0.0
    %4202 = vmatprep.subr.mxu0 0.0
    %4203 = vmatpush1.msra.mxu0 0.0
    %4204 = vmatprep.subr.mxu0 0.0
    %4205 = vmatpush1.msra.mxu0 0.0
    %4206 = vmatprep.subr.mxu0 0.0
    %4207 = vmatpush1.msra.mxu0 0.0
    %4208 = vmatprep.subr.mxu0 0.0
    %4209 = vmatpush1.msra.mxu0 0.0
    %4210 = vmatprep.subr.mxu0 0.0
    %4211 = vmatpush1.msra.mxu0 0.0
    %4212 = vmatprep.subr.mxu0 0.0
    %4213 = vmatpush1.msra.mxu0 0.0
    %4214 = vmatprep.subr.mxu0 0.0
    %4215 = vmatpush1.msra.mxu0 0.0
    %4216 = vmatprep.subr.mxu0 0.0
    %4217 = vmatpush1.msra.mxu0 0.0
    %4218 = vmatprep.subr.mxu0 0.0
    %4219 = vmatpush1.msra.mxu0 0.0
    %4220 = vmatprep.subr.mxu0 0.0
    %4221 = vmatpush1.msra.mxu0 0.0
    %4222 = vmatprep.subr.mxu0 0.0
    %4223 = vmatpush1.msra.mxu0 0.0
    %4224 = vmatprep.subr.mxu0 0.0
    %4225 = vmatpush1.msra.mxu0 0.0
    %4226 = vmatprep.subr.mxu0 0.0
    %4227 = vmatpush1.msra.mxu0 0.0
    %4228 = vmatprep.subr.mxu0 0.0
    %4229 = vmatpush1.msra.mxu0 0.0
    %4230 = vmatprep.subr.mxu0 0.0
    %4231 = vmatpush1.msra.mxu0 0.0
    %4232 = vmatprep.subr.mxu0 0.0
    %4233 = vmatpush1.msra.mxu0 0.0
    %4234 = vmatprep.subr.mxu0 0.0
    %4235 = vmatpush1.msra.mxu0 0.0
    %4236 = vmatprep.subr.mxu0 0.0
    %4237 = vmatpush1.msra.mxu0 0.0
    %4238 = vmatprep.subr.mxu0 0.0
    %4239 = vmatpush1.msra.mxu0 0.0
    %4240 = vmatprep.subr.mxu0 0.0
    %4241 = vmatpush1.msra.mxu0 0.0
    %4242 = vmatprep.subr.mxu0 0.0
    %4243 = vmatpush1.msra.mxu0 0.0
    %4244 = vmatprep.subr.mxu0 0.0
    %4245 = vmatpush1.msra.mxu0 0.0
    %4246 = vmatprep.subr.mxu0 0.0
    %4247 = vmatpush1.msra.mxu0 0.0
    %4248 = vmatprep.mubr.f32.mxu0 0.0
    %4249 = vmatmul.mubr.f32.gmra.mrb[0].mxu0 %v4182
    %v4250 = vpop.f32.mrb[0].mxu0
    %v4251 = vadd.f32 0.0, %v4250
    %v4252 = vpop.f32.mrb[0].mxu0
    %4253 = vdwg.mxu0
    %v4255 = vsel %vm374, %v3777, 0
    %4257 = vmatprep.subr.mxu0 0.0
    %4258 = vmatpush1.msra.mxu0 %v3808
    %4259 = vmatprep.subr.mxu0 0.0
    %4260 = vmatpush1.msra.mxu0 %v3809
    %4261 = vmatprep.subr.mxu0 0.0
    %4262 = vmatpush1.msra.mxu0 %v3810
    %4263 = vmatprep.subr.mxu0 0.0
    %4264 = vmatpush1.msra.mxu0 %v3811
    %4265 = vmatprep.subr.mxu0 0.0
    %4266 = vmatpush1.msra.mxu0 0.0
    %4267 = vmatprep.subr.mxu0 0.0
    %4268 = vmatpush1.msra.mxu0 0.0
    %4269 = vmatprep.subr.mxu0 0.0
    %4270 = vmatpush1.msra.mxu0 0.0
    %4271 = vmatprep.subr.mxu0 0.0
    %4272 = vmatpush1.msra.mxu0 0.0
    %4273 = vmatprep.subr.mxu0 0.0
    %4274 = vmatpush1.msra.mxu0 0.0
    %4275 = vmatprep.subr.mxu0 0.0
    %4276 = vmatpush1.msra.mxu0 0.0
    %4277 = vmatprep.subr.mxu0 0.0
    %4278 = vmatpush1.msra.mxu0 0.0
    %4279 = vmatprep.subr.mxu0 0.0
    %4280 = vmatpush1.msra.mxu0 0.0
    %4281 = vmatprep.subr.mxu0 0.0
    %4282 = vmatpush1.msra.mxu0 0.0
    %4283 = vmatprep.subr.mxu0 0.0
    %4284 = vmatpush1.msra.mxu0 0.0
    %4285 = vmatprep.subr.mxu0 0.0
    %4286 = vmatpush1.msra.mxu0 0.0
    %4287 = vmatprep.subr.mxu0 0.0
    %4288 = vmatpush1.msra.mxu0 0.0
    %4289 = vmatprep.subr.mxu0 0.0
    %4290 = vmatpush1.msra.mxu0 0.0
    %4291 = vmatprep.subr.mxu0 0.0
    %4292 = vmatpush1.msra.mxu0 0.0
    %4293 = vmatprep.subr.mxu0 0.0
    %4294 = vmatpush1.msra.mxu0 0.0
    %4295 = vmatprep.subr.mxu0 0.0
    %4296 = vmatpush1.msra.mxu0 0.0
    %4297 = vmatprep.subr.mxu0 0.0
    %4298 = vmatpush1.msra.mxu0 0.0
    %4299 = vmatprep.subr.mxu0 0.0
    %4300 = vmatpush1.msra.mxu0 0.0
    %4301 = vmatprep.subr.mxu0 0.0
    %4302 = vmatpush1.msra.mxu0 0.0
    %4303 = vmatprep.subr.mxu0 0.0
    %4304 = vmatpush1.msra.mxu0 0.0
    %4305 = vmatprep.subr.mxu0 0.0
    %4306 = vmatpush1.msra.mxu0 0.0
    %4307 = vmatprep.subr.mxu0 0.0
    %4308 = vmatpush1.msra.mxu0 0.0
    %4309 = vmatprep.subr.mxu0 0.0
    %4310 = vmatpush1.msra.mxu0 0.0
    %4311 = vmatprep.subr.mxu0 0.0
    %4312 = vmatpush1.msra.mxu0 0.0
    %4313 = vmatprep.subr.mxu0 0.0
    %4314 = vmatpush1.msra.mxu0 0.0
    %4315 = vmatprep.subr.mxu0 0.0
    %4316 = vmatpush1.msra.mxu0 0.0
    %4317 = vmatprep.subr.mxu0 0.0
    %4318 = vmatpush1.msra.mxu0 0.0
    %4319 = vmatprep.subr.mxu0 0.0
    %4320 = vmatpush1.msra.mxu0 0.0
    %4321 = vmatprep.mubr.f32.mxu0 0.0
    %4322 = vmatmul.mubr.f32.gmra.mrb[0].mxu0 %v4255
    %v4323 = vpop.f32.mrb[0].mxu0
    %v4324 = vadd.f32 0.0, %v4323
    %v4325 = vpop.f32.mrb[0].mxu0
    %4326 = vdwg.mxu0
    %v4328 = vsel %vm374, %v3781, 0
    %4330 = vmatprep.subr.mxu0 0.0
    %4331 = vmatpush1.msra.mxu0 %v3812
    %4332 = vmatprep.subr.mxu0 0.0
    %4333 = vmatpush1.msra.mxu0 %v3813
    %4334 = vmatprep.subr.mxu0 0.0
    %4335 = vmatpush1.msra.mxu0 %v3814
    %4336 = vmatprep.subr.mxu0 0.0
    %4337 = vmatpush1.msra.mxu0 %v3815
    %4338 = vmatprep.subr.mxu0 0.0
    %4339 = vmatpush1.msra.mxu0 0.0
    %4340 = vmatprep.subr.mxu0 0.0
    %4341 = vmatpush1.msra.mxu0 0.0
    %4342 = vmatprep.subr.mxu0 0.0
    %4343 = vmatpush1.msra.mxu0 0.0
    %4344 = vmatprep.subr.mxu0 0.0
    %4345 = vmatpush1.msra.mxu0 0.0
    %4346 = vmatprep.subr.mxu0 0.0
    %4347 = vmatpush1.msra.mxu0 0.0
    %4348 = vmatprep.subr.mxu0 0.0
    %4349 = vmatpush1.msra.mxu0 0.0
    %4350 = vmatprep.subr.mxu0 0.0
    %4351 = vmatpush1.msra.mxu0 0.0
    %4352 = vmatprep.subr.mxu0 0.0
    %4353 = vmatpush1.msra.mxu0 0.0
    %4354 = vmatprep.subr.mxu0 0.0
    %4355 = vmatpush1.msra.mxu0 0.0
    %4356 = vmatprep.subr.mxu0 0.0
    %4357 = vmatpush1.msra.mxu0 0.0
    %4358 = vmatprep.subr.mxu0 0.0
    %4359 = vmatpush1.msra.mxu0 0.0
    %4360 = vmatprep.subr.mxu0 0.0
    %4361 = vmatpush1.msra.mxu0 0.0
    %4362 = vmatprep.subr.mxu0 0.0
    %4363 = vmatpush1.msra.mxu0 0.0
    %4364 = vmatprep.subr.mxu0 0.0
    %4365 = vmatpush1.msra.mxu0 0.0
    %4366 = vmatprep.subr.mxu0 0.0
    %4367 = vmatpush1.msra.mxu0 0.0
    %4368 = vmatprep.subr.mxu0 0.0
    %4369 = vmatpush1.msra.mxu0 0.0
    %4370 = vmatprep.subr.mxu0 0.0
    %4371 = vmatpush1.msra.mxu0 0.0
    %4372 = vmatprep.subr.mxu0 0.0
    %4373 = vmatpush1.msra.mxu0 0.0
    %4374 = vmatprep.subr.mxu0 0.0
    %4375 = vmatpush1.msra.mxu0 0.0
    %4376 = vmatprep.subr.mxu0 0.0
    %4377 = vmatpush1.msra.mxu0 0.0
    %4378 = vmatprep.subr.mxu0 0.0
    %4379 = vmatpush1.msra.mxu0 0.0
    %4380 = vmatprep.subr.mxu0 0.0
    %4381 = vmatpush1.msra.mxu0 0.0
    %4382 = vmatprep.subr.mxu0 0.0
    %4383 = vmatpush1.msra.mxu0 0.0
    %4384 = vmatprep.subr.mxu0 0.0
    %4385 = vmatpush1.msra.mxu0 0.0
    %4386 = vmatprep.subr.mxu0 0.0
    %4387 = vmatpush1.msra.mxu0 0.0
    %4388 = vmatprep.subr.mxu0 0.0
    %4389 = vmatpush1.msra.mxu0 0.0
    %4390 = vmatprep.subr.mxu0 0.0
    %4391 = vmatpush1.msra.mxu0 0.0
    %4392 = vmatprep.subr.mxu0 0.0
    %4393 = vmatpush1.msra.mxu0 0.0
    %4394 = vmatprep.mubr.f32.mxu0 0.0
    %4395 = vmatmul.mubr.f32.gmra.mrb[0].mxu0 %v4328
    %v4396 = vpop.f32.mrb[0].mxu0
    %v4397 = vadd.f32 0.0, %v4396
    %v4398 = vpop.f32.mrb[0].mxu0
    %4399 = vdwg.mxu0
    %v4400 = vsub.f32 %v3886, %v4178
    %v4401 = vsub.f32 %v3959, %v4251
    %v4402 = vsub.f32 %v4032, %v4324
    %v4403 = vsub.f32 %v4105, %v4397
    %4404 = vmatprep.subr.mxu0 0.0
    %4405 = vmatpush1.msra.mxu0 %v3783
    %4406 = vmatprep.subr.mxu0 0.0
    %4407 = vmatpush1.msra.mxu0 %v3784
    %4408 = vmatprep.subr.mxu0 0.0
    %4409 = vmatpush1.msra.mxu0 %v3785
    %4410 = vmatprep.subr.mxu0 0.0
    %4411 = vmatpush1.msra.mxu0 %v3786
    %4412 = vmatprep.subr.mxu0 0.0
    %4413 = vmatpush1.msra.mxu0 0.0
    %4414 = vmatprep.subr.mxu0 0.0
    %4415 = vmatpush1.msra.mxu0 0.0
    %4416 = vmatprep.subr.mxu0 0.0
    %4417 = vmatpush1.msra.mxu0 0.0
    %4418 = vmatprep.subr.mxu0 0.0
    %4419 = vmatpush1.msra.mxu0 0.0
    %4420 = vmatprep.subr.mxu0 0.0
    %4421 = vmatpush1.msra.mxu0 0.0
    %4422 = vmatprep.subr.mxu0 0.0
    %4423 = vmatpush1.msra.mxu0 0.0
    %4424 = vmatprep.subr.mxu0 0.0
    %4425 = vmatpush1.msra.mxu0 0.0
    %4426 = vmatprep.subr.mxu0 0.0
    %4427 = vmatpush1.msra.mxu0 0.0
    %4428 = vmatprep.subr.mxu0 0.0
    %4429 = vmatpush1.msra.mxu0 0.0
    %4430 = vmatprep.subr.mxu0 0.0
    %4431 = vmatpush1.msra.mxu0 0.0
    %4432 = vmatprep.subr.mxu0 0.0
    %4433 = vmatpush1.msra.mxu0 0.0
    %4434 = vmatprep.subr.mxu0 0.0
    %4435 = vmatpush1.msra.mxu0 0.0
    %4436 = vmatprep.subr.mxu0 0.0
    %4437 = vmatpush1.msra.mxu0 0.0
    %4438 = vmatprep.subr.mxu0 0.0
    %4439 = vmatpush1.msra.mxu0 0.0
    %4440 = vmatprep.subr.mxu0 0.0
    %4441 = vmatpush1.msra.mxu0 0.0
    %4442 = vmatprep.subr.mxu0 0.0
    %4443 = vmatpush1.msra.mxu0 0.0
    %4444 = vmatprep.subr.mxu0 0.0
    %4445 = vmatpush1.msra.mxu0 0.0
    %4446 = vmatprep.subr.mxu0 0.0
    %4447 = vmatpush1.msra.mxu0 0.0
    %4448 = vmatprep.subr.mxu0 0.0
    %4449 = vmatpush1.msra.mxu0 0.0
    %4450 = vmatprep.subr.mxu0 0.0
    %4451 = vmatpush1.msra.mxu0 0.0
    %4452 = vmatprep.subr.mxu0 0.0
    %4453 = vmatpush1.msra.mxu0 0.0
    %4454 = vmatprep.subr.mxu0 0.0
    %4455 = vmatpush1.msra.mxu0 0.0
    %4456 = vmatprep.subr.mxu0 0.0
    %4457 = vmatpush1.msra.mxu0 0.0
    %4458 = vmatprep.subr.mxu0 0.0
    %4459 = vmatpush1.msra.mxu0 0.0
    %4460 = vmatprep.subr.mxu0 0.0
    %4461 = vmatpush1.msra.mxu0 0.0
    %4462 = vmatprep.subr.mxu0 0.0
    %4463 = vmatpush1.msra.mxu0 0.0
    %4464 = vmatprep.subr.mxu0 0.0
    %4465 = vmatpush1.msra.mxu0 0.0
    %4466 = vmatprep.subr.mxu0 0.0
    %4467 = vmatpush1.msra.mxu0 0.0
    %4468 = vmatprep.mubr.f32.mxu0 0.0
    %4469 = vmatmul.mubr.f32.gmra.mrb[0].mxu0 %v4109
    %v4470 = vpop.f32.mrb[0].mxu0
    %v4471 = vadd.f32 0.0, %v4470
    %v4472 = vpop.f32.mrb[0].mxu0
    %4473 = vdwg.mxu0
    %4474 = vmatprep.subr.mxu0 0.0
    %4475 = vmatpush1.msra.mxu0 %v3787
    %4476 = vmatprep.subr.mxu0 0.0
    %4477 = vmatpush1.msra.mxu0 %v3788
    %4478 = vmatprep.subr.mxu0 0.0
    %4479 = vmatpush1.msra.mxu0 %v3789
    %4480 = vmatprep.subr.mxu0 0.0
    %4481 = vmatpush1.msra.mxu0 %v3790
    %4482 = vmatprep.subr.mxu0 0.0
    %4483 = vmatpush1.msra.mxu0 0.0
    %4484 = vmatprep.subr.mxu0 0.0
    %4485 = vmatpush1.msra.mxu0 0.0
    %4486 = vmatprep.subr.mxu0 0.0
    %4487 = vmatpush1.msra.mxu0 0.0
    %4488 = vmatprep.subr.mxu0 0.0
    %4489 = vmatpush1.msra.mxu0 0.0
    %4490 = vmatprep.subr.mxu0 0.0
    %4491 = vmatpush1.msra.mxu0 0.0
    %4492 = vmatprep.subr.mxu0 0.0
    %4493 = vmatpush1.msra.mxu0 0.0
    %4494 = vmatprep.subr.mxu0 0.0
    %4495 = vmatpush1.msra.mxu0 0.0
    %4496 = vmatprep.subr.mxu0 0.0
    %4497 = vmatpush1.msra.mxu0 0.0
    %4498 = vmatprep.subr.mxu0 0.0
    %4499 = vmatpush1.msra.mxu0 0.0
    %4500 = vmatprep.subr.mxu0 0.0
    %4501 = vmatpush1.msra.mxu0 0.0
    %4502 = vmatprep.subr.mxu0 0.0
    %4503 = vmatpush1.msra.mxu0 0.0
    %4504 = vmatprep.subr.mxu0 0.0
    %4505 = vmatpush1.msra.mxu0 0.0
    %4506 = vmatprep.subr.mxu0 0.0
    %4507 = vmatpush1.msra.mxu0 0.0
    %4508 = vmatprep.subr.mxu0 0.0
    %4509 = vmatpush1.msra.mxu0 0.0
    %4510 = vmatprep.subr.mxu0 0.0
    %4511 = vmatpush1.msra.mxu0 0.0
    %4512 = vmatprep.subr.mxu0 0.0
    %4513 = vmatpush1.msra.mxu0 0.0
    %4514 = vmatprep.subr.mxu0 0.0
    %4515 = vmatpush1.msra.mxu0 0.0
    %4516 = vmatprep.subr.mxu0 0.0
    %4517 = vmatpush1.msra.mxu0 0.0
    %4518 = vmatprep.subr.mxu0 0.0
    %4519 = vmatpush1.msra.mxu0 0.0
    %4520 = vmatprep.subr.mxu0 0.0
    %4521 = vmatpush1.msra.mxu0 0.0
    %4522 = vmatprep.subr.mxu0 0.0
    %4523 = vmatpush1.msra.mxu0 0.0
    %4524 = vmatprep.subr.mxu0 0.0
    %4525 = vmatpush1.msra.mxu0 0.0
    %4526 = vmatprep.subr.mxu0 0.0
    %4527 = vmatpush1.msra.mxu0 0.0
    %4528 = vmatprep.subr.mxu0 0.0
    %4529 = vmatpush1.msra.mxu0 0.0
    %4530 = vmatprep.subr.mxu0 0.0
    %4531 = vmatpush1.msra.mxu0 0.0
    %4532 = vmatprep.subr.mxu0 0.0
    %4533 = vmatpush1.msra.mxu0 0.0
    %4534 = vmatprep.subr.mxu0 0.0
    %4535 = vmatpush1.msra.mxu0 0.0
    %4536 = vmatprep.subr.mxu0 0.0
    %4537 = vmatpush1.msra.mxu0 0.0
    %4538 = vmatprep.mubr.f32.mxu0 0.0
    %4539 = vmatmul.mubr.f32.gmra.mrb[0].mxu0 %v4182
    %v4540 = vpop.f32.mrb[0].mxu0
    %v4541 = vadd.f32 0.0, %v4540
    %v4542 = vpop.f32.mrb[0].mxu0
    %4543 = vdwg.mxu0
    %4544 = vmatprep.subr.mxu0 0.0
    %4545 = vmatpush1.msra.mxu0 %v3791
    %4546 = vmatprep.subr.mxu0 0.0
    %4547 = vmatpush1.msra.mxu0 %v3792
    %4548 = vmatprep.subr.mxu0 0.0
    %4549 = vmatpush1.msra.mxu0 %v3793
    %4550 = vmatprep.subr.mxu0 0.0
    %4551 = vmatpush1.msra.mxu0 %v3794
    %4552 = vmatprep.subr.mxu0 0.0
    %4553 = vmatpush1.msra.mxu0 0.0
    %4554 = vmatprep.subr.mxu0 0.0
    %4555 = vmatpush1.msra.mxu0 0.0
    %4556 = vmatprep.subr.mxu0 0.0
    %4557 = vmatpush1.msra.mxu0 0.0
    %4558 = vmatprep.subr.mxu0 0.0
    %4559 = vmatpush1.msra.mxu0 0.0
    %4560 = vmatprep.subr.mxu0 0.0
    %4561 = vmatpush1.msra.mxu0 0.0
    %4562 = vmatprep.subr.mxu0 0.0
    %4563 = vmatpush1.msra.mxu0 0.0
    %4564 = vmatprep.subr.mxu0 0.0
    %4565 = vmatpush1.msra.mxu0 0.0
    %4566 = vmatprep.subr.mxu0 0.0
    %4567 = vmatpush1.msra.mxu0 0.0
    %4568 = vmatprep.subr.mxu0 0.0
    %4569 = vmatpush1.msra.mxu0 0.0
    %4570 = vmatprep.subr.mxu0 0.0
    %4571 = vmatpush1.msra.mxu0 0.0
    %4572 = vmatprep.subr.mxu0 0.0
    %4573 = vmatpush1.msra.mxu0 0.0
    %4574 = vmatprep.subr.mxu0 0.0
    %4575 = vmatpush1.msra.mxu0 0.0
    %4576 = vmatprep.subr.mxu0 0.0
    %4577 = vmatpush1.msra.mxu0 0.0
    %4578 = vmatprep.subr.mxu0 0.0
    %4579 = vmatpush1.msra.mxu0 0.0
    %4580 = vmatprep.subr.mxu0 0.0
    %4581 = vmatpush1.msra.mxu0 0.0
    %4582 = vmatprep.subr.mxu0 0.0
    %4583 = vmatpush1.msra.mxu0 0.0
    %4584 = vmatprep.subr.mxu0 0.0
    %4585 = vmatpush1.msra.mxu0 0.0
    %4586 = vmatprep.subr.mxu0 0.0
    %4587 = vmatpush1.msra.mxu0 0.0
    %4588 = vmatprep.subr.mxu0 0.0
    %4589 = vmatpush1.msra.mxu0 0.0
    %4590 = vmatprep.subr.mxu0 0.0
    %4591 = vmatpush1.msra.mxu0 0.0
    %4592 = vmatprep.subr.mxu0 0.0
    %4593 = vmatpush1.msra.mxu0 0.0
    %4594 = vmatprep.subr.mxu0 0.0
    %4595 = vmatpush1.msra.mxu0 0.0
    %4596 = vmatprep.subr.mxu0 0.0
    %4597 = vmatpush1.msra.mxu0 0.0
    %4598 = vmatprep.subr.mxu0 0.0
    %4599 = vmatpush1.msra.mxu0 0.0
    %4600 = vmatprep.subr.mxu0 0.0
    %4601 = vmatpush1.msra.mxu0 0.0
    %4602 = vmatprep.subr.mxu0 0.0
    %4603 = vmatpush1.msra.mxu0 0.0
    %4604 = vmatprep.subr.mxu0 0.0
    %4605 = vmatpush1.msra.mxu0 0.0
    %4606 = vmatprep.subr.mxu0 0.0
    %4607 = vmatpush1.msra.mxu0 0.0
    %4608 = vmatprep.mubr.f32.mxu0 0.0
    %4609 = vmatmul.mubr.f32.gmra.mrb[0].mxu0 %v4255
    %v4610 = vpop.f32.mrb[0].mxu0
    %v4611 = vadd.f32 0.0, %v4610
    %v4612 = vpop.f32.mrb[0].mxu0
    %4613 = vdwg.mxu0
    %4614 = vmatprep.subr.mxu0 0.0
    %4615 = vmatpush1.msra.mxu0 %v3795
    %4616 = vmatprep.subr.mxu0 0.0
    %4617 = vmatpush1.msra.mxu0 %v3796
    %4618 = vmatprep.subr.mxu0 0.0
    %4619 = vmatpush1.msra.mxu0 %v3797
    %4620 = vmatprep.subr.mxu0 0.0
    %4621 = vmatpush1.msra.mxu0 %v3798
    %4622 = vmatprep.subr.mxu0 0.0
    %4623 = vmatpush1.msra.mxu0 0.0
    %4624 = vmatprep.subr.mxu0 0.0
    %4625 = vmatpush1.msra.mxu0 0.0
    %4626 = vmatprep.subr.mxu0 0.0
    %4627 = vmatpush1.msra.mxu0 0.0
    %4628 = vmatprep.subr.mxu0 0.0
    %4629 = vmatpush1.msra.mxu0 0.0
    %4630 = vmatprep.subr.mxu0 0.0
    %4631 = vmatpush1.msra.mxu0 0.0
    %4632 = vmatprep.subr.mxu0 0.0
    %4633 = vmatpush1.msra.mxu0 0.0
    %4634 = vmatprep.subr.mxu0 0.0
    %4635 = vmatpush1.msra.mxu0 0.0
    %4636 = vmatprep.subr.mxu0 0.0
    %4637 = vmatpush1.msra.mxu0 0.0
    %4638 = vmatprep.subr.mxu0 0.0
    %4639 = vmatpush1.msra.mxu0 0.0
    %4640 = vmatprep.subr.mxu0 0.0
    %4641 = vmatpush1.msra.mxu0 0.0
    %4642 = vmatprep.subr.mxu0 0.0
    %4643 = vmatpush1.msra.mxu0 0.0
    %4644 = vmatprep.subr.mxu0 0.0
    %4645 = vmatpush1.msra.mxu0 0.0
    %4646 = vmatprep.subr.mxu0 0.0
    %4647 = vmatpush1.msra.mxu0 0.0
    %4648 = vmatprep.subr.mxu0 0.0
    %4649 = vmatpush1.msra.mxu0 0.0
    %4650 = vmatprep.subr.mxu0 0.0
    %4651 = vmatpush1.msra.mxu0 0.0
    %4652 = vmatprep.subr.mxu0 0.0
    %4653 = vmatpush1.msra.mxu0 0.0
    %4654 = vmatprep.subr.mxu0 0.0
    %4655 = vmatpush1.msra.mxu0 0.0
    %4656 = vmatprep.subr.mxu0 0.0
    %4657 = vmatpush1.msra.mxu0 0.0
    %4658 = vmatprep.subr.mxu0 0.0
    %4659 = vmatpush1.msra.mxu0 0.0
    %4660 = vmatprep.subr.mxu0 0.0
    %4661 = vmatpush1.msra.mxu0 0.0
    %4662 = vmatprep.subr.mxu0 0.0
    %4663 = vmatpush1.msra.mxu0 0.0
    %4664 = vmatprep.subr.mxu0 0.0
    %4665 = vmatpush1.msra.mxu0 0.0
    %4666 = vmatprep.subr.mxu0 0.0
    %4667 = vmatpush1.msra.mxu0 0.0
    %4668 = vmatprep.subr.mxu0 0.0
    %4669 = vmatpush1.msra.mxu0 0.0
    %4670 = vmatprep.subr.mxu0 0.0
    %4671 = vmatpush1.msra.mxu0 0.0
    %4672 = vmatprep.subr.mxu0 0.0
    %4673 = vmatpush1.msra.mxu0 0.0
    %4674 = vmatprep.subr.mxu0 0.0
    %4675 = vmatpush1.msra.mxu0 0.0
    %4676 = vmatprep.subr.mxu0 0.0
    %4677 = vmatpush1.msra.mxu0 0.0
    %4678 = vmatprep.mubr.f32.mxu0 0.0
    %4679 = vmatmul.mubr.f32.gmra.mrb[0].mxu0 %v4328
    %v4680 = vpop.f32.mrb[0].mxu0
    %v4681 = vadd.f32 0.0, %v4680
    %v4682 = vpop.f32.mrb[0].mxu0
    %4683 = vdwg.mxu0
    %4684 = vmatprep.subr.mxu0 0.0
    %4685 = vmatpush1.msra.mxu0 %v3800
    %4686 = vmatprep.subr.mxu0 0.0
    %4687 = vmatpush1.msra.mxu0 %v3801
    %4688 = vmatprep.subr.mxu0 0.0
    %4689 = vmatpush1.msra.mxu0 %v3802
    %4690 = vmatprep.subr.mxu0 0.0
    %4691 = vmatpush1.msra.mxu0 %v3803
    %4692 = vmatprep.subr.mxu0 0.0
    %4693 = vmatpush1.msra.mxu0 0.0
    %4694 = vmatprep.subr.mxu0 0.0
    %4695 = vmatpush1.msra.mxu0 0.0
    %4696 = vmatprep.subr.mxu0 0.0
    %4697 = vmatpush1.msra.mxu0 0.0
    %4698 = vmatprep.subr.mxu0 0.0
    %4699 = vmatpush1.msra.mxu0 0.0
    %4700 = vmatprep.subr.mxu0 0.0
    %4701 = vmatpush1.msra.mxu0 0.0
    %4702 = vmatprep.subr.mxu0 0.0
    %4703 = vmatpush1.msra.mxu0 0.0
    %4704 = vmatprep.subr.mxu0 0.0
    %4705 = vmatpush1.msra.mxu0 0.0
    %4706 = vmatprep.subr.mxu0 0.0
    %4707 = vmatpush1.msra.mxu0 0.0
    %4708 = vmatprep.subr.mxu0 0.0
    %4709 = vmatpush1.msra.mxu0 0.0
    %4710 = vmatprep.subr.mxu0 0.0
    %4711 = vmatpush1.msra.mxu0 0.0
    %4712 = vmatprep.subr.mxu0 0.0
    %4713 = vmatpush1.msra.mxu0 0.0
    %4714 = vmatprep.subr.mxu0 0.0
    %4715 = vmatpush1.msra.mxu0 0.0
    %4716 = vmatprep.subr.mxu0 0.0
    %4717 = vmatpush1.msra.mxu0 0.0
    %4718 = vmatprep.subr.mxu0 0.0
    %4719 = vmatpush1.msra.mxu0 0.0
    %4720 = vmatprep.subr.mxu0 0.0
    %4721 = vmatpush1.msra.mxu0 0.0
    %4722 = vmatprep.subr.mxu0 0.0
    %4723 = vmatpush1.msra.mxu0 0.0
    %4724 = vmatprep.subr.mxu0 0.0
    %4725 = vmatpush1.msra.mxu0 0.0
    %4726 = vmatprep.subr.mxu0 0.0
    %4727 = vmatpush1.msra.mxu0 0.0
    %4728 = vmatprep.subr.mxu0 0.0
    %4729 = vmatpush1.msra.mxu0 0.0
    %4730 = vmatprep.subr.mxu0 0.0
    %4731 = vmatpush1.msra.mxu0 0.0
    %4732 = vmatprep.subr.mxu0 0.0
    %4733 = vmatpush1.msra.mxu0 0.0
    %4734 = vmatprep.subr.mxu0 0.0
    %4735 = vmatpush1.msra.mxu0 0.0
    %4736 = vmatprep.subr.mxu0 0.0
    %4737 = vmatpush1.msra.mxu0 0.0
    %4738 = vmatprep.subr.mxu0 0.0
    %4739 = vmatpush1.msra.mxu0 0.0
    %4740 = vmatprep.subr.mxu0 0.0
    %4741 = vmatpush1.msra.mxu0 0.0
    %4742 = vmatprep.subr.mxu0 0.0
    %4743 = vmatpush1.msra.mxu0 0.0
    %4744 = vmatprep.subr.mxu0 0.0
    %4745 = vmatpush1.msra.mxu0 0.0
    %4746 = vmatprep.subr.mxu0 0.0
    %4747 = vmatpush1.msra.mxu0 0.0
    %4748 = vmatprep.mubr.f32.mxu0 0.0
    %4749 = vmatmul.mubr.f32.gmra.mrb[0].mxu0 %v3817
    %v4750 = vpop.f32.mrb[0].mxu0
    %v4751 = vadd.f32 %v4471, %v4750
    %v4752 = vpop.f32.mrb[0].mxu0
    %4753 = vdwg.mxu0
    %4754 = vmatprep.subr.mxu0 0.0
    %4755 = vmatpush1.msra.mxu0 %v3804
    %4756 = vmatprep.subr.mxu0 0.0
    %4757 = vmatpush1.msra.mxu0 %v3805
    %4758 = vmatprep.subr.mxu0 0.0
    %4759 = vmatpush1.msra.mxu0 %v3806
    %4760 = vmatprep.subr.mxu0 0.0
    %4761 = vmatpush1.msra.mxu0 %v3807
    %4762 = vmatprep.subr.mxu0 0.0
    %4763 = vmatpush1.msra.mxu0 0.0
    %4764 = vmatprep.subr.mxu0 0.0
    %4765 = vmatpush1.msra.mxu0 0.0
    %4766 = vmatprep.subr.mxu0 0.0
    %4767 = vmatpush1.msra.mxu0 0.0
    %4768 = vmatprep.subr.mxu0 0.0
    %4769 = vmatpush1.msra.mxu0 0.0
    %4770 = vmatprep.subr.mxu0 0.0
    %4771 = vmatpush1.msra.mxu0 0.0
    %4772 = vmatprep.subr.mxu0 0.0
    %4773 = vmatpush1.msra.mxu0 0.0
    %4774 = vmatprep.subr.mxu0 0.0
    %4775 = vmatpush1.msra.mxu0 0.0
    %4776 = vmatprep.subr.mxu0 0.0
    %4777 = vmatpush1.msra.mxu0 0.0
    %4778 = vmatprep.subr.mxu0 0.0
    %4779 = vmatpush1.msra.mxu0 0.0
    %4780 = vmatprep.subr.mxu0 0.0
    %4781 = vmatpush1.msra.mxu0 0.0
    %4782 = vmatprep.subr.mxu0 0.0
    %4783 = vmatpush1.msra.mxu0 0.0
    %4784 = vmatprep.subr.mxu0 0.0
    %4785 = vmatpush1.msra.mxu0 0.0
    %4786 = vmatprep.subr.mxu0 0.0
    %4787 = vmatpush1.msra.mxu0 0.0
    %4788 = vmatprep.subr.mxu0 0.0
    %4789 = vmatpush1.msra.mxu0 0.0
    %4790 = vmatprep.subr.mxu0 0.0
    %4791 = vmatpush1.msra.mxu0 0.0
    %4792 = vmatprep.subr.mxu0 0.0
    %4793 = vmatpush1.msra.mxu0 0.0
    %4794 = vmatprep.subr.mxu0 0.0
    %4795 = vmatpush1.msra.mxu0 0.0
    %4796 = vmatprep.subr.mxu0 0.0
    %4797 = vmatpush1.msra.mxu0 0.0
    %4798 = vmatprep.subr.mxu0 0.0
    %4799 = vmatpush1.msra.mxu0 0.0
    %4800 = vmatprep.subr.mxu0 0.0
    %4801 = vmatpush1.msra.mxu0 0.0
    %4802 = vmatprep.subr.mxu0 0.0
    %4803 = vmatpush1.msra.mxu0 0.0
    %4804 = vmatprep.subr.mxu0 0.0
    %4805 = vmatpush1.msra.mxu0 0.0
    %4806 = vmatprep.subr.mxu0 0.0
    %4807 = vmatpush1.msra.mxu0 0.0
    %4808 = vmatprep.subr.mxu0 0.0
    %4809 = vmatpush1.msra.mxu0 0.0
    %4810 = vmatprep.subr.mxu0 0.0
    %4811 = vmatpush1.msra.mxu0 0.0
    %4812 = vmatprep.subr.mxu0 0.0
    %4813 = vmatpush1.msra.mxu0 0.0
    %4814 = vmatprep.subr.mxu0 0.0
    %4815 = vmatpush1.msra.mxu0 0.0
    %4816 = vmatprep.subr.mxu0 0.0
    %4817 = vmatpush1.msra.mxu0 0.0
    %4818 = vmatprep.mubr.f32.mxu0 0.0
    %4819 = vmatmul.mubr.f32.gmra.mrb[0].mxu0 %v3890
    %v4820 = vpop.f32.mrb[0].mxu0
    %v4821 = vadd.f32 %v4541, %v4820
    %v4822 = vpop.f32.mrb[0].mxu0
    %4823 = vdwg.mxu0
    %4824 = vmatprep.subr.mxu0 0.0
    %4825 = vmatpush1.msra.mxu0 %v3808
    %4826 = vmatprep.subr.mxu0 0.0
    %4827 = vmatpush1.msra.mxu0 %v3809
    %4828 = vmatprep.subr.mxu0 0.0
    %4829 = vmatpush1.msra.mxu0 %v3810
    %4830 = vmatprep.subr.mxu0 0.0
    %4831 = vmatpush1.msra.mxu0 %v3811
    %4832 = vmatprep.subr.mxu0 0.0
    %4833 = vmatpush1.msra.mxu0 0.0
    %4834 = vmatprep.subr.mxu0 0.0
    %4835 = vmatpush1.msra.mxu0 0.0
    %4836 = vmatprep.subr.mxu0 0.0
    %4837 = vmatpush1.msra.mxu0 0.0
    %4838 = vmatprep.subr.mxu0 0.0
    %4839 = vmatpush1.msra.mxu0 0.0
    %4840 = vmatprep.subr.mxu0 0.0
    %4841 = vmatpush1.msra.mxu0 0.0
    %4842 = vmatprep.subr.mxu0 0.0
    %4843 = vmatpush1.msra.mxu0 0.0
    %4844 = vmatprep.subr.mxu0 0.0
    %4845 = vmatpush1.msra.mxu0 0.0
    %4846 = vmatprep.subr.mxu0 0.0
    %4847 = vmatpush1.msra.mxu0 0.0
    %4848 = vmatprep.subr.mxu0 0.0
    %4849 = vmatpush1.msra.mxu0 0.0
    %4850 = vmatprep.subr.mxu0 0.0
    %4851 = vmatpush1.msra.mxu0 0.0
    %4852 = vmatprep.subr.mxu0 0.0
    %4853 = vmatpush1.msra.mxu0 0.0
    %4854 = vmatprep.subr.mxu0 0.0
    %4855 = vmatpush1.msra.mxu0 0.0
    %4856 = vmatprep.subr.mxu0 0.0
    %4857 = vmatpush1.msra.mxu0 0.0
    %4858 = vmatprep.subr.mxu0 0.0
    %4859 = vmatpush1.msra.mxu0 0.0
    %4860 = vmatprep.subr.mxu0 0.0
    %4861 = vmatpush1.msra.mxu0 0.0
    %4862 = vmatprep.subr.mxu0 0.0
    %4863 = vmatpush1.msra.mxu0 0.0
    %4864 = vmatprep.subr.mxu0 0.0
    %4865 = vmatpush1.msra.mxu0 0.0
    %4866 = vmatprep.subr.mxu0 0.0
    %4867 = vmatpush1.msra.mxu0 0.0
    %4868 = vmatprep.subr.mxu0 0.0
    %4869 = vmatpush1.msra.mxu0 0.0
    %4870 = vmatprep.subr.mxu0 0.0
    %4871 = vmatpush1.msra.mxu0 0.0
    %4872 = vmatprep.subr.mxu0 0.0
    %4873 = vmatpush1.msra.mxu0 0.0
    %4874 = vmatprep.subr.mxu0 0.0
    %4875 = vmatpush1.msra.mxu0 0.0
    %4876 = vmatprep.subr.mxu0 0.0
    %4877 = vmatpush1.msra.mxu0 0.0
    %4878 = vmatprep.subr.mxu0 0.0
    %4879 = vmatpush1.msra.mxu0 0.0
    %4880 = vmatprep.subr.mxu0 0.0
    %4881 = vmatpush1.msra.mxu0 0.0
    %4882 = vmatprep.subr.mxu0 0.0
    %4883 = vmatpush1.msra.mxu0 0.0
    %4884 = vmatprep.subr.mxu0 0.0
    %4885 = vmatpush1.msra.mxu0 0.0
    %4886 = vmatprep.subr.mxu0 0.0
    %4887 = vmatpush1.msra.mxu0 0.0
    %4888 = vmatprep.mubr.f32.mxu0 0.0
    %4889 = vmatmul.mubr.f32.gmra.mrb[0].mxu0 %v3963
    %v4890 = vpop.f32.mrb[0].mxu0
    %v4891 = vadd.f32 %v4611, %v4890
    %v4892 = vpop.f32.mrb[0].mxu0
    %4893 = vdwg.mxu0
    %4894 = vmatprep.subr.mxu0 0.0
    %4895 = vmatpush1.msra.mxu0 %v3812
    %4896 = vmatprep.subr.mxu0 0.0
    %4897 = vmatpush1.msra.mxu0 %v3813
    %4898 = vmatprep.subr.mxu0 0.0
    %4899 = vmatpush1.msra.mxu0 %v3814
    %4900 = vmatprep.subr.mxu0 0.0
    %4901 = vmatpush1.msra.mxu0 %v3815
    %4902 = vmatprep.subr.mxu0 0.0
    %4903 = vmatpush1.msra.mxu0 0.0
    %4904 = vmatprep.subr.mxu0 0.0
    %4905 = vmatpush1.msra.mxu0 0.0
    %4906 = vmatprep.subr.mxu0 0.0
    %4907 = vmatpush1.msra.mxu0 0.0
    %4908 = vmatprep.subr.mxu0 0.0
    %4909 = vmatpush1.msra.mxu0 0.0
    %4910 = vmatprep.subr.mxu0 0.0
    %4911 = vmatpush1.msra.mxu0 0.0
    %4912 = vmatprep.subr.mxu0 0.0
    %4913 = vmatpush1.msra.mxu0 0.0
    %4914 = vmatprep.subr.mxu0 0.0
    %4915 = vmatpush1.msra.mxu0 0.0
    %4916 = vmatprep.subr.mxu0 0.0
    %4917 = vmatpush1.msra.mxu0 0.0
    %4918 = vmatprep.subr.mxu0 0.0
    %4919 = vmatpush1.msra.mxu0 0.0
    %4920 = vmatprep.subr.mxu0 0.0
    %4921 = vmatpush1.msra.mxu0 0.0
    %4922 = vmatprep.subr.mxu0 0.0
    %4923 = vmatpush1.msra.mxu0 0.0
    %4924 = vmatprep.subr.mxu0 0.0
    %4925 = vmatpush1.msra.mxu0 0.0
    %4926 = vmatprep.subr.mxu0 0.0
    %4927 = vmatpush1.msra.mxu0 0.0
    %4928 = vmatprep.subr.mxu0 0.0
    %4929 = vmatpush1.msra.mxu0 0.0
    %4930 = vmatprep.subr.mxu0 0.0
    %4931 = vmatpush1.msra.mxu0 0.0
    %4932 = vmatprep.subr.mxu0 0.0
    %4933 = vmatpush1.msra.mxu0 0.0
    %4934 = vmatprep.subr.mxu0 0.0
    %4935 = vmatpush1.msra.mxu0 0.0
    %4936 = vmatprep.subr.mxu0 0.0
    %4937 = vmatpush1.msra.mxu0 0.0
    %4938 = vmatprep.subr.mxu0 0.0
    %4939 = vmatpush1.msra.mxu0 0.0
    %4940 = vmatprep.subr.mxu0 0.0
    %4941 = vmatpush1.msra.mxu0 0.0
    %4942 = vmatprep.subr.mxu0 0.0
    %4943 = vmatpush1.msra.mxu0 0.0
    %4944 = vmatprep.subr.mxu0 0.0
    %4945 = vmatpush1.msra.mxu0 0.0
    %4946 = vmatprep.subr.mxu0 0.0
    %4947 = vmatpush1.msra.mxu0 0.0
    %4948 = vmatprep.subr.mxu0 0.0
    %4949 = vmatpush1.msra.mxu0 0.0
    %4950 = vmatprep.subr.mxu0 0.0
    %4951 = vmatpush1.msra.mxu0 0.0
    %4952 = vmatprep.subr.mxu0 0.0
    %4953 = vmatpush1.msra.mxu0 0.0
    %4954 = vmatprep.subr.mxu0 0.0
    %4955 = vmatpush1.msra.mxu0 0.0
    %4956 = vmatprep.subr.mxu0 0.0
    %4957 = vmatpush1.msra.mxu0 0.0
    %4958 = vmatprep.mubr.f32.mxu0 0.0
    %4959 = vmatmul.mubr.f32.gmra.mrb[0].mxu0 %v4036
    %v4960 = vpop.f32.mrb[0].mxu0
    %v4961 = vadd.f32 %v4681, %v4960
    %v4962 = vpop.f32.mrb[0].mxu0
    %4963 = vdwg.mxu0
    %v4964 = vcombine.low %v4400, %v4402
    %v4966 = vunpack.c.l.s4 1983009808
    %v4967 = vunpack.c.0.s8 %v4966
    %v4968 = vlaneseq
    %v4969 = vshrl.u32 %v4968, 7
    %v4970 = vsub.s32 %v4967, %v4969
    %v4971 = vrot.slane %v4964, %v4970
    %v4972 = vcombine.low %v4401, %v4403
    %v4974 = vunpack.c.l.s4 1983009808
    %v4975 = vunpack.c.0.s8 %v4974
    %v4976 = vlaneseq
    %v4977 = vshrl.u32 %v4976, 7
    %v4978 = vsub.s32 %v4975, %v4977
    %v4979 = vrot.slane %v4972, %v4978
    %v4980 = vcombine.low %v4751, %v4891
    %v4982 = vunpack.c.l.s4 1983009808
    %v4983 = vunpack.c.0.s8 %v4982
    %v4984 = vlaneseq
    %v4985 = vshrl.u32 %v4984, 7
    %v4986 = vsub.s32 %v4983, %v4985
    %v4987 = vrot.slane %v4980, %v4986
    %v4988 = vcombine.low %v4821, %v4961
    %v4990 = vunpack.c.l.s4 1983009808
    %v4991 = vunpack.c.0.s8 %v4990
    %v4992 = vlaneseq
    %v4993 = vshrl.u32 %v4992, 7
    %v4994 = vsub.s32 %v4991, %v4993
    %v4995 = vrot.slane %v4988, %v4994
    %v4996 = vcombine.low %v4971, %v4979
    %v4998 = vunpack.c.l.s4 1934713408
    %v4999 = vunpack.c.0.s8 %v4998
    %v5000 = vlaneseq
    %v5001 = vshrl.u32 %v5000, 7
    %v5002 = vsub.s32 %v4999, %v5001
    %v5003 = vrot.slane %v4996, %v5002
    %v5004 = vcombine.low %v4987, %v4995
    %v5006 = vunpack.c.l.s4 1934713408
    %v5007 = vunpack.c.0.s8 %v5006
    %v5008 = vlaneseq
    %v5009 = vshrl.u32 %v5008, 7
    %v5010 = vsub.s32 %v5007, %v5009
    %v5011 = vrot.slane %v5004, %v5010
    %v5012 = vcombine.low %v5003, %v5011
    %v5013 = vcombine.high %v5003, %v5011
    %s5014 = scalar_lea.vmem [#allocation8], 64
    %v5015 = vld [vmem:[%s5014] sm:$0xff]
    %v5016 = vld [vmem:[%s5014 + $0x8] sm:$0xff]
    %v5017 = vld [vmem:[%s5014 + $0x10] sm:$0xff]
    %v5018 = vld [vmem:[%s5014 + $0x18] sm:$0xff]
    %s5019 = scalar_lea.vmem %s6, 2
    %v5020 = vld [vmem:[%s5019] sm:$0x1]
    %v5022 = vlaneseq
    %v5023 = vshrl.u32 %v5022, 7
    %v5024 = vsub.s32 0, %v5023
    %v5025 = vrot.slane %v5020, %v5024
    %v5028 = vsel %vm374, %v3572, 0
    %v5031 = vsel %vm374, %v3573, 0
    %v5034 = vsel %vm374, %v3574, 0
    %v5037 = vsel %vm374, %v3575, 0
    %5039 = vmatprep.subr.mxu0 0.0
    %5040 = vmatpush1.msra.mxu0 %v5015
    %5041 = vmatprep.subr.mxu0 0.0
    %5042 = vmatpush1.msra.mxu0 %v5016
    %5043 = vmatprep.subr.mxu0 0.0
    %5044 = vmatpush1.msra.mxu0 %v5017
    %5045 = vmatprep.subr.mxu0 0.0
    %5046 = vmatpush1.msra.mxu0 %v5018
    %5047 = vmatprep.subr.mxu0 0.0
    %5048 = vmatpush1.msra.mxu0 0.0
    %5049 = vmatprep.subr.mxu0 0.0
    %5050 = vmatpush1.msra.mxu0 0.0
    %5051 = vmatprep.subr.mxu0 0.0
    %5052 = vmatpush1.msra.mxu0 0.0
    %5053 = vmatprep.subr.mxu0 0.0
    %5054 = vmatpush1.msra.mxu0 0.0
    %5055 = vmatprep.subr.mxu0 0.0
    %5056 = vmatpush1.msra.mxu0 0.0
    %5057 = vmatprep.subr.mxu0 0.0
    %5058 = vmatpush1.msra.mxu0 0.0
    %5059 = vmatprep.subr.mxu0 0.0
    %5060 = vmatpush1.msra.mxu0 0.0
    %5061 = vmatprep.subr.mxu0 0.0
    %5062 = vmatpush1.msra.mxu0 0.0
    %5063 = vmatprep.subr.mxu0 0.0
    %5064 = vmatpush1.msra.mxu0 0.0
    %5065 = vmatprep.subr.mxu0 0.0
    %5066 = vmatpush1.msra.mxu0 0.0
    %5067 = vmatprep.subr.mxu0 0.0
    %5068 = vmatpush1.msra.mxu0 0.0
    %5069 = vmatprep.subr.mxu0 0.0
    %5070 = vmatpush1.msra.mxu0 0.0
    %5071 = vmatprep.subr.mxu0 0.0
    %5072 = vmatpush1.msra.mxu0 0.0
    %5073 = vmatprep.subr.mxu0 0.0
    %5074 = vmatpush1.msra.mxu0 0.0
    %5075 = vmatprep.subr.mxu0 0.0
    %5076 = vmatpush1.msra.mxu0 0.0
    %5077 = vmatprep.subr.mxu0 0.0
    %5078 = vmatpush1.msra.mxu0 0.0
    %5079 = vmatprep.subr.mxu0 0.0
    %5080 = vmatpush1.msra.mxu0 0.0
    %5081 = vmatprep.subr.mxu0 0.0
    %5082 = vmatpush1.msra.mxu0 0.0
    %5083 = vmatprep.subr.mxu0 0.0
    %5084 = vmatpush1.msra.mxu0 0.0
    %5085 = vmatprep.subr.mxu0 0.0
    %5086 = vmatpush1.msra.mxu0 0.0
    %5087 = vmatprep.subr.mxu0 0.0
    %5088 = vmatpush1.msra.mxu0 0.0
    %5089 = vmatprep.subr.mxu0 0.0
    %5090 = vmatpush1.msra.mxu0 0.0
    %5091 = vmatprep.subr.mxu0 0.0
    %5092 = vmatpush1.msra.mxu0 0.0
    %5093 = vmatprep.subr.mxu0 0.0
    %5094 = vmatpush1.msra.mxu0 0.0
    %5095 = vmatprep.subr.mxu0 0.0
    %5096 = vmatpush1.msra.mxu0 0.0
    %5097 = vmatprep.subr.mxu0 0.0
    %5098 = vmatpush1.msra.mxu0 0.0
    %5099 = vmatprep.subr.mxu0 0.0
    %5100 = vmatpush1.msra.mxu0 0.0
    %5101 = vmatprep.subr.mxu0 0.0
    %5102 = vmatpush1.msra.mxu0 0.0
    %5103 = vmatprep.mubr.f32.mxu0 0.0
    %5104 = vmatmul.mubr.f32.gmra.mrb[0].mxu0 %v5028
    %v5105 = vpop.f32.mrb[0].mxu0
    %v5106 = vadd.f32 %v5025, %v5105
    %v5107 = vpop.f32.mrb[0].mxu0
    %5108 = vmatprep.mubr.f32.mxu0 0.0
    %5109 = vmatmul.mubr.f32.gmra.mrb[0].mxu0 %v5031
    %v5110 = vpop.f32.mrb[0].mxu0
    %v5111 = vadd.f32 %v5025, %v5110
    %v5112 = vpop.f32.mrb[0].mxu0
    %5113 = vmatprep.mubr.f32.mxu0 0.0
    %5114 = vmatmul.mubr.f32.gmra.mrb[0].mxu0 %v5034
    %v5115 = vpop.f32.mrb[0].mxu0
    %v5116 = vadd.f32 %v5025, %v5115
    %v5117 = vpop.f32.mrb[0].mxu0
    %5118 = vmatprep.mubr.f32.mxu0 0.0
    %5119 = vmatmul.mubr.f32.gmra.mrb[0].mxu0 %v5037
    %v5120 = vpop.f32.mrb[0].mxu0
    %v5121 = vadd.f32 %v5025, %v5120
    %v5122 = vpop.f32.mrb[0].mxu0
    %5123 = vdwg.mxu0
    %5124 = vmatprep.subr.mxu0 0.0
    %5125 = vmatpush1.msra.mxu0 %v5012
    %5126 = vmatprep.subr.mxu0 0.0
    %5127 = vmatpush1.msra.mxu0 0.0
    %5128 = vmatprep.subr.mxu0 0.0
    %5129 = vmatpush1.msra.mxu0 0.0
    %5130 = vmatprep.subr.mxu0 0.0
    %5131 = vmatpush1.msra.mxu0 0.0
    %5132 = vmatprep.subr.mxu0 0.0
    %5133 = vmatpush1.msra.mxu0 0.0
    %5134 = vmatprep.subr.mxu0 0.0
    %5135 = vmatpush1.msra.mxu0 0.0
    %5136 = vmatprep.subr.mxu0 0.0
    %5137 = vmatpush1.msra.mxu0 0.0
    %5138 = vmatprep.subr.mxu0 0.0
    %5139 = vmatpush1.msra.mxu0 0.0
    %5140 = vmatprep.subr.mxu0 0.0
    %5141 = vmatpush1.msra.mxu0 0.0
    %5142 = vmatprep.subr.mxu0 0.0
    %5143 = vmatpush1.msra.mxu0 0.0
    %5144 = vmatprep.subr.mxu0 0.0
    %5145 = vmatpush1.msra.mxu0 0.0
    %5146 = vmatprep.subr.mxu0 0.0
    %5147 = vmatpush1.msra.mxu0 0.0
    %5148 = vmatprep.subr.mxu0 0.0
    %5149 = vmatpush1.msra.mxu0 0.0
    %5150 = vmatprep.subr.mxu0 0.0
    %5151 = vmatpush1.msra.mxu0 0.0
    %5152 = vmatprep.subr.mxu0 0.0
    %5153 = vmatpush1.msra.mxu0 0.0
    %5154 = vmatprep.subr.mxu0 0.0
    %5155 = vmatpush1.msra.mxu0 0.0
    %5156 = vmatprep.subr.mxu0 0.0
    %5157 = vmatpush1.msra.mxu0 0.0
    %5158 = vmatprep.subr.mxu0 0.0
    %5159 = vmatpush1.msra.mxu0 0.0
    %5160 = vmatprep.subr.mxu0 0.0
    %5161 = vmatpush1.msra.mxu0 0.0
    %5162 = vmatprep.subr.mxu0 0.0
    %5163 = vmatpush1.msra.mxu0 0.0
    %5164 = vmatprep.subr.mxu0 0.0
    %5165 = vmatpush1.msra.mxu0 0.0
    %5166 = vmatprep.subr.mxu0 0.0
    %5167 = vmatpush1.msra.mxu0 0.0
    %5168 = vmatprep.subr.mxu0 0.0
    %5169 = vmatpush1.msra.mxu0 0.0
    %5170 = vmatprep.subr.mxu0 0.0
    %5171 = vmatpush1.msra.mxu0 0.0
    %5172 = vmatprep.subr.mxu0 0.0
    %5173 = vmatpush1.msra.mxu0 0.0
    %5174 = vmatprep.subr.mxu0 0.0
    %5175 = vmatpush1.msra.mxu0 0.0
    %5176 = vmatprep.subr.mxu0 0.0
    %5177 = vmatpush1.msra.mxu0 0.0
    %5178 = vmatprep.subr.mxu0 0.0
    %5179 = vmatpush1.msra.mxu0 0.0
    %5180 = vmatprep.subr.mxu0 0.0
    %5181 = vmatpush1.msra.mxu0 0.0
    %5182 = vmatprep.subr.mxu0 0.0
    %5183 = vmatpush1.msra.mxu0 0.0
    %5184 = vmatprep.subr.mxu0 0.0
    %5185 = vmatpush1.msra.mxu0 0.0
    %5186 = vmatprep.subr.mxu0 0.0
    %5187 = vmatpush1.msra.mxu0 0.0
    %5188 = vmatprep.mubr.f32.mxu0 0.0
    %5189 = vmatmul.mubr.f32.gmra.mrb[0].mxu0 %v1683
    %v5190 = vpop.f32.mrb[0].mxu0
    %v5191 = vadd.f32 %v5106, %v5190
    %v5192 = vpop.f32.mrb[0].mxu0
    %5193 = vmatprep.mubr.f32.mxu0 0.0
    %5194 = vmatmul.mubr.f32.gmra.mrb[0].mxu0 %v1686
    %v5195 = vpop.f32.mrb[0].mxu0
    %v5196 = vadd.f32 %v5111, %v5195
    %v5197 = vpop.f32.mrb[0].mxu0
    %5198 = vdwg.mxu0
    %5199 = vmatprep.subr.mxu0 0.0
    %5200 = vmatpush1.msra.mxu0 %v5013
    %5201 = vmatprep.subr.mxu0 0.0
    %5202 = vmatpush1.msra.mxu0 0.0
    %5203 = vmatprep.subr.mxu0 0.0
    %5204 = vmatpush1.msra.mxu0 0.0
    %5205 = vmatprep.subr.mxu0 0.0
    %5206 = vmatpush1.msra.mxu0 0.0
    %5207 = vmatprep.subr.mxu0 0.0
    %5208 = vmatpush1.msra.mxu0 0.0
    %5209 = vmatprep.subr.mxu0 0.0
    %5210 = vmatpush1.msra.mxu0 0.0
    %5211 = vmatprep.subr.mxu0 0.0
    %5212 = vmatpush1.msra.mxu0 0.0
    %5213 = vmatprep.subr.mxu0 0.0
    %5214 = vmatpush1.msra.mxu0 0.0
    %5215 = vmatprep.subr.mxu0 0.0
    %5216 = vmatpush1.msra.mxu0 0.0
    %5217 = vmatprep.subr.mxu0 0.0
    %5218 = vmatpush1.msra.mxu0 0.0
    %5219 = vmatprep.subr.mxu0 0.0
    %5220 = vmatpush1.msra.mxu0 0.0
    %5221 = vmatprep.subr.mxu0 0.0
    %5222 = vmatpush1.msra.mxu0 0.0
    %5223 = vmatprep.subr.mxu0 0.0
    %5224 = vmatpush1.msra.mxu0 0.0
    %5225 = vmatprep.subr.mxu0 0.0
    %5226 = vmatpush1.msra.mxu0 0.0
    %5227 = vmatprep.subr.mxu0 0.0
    %5228 = vmatpush1.msra.mxu0 0.0
    %5229 = vmatprep.subr.mxu0 0.0
    %5230 = vmatpush1.msra.mxu0 0.0
    %5231 = vmatprep.subr.mxu0 0.0
    %5232 = vmatpush1.msra.mxu0 0.0
    %5233 = vmatprep.subr.mxu0 0.0
    %5234 = vmatpush1.msra.mxu0 0.0
    %5235 = vmatprep.subr.mxu0 0.0
    %5236 = vmatpush1.msra.mxu0 0.0
    %5237 = vmatprep.subr.mxu0 0.0
    %5238 = vmatpush1.msra.mxu0 0.0
    %5239 = vmatprep.subr.mxu0 0.0
    %5240 = vmatpush1.msra.mxu0 0.0
    %5241 = vmatprep.subr.mxu0 0.0
    %5242 = vmatpush1.msra.mxu0 0.0
    %5243 = vmatprep.subr.mxu0 0.0
    %5244 = vmatpush1.msra.mxu0 0.0
    %5245 = vmatprep.subr.mxu0 0.0
    %5246 = vmatpush1.msra.mxu0 0.0
    %5247 = vmatprep.subr.mxu0 0.0
    %5248 = vmatpush1.msra.mxu0 0.0
    %5249 = vmatprep.subr.mxu0 0.0
    %5250 = vmatpush1.msra.mxu0 0.0
    %5251 = vmatprep.subr.mxu0 0.0
    %5252 = vmatpush1.msra.mxu0 0.0
    %5253 = vmatprep.subr.mxu0 0.0
    %5254 = vmatpush1.msra.mxu0 0.0
    %5255 = vmatprep.subr.mxu0 0.0
    %5256 = vmatpush1.msra.mxu0 0.0
    %5257 = vmatprep.subr.mxu0 0.0
    %5258 = vmatpush1.msra.mxu0 0.0
    %5259 = vmatprep.subr.mxu0 0.0
    %5260 = vmatpush1.msra.mxu0 0.0
    %5261 = vmatprep.subr.mxu0 0.0
    %5262 = vmatpush1.msra.mxu0 0.0
    %5263 = vmatprep.mubr.f32.mxu0 0.0
    %5264 = vmatmul.mubr.f32.gmra.mrb[0].mxu0 %v1683
    %v5265 = vpop.f32.mrb[0].mxu0
    %v5266 = vadd.f32 %v5116, %v5265
    %v5267 = vpop.f32.mrb[0].mxu0
    %5268 = vmatprep.mubr.f32.mxu0 0.0
    %5269 = vmatmul.mubr.f32.gmra.mrb[0].mxu0 %v1686
    %v5270 = vpop.f32.mrb[0].mxu0
    %v5271 = vadd.f32 %v5121, %v5270
    %v5272 = vpop.f32.mrb[0].mxu0
    %5273 = vdwg.mxu0
    %v5274 = vmul.f32 %v5191, 0.5
    %v5275 = vmul.f32 %v5196, 0.5
    %v5276 = vmul.f32 %v5266, 0.5
    %v5277 = vmul.f32 %v5271, 0.5
    %v5278 = vmul.f32 %v5191, 0.70710677
    %v5279 = vmul.f32 %v5196, 0.70710677
    %v5280 = vmul.f32 %v5266, 0.70710677
    %v5281 = vmul.f32 %v5271, 0.70710677
    %v5282 = verf.f32.pop %v5278
    %v5283 = verf.f32.pop %v5279
    %v5284 = verf.f32.pop %v5280
    %v5285 = verf.f32.pop %v5281
    %v5286 = vadd.f32 %v5282, 1.0
    %v5287 = vadd.f32 %v5283, 1.0
    %v5288 = vadd.f32 %v5284, 1.0
    %v5289 = vadd.f32 %v5285, 1.0
    %v5290 = vmul.f32 %v5274, %v5286
    %v5291 = vmul.f32 %v5275, %v5287
    %v5292 = vmul.f32 %v5276, %v5288
    %v5293 = vmul.f32 %v5277, %v5289
    %5294 = vmatprep.subr.mxu0 0.0
    %5295 = vmatpush1.msra.mxu0 %v5290
    %5296 = vmatprep.subr.mxu0 0.0
    %5297 = vmatpush1.msra.mxu0 %v5291
    %5298 = vmatprep.subr.mxu0 0.0
    %5299 = vmatpush1.msra.mxu0 0.0
    %5300 = vmatprep.subr.mxu0 0.0
    %5301 = vmatpush1.msra.mxu0 0.0
    %5302 = vmatprep.subr.mxu0 0.0
    %5303 = vmatpush1.msra.mxu0 0.0
    %5304 = vmatprep.subr.mxu0 0.0
    %5305 = vmatpush1.msra.mxu0 0.0
    %5306 = vmatprep.subr.mxu0 0.0
    %5307 = vmatpush1.msra.mxu0 0.0
    %5308 = vmatprep.subr.mxu0 0.0
    %5309 = vmatpush1.msra.mxu0 0.0
    %5310 = vmatprep.subr.mxu0 0.0
    %5311 = vmatpush1.msra.mxu0 0.0
    %5312 = vmatprep.subr.mxu0 0.0
    %5313 = vmatpush1.msra.mxu0 0.0
    %5314 = vmatprep.subr.mxu0 0.0
    %5315 = vmatpush1.msra.mxu0 0.0
    %5316 = vmatprep.subr.mxu0 0.0
    %5317 = vmatpush1.msra.mxu0 0.0
    %5318 = vmatprep.subr.mxu0 0.0
    %5319 = vmatpush1.msra.mxu0 0.0
    %5320 = vmatprep.subr.mxu0 0.0
    %5321 = vmatpush1.msra.mxu0 0.0
    %5322 = vmatprep.subr.mxu0 0.0
    %5323 = vmatpush1.msra.mxu0 0.0
    %5324 = vmatprep.subr.mxu0 0.0
    %5325 = vmatpush1.msra.mxu0 0.0
    %5326 = vmatprep.subr.mxu0 0.0
    %5327 = vmatpush1.msra.mxu0 0.0
    %5328 = vmatprep.subr.mxu0 0.0
    %5329 = vmatpush1.msra.mxu0 0.0
    %5330 = vmatprep.subr.mxu0 0.0
    %5331 = vmatpush1.msra.mxu0 0.0
    %5332 = vmatprep.subr.mxu0 0.0
    %5333 = vmatpush1.msra.mxu0 0.0
    %5334 = vmatprep.subr.mxu0 0.0
    %5335 = vmatpush1.msra.mxu0 0.0
    %5336 = vmatprep.subr.mxu0 0.0
    %5337 = vmatpush1.msra.mxu0 0.0
    %5338 = vmatprep.subr.mxu0 0.0
    %5339 = vmatpush1.msra.mxu0 0.0
    %5340 = vmatprep.subr.mxu0 0.0
    %5341 = vmatpush1.msra.mxu0 0.0
    %5342 = vmatprep.subr.mxu0 0.0
    %5343 = vmatpush1.msra.mxu0 0.0
    %5344 = vmatprep.subr.mxu0 0.0
    %5345 = vmatpush1.msra.mxu0 0.0
    %5346 = vmatprep.subr.mxu0 0.0
    %5347 = vmatpush1.msra.mxu0 0.0
    %5348 = vmatprep.subr.mxu0 0.0
    %5349 = vmatpush1.msra.mxu0 0.0
    %5350 = vmatprep.subr.mxu0 0.0
    %5351 = vmatpush1.msra.mxu0 0.0
    %5352 = vmatprep.subr.mxu0 0.0
    %5353 = vmatpush1.msra.mxu0 0.0
    %5354 = vmatprep.subr.mxu0 0.0
    %5355 = vmatpush1.msra.mxu0 0.0
    %5356 = vmatprep.subr.mxu0 0.0
    %5357 = vmatpush1.msra.mxu0 0.0
    %5358 = vmatprep.mubr.f32.mxu0 0.0
    %5359 = vmatmul.mubr.f32.gmra.mrb[0].mxu0 %v134
    %v5360 = vpop.f32.mrb[0].mxu0
    %v5361 = vadd.f32 0.0, %v5360
    %v5362 = vpop.f32.mrb[0].mxu0
    %5363 = vdwg.mxu0
    %5364 = vmatprep.subr.mxu0 0.0
    %5365 = vmatpush1.msra.mxu0 %v5292
    %5366 = vmatprep.subr.mxu0 0.0
    %5367 = vmatpush1.msra.mxu0 %v5293
    %5368 = vmatprep.subr.mxu0 0.0
    %5369 = vmatpush1.msra.mxu0 0.0
    %5370 = vmatprep.subr.mxu0 0.0
    %5371 = vmatpush1.msra.mxu0 0.0
    %5372 = vmatprep.subr.mxu0 0.0
    %5373 = vmatpush1.msra.mxu0 0.0
    %5374 = vmatprep.subr.mxu0 0.0
    %5375 = vmatpush1.msra.mxu0 0.0
    %5376 = vmatprep.subr.mxu0 0.0
    %5377 = vmatpush1.msra.mxu0 0.0
    %5378 = vmatprep.subr.mxu0 0.0
    %5379 = vmatpush1.msra.mxu0 0.0
    %5380 = vmatprep.subr.mxu0 0.0
    %5381 = vmatpush1.msra.mxu0 0.0
    %5382 = vmatprep.subr.mxu0 0.0
    %5383 = vmatpush1.msra.mxu0 0.0
    %5384 = vmatprep.subr.mxu0 0.0
    %5385 = vmatpush1.msra.mxu0 0.0
    %5386 = vmatprep.subr.mxu0 0.0
    %5387 = vmatpush1.msra.mxu0 0.0
    %5388 = vmatprep.subr.mxu0 0.0
    %5389 = vmatpush1.msra.mxu0 0.0
    %5390 = vmatprep.subr.mxu0 0.0
    %5391 = vmatpush1.msra.mxu0 0.0
    %5392 = vmatprep.subr.mxu0 0.0
    %5393 = vmatpush1.msra.mxu0 0.0
    %5394 = vmatprep.subr.mxu0 0.0
    %5395 = vmatpush1.msra.mxu0 0.0
    %5396 = vmatprep.subr.mxu0 0.0
    %5397 = vmatpush1.msra.mxu0 0.0
    %5398 = vmatprep.subr.mxu0 0.0
    %5399 = vmatpush1.msra.mxu0 0.0
    %5400 = vmatprep.subr.mxu0 0.0
    %5401 = vmatpush1.msra.mxu0 0.0
    %5402 = vmatprep.subr.mxu0 0.0
    %5403 = vmatpush1.msra.mxu0 0.0
    %5404 = vmatprep.subr.mxu0 0.0
    %5405 = vmatpush1.msra.mxu0 0.0
    %5406 = vmatprep.subr.mxu0 0.0
    %5407 = vmatpush1.msra.mxu0 0.0
    %5408 = vmatprep.subr.mxu0 0.0
    %5409 = vmatpush1.msra.mxu0 0.0
    %5410 = vmatprep.subr.mxu0 0.0
    %5411 = vmatpush1.msra.mxu0 0.0
    %5412 = vmatprep.subr.mxu0 0.0
    %5413 = vmatpush1.msra.mxu0 0.0
    %5414 = vmatprep.subr.mxu0 0.0
    %5415 = vmatpush1.msra.mxu0 0.0
    %5416 = vmatprep.subr.mxu0 0.0
    %5417 = vmatpush1.msra.mxu0 0.0
    %5418 = vmatprep.subr.mxu0 0.0
    %5419 = vmatpush1.msra.mxu0 0.0
    %5420 = vmatprep.subr.mxu0 0.0
    %5421 = vmatpush1.msra.mxu0 0.0
    %5422 = vmatprep.subr.mxu0 0.0
    %5423 = vmatpush1.msra.mxu0 0.0
    %5424 = vmatprep.subr.mxu0 0.0
    %5425 = vmatpush1.msra.mxu0 0.0
    %5426 = vmatprep.subr.mxu0 0.0
    %5427 = vmatpush1.msra.mxu0 0.0
    %5428 = vmatprep.mubr.f32.mxu0 0.0
    %5429 = vmatmul.mubr.f32.gmra.mrb[0].mxu0 %v134
    %v5430 = vpop.f32.mrb[0].mxu0
    %v5431 = vadd.f32 0.0, %v5430
    %v5432 = vpop.f32.mrb[0].mxu0
    %5433 = vdwg.mxu0
    %v5434 = vcombine.high %v5361, 0.0
    %v5436 = vunpack.c.l.s4 1983009808
    %v5437 = vunpack.c.0.s8 %v5436
    %v5438 = vlaneseq
    %v5439 = vshrl.u32 %v5438, 7
    %v5440 = vsub.s32 %v5437, %v5439
    %v5441 = vrot.slane %v5361, %v5440
    %v5443 = vunpack.c.l.s4 1983009808
    %v5444 = vunpack.c.0.s8 %v5443
    %v5445 = vlaneseq
    %v5446 = vshrl.u32 %v5445, 7
    %v5447 = vsub.s32 %v5444, %v5446
    %v5448 = vrot.slane %v5434, %v5447
    %v5449 = vcombine.high %v5431, 0.0
    %v5451 = vunpack.c.l.s4 1983009808
    %v5452 = vunpack.c.0.s8 %v5451
    %v5453 = vlaneseq
    %v5454 = vshrl.u32 %v5453, 7
    %v5455 = vsub.s32 %v5452, %v5454
    %v5456 = vrot.slane %v5431, %v5455
    %v5458 = vunpack.c.l.s4 1983009808
    %v5459 = vunpack.c.0.s8 %v5458
    %v5460 = vlaneseq
    %v5461 = vshrl.u32 %v5460, 7
    %v5462 = vsub.s32 %v5459, %v5461
    %v5463 = vrot.slane %v5449, %v5462
    %v5464 = vcombine.low %v5441, %v5456
    %v5465 = vcombine.high %v5441, %v5456
    %v5467 = vunpack.c.l.s4 1934713408
    %v5468 = vunpack.c.0.s8 %v5467
    %v5469 = vlaneseq
    %v5470 = vshrl.u32 %v5469, 7
    %v5471 = vsub.s32 %v5468, %v5470
    %v5472 = vrot.slane %v5464, %v5471
    %v5474 = vunpack.c.l.s4 1934713408
    %v5475 = vunpack.c.0.s8 %v5474
    %v5476 = vlaneseq
    %v5477 = vshrl.u32 %v5476, 7
    %v5478 = vsub.s32 %v5475, %v5477
    %v5479 = vrot.slane %v5465, %v5478
    %v5480 = vcombine.low %v5448, %v5463
    %v5481 = vcombine.high %v5448, %v5463
    %v5483 = vunpack.c.l.s4 1934713408
    %v5484 = vunpack.c.0.s8 %v5483
    %v5485 = vlaneseq
    %v5486 = vshrl.u32 %v5485, 7
    %v5487 = vsub.s32 %v5484, %v5486
    %v5488 = vrot.slane %v5480, %v5487
    %v5490 = vunpack.c.l.s4 1934713408
    %v5491 = vunpack.c.0.s8 %v5490
    %v5492 = vlaneseq
    %v5493 = vshrl.u32 %v5492, 7
    %v5494 = vsub.s32 %v5491, %v5493
    %v5495 = vrot.slane %v5481, %v5494
    %v5496 = vcombine.high %v5472, 0.0
    %v5497 = vcombine.high %v5479, 0.0
    %v5498 = vcombine.high %v5488, 0.0
    %v5499 = vcombine.high %v5495, 0.0
    %s5500 = scalar_lea.vmem [#allocation3], 384
    %v5501 = vld [vmem:[%s5500] sm:$0xff]
    %v5502 = vld [vmem:[%s5500 + $0x8] sm:$0xff]
    %v5503 = vld [vmem:[%s5500 + $0x10] sm:$0xff]
    %v5504 = vld [vmem:[%s5500 + $0x18] sm:$0xff]
    %v5505 = vld [vmem:[%s5500 + $0x20] sm:$0xff]
    %v5506 = vld [vmem:[%s5500 + $0x28] sm:$0xff]
    %v5507 = vld [vmem:[%s5500 + $0x30] sm:$0xff]
    %v5508 = vld [vmem:[%s5500 + $0x38] sm:$0xff]
    %v5509 = vld [vmem:[%s5500 + $0x40] sm:$0xff]
    %v5510 = vld [vmem:[%s5500 + $0x48] sm:$0xff]
    %v5511 = vld [vmem:[%s5500 + $0x50] sm:$0xff]
    %v5512 = vld [vmem:[%s5500 + $0x58] sm:$0xff]
    %v5513 = vld [vmem:[%s5500 + $0x60] sm:$0xff]
    %v5514 = vld [vmem:[%s5500 + $0x68] sm:$0xff]
    %v5515 = vld [vmem:[%s5500 + $0x70] sm:$0xff]
    %v5516 = vld [vmem:[%s5500 + $0x78] sm:$0xff]
    %s5517 = scalar_lea.vmem [#allocation6], 384
    %v5518 = vld [vmem:[%s5517] sm:$0xff]
    %v5519 = vld [vmem:[%s5517 + $0x8] sm:$0xff]
    %v5520 = vld [vmem:[%s5517 + $0x10] sm:$0xff]
    %v5521 = vld [vmem:[%s5517 + $0x18] sm:$0xff]
    %v5522 = vld [vmem:[%s5517 + $0x20] sm:$0xff]
    %v5523 = vld [vmem:[%s5517 + $0x28] sm:$0xff]
    %v5524 = vld [vmem:[%s5517 + $0x30] sm:$0xff]
    %v5525 = vld [vmem:[%s5517 + $0x38] sm:$0xff]
    %v5526 = vld [vmem:[%s5517 + $0x40] sm:$0xff]
    %v5527 = vld [vmem:[%s5517 + $0x48] sm:$0xff]
    %v5528 = vld [vmem:[%s5517 + $0x50] sm:$0xff]
    %v5529 = vld [vmem:[%s5517 + $0x58] sm:$0xff]
    %v5530 = vld [vmem:[%s5517 + $0x60] sm:$0xff]
    %v5531 = vld [vmem:[%s5517 + $0x68] sm:$0xff]
    %v5532 = vld [vmem:[%s5517 + $0x70] sm:$0xff]
    %v5533 = vld [vmem:[%s5517 + $0x78] sm:$0xff]
    %v5535 = vsel %vm374, %v5472, 0
    %5537 = vmatprep.subr.mxu0 0.0
    %5538 = vmatpush1.msra.mxu0 %v5501
    %5539 = vmatprep.subr.mxu0 0.0
    %5540 = vmatpush1.msra.mxu0 %v5502
    %5541 = vmatprep.subr.mxu0 0.0
    %5542 = vmatpush1.msra.mxu0 %v5503
    %5543 = vmatprep.subr.mxu0 0.0
    %5544 = vmatpush1.msra.mxu0 %v5504
    %5545 = vmatprep.subr.mxu0 0.0
    %5546 = vmatpush1.msra.mxu0 0.0
    %5547 = vmatprep.subr.mxu0 0.0
    %5548 = vmatpush1.msra.mxu0 0.0
    %5549 = vmatprep.subr.mxu0 0.0
    %5550 = vmatpush1.msra.mxu0 0.0
    %5551 = vmatprep.subr.mxu0 0.0
    %5552 = vmatpush1.msra.mxu0 0.0
    %5553 = vmatprep.subr.mxu0 0.0
    %5554 = vmatpush1.msra.mxu0 0.0
    %5555 = vmatprep.subr.mxu0 0.0
    %5556 = vmatpush1.msra.mxu0 0.0
    %5557 = vmatprep.subr.mxu0 0.0
    %5558 = vmatpush1.msra.mxu0 0.0
    %5559 = vmatprep.subr.mxu0 0.0
    %5560 = vmatpush1.msra.mxu0 0.0
    %5561 = vmatprep.subr.mxu0 0.0
    %5562 = vmatpush1.msra.mxu0 0.0
    %5563 = vmatprep.subr.mxu0 0.0
    %5564 = vmatpush1.msra.mxu0 0.0
    %5565 = vmatprep.subr.mxu0 0.0
    %5566 = vmatpush1.msra.mxu0 0.0
    %5567 = vmatprep.subr.mxu0 0.0
    %5568 = vmatpush1.msra.mxu0 0.0
    %5569 = vmatprep.subr.mxu0 0.0
    %5570 = vmatpush1.msra.mxu0 0.0
    %5571 = vmatprep.subr.mxu0 0.0
    %5572 = vmatpush1.msra.mxu0 0.0
    %5573 = vmatprep.subr.mxu0 0.0
    %5574 = vmatpush1.msra.mxu0 0.0
    %5575 = vmatprep.subr.mxu0 0.0
    %5576 = vmatpush1.msra.mxu0 0.0
    %5577 = vmatprep.subr.mxu0 0.0
    %5578 = vmatpush1.msra.mxu0 0.0
    %5579 = vmatprep.subr.mxu0 0.0
    %5580 = vmatpush1.msra.mxu0 0.0
    %5581 = vmatprep.subr.mxu0 0.0
    %5582 = vmatpush1.msra.mxu0 0.0
    %5583 = vmatprep.subr.mxu0 0.0
    %5584 = vmatpush1.msra.mxu0 0.0
    %5585 = vmatprep.subr.mxu0 0.0
    %5586 = vmatpush1.msra.mxu0 0.0
    %5587 = vmatprep.subr.mxu0 0.0
    %5588 = vmatpush1.msra.mxu0 0.0
    %5589 = vmatprep.subr.mxu0 0.0
    %5590 = vmatpush1.msra.mxu0 0.0
    %5591 = vmatprep.subr.mxu0 0.0
    %5592 = vmatpush1.msra.mxu0 0.0
    %5593 = vmatprep.subr.mxu0 0.0
    %5594 = vmatpush1.msra.mxu0 0.0
    %5595 = vmatprep.subr.mxu0 0.0
    %5596 = vmatpush1.msra.mxu0 0.0
    %5597 = vmatprep.subr.mxu0 0.0
    %5598 = vmatpush1.msra.mxu0 0.0
    %5599 = vmatprep.subr.mxu0 0.0
    %5600 = vmatpush1.msra.mxu0 0.0
    %5601 = vmatprep.mubr.f32.mxu0 0.0
    %5602 = vmatmul.mubr.f32.gmra.mrb[0].mxu0 %v5535
    %v5603 = vpop.f32.mrb[0].mxu0
    %v5604 = vadd.f32 0.0, %v5603
    %v5605 = vpop.f32.mrb[0].mxu0
    %5606 = vdwg.mxu0
    %v5608 = vsel %vm374, %v5496, 0
    %5610 = vmatprep.subr.mxu0 0.0
    %5611 = vmatpush1.msra.mxu0 %v5505
    %5612 = vmatprep.subr.mxu0 0.0
    %5613 = vmatpush1.msra.mxu0 %v5506
    %5614 = vmatprep.subr.mxu0 0.0
    %5615 = vmatpush1.msra.mxu0 %v5507
    %5616 = vmatprep.subr.mxu0 0.0
    %5617 = vmatpush1.msra.mxu0 %v5508
    %5618 = vmatprep.subr.mxu0 0.0
    %5619 = vmatpush1.msra.mxu0 0.0
    %5620 = vmatprep.subr.mxu0 0.0
    %5621 = vmatpush1.msra.mxu0 0.0
    %5622 = vmatprep.subr.mxu0 0.0
    %5623 = vmatpush1.msra.mxu0 0.0
    %5624 = vmatprep.subr.mxu0 0.0
    %5625 = vmatpush1.msra.mxu0 0.0
    %5626 = vmatprep.subr.mxu0 0.0
    %5627 = vmatpush1.msra.mxu0 0.0
    %5628 = vmatprep.subr.mxu0 0.0
    %5629 = vmatpush1.msra.mxu0 0.0
    %5630 = vmatprep.subr.mxu0 0.0
    %5631 = vmatpush1.msra.mxu0 0.0
    %5632 = vmatprep.subr.mxu0 0.0
    %5633 = vmatpush1.msra.mxu0 0.0
    %5634 = vmatprep.subr.mxu0 0.0
    %5635 = vmatpush1.msra.mxu0 0.0
    %5636 = vmatprep.subr.mxu0 0.0
    %5637 = vmatpush1.msra.mxu0 0.0
    %5638 = vmatprep.subr.mxu0 0.0
    %5639 = vmatpush1.msra.mxu0 0.0
    %5640 = vmatprep.subr.mxu0 0.0
    %5641 = vmatpush1.msra.mxu0 0.0
    %5642 = vmatprep.subr.mxu0 0.0
    %5643 = vmatpush1.msra.mxu0 0.0
    %5644 = vmatprep.subr.mxu0 0.0
    %5645 = vmatpush1.msra.mxu0 0.0
    %5646 = vmatprep.subr.mxu0 0.0
    %5647 = vmatpush1.msra.mxu0 0.0
    %5648 = vmatprep.subr.mxu0 0.0
    %5649 = vmatpush1.msra.mxu0 0.0
    %5650 = vmatprep.subr.mxu0 0.0
    %5651 = vmatpush1.msra.mxu0 0.0
    %5652 = vmatprep.subr.mxu0 0.0
    %5653 = vmatpush1.msra.mxu0 0.0
    %5654 = vmatprep.subr.mxu0 0.0
    %5655 = vmatpush1.msra.mxu0 0.0
    %5656 = vmatprep.subr.mxu0 0.0
    %5657 = vmatpush1.msra.mxu0 0.0
    %5658 = vmatprep.subr.mxu0 0.0
    %5659 = vmatpush1.msra.mxu0 0.0
    %5660 = vmatprep.subr.mxu0 0.0
    %5661 = vmatpush1.msra.mxu0 0.0
    %5662 = vmatprep.subr.mxu0 0.0
    %5663 = vmatpush1.msra.mxu0 0.0
    %5664 = vmatprep.subr.mxu0 0.0
    %5665 = vmatpush1.msra.mxu0 0.0
    %5666 = vmatprep.subr.mxu0 0.0
    %5667 = vmatpush1.msra.mxu0 0.0
    %5668 = vmatprep.subr.mxu0 0.0
    %5669 = vmatpush1.msra.mxu0 0.0
    %5670 = vmatprep.subr.mxu0 0.0
    %5671 = vmatpush1.msra.mxu0 0.0
    %5672 = vmatprep.subr.mxu0 0.0
    %5673 = vmatpush1.msra.mxu0 0.0
    %5674 = vmatprep.mubr.f32.mxu0 0.0
    %5675 = vmatmul.mubr.f32.gmra.mrb[0].mxu0 %v5608
    %v5676 = vpop.f32.mrb[0].mxu0
    %v5677 = vadd.f32 0.0, %v5676
    %v5678 = vpop.f32.mrb[0].mxu0
    %5679 = vdwg.mxu0
    %v5681 = vsel %vm374, %v5479, 0
    %5683 = vmatprep.subr.mxu0 0.0
    %5684 = vmatpush1.msra.mxu0 %v5509
    %5685 = vmatprep.subr.mxu0 0.0
    %5686 = vmatpush1.msra.mxu0 %v5510
    %5687 = vmatprep.subr.mxu0 0.0
    %5688 = vmatpush1.msra.mxu0 %v5511
    %5689 = vmatprep.subr.mxu0 0.0
    %5690 = vmatpush1.msra.mxu0 %v5512
    %5691 = vmatprep.subr.mxu0 0.0
    %5692 = vmatpush1.msra.mxu0 0.0
    %5693 = vmatprep.subr.mxu0 0.0
    %5694 = vmatpush1.msra.mxu0 0.0
    %5695 = vmatprep.subr.mxu0 0.0
    %5696 = vmatpush1.msra.mxu0 0.0
    %5697 = vmatprep.subr.mxu0 0.0
    %5698 = vmatpush1.msra.mxu0 0.0
    %5699 = vmatprep.subr.mxu0 0.0
    %5700 = vmatpush1.msra.mxu0 0.0
    %5701 = vmatprep.subr.mxu0 0.0
    %5702 = vmatpush1.msra.mxu0 0.0
    %5703 = vmatprep.subr.mxu0 0.0
    %5704 = vmatpush1.msra.mxu0 0.0
    %5705 = vmatprep.subr.mxu0 0.0
    %5706 = vmatpush1.msra.mxu0 0.0
    %5707 = vmatprep.subr.mxu0 0.0
    %5708 = vmatpush1.msra.mxu0 0.0
    %5709 = vmatprep.subr.mxu0 0.0
    %5710 = vmatpush1.msra.mxu0 0.0
    %5711 = vmatprep.subr.mxu0 0.0
    %5712 = vmatpush1.msra.mxu0 0.0
    %5713 = vmatprep.subr.mxu0 0.0
    %5714 = vmatpush1.msra.mxu0 0.0
    %5715 = vmatprep.subr.mxu0 0.0
    %5716 = vmatpush1.msra.mxu0 0.0
    %5717 = vmatprep.subr.mxu0 0.0
    %5718 = vmatpush1.msra.mxu0 0.0
    %5719 = vmatprep.subr.mxu0 0.0
    %5720 = vmatpush1.msra.mxu0 0.0
    %5721 = vmatprep.subr.mxu0 0.0
    %5722 = vmatpush1.msra.mxu0 0.0
    %5723 = vmatprep.subr.mxu0 0.0
    %5724 = vmatpush1.msra.mxu0 0.0
    %5725 = vmatprep.subr.mxu0 0.0
    %5726 = vmatpush1.msra.mxu0 0.0
    %5727 = vmatprep.subr.mxu0 0.0
    %5728 = vmatpush1.msra.mxu0 0.0
    %5729 = vmatprep.subr.mxu0 0.0
    %5730 = vmatpush1.msra.mxu0 0.0
    %5731 = vmatprep.subr.mxu0 0.0
    %5732 = vmatpush1.msra.mxu0 0.0
    %5733 = vmatprep.subr.mxu0 0.0
    %5734 = vmatpush1.msra.mxu0 0.0
    %5735 = vmatprep.subr.mxu0 0.0
    %5736 = vmatpush1.msra.mxu0 0.0
    %5737 = vmatprep.subr.mxu0 0.0
    %5738 = vmatpush1.msra.mxu0 0.0
    %5739 = vmatprep.subr.mxu0 0.0
    %5740 = vmatpush1.msra.mxu0 0.0
    %5741 = vmatprep.subr.mxu0 0.0
    %5742 = vmatpush1.msra.mxu0 0.0
    %5743 = vmatprep.subr.mxu0 0.0
    %5744 = vmatpush1.msra.mxu0 0.0
    %5745 = vmatprep.subr.mxu0 0.0
    %5746 = vmatpush1.msra.mxu0 0.0
    %5747 = vmatprep.mubr.f32.mxu0 0.0
    %5748 = vmatmul.mubr.f32.gmra.mrb[0].mxu0 %v5681
    %v5749 = vpop.f32.mrb[0].mxu0
    %v5750 = vadd.f32 0.0, %v5749
    %v5751 = vpop.f32.mrb[0].mxu0
    %5752 = vdwg.mxu0
    %v5754 = vsel %vm374, %v5497, 0
    %5756 = vmatprep.subr.mxu0 0.0
    %5757 = vmatpush1.msra.mxu0 %v5513
    %5758 = vmatprep.subr.mxu0 0.0
    %5759 = vmatpush1.msra.mxu0 %v5514
    %5760 = vmatprep.subr.mxu0 0.0
    %5761 = vmatpush1.msra.mxu0 %v5515
    %5762 = vmatprep.subr.mxu0 0.0
    %5763 = vmatpush1.msra.mxu0 %v5516
    %5764 = vmatprep.subr.mxu0 0.0
    %5765 = vmatpush1.msra.mxu0 0.0
    %5766 = vmatprep.subr.mxu0 0.0
    %5767 = vmatpush1.msra.mxu0 0.0
    %5768 = vmatprep.subr.mxu0 0.0
    %5769 = vmatpush1.msra.mxu0 0.0
    %5770 = vmatprep.subr.mxu0 0.0
    %5771 = vmatpush1.msra.mxu0 0.0
    %5772 = vmatprep.subr.mxu0 0.0
    %5773 = vmatpush1.msra.mxu0 0.0
    %5774 = vmatprep.subr.mxu0 0.0
    %5775 = vmatpush1.msra.mxu0 0.0
    %5776 = vmatprep.subr.mxu0 0.0
    %5777 = vmatpush1.msra.mxu0 0.0
    %5778 = vmatprep.subr.mxu0 0.0
    %5779 = vmatpush1.msra.mxu0 0.0
    %5780 = vmatprep.subr.mxu0 0.0
    %5781 = vmatpush1.msra.mxu0 0.0
    %5782 = vmatprep.subr.mxu0 0.0
    %5783 = vmatpush1.msra.mxu0 0.0
    %5784 = vmatprep.subr.mxu0 0.0
    %5785 = vmatpush1.msra.mxu0 0.0
    %5786 = vmatprep.subr.mxu0 0.0
    %5787 = vmatpush1.msra.mxu0 0.0
    %5788 = vmatprep.subr.mxu0 0.0
    %5789 = vmatpush1.msra.mxu0 0.0
    %5790 = vmatprep.subr.mxu0 0.0
    %5791 = vmatpush1.msra.mxu0 0.0
    %5792 = vmatprep.subr.mxu0 0.0
    %5793 = vmatpush1.msra.mxu0 0.0
    %5794 = vmatprep.subr.mxu0 0.0
    %5795 = vmatpush1.msra.mxu0 0.0
    %5796 = vmatprep.subr.mxu0 0.0
    %5797 = vmatpush1.msra.mxu0 0.0
    %5798 = vmatprep.subr.mxu0 0.0
    %5799 = vmatpush1.msra.mxu0 0.0
    %5800 = vmatprep.subr.mxu0 0.0
    %5801 = vmatpush1.msra.mxu0 0.0
    %5802 = vmatprep.subr.mxu0 0.0
    %5803 = vmatpush1.msra.mxu0 0.0
    %5804 = vmatprep.subr.mxu0 0.0
    %5805 = vmatpush1.msra.mxu0 0.0
    %5806 = vmatprep.subr.mxu0 0.0
    %5807 = vmatpush1.msra.mxu0 0.0
    %5808 = vmatprep.subr.mxu0 0.0
    %5809 = vmatpush1.msra.mxu0 0.0
    %5810 = vmatprep.subr.mxu0 0.0
    %5811 = vmatpush1.msra.mxu0 0.0
    %5812 = vmatprep.subr.mxu0 0.0
    %5813 = vmatpush1.msra.mxu0 0.0
    %5814 = vmatprep.subr.mxu0 0.0
    %5815 = vmatpush1.msra.mxu0 0.0
    %5816 = vmatprep.subr.mxu0 0.0
    %5817 = vmatpush1.msra.mxu0 0.0
    %5818 = vmatprep.subr.mxu0 0.0
    %5819 = vmatpush1.msra.mxu0 0.0
    %5820 = vmatprep.mubr.f32.mxu0 0.0
    %5821 = vmatmul.mubr.f32.gmra.mrb[0].mxu0 %v5754
    %v5822 = vpop.f32.mrb[0].mxu0
    %v5823 = vadd.f32 0.0, %v5822
    %v5824 = vpop.f32.mrb[0].mxu0
    %5825 = vdwg.mxu0
    %v5827 = vsel %vm374, %v5488, 0
    %5829 = vmatprep.subr.mxu0 0.0
    %5830 = vmatpush1.msra.mxu0 %v5518
    %5831 = vmatprep.subr.mxu0 0.0
    %5832 = vmatpush1.msra.mxu0 %v5519
    %5833 = vmatprep.subr.mxu0 0.0
    %5834 = vmatpush1.msra.mxu0 %v5520
    %5835 = vmatprep.subr.mxu0 0.0
    %5836 = vmatpush1.msra.mxu0 %v5521
    %5837 = vmatprep.subr.mxu0 0.0
    %5838 = vmatpush1.msra.mxu0 0.0
    %5839 = vmatprep.subr.mxu0 0.0
    %5840 = vmatpush1.msra.mxu0 0.0
    %5841 = vmatprep.subr.mxu0 0.0
    %5842 = vmatpush1.msra.mxu0 0.0
    %5843 = vmatprep.subr.mxu0 0.0
    %5844 = vmatpush1.msra.mxu0 0.0
    %5845 = vmatprep.subr.mxu0 0.0
    %5846 = vmatpush1.msra.mxu0 0.0
    %5847 = vmatprep.subr.mxu0 0.0
    %5848 = vmatpush1.msra.mxu0 0.0
    %5849 = vmatprep.subr.mxu0 0.0
    %5850 = vmatpush1.msra.mxu0 0.0
    %5851 = vmatprep.subr.mxu0 0.0
    %5852 = vmatpush1.msra.mxu0 0.0
    %5853 = vmatprep.subr.mxu0 0.0
    %5854 = vmatpush1.msra.mxu0 0.0
    %5855 = vmatprep.subr.mxu0 0.0
    %5856 = vmatpush1.msra.mxu0 0.0
    %5857 = vmatprep.subr.mxu0 0.0
    %5858 = vmatpush1.msra.mxu0 0.0
    %5859 = vmatprep.subr.mxu0 0.0
    %5860 = vmatpush1.msra.mxu0 0.0
    %5861 = vmatprep.subr.mxu0 0.0
    %5862 = vmatpush1.msra.mxu0 0.0
    %5863 = vmatprep.subr.mxu0 0.0
    %5864 = vmatpush1.msra.mxu0 0.0
    %5865 = vmatprep.subr.mxu0 0.0
    %5866 = vmatpush1.msra.mxu0 0.0
    %5867 = vmatprep.subr.mxu0 0.0
    %5868 = vmatpush1.msra.mxu0 0.0
    %5869 = vmatprep.subr.mxu0 0.0
    %5870 = vmatpush1.msra.mxu0 0.0
    %5871 = vmatprep.subr.mxu0 0.0
    %5872 = vmatpush1.msra.mxu0 0.0
    %5873 = vmatprep.subr.mxu0 0.0
    %5874 = vmatpush1.msra.mxu0 0.0
    %5875 = vmatprep.subr.mxu0 0.0
    %5876 = vmatpush1.msra.mxu0 0.0
    %5877 = vmatprep.subr.mxu0 0.0
    %5878 = vmatpush1.msra.mxu0 0.0
    %5879 = vmatprep.subr.mxu0 0.0
    %5880 = vmatpush1.msra.mxu0 0.0
    %5881 = vmatprep.subr.mxu0 0.0
    %5882 = vmatpush1.msra.mxu0 0.0
    %5883 = vmatprep.subr.mxu0 0.0
    %5884 = vmatpush1.msra.mxu0 0.0
    %5885 = vmatprep.subr.mxu0 0.0
    %5886 = vmatpush1.msra.mxu0 0.0
    %5887 = vmatprep.subr.mxu0 0.0
    %5888 = vmatpush1.msra.mxu0 0.0
    %5889 = vmatprep.subr.mxu0 0.0
    %5890 = vmatpush1.msra.mxu0 0.0
    %5891 = vmatprep.subr.mxu0 0.0
    %5892 = vmatpush1.msra.mxu0 0.0
    %5893 = vmatprep.mubr.f32.mxu0 0.0
    %5894 = vmatmul.mubr.f32.gmra.mrb[0].mxu0 %v5827
    %v5895 = vpop.f32.mrb[0].mxu0
    %v5896 = vadd.f32 0.0, %v5895
    %v5897 = vpop.f32.mrb[0].mxu0
    %5898 = vdwg.mxu0
    %v5900 = vsel %vm374, %v5498, 0
    %5902 = vmatprep.subr.mxu0 0.0
    %5903 = vmatpush1.msra.mxu0 %v5522
    %5904 = vmatprep.subr.mxu0 0.0
    %5905 = vmatpush1.msra.mxu0 %v5523
    %5906 = vmatprep.subr.mxu0 0.0
    %5907 = vmatpush1.msra.mxu0 %v5524
    %5908 = vmatprep.subr.mxu0 0.0
    %5909 = vmatpush1.msra.mxu0 %v5525
    %5910 = vmatprep.subr.mxu0 0.0
    %5911 = vmatpush1.msra.mxu0 0.0
    %5912 = vmatprep.subr.mxu0 0.0
    %5913 = vmatpush1.msra.mxu0 0.0
    %5914 = vmatprep.subr.mxu0 0.0
    %5915 = vmatpush1.msra.mxu0 0.0
    %5916 = vmatprep.subr.mxu0 0.0
    %5917 = vmatpush1.msra.mxu0 0.0
    %5918 = vmatprep.subr.mxu0 0.0
    %5919 = vmatpush1.msra.mxu0 0.0
    %5920 = vmatprep.subr.mxu0 0.0
    %5921 = vmatpush1.msra.mxu0 0.0
    %5922 = vmatprep.subr.mxu0 0.0
    %5923 = vmatpush1.msra.mxu0 0.0
    %5924 = vmatprep.subr.mxu0 0.0
    %5925 = vmatpush1.msra.mxu0 0.0
    %5926 = vmatprep.subr.mxu0 0.0
    %5927 = vmatpush1.msra.mxu0 0.0
    %5928 = vmatprep.subr.mxu0 0.0
    %5929 = vmatpush1.msra.mxu0 0.0
    %5930 = vmatprep.subr.mxu0 0.0
    %5931 = vmatpush1.msra.mxu0 0.0
    %5932 = vmatprep.subr.mxu0 0.0
    %5933 = vmatpush1.msra.mxu0 0.0
    %5934 = vmatprep.subr.mxu0 0.0
    %5935 = vmatpush1.msra.mxu0 0.0
    %5936 = vmatprep.subr.mxu0 0.0
    %5937 = vmatpush1.msra.mxu0 0.0
    %5938 = vmatprep.subr.mxu0 0.0
    %5939 = vmatpush1.msra.mxu0 0.0
    %5940 = vmatprep.subr.mxu0 0.0
    %5941 = vmatpush1.msra.mxu0 0.0
    %5942 = vmatprep.subr.mxu0 0.0
    %5943 = vmatpush1.msra.mxu0 0.0
    %5944 = vmatprep.subr.mxu0 0.0
    %5945 = vmatpush1.msra.mxu0 0.0
    %5946 = vmatprep.subr.mxu0 0.0
    %5947 = vmatpush1.msra.mxu0 0.0
    %5948 = vmatprep.subr.mxu0 0.0
    %5949 = vmatpush1.msra.mxu0 0.0
    %5950 = vmatprep.subr.mxu0 0.0
    %5951 = vmatpush1.msra.mxu0 0.0
    %5952 = vmatprep.subr.mxu0 0.0
    %5953 = vmatpush1.msra.mxu0 0.0
    %5954 = vmatprep.subr.mxu0 0.0
    %5955 = vmatpush1.msra.mxu0 0.0
    %5956 = vmatprep.subr.mxu0 0.0
    %5957 = vmatpush1.msra.mxu0 0.0
    %5958 = vmatprep.subr.mxu0 0.0
    %5959 = vmatpush1.msra.mxu0 0.0
    %5960 = vmatprep.subr.mxu0 0.0
    %5961 = vmatpush1.msra.mxu0 0.0
    %5962 = vmatprep.subr.mxu0 0.0
    %5963 = vmatpush1.msra.mxu0 0.0
    %5964 = vmatprep.subr.mxu0 0.0
    %5965 = vmatpush1.msra.mxu0 0.0
    %5966 = vmatprep.mubr.f32.mxu0 0.0
    %5967 = vmatmul.mubr.f32.gmra.mrb[0].mxu0 %v5900
    %v5968 = vpop.f32.mrb[0].mxu0
    %v5969 = vadd.f32 0.0, %v5968
    %v5970 = vpop.f32.mrb[0].mxu0
    %5971 = vdwg.mxu0
    %v5973 = vsel %vm374, %v5495, 0
    %5975 = vmatprep.subr.mxu0 0.0
    %5976 = vmatpush1.msra.mxu0 %v5526
    %5977 = vmatprep.subr.mxu0 0.0
    %5978 = vmatpush1.msra.mxu0 %v5527
    %5979 = vmatprep.subr.mxu0 0.0
    %5980 = vmatpush1.msra.mxu0 %v5528
    %5981 = vmatprep.subr.mxu0 0.0
    %5982 = vmatpush1.msra.mxu0 %v5529
    %5983 = vmatprep.subr.mxu0 0.0
    %5984 = vmatpush1.msra.mxu0 0.0
    %5985 = vmatprep.subr.mxu0 0.0
    %5986 = vmatpush1.msra.mxu0 0.0
    %5987 = vmatprep.subr.mxu0 0.0
    %5988 = vmatpush1.msra.mxu0 0.0
    %5989 = vmatprep.subr.mxu0 0.0
    %5990 = vmatpush1.msra.mxu0 0.0
    %5991 = vmatprep.subr.mxu0 0.0
    %5992 = vmatpush1.msra.mxu0 0.0
    %5993 = vmatprep.subr.mxu0 0.0
    %5994 = vmatpush1.msra.mxu0 0.0
    %5995 = vmatprep.subr.mxu0 0.0
    %5996 = vmatpush1.msra.mxu0 0.0
    %5997 = vmatprep.subr.mxu0 0.0
    %5998 = vmatpush1.msra.mxu0 0.0
    %5999 = vmatprep.subr.mxu0 0.0
    %6000 = vmatpush1.msra.mxu0 0.0
    %6001 = vmatprep.subr.mxu0 0.0
    %6002 = vmatpush1.msra.mxu0 0.0
    %6003 = vmatprep.subr.mxu0 0.0
    %6004 = vmatpush1.msra.mxu0 0.0
    %6005 = vmatprep.subr.mxu0 0.0
    %6006 = vmatpush1.msra.mxu0 0.0
    %6007 = vmatprep.subr.mxu0 0.0
    %6008 = vmatpush1.msra.mxu0 0.0
    %6009 = vmatprep.subr.mxu0 0.0
    %6010 = vmatpush1.msra.mxu0 0.0
    %6011 = vmatprep.subr.mxu0 0.0
    %6012 = vmatpush1.msra.mxu0 0.0
    %6013 = vmatprep.subr.mxu0 0.0
    %6014 = vmatpush1.msra.mxu0 0.0
    %6015 = vmatprep.subr.mxu0 0.0
    %6016 = vmatpush1.msra.mxu0 0.0
    %6017 = vmatprep.subr.mxu0 0.0
    %6018 = vmatpush1.msra.mxu0 0.0
    %6019 = vmatprep.subr.mxu0 0.0
    %6020 = vmatpush1.msra.mxu0 0.0
    %6021 = vmatprep.subr.mxu0 0.0
    %6022 = vmatpush1.msra.mxu0 0.0
    %6023 = vmatprep.subr.mxu0 0.0
    %6024 = vmatpush1.msra.mxu0 0.0
    %6025 = vmatprep.subr.mxu0 0.0
    %6026 = vmatpush1.msra.mxu0 0.0
    %6027 = vmatprep.subr.mxu0 0.0
    %6028 = vmatpush1.msra.mxu0 0.0
    %6029 = vmatprep.subr.mxu0 0.0
    %6030 = vmatpush1.msra.mxu0 0.0
    %6031 = vmatprep.subr.mxu0 0.0
    %6032 = vmatpush1.msra.mxu0 0.0
    %6033 = vmatprep.subr.mxu0 0.0
    %6034 = vmatpush1.msra.mxu0 0.0
    %6035 = vmatprep.subr.mxu0 0.0
    %6036 = vmatpush1.msra.mxu0 0.0
    %6037 = vmatprep.subr.mxu0 0.0
    %6038 = vmatpush1.msra.mxu0 0.0
    %6039 = vmatprep.mubr.f32.mxu0 0.0
    %6040 = vmatmul.mubr.f32.gmra.mrb[0].mxu0 %v5973
    %v6041 = vpop.f32.mrb[0].mxu0
    %v6042 = vadd.f32 0.0, %v6041
    %v6043 = vpop.f32.mrb[0].mxu0
    %6044 = vdwg.mxu0
    %v6046 = vsel %vm374, %v5499, 0
    %6048 = vmatprep.subr.mxu0 0.0
    %6049 = vmatpush1.msra.mxu0 %v5530
    %6050 = vmatprep.subr.mxu0 0.0
    %6051 = vmatpush1.msra.mxu0 %v5531
    %6052 = vmatprep.subr.mxu0 0.0
    %6053 = vmatpush1.msra.mxu0 %v5532
    %6054 = vmatprep.subr.mxu0 0.0
    %6055 = vmatpush1.msra.mxu0 %v5533
    %6056 = vmatprep.subr.mxu0 0.0
    %6057 = vmatpush1.msra.mxu0 0.0
    %6058 = vmatprep.subr.mxu0 0.0
    %6059 = vmatpush1.msra.mxu0 0.0
    %6060 = vmatprep.subr.mxu0 0.0
    %6061 = vmatpush1.msra.mxu0 0.0
    %6062 = vmatprep.subr.mxu0 0.0
    %6063 = vmatpush1.msra.mxu0 0.0
    %6064 = vmatprep.subr.mxu0 0.0
    %6065 = vmatpush1.msra.mxu0 0.0
    %6066 = vmatprep.subr.mxu0 0.0
    %6067 = vmatpush1.msra.mxu0 0.0
    %6068 = vmatprep.subr.mxu0 0.0
    %6069 = vmatpush1.msra.mxu0 0.0
    %6070 = vmatprep.subr.mxu0 0.0
    %6071 = vmatpush1.msra.mxu0 0.0
    %6072 = vmatprep.subr.mxu0 0.0
    %6073 = vmatpush1.msra.mxu0 0.0
    %6074 = vmatprep.subr.mxu0 0.0
    %6075 = vmatpush1.msra.mxu0 0.0
    %6076 = vmatprep.subr.mxu0 0.0
    %6077 = vmatpush1.msra.mxu0 0.0
    %6078 = vmatprep.subr.mxu0 0.0
    %6079 = vmatpush1.msra.mxu0 0.0
    %6080 = vmatprep.subr.mxu0 0.0
    %6081 = vmatpush1.msra.mxu0 0.0
    %6082 = vmatprep.subr.mxu0 0.0
    %6083 = vmatpush1.msra.mxu0 0.0
    %6084 = vmatprep.subr.mxu0 0.0
    %6085 = vmatpush1.msra.mxu0 0.0
    %6086 = vmatprep.subr.mxu0 0.0
    %6087 = vmatpush1.msra.mxu0 0.0
    %6088 = vmatprep.subr.mxu0 0.0
    %6089 = vmatpush1.msra.mxu0 0.0
    %6090 = vmatprep.subr.mxu0 0.0
    %6091 = vmatpush1.msra.mxu0 0.0
    %6092 = vmatprep.subr.mxu0 0.0
    %6093 = vmatpush1.msra.mxu0 0.0
    %6094 = vmatprep.subr.mxu0 0.0
    %6095 = vmatpush1.msra.mxu0 0.0
    %6096 = vmatprep.subr.mxu0 0.0
    %6097 = vmatpush1.msra.mxu0 0.0
    %6098 = vmatprep.subr.mxu0 0.0
    %6099 = vmatpush1.msra.mxu0 0.0
    %6100 = vmatprep.subr.mxu0 0.0
    %6101 = vmatpush1.msra.mxu0 0.0
    %6102 = vmatprep.subr.mxu0 0.0
    %6103 = vmatpush1.msra.mxu0 0.0
    %6104 = vmatprep.subr.mxu0 0.0
    %6105 = vmatpush1.msra.mxu0 0.0
    %6106 = vmatprep.subr.mxu0 0.0
    %6107 = vmatpush1.msra.mxu0 0.0
    %6108 = vmatprep.subr.mxu0 0.0
    %6109 = vmatpush1.msra.mxu0 0.0
    %6110 = vmatprep.subr.mxu0 0.0
    %6111 = vmatpush1.msra.mxu0 0.0
    %6112 = vmatprep.mubr.f32.mxu0 0.0
    %6113 = vmatmul.mubr.f32.gmra.mrb[0].mxu0 %v6046
    %v6114 = vpop.f32.mrb[0].mxu0
    %v6115 = vadd.f32 0.0, %v6114
    %v6116 = vpop.f32.mrb[0].mxu0
    %6117 = vdwg.mxu0
    %v6118 = vsub.f32 %v5604, %v5896
    %v6119 = vsub.f32 %v5677, %v5969
    %v6120 = vsub.f32 %v5750, %v6042
    %v6121 = vsub.f32 %v5823, %v6115
    %6122 = vmatprep.subr.mxu0 0.0
    %6123 = vmatpush1.msra.mxu0 %v5501
    %6124 = vmatprep.subr.mxu0 0.0
    %6125 = vmatpush1.msra.mxu0 %v5502
    %6126 = vmatprep.subr.mxu0 0.0
    %6127 = vmatpush1.msra.mxu0 %v5503
    %6128 = vmatprep.subr.mxu0 0.0
    %6129 = vmatpush1.msra.mxu0 %v5504
    %6130 = vmatprep.subr.mxu0 0.0
    %6131 = vmatpush1.msra.mxu0 0.0
    %6132 = vmatprep.subr.mxu0 0.0
    %6133 = vmatpush1.msra.mxu0 0.0
    %6134 = vmatprep.subr.mxu0 0.0
    %6135 = vmatpush1.msra.mxu0 0.0
    %6136 = vmatprep.subr.mxu0 0.0
    %6137 = vmatpush1.msra.mxu0 0.0
    %6138 = vmatprep.subr.mxu0 0.0
    %6139 = vmatpush1.msra.mxu0 0.0
    %6140 = vmatprep.subr.mxu0 0.0
    %6141 = vmatpush1.msra.mxu0 0.0
    %6142 = vmatprep.subr.mxu0 0.0
    %6143 = vmatpush1.msra.mxu0 0.0
    %6144 = vmatprep.subr.mxu0 0.0
    %6145 = vmatpush1.msra.mxu0 0.0
    %6146 = vmatprep.subr.mxu0 0.0
    %6147 = vmatpush1.msra.mxu0 0.0
    %6148 = vmatprep.subr.mxu0 0.0
    %6149 = vmatpush1.msra.mxu0 0.0
    %6150 = vmatprep.subr.mxu0 0.0
    %6151 = vmatpush1.msra.mxu0 0.0
    %6152 = vmatprep.subr.mxu0 0.0
    %6153 = vmatpush1.msra.mxu0 0.0
    %6154 = vmatprep.subr.mxu0 0.0
    %6155 = vmatpush1.msra.mxu0 0.0
    %6156 = vmatprep.subr.mxu0 0.0
    %6157 = vmatpush1.msra.mxu0 0.0
    %6158 = vmatprep.subr.mxu0 0.0
    %6159 = vmatpush1.msra.mxu0 0.0
    %6160 = vmatprep.subr.mxu0 0.0
    %6161 = vmatpush1.msra.mxu0 0.0
    %6162 = vmatprep.subr.mxu0 0.0
    %6163 = vmatpush1.msra.mxu0 0.0
    %6164 = vmatprep.subr.mxu0 0.0
    %6165 = vmatpush1.msra.mxu0 0.0
    %6166 = vmatprep.subr.mxu0 0.0
    %6167 = vmatpush1.msra.mxu0 0.0
    %6168 = vmatprep.subr.mxu0 0.0
    %6169 = vmatpush1.msra.mxu0 0.0
    %6170 = vmatprep.subr.mxu0 0.0
    %6171 = vmatpush1.msra.mxu0 0.0
    %6172 = vmatprep.subr.mxu0 0.0
    %6173 = vmatpush1.msra.mxu0 0.0
    %6174 = vmatprep.subr.mxu0 0.0
    %6175 = vmatpush1.msra.mxu0 0.0
    %6176 = vmatprep.subr.mxu0 0.0
    %6177 = vmatpush1.msra.mxu0 0.0
    %6178 = vmatprep.subr.mxu0 0.0
    %6179 = vmatpush1.msra.mxu0 0.0
    %6180 = vmatprep.subr.mxu0 0.0
    %6181 = vmatpush1.msra.mxu0 0.0
    %6182 = vmatprep.subr.mxu0 0.0
    %6183 = vmatpush1.msra.mxu0 0.0
    %6184 = vmatprep.subr.mxu0 0.0
    %6185 = vmatpush1.msra.mxu0 0.0
    %6186 = vmatprep.mubr.f32.mxu0 0.0
    %6187 = vmatmul.mubr.f32.gmra.mrb[0].mxu0 %v5827
    %v6188 = vpop.f32.mrb[0].mxu0
    %v6189 = vadd.f32 0.0, %v6188
    %v6190 = vpop.f32.mrb[0].mxu0
    %6191 = vdwg.mxu0
    %6192 = vmatprep.subr.mxu0 0.0
    %6193 = vmatpush1.msra.mxu0 %v5505
    %6194 = vmatprep.subr.mxu0 0.0
    %6195 = vmatpush1.msra.mxu0 %v5506
    %6196 = vmatprep.subr.mxu0 0.0
    %6197 = vmatpush1.msra.mxu0 %v5507
    %6198 = vmatprep.subr.mxu0 0.0
    %6199 = vmatpush1.msra.mxu0 %v5508
    %6200 = vmatprep.subr.mxu0 0.0
    %6201 = vmatpush1.msra.mxu0 0.0
    %6202 = vmatprep.subr.mxu0 0.0
    %6203 = vmatpush1.msra.mxu0 0.0
    %6204 = vmatprep.subr.mxu0 0.0
    %6205 = vmatpush1.msra.mxu0 0.0
    %6206 = vmatprep.subr.mxu0 0.0
    %6207 = vmatpush1.msra.mxu0 0.0
    %6208 = vmatprep.subr.mxu0 0.0
    %6209 = vmatpush1.msra.mxu0 0.0
    %6210 = vmatprep.subr.mxu0 0.0
    %6211 = vmatpush1.msra.mxu0 0.0
    %6212 = vmatprep.subr.mxu0 0.0
    %6213 = vmatpush1.msra.mxu0 0.0
    %6214 = vmatprep.subr.mxu0 0.0
    %6215 = vmatpush1.msra.mxu0 0.0
    %6216 = vmatprep.subr.mxu0 0.0
    %6217 = vmatpush1.msra.mxu0 0.0
    %6218 = vmatprep.subr.mxu0 0.0
    %6219 = vmatpush1.msra.mxu0 0.0
    %6220 = vmatprep.subr.mxu0 0.0
    %6221 = vmatpush1.msra.mxu0 0.0
    %6222 = vmatprep.subr.mxu0 0.0
    %6223 = vmatpush1.msra.mxu0 0.0
    %6224 = vmatprep.subr.mxu0 0.0
    %6225 = vmatpush1.msra.mxu0 0.0
    %6226 = vmatprep.subr.mxu0 0.0
    %6227 = vmatpush1.msra.mxu0 0.0
    %6228 = vmatprep.subr.mxu0 0.0
    %6229 = vmatpush1.msra.mxu0 0.0
    %6230 = vmatprep.subr.mxu0 0.0
    %6231 = vmatpush1.msra.mxu0 0.0
    %6232 = vmatprep.subr.mxu0 0.0
    %6233 = vmatpush1.msra.mxu0 0.0
    %6234 = vmatprep.subr.mxu0 0.0
    %6235 = vmatpush1.msra.mxu0 0.0
    %6236 = vmatprep.subr.mxu0 0.0
    %6237 = vmatpush1.msra.mxu0 0.0
    %6238 = vmatprep.subr.mxu0 0.0
    %6239 = vmatpush1.msra.mxu0 0.0
    %6240 = vmatprep.subr.mxu0 0.0
    %6241 = vmatpush1.msra.mxu0 0.0
    %6242 = vmatprep.subr.mxu0 0.0
    %6243 = vmatpush1.msra.mxu0 0.0
    %6244 = vmatprep.subr.mxu0 0.0
    %6245 = vmatpush1.msra.mxu0 0.0
    %6246 = vmatprep.subr.mxu0 0.0
    %6247 = vmatpush1.msra.mxu0 0.0
    %6248 = vmatprep.subr.mxu0 0.0
    %6249 = vmatpush1.msra.mxu0 0.0
    %6250 = vmatprep.subr.mxu0 0.0
    %6251 = vmatpush1.msra.mxu0 0.0
    %6252 = vmatprep.subr.mxu0 0.0
    %6253 = vmatpush1.msra.mxu0 0.0
    %6254 = vmatprep.subr.mxu0 0.0
    %6255 = vmatpush1.msra.mxu0 0.0
    %6256 = vmatprep.mubr.f32.mxu0 0.0
    %6257 = vmatmul.mubr.f32.gmra.mrb[0].mxu0 %v5900
    %v6258 = vpop.f32.mrb[0].mxu0
    %v6259 = vadd.f32 0.0, %v6258
    %v6260 = vpop.f32.mrb[0].mxu0
    %6261 = vdwg.mxu0
    %6262 = vmatprep.subr.mxu0 0.0
    %6263 = vmatpush1.msra.mxu0 %v5509
    %6264 = vmatprep.subr.mxu0 0.0
    %6265 = vmatpush1.msra.mxu0 %v5510
    %6266 = vmatprep.subr.mxu0 0.0
    %6267 = vmatpush1.msra.mxu0 %v5511
    %6268 = vmatprep.subr.mxu0 0.0
    %6269 = vmatpush1.msra.mxu0 %v5512
    %6270 = vmatprep.subr.mxu0 0.0
    %6271 = vmatpush1.msra.mxu0 0.0
    %6272 = vmatprep.subr.mxu0 0.0
    %6273 = vmatpush1.msra.mxu0 0.0
    %6274 = vmatprep.subr.mxu0 0.0
    %6275 = vmatpush1.msra.mxu0 0.0
    %6276 = vmatprep.subr.mxu0 0.0
    %6277 = vmatpush1.msra.mxu0 0.0
    %6278 = vmatprep.subr.mxu0 0.0
    %6279 = vmatpush1.msra.mxu0 0.0
    %6280 = vmatprep.subr.mxu0 0.0
    %6281 = vmatpush1.msra.mxu0 0.0
    %6282 = vmatprep.subr.mxu0 0.0
    %6283 = vmatpush1.msra.mxu0 0.0
    %6284 = vmatprep.subr.mxu0 0.0
    %6285 = vmatpush1.msra.mxu0 0.0
    %6286 = vmatprep.subr.mxu0 0.0
    %6287 = vmatpush1.msra.mxu0 0.0
    %6288 = vmatprep.subr.mxu0 0.0
    %6289 = vmatpush1.msra.mxu0 0.0
    %6290 = vmatprep.subr.mxu0 0.0
    %6291 = vmatpush1.msra.mxu0 0.0
    %6292 = vmatprep.subr.mxu0 0.0
    %6293 = vmatpush1.msra.mxu0 0.0
    %6294 = vmatprep.subr.mxu0 0.0
    %6295 = vmatpush1.msra.mxu0 0.0
    %6296 = vmatprep.subr.mxu0 0.0
    %6297 = vmatpush1.msra.mxu0 0.0
    %6298 = vmatprep.subr.mxu0 0.0
    %6299 = vmatpush1.msra.mxu0 0.0
    %6300 = vmatprep.subr.mxu0 0.0
    %6301 = vmatpush1.msra.mxu0 0.0
    %6302 = vmatprep.subr.mxu0 0.0
    %6303 = vmatpush1.msra.mxu0 0.0
    %6304 = vmatprep.subr.mxu0 0.0
    %6305 = vmatpush1.msra.mxu0 0.0
    %6306 = vmatprep.subr.mxu0 0.0
    %6307 = vmatpush1.msra.mxu0 0.0
    %6308 = vmatprep.subr.mxu0 0.0
    %6309 = vmatpush1.msra.mxu0 0.0
    %6310 = vmatprep.subr.mxu0 0.0
    %6311 = vmatpush1.msra.mxu0 0.0
    %6312 = vmatprep.subr.mxu0 0.0
    %6313 = vmatpush1.msra.mxu0 0.0
    %6314 = vmatprep.subr.mxu0 0.0
    %6315 = vmatpush1.msra.mxu0 0.0
    %6316 = vmatprep.subr.mxu0 0.0
    %6317 = vmatpush1.msra.mxu0 0.0
    %6318 = vmatprep.subr.mxu0 0.0
    %6319 = vmatpush1.msra.mxu0 0.0
    %6320 = vmatprep.subr.mxu0 0.0
    %6321 = vmatpush1.msra.mxu0 0.0
    %6322 = vmatprep.subr.mxu0 0.0
    %6323 = vmatpush1.msra.mxu0 0.0
    %6324 = vmatprep.subr.mxu0 0.0
    %6325 = vmatpush1.msra.mxu0 0.0
    %6326 = vmatprep.mubr.f32.mxu0 0.0
    %6327 = vmatmul.mubr.f32.gmra.mrb[0].mxu0 %v5973
    %v6328 = vpop.f32.mrb[0].mxu0
    %v6329 = vadd.f32 0.0, %v6328
    %v6330 = vpop.f32.mrb[0].mxu0
    %6331 = vdwg.mxu0
    %6332 = vmatprep.subr.mxu0 0.0
    %6333 = vmatpush1.msra.mxu0 %v5513
    %6334 = vmatprep.subr.mxu0 0.0
    %6335 = vmatpush1.msra.mxu0 %v5514
    %6336 = vmatprep.subr.mxu0 0.0
    %6337 = vmatpush1.msra.mxu0 %v5515
    %6338 = vmatprep.subr.mxu0 0.0
    %6339 = vmatpush1.msra.mxu0 %v5516
    %6340 = vmatprep.subr.mxu0 0.0
    %6341 = vmatpush1.msra.mxu0 0.0
    %6342 = vmatprep.subr.mxu0 0.0
    %6343 = vmatpush1.msra.mxu0 0.0
    %6344 = vmatprep.subr.mxu0 0.0
    %6345 = vmatpush1.msra.mxu0 0.0
    %6346 = vmatprep.subr.mxu0 0.0
    %6347 = vmatpush1.msra.mxu0 0.0
    %6348 = vmatprep.subr.mxu0 0.0
    %6349 = vmatpush1.msra.mxu0 0.0
    %6350 = vmatprep.subr.mxu0 0.0
    %6351 = vmatpush1.msra.mxu0 0.0
    %6352 = vmatprep.subr.mxu0 0.0
    %6353 = vmatpush1.msra.mxu0 0.0
    %6354 = vmatprep.subr.mxu0 0.0
    %6355 = vmatpush1.msra.mxu0 0.0
    %6356 = vmatprep.subr.mxu0 0.0
    %6357 = vmatpush1.msra.mxu0 0.0
    %6358 = vmatprep.subr.mxu0 0.0
    %6359 = vmatpush1.msra.mxu0 0.0
    %6360 = vmatprep.subr.mxu0 0.0
    %6361 = vmatpush1.msra.mxu0 0.0
    %6362 = vmatprep.subr.mxu0 0.0
    %6363 = vmatpush1.msra.mxu0 0.0
    %6364 = vmatprep.subr.mxu0 0.0
    %6365 = vmatpush1.msra.mxu0 0.0
    %6366 = vmatprep.subr.mxu0 0.0
    %6367 = vmatpush1.msra.mxu0 0.0
    %6368 = vmatprep.subr.mxu0 0.0
    %6369 = vmatpush1.msra.mxu0 0.0
    %6370 = vmatprep.subr.mxu0 0.0
    %6371 = vmatpush1.msra.mxu0 0.0
    %6372 = vmatprep.subr.mxu0 0.0
    %6373 = vmatpush1.msra.mxu0 0.0
    %6374 = vmatprep.subr.mxu0 0.0
    %6375 = vmatpush1.msra.mxu0 0.0
    %6376 = vmatprep.subr.mxu0 0.0
    %6377 = vmatpush1.msra.mxu0 0.0
    %6378 = vmatprep.subr.mxu0 0.0
    %6379 = vmatpush1.msra.mxu0 0.0
    %6380 = vmatprep.subr.mxu0 0.0
    %6381 = vmatpush1.msra.mxu0 0.0
    %6382 = vmatprep.subr.mxu0 0.0
    %6383 = vmatpush1.msra.mxu0 0.0
    %6384 = vmatprep.subr.mxu0 0.0
    %6385 = vmatpush1.msra.mxu0 0.0
    %6386 = vmatprep.subr.mxu0 0.0
    %6387 = vmatpush1.msra.mxu0 0.0
    %6388 = vmatprep.subr.mxu0 0.0
    %6389 = vmatpush1.msra.mxu0 0.0
    %6390 = vmatprep.subr.mxu0 0.0
    %6391 = vmatpush1.msra.mxu0 0.0
    %6392 = vmatprep.subr.mxu0 0.0
    %6393 = vmatpush1.msra.mxu0 0.0
    %6394 = vmatprep.subr.mxu0 0.0
    %6395 = vmatpush1.msra.mxu0 0.0
    %6396 = vmatprep.mubr.f32.mxu0 0.0
    %6397 = vmatmul.mubr.f32.gmra.mrb[0].mxu0 %v6046
    %v6398 = vpop.f32.mrb[0].mxu0
    %v6399 = vadd.f32 0.0, %v6398
    %v6400 = vpop.f32.mrb[0].mxu0
    %6401 = vdwg.mxu0
    %6402 = vmatprep.subr.mxu0 0.0
    %6403 = vmatpush1.msra.mxu0 %v5518
    %6404 = vmatprep.subr.mxu0 0.0
    %6405 = vmatpush1.msra.mxu0 %v5519
    %6406 = vmatprep.subr.mxu0 0.0
    %6407 = vmatpush1.msra.mxu0 %v5520
    %6408 = vmatprep.subr.mxu0 0.0
    %6409 = vmatpush1.msra.mxu0 %v5521
    %6410 = vmatprep.subr.mxu0 0.0
    %6411 = vmatpush1.msra.mxu0 0.0
    %6412 = vmatprep.subr.mxu0 0.0
    %6413 = vmatpush1.msra.mxu0 0.0
    %6414 = vmatprep.subr.mxu0 0.0
    %6415 = vmatpush1.msra.mxu0 0.0
    %6416 = vmatprep.subr.mxu0 0.0
    %6417 = vmatpush1.msra.mxu0 0.0
    %6418 = vmatprep.subr.mxu0 0.0
    %6419 = vmatpush1.msra.mxu0 0.0
    %6420 = vmatprep.subr.mxu0 0.0
    %6421 = vmatpush1.msra.mxu0 0.0
    %6422 = vmatprep.subr.mxu0 0.0
    %6423 = vmatpush1.msra.mxu0 0.0
    %6424 = vmatprep.subr.mxu0 0.0
    %6425 = vmatpush1.msra.mxu0 0.0
    %6426 = vmatprep.subr.mxu0 0.0
    %6427 = vmatpush1.msra.mxu0 0.0
    %6428 = vmatprep.subr.mxu0 0.0
    %6429 = vmatpush1.msra.mxu0 0.0
    %6430 = vmatprep.subr.mxu0 0.0
    %6431 = vmatpush1.msra.mxu0 0.0
    %6432 = vmatprep.subr.mxu0 0.0
    %6433 = vmatpush1.msra.mxu0 0.0
    %6434 = vmatprep.subr.mxu0 0.0
    %6435 = vmatpush1.msra.mxu0 0.0
    %6436 = vmatprep.subr.mxu0 0.0
    %6437 = vmatpush1.msra.mxu0 0.0
    %6438 = vmatprep.subr.mxu0 0.0
    %6439 = vmatpush1.msra.mxu0 0.0
    %6440 = vmatprep.subr.mxu0 0.0
    %6441 = vmatpush1.msra.mxu0 0.0
    %6442 = vmatprep.subr.mxu0 0.0
    %6443 = vmatpush1.msra.mxu0 0.0
    %6444 = vmatprep.subr.mxu0 0.0
    %6445 = vmatpush1.msra.mxu0 0.0
    %6446 = vmatprep.subr.mxu0 0.0
    %6447 = vmatpush1.msra.mxu0 0.0
    %6448 = vmatprep.subr.mxu0 0.0
    %6449 = vmatpush1.msra.mxu0 0.0
    %6450 = vmatprep.subr.mxu0 0.0
    %6451 = vmatpush1.msra.mxu0 0.0
    %6452 = vmatprep.subr.mxu0 0.0
    %6453 = vmatpush1.msra.mxu0 0.0
    %6454 = vmatprep.subr.mxu0 0.0
    %6455 = vmatpush1.msra.mxu0 0.0
    %6456 = vmatprep.subr.mxu0 0.0
    %6457 = vmatpush1.msra.mxu0 0.0
    %6458 = vmatprep.subr.mxu0 0.0
    %6459 = vmatpush1.msra.mxu0 0.0
    %6460 = vmatprep.subr.mxu0 0.0
    %6461 = vmatpush1.msra.mxu0 0.0
    %6462 = vmatprep.subr.mxu0 0.0
    %6463 = vmatpush1.msra.mxu0 0.0
    %6464 = vmatprep.subr.mxu0 0.0
    %6465 = vmatpush1.msra.mxu0 0.0
    %6466 = vmatprep.mubr.f32.mxu0 0.0
    %6467 = vmatmul.mubr.f32.gmra.mrb[0].mxu0 %v5535
    %v6468 = vpop.f32.mrb[0].mxu0
    %v6469 = vadd.f32 %v6189, %v6468
    %v6470 = vpop.f32.mrb[0].mxu0
    %6471 = vdwg.mxu0
    %6472 = vmatprep.subr.mxu0 0.0
    %6473 = vmatpush1.msra.mxu0 %v5522
    %6474 = vmatprep.subr.mxu0 0.0
    %6475 = vmatpush1.msra.mxu0 %v5523
    %6476 = vmatprep.subr.mxu0 0.0
    %6477 = vmatpush1.msra.mxu0 %v5524
    %6478 = vmatprep.subr.mxu0 0.0
    %6479 = vmatpush1.msra.mxu0 %v5525
    %6480 = vmatprep.subr.mxu0 0.0
    %6481 = vmatpush1.msra.mxu0 0.0
    %6482 = vmatprep.subr.mxu0 0.0
    %6483 = vmatpush1.msra.mxu0 0.0
    %6484 = vmatprep.subr.mxu0 0.0
    %6485 = vmatpush1.msra.mxu0 0.0
    %6486 = vmatprep.subr.mxu0 0.0
    %6487 = vmatpush1.msra.mxu0 0.0
    %6488 = vmatprep.subr.mxu0 0.0
    %6489 = vmatpush1.msra.mxu0 0.0
    %6490 = vmatprep.subr.mxu0 0.0
    %6491 = vmatpush1.msra.mxu0 0.0
    %6492 = vmatprep.subr.mxu0 0.0
    %6493 = vmatpush1.msra.mxu0 0.0
    %6494 = vmatprep.subr.mxu0 0.0
    %6495 = vmatpush1.msra.mxu0 0.0
    %6496 = vmatprep.subr.mxu0 0.0
    %6497 = vmatpush1.msra.mxu0 0.0
    %6498 = vmatprep.subr.mxu0 0.0
    %6499 = vmatpush1.msra.mxu0 0.0
    %6500 = vmatprep.subr.mxu0 0.0
    %6501 = vmatpush1.msra.mxu0 0.0
    %6502 = vmatprep.subr.mxu0 0.0
    %6503 = vmatpush1.msra.mxu0 0.0
    %6504 = vmatprep.subr.mxu0 0.0
    %6505 = vmatpush1.msra.mxu0 0.0
    %6506 = vmatprep.subr.mxu0 0.0
    %6507 = vmatpush1.msra.mxu0 0.0
    %6508 = vmatprep.subr.mxu0 0.0
    %6509 = vmatpush1.msra.mxu0 0.0
    %6510 = vmatprep.subr.mxu0 0.0
    %6511 = vmatpush1.msra.mxu0 0.0
    %6512 = vmatprep.subr.mxu0 0.0
    %6513 = vmatpush1.msra.mxu0 0.0
    %6514 = vmatprep.subr.mxu0 0.0
    %6515 = vmatpush1.msra.mxu0 0.0
    %6516 = vmatprep.subr.mxu0 0.0
    %6517 = vmatpush1.msra.mxu0 0.0
    %6518 = vmatprep.subr.mxu0 0.0
    %6519 = vmatpush1.msra.mxu0 0.0
    %6520 = vmatprep.subr.mxu0 0.0
    %6521 = vmatpush1.msra.mxu0 0.0
    %6522 = vmatprep.subr.mxu0 0.0
    %6523 = vmatpush1.msra.mxu0 0.0
    %6524 = vmatprep.subr.mxu0 0.0
    %6525 = vmatpush1.msra.mxu0 0.0
    %6526 = vmatprep.subr.mxu0 0.0
    %6527 = vmatpush1.msra.mxu0 0.0
    %6528 = vmatprep.subr.mxu0 0.0
    %6529 = vmatpush1.msra.mxu0 0.0
    %6530 = vmatprep.subr.mxu0 0.0
    %6531 = vmatpush1.msra.mxu0 0.0
    %6532 = vmatprep.subr.mxu0 0.0
    %6533 = vmatpush1.msra.mxu0 0.0
    %6534 = vmatprep.subr.mxu0 0.0
    %6535 = vmatpush1.msra.mxu0 0.0
    %6536 = vmatprep.mubr.f32.mxu0 0.0
    %6537 = vmatmul.mubr.f32.gmra.mrb[0].mxu0 %v5608
    %v6538 = vpop.f32.mrb[0].mxu0
    %v6539 = vadd.f32 %v6259, %v6538
    %v6540 = vpop.f32.mrb[0].mxu0
    %6541 = vdwg.mxu0
    %6542 = vmatprep.subr.mxu0 0.0
    %6543 = vmatpush1.msra.mxu0 %v5526
    %6544 = vmatprep.subr.mxu0 0.0
    %6545 = vmatpush1.msra.mxu0 %v5527
    %6546 = vmatprep.subr.mxu0 0.0
    %6547 = vmatpush1.msra.mxu0 %v5528
    %6548 = vmatprep.subr.mxu0 0.0
    %6549 = vmatpush1.msra.mxu0 %v5529
    %6550 = vmatprep.subr.mxu0 0.0
    %6551 = vmatpush1.msra.mxu0 0.0
    %6552 = vmatprep.subr.mxu0 0.0
    %6553 = vmatpush1.msra.mxu0 0.0
    %6554 = vmatprep.subr.mxu0 0.0
    %6555 = vmatpush1.msra.mxu0 0.0
    %6556 = vmatprep.subr.mxu0 0.0
    %6557 = vmatpush1.msra.mxu0 0.0
    %6558 = vmatprep.subr.mxu0 0.0
    %6559 = vmatpush1.msra.mxu0 0.0
    %6560 = vmatprep.subr.mxu0 0.0
    %6561 = vmatpush1.msra.mxu0 0.0
    %6562 = vmatprep.subr.mxu0 0.0
    %6563 = vmatpush1.msra.mxu0 0.0
    %6564 = vmatprep.subr.mxu0 0.0
    %6565 = vmatpush1.msra.mxu0 0.0
    %6566 = vmatprep.subr.mxu0 0.0
    %6567 = vmatpush1.msra.mxu0 0.0
    %6568 = vmatprep.subr.mxu0 0.0
    %6569 = vmatpush1.msra.mxu0 0.0
    %6570 = vmatprep.subr.mxu0 0.0
    %6571 = vmatpush1.msra.mxu0 0.0
    %6572 = vmatprep.subr.mxu0 0.0
    %6573 = vmatpush1.msra.mxu0 0.0
    %6574 = vmatprep.subr.mxu0 0.0
    %6575 = vmatpush1.msra.mxu0 0.0
    %6576 = vmatprep.subr.mxu0 0.0
    %6577 = vmatpush1.msra.mxu0 0.0
    %6578 = vmatprep.subr.mxu0 0.0
    %6579 = vmatpush1.msra.mxu0 0.0
    %6580 = vmatprep.subr.mxu0 0.0
    %6581 = vmatpush1.msra.mxu0 0.0
    %6582 = vmatprep.subr.mxu0 0.0
    %6583 = vmatpush1.msra.mxu0 0.0
    %6584 = vmatprep.subr.mxu0 0.0
    %6585 = vmatpush1.msra.mxu0 0.0
    %6586 = vmatprep.subr.mxu0 0.0
    %6587 = vmatpush1.msra.mxu0 0.0
    %6588 = vmatprep.subr.mxu0 0.0
    %6589 = vmatpush1.msra.mxu0 0.0
    %6590 = vmatprep.subr.mxu0 0.0
    %6591 = vmatpush1.msra.mxu0 0.0
    %6592 = vmatprep.subr.mxu0 0.0
    %6593 = vmatpush1.msra.mxu0 0.0
    %6594 = vmatprep.subr.mxu0 0.0
    %6595 = vmatpush1.msra.mxu0 0.0
    %6596 = vmatprep.subr.mxu0 0.0
    %6597 = vmatpush1.msra.mxu0 0.0
    %6598 = vmatprep.subr.mxu0 0.0
    %6599 = vmatpush1.msra.mxu0 0.0
    %6600 = vmatprep.subr.mxu0 0.0
    %6601 = vmatpush1.msra.mxu0 0.0
    %6602 = vmatprep.subr.mxu0 0.0
    %6603 = vmatpush1.msra.mxu0 0.0
    %6604 = vmatprep.subr.mxu0 0.0
    %6605 = vmatpush1.msra.mxu0 0.0
    %6606 = vmatprep.mubr.f32.mxu0 0.0
    %6607 = vmatmul.mubr.f32.gmra.mrb[0].mxu0 %v5681
    %v6608 = vpop.f32.mrb[0].mxu0
    %v6609 = vadd.f32 %v6329, %v6608
    %v6610 = vpop.f32.mrb[0].mxu0
    %6611 = vdwg.mxu0
    %6612 = vmatprep.subr.mxu0 0.0
    %6613 = vmatpush1.msra.mxu0 %v5530
    %6614 = vmatprep.subr.mxu0 0.0
    %6615 = vmatpush1.msra.mxu0 %v5531
    %6616 = vmatprep.subr.mxu0 0.0
    %6617 = vmatpush1.msra.mxu0 %v5532
    %6618 = vmatprep.subr.mxu0 0.0
    %6619 = vmatpush1.msra.mxu0 %v5533
    %6620 = vmatprep.subr.mxu0 0.0
    %6621 = vmatpush1.msra.mxu0 0.0
    %6622 = vmatprep.subr.mxu0 0.0
    %6623 = vmatpush1.msra.mxu0 0.0
    %6624 = vmatprep.subr.mxu0 0.0
    %6625 = vmatpush1.msra.mxu0 0.0
    %6626 = vmatprep.subr.mxu0 0.0
    %6627 = vmatpush1.msra.mxu0 0.0
    %6628 = vmatprep.subr.mxu0 0.0
    %6629 = vmatpush1.msra.mxu0 0.0
    %6630 = vmatprep.subr.mxu0 0.0
    %6631 = vmatpush1.msra.mxu0 0.0
    %6632 = vmatprep.subr.mxu0 0.0
    %6633 = vmatpush1.msra.mxu0 0.0
    %6634 = vmatprep.subr.mxu0 0.0
    %6635 = vmatpush1.msra.mxu0 0.0
    %6636 = vmatprep.subr.mxu0 0.0
    %6637 = vmatpush1.msra.mxu0 0.0
    %6638 = vmatprep.subr.mxu0 0.0
    %6639 = vmatpush1.msra.mxu0 0.0
    %6640 = vmatprep.subr.mxu0 0.0
    %6641 = vmatpush1.msra.mxu0 0.0
    %6642 = vmatprep.subr.mxu0 0.0
    %6643 = vmatpush1.msra.mxu0 0.0
    %6644 = vmatprep.subr.mxu0 0.0
    %6645 = vmatpush1.msra.mxu0 0.0
    %6646 = vmatprep.subr.mxu0 0.0
    %6647 = vmatpush1.msra.mxu0 0.0
    %6648 = vmatprep.subr.mxu0 0.0
    %6649 = vmatpush1.msra.mxu0 0.0
    %6650 = vmatprep.subr.mxu0 0.0
    %6651 = vmatpush1.msra.mxu0 0.0
    %6652 = vmatprep.subr.mxu0 0.0
    %6653 = vmatpush1.msra.mxu0 0.0
    %6654 = vmatprep.subr.mxu0 0.0
    %6655 = vmatpush1.msra.mxu0 0.0
    %6656 = vmatprep.subr.mxu0 0.0
    %6657 = vmatpush1.msra.mxu0 0.0
    %6658 = vmatprep.subr.mxu0 0.0
    %6659 = vmatpush1.msra.mxu0 0.0
    %6660 = vmatprep.subr.mxu0 0.0
    %6661 = vmatpush1.msra.mxu0 0.0
    %6662 = vmatprep.subr.mxu0 0.0
    %6663 = vmatpush1.msra.mxu0 0.0
    %6664 = vmatprep.subr.mxu0 0.0
    %6665 = vmatpush1.msra.mxu0 0.0
    %6666 = vmatprep.subr.mxu0 0.0
    %6667 = vmatpush1.msra.mxu0 0.0
    %6668 = vmatprep.subr.mxu0 0.0
    %6669 = vmatpush1.msra.mxu0 0.0
    %6670 = vmatprep.subr.mxu0 0.0
    %6671 = vmatpush1.msra.mxu0 0.0
    %6672 = vmatprep.subr.mxu0 0.0
    %6673 = vmatpush1.msra.mxu0 0.0
    %6674 = vmatprep.subr.mxu0 0.0
    %6675 = vmatpush1.msra.mxu0 0.0
    %6676 = vmatprep.mubr.f32.mxu0 0.0
    %6677 = vmatmul.mubr.f32.gmra.mrb[0].mxu0 %v5754
    %v6678 = vpop.f32.mrb[0].mxu0
    %v6679 = vadd.f32 %v6399, %v6678
    %v6680 = vpop.f32.mrb[0].mxu0
    %6681 = vdwg.mxu0
    %v6682 = vcombine.low %v6118, %v6120
    %v6684 = vunpack.c.l.s4 1983009808
    %v6685 = vunpack.c.0.s8 %v6684
    %v6686 = vlaneseq
    %v6687 = vshrl.u32 %v6686, 7
    %v6688 = vsub.s32 %v6685, %v6687
    %v6689 = vrot.slane %v6682, %v6688
    %v6690 = vcombine.low %v6119, %v6121
    %v6692 = vunpack.c.l.s4 1983009808
    %v6693 = vunpack.c.0.s8 %v6692
    %v6694 = vlaneseq
    %v6695 = vshrl.u32 %v6694, 7
    %v6696 = vsub.s32 %v6693, %v6695
    %v6697 = vrot.slane %v6690, %v6696
    %v6698 = vcombine.low %v6469, %v6609
    %v6700 = vunpack.c.l.s4 1983009808
    %v6701 = vunpack.c.0.s8 %v6700
    %v6702 = vlaneseq
    %v6703 = vshrl.u32 %v6702, 7
    %v6704 = vsub.s32 %v6701, %v6703
    %v6705 = vrot.slane %v6698, %v6704
    %v6706 = vcombine.low %v6539, %v6679
    %v6708 = vunpack.c.l.s4 1983009808
    %v6709 = vunpack.c.0.s8 %v6708
    %v6710 = vlaneseq
    %v6711 = vshrl.u32 %v6710, 7
    %v6712 = vsub.s32 %v6709, %v6711
    %v6713 = vrot.slane %v6706, %v6712
    %v6714 = vcombine.low %v6689, %v6697
    %v6716 = vunpack.c.l.s4 1934713408
    %v6717 = vunpack.c.0.s8 %v6716
    %v6718 = vlaneseq
    %v6719 = vshrl.u32 %v6718, 7
    %v6720 = vsub.s32 %v6717, %v6719
    %v6721 = vrot.slane %v6714, %v6720
    %v6722 = vcombine.low %v6705, %v6713
    %v6724 = vunpack.c.l.s4 1934713408
    %v6725 = vunpack.c.0.s8 %v6724
    %v6726 = vlaneseq
    %v6727 = vshrl.u32 %v6726, 7
    %v6728 = vsub.s32 %v6725, %v6727
    %v6729 = vrot.slane %v6722, %v6728
    %v6730 = vcombine.low %v6721, %v6729
    %v6731 = vcombine.high %v6721, %v6729
    %s6732 = scalar_lea.vmem [#allocation8], 96
    %v6733 = vld [vmem:[%s6732] sm:$0xff]
    %v6734 = vld [vmem:[%s6732 + $0x8] sm:$0xff]
    %v6735 = vld [vmem:[%s6732 + $0x10] sm:$0xff]
    %v6736 = vld [vmem:[%s6732 + $0x18] sm:$0xff]
    %s6737 = scalar_lea.vmem %s6, 3
    %v6738 = vld [vmem:[%s6737] sm:$0x1]
    %v6740 = vlaneseq
    %v6741 = vshrl.u32 %v6740, 7
    %v6742 = vsub.s32 0, %v6741
    %v6743 = vrot.slane %v6738, %v6742
    %v6746 = vsel %vm374, %v5290, 0
    %v6749 = vsel %vm374, %v5291, 0
    %v6752 = vsel %vm374, %v5292, 0
    %v6755 = vsel %vm374, %v5293, 0
    %6757 = vmatprep.subr.mxu0 0.0
    %6758 = vmatpush1.msra.mxu0 %v6733
    %6759 = vmatprep.subr.mxu0 0.0
    %6760 = vmatpush1.msra.mxu0 %v6734
    %6761 = vmatprep.subr.mxu0 0.0
    %6762 = vmatpush1.msra.mxu0 %v6735
    %6763 = vmatprep.subr.mxu0 0.0
    %6764 = vmatpush1.msra.mxu0 %v6736
    %6765 = vmatprep.subr.mxu0 0.0
    %6766 = vmatpush1.msra.mxu0 0.0
    %6767 = vmatprep.subr.mxu0 0.0
    %6768 = vmatpush1.msra.mxu0 0.0
    %6769 = vmatprep.subr.mxu0 0.0
    %6770 = vmatpush1.msra.mxu0 0.0
    %6771 = vmatprep.subr.mxu0 0.0
    %6772 = vmatpush1.msra.mxu0 0.0
    %6773 = vmatprep.subr.mxu0 0.0
    %6774 = vmatpush1.msra.mxu0 0.0
    %6775 = vmatprep.subr.mxu0 0.0
    %6776 = vmatpush1.msra.mxu0 0.0
    %6777 = vmatprep.subr.mxu0 0.0
    %6778 = vmatpush1.msra.mxu0 0.0
    %6779 = vmatprep.subr.mxu0 0.0
    %6780 = vmatpush1.msra.mxu0 0.0
    %6781 = vmatprep.subr.mxu0 0.0
    %6782 = vmatpush1.msra.mxu0 0.0
    %6783 = vmatprep.subr.mxu0 0.0
    %6784 = vmatpush1.msra.mxu0 0.0
    %6785 = vmatprep.subr.mxu0 0.0
    %6786 = vmatpush1.msra.mxu0 0.0
    %6787 = vmatprep.subr.mxu0 0.0
    %6788 = vmatpush1.msra.mxu0 0.0
    %6789 = vmatprep.subr.mxu0 0.0
    %6790 = vmatpush1.msra.mxu0 0.0
    %6791 = vmatprep.subr.mxu0 0.0
    %6792 = vmatpush1.msra.mxu0 0.0
    %6793 = vmatprep.subr.mxu0 0.0
    %6794 = vmatpush1.msra.mxu0 0.0
    %6795 = vmatprep.subr.mxu0 0.0
    %6796 = vmatpush1.msra.mxu0 0.0
    %6797 = vmatprep.subr.mxu0 0.0
    %6798 = vmatpush1.msra.mxu0 0.0
    %6799 = vmatprep.subr.mxu0 0.0
    %6800 = vmatpush1.msra.mxu0 0.0
    %6801 = vmatprep.subr.mxu0 0.0
    %6802 = vmatpush1.msra.mxu0 0.0
    %6803 = vmatprep.subr.mxu0 0.0
    %6804 = vmatpush1.msra.mxu0 0.0
    %6805 = vmatprep.subr.mxu0 0.0
    %6806 = vmatpush1.msra.mxu0 0.0
    %6807 = vmatprep.subr.mxu0 0.0
    %6808 = vmatpush1.msra.mxu0 0.0
    %6809 = vmatprep.subr.mxu0 0.0
    %6810 = vmatpush1.msra.mxu0 0.0
    %6811 = vmatprep.subr.mxu0 0.0
    %6812 = vmatpush1.msra.mxu0 0.0
    %6813 = vmatprep.subr.mxu0 0.0
    %6814 = vmatpush1.msra.mxu0 0.0
    %6815 = vmatprep.subr.mxu0 0.0
    %6816 = vmatpush1.msra.mxu0 0.0
    %6817 = vmatprep.subr.mxu0 0.0
    %6818 = vmatpush1.msra.mxu0 0.0
    %6819 = vmatprep.subr.mxu0 0.0
    %6820 = vmatpush1.msra.mxu0 0.0
    %6821 = vmatprep.mubr.f32.mxu0 0.0
    %6822 = vmatmul.mubr.f32.gmra.mrb[0].mxu0 %v6746
    %v6823 = vpop.f32.mrb[0].mxu0
    %v6824 = vadd.f32 %v6743, %v6823
    %v6825 = vpop.f32.mrb[0].mxu0
    %6826 = vmatprep.mubr.f32.mxu0 0.0
    %6827 = vmatmul.mubr.f32.gmra.mrb[0].mxu0 %v6749
    %v6828 = vpop.f32.mrb[0].mxu0
    %v6829 = vadd.f32 %v6743, %v6828
    %v6830 = vpop.f32.mrb[0].mxu0
    %6831 = vmatprep.mubr.f32.mxu0 0.0
    %6832 = vmatmul.mubr.f32.gmra.mrb[0].mxu0 %v6752
    %v6833 = vpop.f32.mrb[0].mxu0
    %v6834 = vadd.f32 %v6743, %v6833
    %v6835 = vpop.f32.mrb[0].mxu0
    %6836 = vmatprep.mubr.f32.mxu0 0.0
    %6837 = vmatmul.mubr.f32.gmra.mrb[0].mxu0 %v6755
    %v6838 = vpop.f32.mrb[0].mxu0
    %v6839 = vadd.f32 %v6743, %v6838
    %v6840 = vpop.f32.mrb[0].mxu0
    %6841 = vdwg.mxu0
    %6842 = vmatprep.subr.mxu0 0.0
    %6843 = vmatpush1.msra.mxu0 %v6730
    %6844 = vmatprep.subr.mxu0 0.0
    %6845 = vmatpush1.msra.mxu0 0.0
    %6846 = vmatprep.subr.mxu0 0.0
    %6847 = vmatpush1.msra.mxu0 0.0
    %6848 = vmatprep.subr.mxu0 0.0
    %6849 = vmatpush1.msra.mxu0 0.0
    %6850 = vmatprep.subr.mxu0 0.0
    %6851 = vmatpush1.msra.mxu0 0.0
    %6852 = vmatprep.subr.mxu0 0.0
    %6853 = vmatpush1.msra.mxu0 0.0
    %6854 = vmatprep.subr.mxu0 0.0
    %6855 = vmatpush1.msra.mxu0 0.0
    %6856 = vmatprep.subr.mxu0 0.0
    %6857 = vmatpush1.msra.mxu0 0.0
    %6858 = vmatprep.subr.mxu0 0.0
    %6859 = vmatpush1.msra.mxu0 0.0
    %6860 = vmatprep.subr.mxu0 0.0
    %6861 = vmatpush1.msra.mxu0 0.0
    %6862 = vmatprep.subr.mxu0 0.0
    %6863 = vmatpush1.msra.mxu0 0.0
    %6864 = vmatprep.subr.mxu0 0.0
    %6865 = vmatpush1.msra.mxu0 0.0
    %6866 = vmatprep.subr.mxu0 0.0
    %6867 = vmatpush1.msra.mxu0 0.0
    %6868 = vmatprep.subr.mxu0 0.0
    %6869 = vmatpush1.msra.mxu0 0.0
    %6870 = vmatprep.subr.mxu0 0.0
    %6871 = vmatpush1.msra.mxu0 0.0
    %6872 = vmatprep.subr.mxu0 0.0
    %6873 = vmatpush1.msra.mxu0 0.0
    %6874 = vmatprep.subr.mxu0 0.0
    %6875 = vmatpush1.msra.mxu0 0.0
    %6876 = vmatprep.subr.mxu0 0.0
    %6877 = vmatpush1.msra.mxu0 0.0
    %6878 = vmatprep.subr.mxu0 0.0
    %6879 = vmatpush1.msra.mxu0 0.0
    %6880 = vmatprep.subr.mxu0 0.0
    %6881 = vmatpush1.msra.mxu0 0.0
    %6882 = vmatprep.subr.mxu0 0.0
    %6883 = vmatpush1.msra.mxu0 0.0
    %6884 = vmatprep.subr.mxu0 0.0
    %6885 = vmatpush1.msra.mxu0 0.0
    %6886 = vmatprep.subr.mxu0 0.0
    %6887 = vmatpush1.msra.mxu0 0.0
    %6888 = vmatprep.subr.mxu0 0.0
    %6889 = vmatpush1.msra.mxu0 0.0
    %6890 = vmatprep.subr.mxu0 0.0
    %6891 = vmatpush1.msra.mxu0 0.0
    %6892 = vmatprep.subr.mxu0 0.0
    %6893 = vmatpush1.msra.mxu0 0.0
    %6894 = vmatprep.subr.mxu0 0.0
    %6895 = vmatpush1.msra.mxu0 0.0
    %6896 = vmatprep.subr.mxu0 0.0
    %6897 = vmatpush1.msra.mxu0 0.0
    %6898 = vmatprep.subr.mxu0 0.0
    %6899 = vmatpush1.msra.mxu0 0.0
    %6900 = vmatprep.subr.mxu0 0.0
    %6901 = vmatpush1.msra.mxu0 0.0
    %6902 = vmatprep.subr.mxu0 0.0
    %6903 = vmatpush1.msra.mxu0 0.0
    %6904 = vmatprep.subr.mxu0 0.0
    %6905 = vmatpush1.msra.mxu0 0.0
    %6906 = vmatprep.mubr.f32.mxu0 0.0
    %6907 = vmatmul.mubr.f32.gmra.mrb[0].mxu0 %v1683
    %v6908 = vpop.f32.mrb[0].mxu0
    %v6909 = vadd.f32 %v6824, %v6908
    %v6910 = vpop.f32.mrb[0].mxu0
    %6911 = vmatprep.mubr.f32.mxu0 0.0
    %6912 = vmatmul.mubr.f32.gmra.mrb[0].mxu0 %v1686
    %v6913 = vpop.f32.mrb[0].mxu0
    %v6914 = vadd.f32 %v6829, %v6913
    %v6915 = vpop.f32.mrb[0].mxu0
    %6916 = vdwg.mxu0
    %6917 = vmatprep.subr.mxu0 0.0
    %6918 = vmatpush1.msra.mxu0 %v6731
    %6919 = vmatprep.subr.mxu0 0.0
    %6920 = vmatpush1.msra.mxu0 0.0
    %6921 = vmatprep.subr.mxu0 0.0
    %6922 = vmatpush1.msra.mxu0 0.0
    %6923 = vmatprep.subr.mxu0 0.0
    %6924 = vmatpush1.msra.mxu0 0.0
    %6925 = vmatprep.subr.mxu0 0.0
    %6926 = vmatpush1.msra.mxu0 0.0
    %6927 = vmatprep.subr.mxu0 0.0
    %6928 = vmatpush1.msra.mxu0 0.0
    %6929 = vmatprep.subr.mxu0 0.0
    %6930 = vmatpush1.msra.mxu0 0.0
    %6931 = vmatprep.subr.mxu0 0.0
    %6932 = vmatpush1.msra.mxu0 0.0
    %6933 = vmatprep.subr.mxu0 0.0
    %6934 = vmatpush1.msra.mxu0 0.0
    %6935 = vmatprep.subr.mxu0 0.0
    %6936 = vmatpush1.msra.mxu0 0.0
    %6937 = vmatprep.subr.mxu0 0.0
    %6938 = vmatpush1.msra.mxu0 0.0
    %6939 = vmatprep.subr.mxu0 0.0
    %6940 = vmatpush1.msra.mxu0 0.0
    %6941 = vmatprep.subr.mxu0 0.0
    %6942 = vmatpush1.msra.mxu0 0.0
    %6943 = vmatprep.subr.mxu0 0.0
    %6944 = vmatpush1.msra.mxu0 0.0
    %6945 = vmatprep.subr.mxu0 0.0
    %6946 = vmatpush1.msra.mxu0 0.0
    %6947 = vmatprep.subr.mxu0 0.0
    %6948 = vmatpush1.msra.mxu0 0.0
    %6949 = vmatprep.subr.mxu0 0.0
    %6950 = vmatpush1.msra.mxu0 0.0
    %6951 = vmatprep.subr.mxu0 0.0
    %6952 = vmatpush1.msra.mxu0 0.0
    %6953 = vmatprep.subr.mxu0 0.0
    %6954 = vmatpush1.msra.mxu0 0.0
    %6955 = vmatprep.subr.mxu0 0.0
    %6956 = vmatpush1.msra.mxu0 0.0
    %6957 = vmatprep.subr.mxu0 0.0
    %6958 = vmatpush1.msra.mxu0 0.0
    %6959 = vmatprep.subr.mxu0 0.0
    %6960 = vmatpush1.msra.mxu0 0.0
    %6961 = vmatprep.subr.mxu0 0.0
    %6962 = vmatpush1.msra.mxu0 0.0
    %6963 = vmatprep.subr.mxu0 0.0
    %6964 = vmatpush1.msra.mxu0 0.0
    %6965 = vmatprep.subr.mxu0 0.0
    %6966 = vmatpush1.msra.mxu0 0.0
    %6967 = vmatprep.subr.mxu0 0.0
    %6968 = vmatpush1.msra.mxu0 0.0
    %6969 = vmatprep.subr.mxu0 0.0
    %6970 = vmatpush1.msra.mxu0 0.0
    %6971 = vmatprep.subr.mxu0 0.0
    %6972 = vmatpush1.msra.mxu0 0.0
    %6973 = vmatprep.subr.mxu0 0.0
    %6974 = vmatpush1.msra.mxu0 0.0
    %6975 = vmatprep.subr.mxu0 0.0
    %6976 = vmatpush1.msra.mxu0 0.0
    %6977 = vmatprep.subr.mxu0 0.0
    %6978 = vmatpush1.msra.mxu0 0.0
    %6979 = vmatprep.subr.mxu0 0.0
    %6980 = vmatpush1.msra.mxu0 0.0
    %6981 = vmatprep.mubr.f32.mxu0 0.0
    %6982 = vmatmul.mubr.f32.gmra.mrb[0].mxu0 %v1683
    %v6983 = vpop.f32.mrb[0].mxu0
    %v6984 = vadd.f32 %v6834, %v6983
    %v6985 = vpop.f32.mrb[0].mxu0
    %6986 = vmatprep.mubr.f32.mxu0 0.0
    %6987 = vmatmul.mubr.f32.gmra.mrb[0].mxu0 %v1686
    %v6988 = vpop.f32.mrb[0].mxu0
    %v6989 = vadd.f32 %v6839, %v6988
    %v6990 = vpop.f32.mrb[0].mxu0
    %6991 = vdwg.mxu0
    %v6992 = vld [vmem:[%s9] sm:$0xff]
    %v6993 = vld [vmem:[%s9 + $0x8] sm:$0xff]
    %v6994 = vld [vmem:[%s9 + $0x10] sm:$0xff]
    %v6995 = vld [vmem:[%s9 + $0x18] sm:$0xff]
    %v6996 = vld [vmem:[%s10] sm:$0x1]
    %v6998 = vlaneseq
    %v6999 = vshrl.u32 %v6998, 7
    %v7000 = vsub.s32 0, %v6999
    %v7001 = vrot.slane %v6996, %v7000
    %v7004 = vsel %vm374, %v6909, 0
    %v7007 = vsel %vm374, %v6914, 0
    %v7010 = vsel %vm374, %v6984, 0
    %v7013 = vsel %vm374, %v6989, 0
    %7015 = vmatprep.subr.mxu0 0.0
    %7016 = vmatpush1.msra.mxu0 %v6992
    %7017 = vmatprep.subr.mxu0 0.0
    %7018 = vmatpush1.msra.mxu0 %v6993
    %7019 = vmatprep.subr.mxu0 0.0
    %7020 = vmatpush1.msra.mxu0 %v6994
    %7021 = vmatprep.subr.mxu0 0.0
    %7022 = vmatpush1.msra.mxu0 %v6995
    %7023 = vmatprep.subr.mxu0 0.0
    %7024 = vmatpush1.msra.mxu0 0.0
    %7025 = vmatprep.subr.mxu0 0.0
    %7026 = vmatpush1.msra.mxu0 0.0
    %7027 = vmatprep.subr.mxu0 0.0
    %7028 = vmatpush1.msra.mxu0 0.0
    %7029 = vmatprep.subr.mxu0 0.0
    %7030 = vmatpush1.msra.mxu0 0.0
    %7031 = vmatprep.subr.mxu0 0.0
    %7032 = vmatpush1.msra.mxu0 0.0
    %7033 = vmatprep.subr.mxu0 0.0
    %7034 = vmatpush1.msra.mxu0 0.0
    %7035 = vmatprep.subr.mxu0 0.0
    %7036 = vmatpush1.msra.mxu0 0.0
    %7037 = vmatprep.subr.mxu0 0.0
    %7038 = vmatpush1.msra.mxu0 0.0
    %7039 = vmatprep.subr.mxu0 0.0
    %7040 = vmatpush1.msra.mxu0 0.0
    %7041 = vmatprep.subr.mxu0 0.0
    %7042 = vmatpush1.msra.mxu0 0.0
    %7043 = vmatprep.subr.mxu0 0.0
    %7044 = vmatpush1.msra.mxu0 0.0
    %7045 = vmatprep.subr.mxu0 0.0
    %7046 = vmatpush1.msra.mxu0 0.0
    %7047 = vmatprep.subr.mxu0 0.0
    %7048 = vmatpush1.msra.mxu0 0.0
    %7049 = vmatprep.subr.mxu0 0.0
    %7050 = vmatpush1.msra.mxu0 0.0
    %7051 = vmatprep.subr.mxu0 0.0
    %7052 = vmatpush1.msra.mxu0 0.0
    %7053 = vmatprep.subr.mxu0 0.0
    %7054 = vmatpush1.msra.mxu0 0.0
    %7055 = vmatprep.subr.mxu0 0.0
    %7056 = vmatpush1.msra.mxu0 0.0
    %7057 = vmatprep.subr.mxu0 0.0
    %7058 = vmatpush1.msra.mxu0 0.0
    %7059 = vmatprep.subr.mxu0 0.0
    %7060 = vmatpush1.msra.mxu0 0.0
    %7061 = vmatprep.subr.mxu0 0.0
    %7062 = vmatpush1.msra.mxu0 0.0
    %7063 = vmatprep.subr.mxu0 0.0
    %7064 = vmatpush1.msra.mxu0 0.0
    %7065 = vmatprep.subr.mxu0 0.0
    %7066 = vmatpush1.msra.mxu0 0.0
    %7067 = vmatprep.subr.mxu0 0.0
    %7068 = vmatpush1.msra.mxu0 0.0
    %7069 = vmatprep.subr.mxu0 0.0
    %7070 = vmatpush1.msra.mxu0 0.0
    %7071 = vmatprep.subr.mxu0 0.0
    %7072 = vmatpush1.msra.mxu0 0.0
    %7073 = vmatprep.subr.mxu0 0.0
    %7074 = vmatpush1.msra.mxu0 0.0
    %7075 = vmatprep.subr.mxu0 0.0
    %7076 = vmatpush1.msra.mxu0 0.0
    %7077 = vmatprep.subr.mxu0 0.0
    %7078 = vmatpush1.msra.mxu0 0.0
    %7079 = vmatprep.mubr.f32.mxu0 0.0
    %7080 = vmatmul.mubr.f32.gmra.mrb[0].mxu0 %v7004
    %v7081 = vpop.f32.mrb[0].mxu0
    %v7082 = vadd.f32 %v7001, %v7081
    %v7083 = vpop.f32.mrb[0].mxu0
    %7084 = vmatprep.mubr.f32.mxu0 0.0
    %7085 = vmatmul.mubr.f32.gmra.mrb[0].mxu0 %v7007
    %v7086 = vpop.f32.mrb[0].mxu0
    %v7087 = vadd.f32 %v7001, %v7086
    %v7088 = vpop.f32.mrb[0].mxu0
    %7089 = vmatprep.mubr.f32.mxu0 0.0
    %7090 = vmatmul.mubr.f32.gmra.mrb[0].mxu0 %v7010
    %v7091 = vpop.f32.mrb[0].mxu0
    %v7092 = vadd.f32 %v7001, %v7091
    %v7093 = vpop.f32.mrb[0].mxu0
    %7094 = vmatprep.mubr.f32.mxu0 0.0
    %7095 = vmatmul.mubr.f32.gmra.mrb[0].mxu0 %v7013
    %v7096 = vpop.f32.mrb[0].mxu0
    %v7097 = vadd.f32 %v7001, %v7096
    %v7098 = vpop.f32.mrb[0].mxu0
    %7099 = vdwg.mxu0
    %v7100 = vmul.f32 %v7082, 0.5
    %v7101 = vmul.f32 %v7087, 0.5
    %v7102 = vmul.f32 %v7092, 0.5
    %v7103 = vmul.f32 %v7097, 0.5
    %v7104 = vmul.f32 %v7082, 0.70710677
    %v7105 = vmul.f32 %v7087, 0.70710677
    %v7106 = vmul.f32 %v7092, 0.70710677
    %v7107 = vmul.f32 %v7097, 0.70710677
    %v7108 = verf.f32.pop %v7104
    %v7109 = verf.f32.pop %v7105
    %v7110 = verf.f32.pop %v7106
    %v7111 = verf.f32.pop %v7107
    %v7112 = vadd.f32 %v7108, 1.0
    %v7113 = vadd.f32 %v7109, 1.0
    %v7114 = vadd.f32 %v7110, 1.0
    %v7115 = vadd.f32 %v7111, 1.0
    %v7116 = vmul.f32 %v7100, %v7112
    %v7117 = vmul.f32 %v7101, %v7113
    %v7118 = vmul.f32 %v7102, %v7114
    %v7119 = vmul.f32 %v7103, %v7115
    %v7120 = vld [vmem:[%s11] sm:$0x1]
    %v7122 = vlaneseq
    %v7123 = vshrl.u32 %v7122, 7
    %v7124 = vsub.s32 0, %v7123
    %v7125 = vrot.slane %v7120, %v7124
    %v7127 = vmul.f32 %v7116, %v7125
    %v7128 = vmul.f32 %v7117, %v7125
    %v7129 = vmul.f32 %v7118, %v7125
    %v7130 = vmul.f32 %v7119, %v7125
    %7131 = vadd.xlane.f32.xlu0 %v7127
    %v7132 = vpop.xlane.xlu0 %7131
    %7133 = vadd.xlane.f32.xlu0 %v7128
    %v7134 = vpop.xlane.xlu0 %7133
    %7135 = vadd.xlane.f32.xlu0 %v7129
    %v7136 = vpop.xlane.xlu0 %7135
    %7137 = vadd.xlane.f32.xlu0 %v7130
    %v7138 = vpop.xlane.xlu0 %7137
    %v7139 = vld [vmem:[#allocation2] sm:$0x1]
    %v7141 = vlaneseq
    %v7142 = vshrl.u32 %v7141, 7
    %v7143 = vsub.s32 0, %v7142
    %v7144 = vrot.slane %v7139, %v7143
    %7145 = vset.pattern.permute.xlu0 0
    %7146 = vperm.xlu0 %7145, %v7144
    %v7147 = vpop.permute.xlu0 %7146
    %v7149 = vadd.f32 %v7132, %v7147
    %v7150 = vadd.f32 %v7134, %v7147
    %v7151 = vadd.f32 %v7136, %v7147
    %v7152 = vadd.f32 %v7138, %v7147
    %v7157 = vlaneseq
    %v7158 = vand.u32 %v7157, 127
    %v7159 = vlaneseq
    %v7160 = vshrl.u32 %v7159, 7
    %v7161 = vsub.s32 %v7158, %v7160
    %v7162 = vrot.slane %v7149, %v7161
    %v7163 = vadd.s32 %v7158, 4294967288
    %v7164 = vlaneseq
    %v7165 = vshrl.u32 %v7164, 7
    %v7166 = vsub.s32 %v7163, %v7165
    %v7167 = vrot.slane %v7150, %v7166
    %vm7168 = vcmask 130112
    %v7169 = vsel %vm7168, %v7167, %v7162
    %v7170 = vlaneseq
    %v7171 = vshrl.u32 %v7170, 7
    %v7172 = vsub.s32 %v7158, %v7171
    %v7173 = vrot.slane %v7151, %v7172
    %v7174 = vlaneseq
    %v7175 = vshrl.u32 %v7174, 7
    %v7176 = vsub.s32 %v7163, %v7175
    %v7177 = vrot.slane %v7152, %v7176
    %v7178 = vsel %vm7168, %v7177, %v7173
    %vm7179 = vcmask 1041409
    %v7180 = vsel %vm7179, %v7178, %v7169
    %vm7182 = vcmask 123904
    %7183 = vst.msk [vmem:[#allocation9] sm:$0x3] %vm7182, %v7180
    // Predicated region
    $region66: #{tpu_custom_call.1} parent=1 // pred_check
      _
    $region67: #{tpu_custom_call.1} parent=1 // pred_check_branch
      %7185 = sbr.rel (0) target = $region69
    $region68: #{tpu_custom_call.1} parent=1 // pred_region
      %s7187 = ssub.s32 32, 32
      %7188 = vsyncadd [#allocation5], %s7187
      %s7190 = sshll.u32 [#allocation9], 4
      %s7191 = int_to_ptr.vmem [resolvable:$true] %s7190
      %7193 = dma.vmem_to_hbm [thread:$0]  %s7191, 32, %s13, [#allocation5]
    $region69: #{tpu_custom_call.1} parent=1 // pred_fallthru
      _
    // Predicated region
    $region70: #{tpu_custom_call.1} parent=1 // pred_check
      _
    $region71: #{tpu_custom_call.1} parent=1 // pred_check_branch
      %7195 = sbr.rel (0) target = $region73
    $region72: #{tpu_custom_call.1} parent=1 // pred_region
      %7196 = dma.done [#allocation5], 32
    $region73: #{tpu_custom_call.1} parent=1 // pred_fallthru
      _
    %7197 = vsyncpa [#allocation4], 1
    %7198 = vsyncpa [#allocation7], 1
    %7199 = vsyncpa [#allocation5], 1

</llo_original>
